<compile_context>
chip_gen: v7x
topology: tpu7x:2x2x1
jax: 0.10.0
libtpu: 0.0.40
codegen_flags: <defaults>
</compile_context>

<pallas_src>
import jax
import jax.numpy as jnp
from jax.experimental import pallas as pl
from jax.experimental.pallas import tpu as pltpu


def discriminator_kernel(
    x_ref,                                     # [T, B, E]       time-major input
    wih0_ref, b0_ref,                          # [E, 8H], [1,8H] layer-0 fwd|bwd input proj
    whh0f_ref, whh0b_ref,                      # [H, 4H] each    layer-0 recurrent weights
    wih1_ref, b1_ref,                          # [2H, 8H], [1,8H] layer-1 fwd|bwd input proj
    whh1f_ref, whh1b_ref,                      # [H, 4H] each    layer-1 recurrent weights
    wfc_ref, bfc_ref,                          # [4H, H], [1, H]
    wout_ref, bout_ref,                        # [H, 128], [1, 128]  (lane-broadcast)
    out_ref,                                   # [B, 128]        lane-dense logit slab
    gx0_ref, gx1_ref, hseq_ref,                # scratch: [T,B,8H], [T,B,8H], [T,B,2H]
):
    T, B, _ = x_ref.shape
    H = whh0f_ref.shape[0]
    G = 4 * H

    # ---- hoisted weight loads (no per-step ref reads inside the loops) ----
    wih0 = wih0_ref[...]
    b0 = b0_ref[...]
    whh0f = whh0f_ref[...]
    whh0b = whh0b_ref[...]
    wih1 = wih1_ref[...]
    b1 = b1_ref[...]
    whh1f = whh1f_ref[...]
    whh1b = whh1b_ref[...]

    def lstm_gates(gates, c):
        # Full-width transcendentals on the [B, 4H] vreg, then narrow slices
        # for the cheap elementwise products (PyTorch gate order i, f, g, o).
        sig = jax.nn.sigmoid(gates)
        th = jnp.tanh(gates)
        i = sig[:, 0:H]
        f = sig[:, H:2 * H]
        g = th[:, 2 * H:3 * H]
        o = sig[:, 3 * H:4 * H]
        c_new = f * c + i * g
        h_new = o * jnp.tanh(c_new)
        return h_new, c_new

    zeros = jnp.zeros((B, H), jnp.float32)

    # ---- layer 0: input projection for all timesteps, both directions ----
    # Independent iterations (off the serial chain) -> pipelined MXU pushes.
    for t in range(T):
        gx0_ref[t] = (
            jnp.dot(x_ref[t], wih0, preferred_element_type=jnp.float32) + b0
        )

    # ---- layer 0: fused forward/backward recurrence ----
    hf, cf, hb, cb = zeros, zeros, zeros, zeros
    for s in range(T):
        tb = T - 1 - s
        gf = gx0_ref[s][:, 0:G] + jnp.dot(
            hf, whh0f, preferred_element_type=jnp.float32)
        gb = gx0_ref[tb][:, G:2 * G] + jnp.dot(
            hb, whh0b, preferred_element_type=jnp.float32)
        hf, cf = lstm_gates(gf, cf)
        hb, cb = lstm_gates(gb, cb)
        hseq_ref[s, :, 0:H] = hf
        hseq_ref[tb, :, H:2 * H] = hb

    # ---- layer 1: input projection for all timesteps, both directions ----
    for t in range(T):
        gx1_ref[t] = (
            jnp.dot(hseq_ref[t], wih1, preferred_element_type=jnp.float32) + b1
        )

    # ---- layer 1: fused forward/backward recurrence (only final h, c kept) ----
    hf, cf, hb, cb = zeros, zeros, zeros, zeros
    for s in range(T):
        tb = T - 1 - s
        gf = gx1_ref[s][:, 0:G] + jnp.dot(
            hf, whh1f, preferred_element_type=jnp.float32)
        gb = gx1_ref[tb][:, G:2 * G] + jnp.dot(
            hb, whh1b, preferred_element_type=jnp.float32)
        hf, cf = lstm_gates(gf, cf)
        hb, cb = lstm_gates(gb, cb)

    # final_state = [h1_fwd | h1_bwd | c1_fwd | c1_bwd]  -> [B, 4H]
    final_state = jnp.concatenate([hf, hb, cf, cb], axis=-1)

    hidden = jnp.maximum(
        jnp.dot(final_state, wfc_ref[...], preferred_element_type=jnp.float32)
        + bfc_ref[...],
        0.0,
    )
    # Lane-dense output: every lane of the [B, 128] slab carries the same logit
    # (wout was pre-broadcast to [H, 128]) -> unmasked full-width store.
    out_ref[...] = (
        jnp.dot(hidden, wout_ref[...], preferred_element_type=jnp.float32)
        + bout_ref[...]
    )


def discriminator_forward(sentences, params):
    """sentences: [B, T, E] (batch-first, like the PyTorch module). Returns [B]."""
    B, T, E = sentences.shape
    H = params["whh0f"].shape[0]
    LANES = 128

    x_tm = jnp.transpose(sentences, (1, 0, 2))  # -> [T, B, E] time-major

    # Concatenate the two directions' input projections / biases along lanes so
    # the kernel does a single projection matmul per timestep per layer.
    wih0 = jnp.concatenate([params["wih0f"], params["wih0b"]], axis=1)   # [E, 8H]
    b0 = jnp.concatenate([params["b0f"], params["b0b"]], axis=1)         # [1, 8H]
    wih1 = jnp.concatenate([params["wih1f"], params["wih1b"]], axis=1)   # [2H, 8H]
    b1 = jnp.concatenate([params["b1f"], params["b1b"]], axis=1)         # [1, 8H]
    wout_wide = jnp.broadcast_to(params["wout"], (H, LANES))             # [H, 128]
    bout_wide = jnp.broadcast_to(params["bout"], (1, LANES))             # [1, 128]

    args = (
        x_tm,
        wih0, b0, params["whh0f"], params["whh0b"],
        wih1, b1, params["whh1f"], params["whh1b"],
        params["wfc"], params["bfc"],
        wout_wide, bout_wide,
    )
    in_specs = [pl.BlockSpec(memory_space=pltpu.MemorySpace.VMEM)] * len(args)

    out = pl.pallas_call(
        discriminator_kernel,
        out_shape=jax.ShapeDtypeStruct((B, LANES), jnp.float32),
        in_specs=in_specs,
        out_specs=pl.BlockSpec(memory_space=pltpu.MemorySpace.VMEM),
        scratch_shapes=[
            pltpu.VMEM((T, B, 8 * H), jnp.float32),   # layer-0 input projections (fwd|bwd)
            pltpu.VMEM((T, B, 8 * H), jnp.float32),   # layer-1 input projections (fwd|bwd)
            pltpu.VMEM((T, B, 2 * H), jnp.float32),   # layer-0 hidden sequence  (fwd|bwd)
        ],
    )(*args)
    return out[:, 0]


def init_params(key, E, H):
    """Deterministic PyTorch-style init. LSTM weights pre-transposed to [in, 4H]."""
    keys = jax.random.split(key, 20)
    it = iter(keys)

    def u(shape, fan_in):
        bound = 1.0 / float(fan_in) ** 0.5
        return jax.random.uniform(next(it), shape, jnp.float32, -bound, bound)

    p = {}
    # layer 0 (input size E), layer 1 (input size 2H); biases = b_ih + b_hh
    for name, din in (("0f", E), ("0b", E), ("1f", 2 * H), ("1b", 2 * H)):
        p["wih" + name] = u((din, 4 * H), H)
        p["whh" + name] = u((H, 4 * H), H)
        p["b" + name] = u((1, 4 * H), H) + u((1, 4 * H), H)
    p["wfc"] = u((4 * H, H), 4 * H)
    p["bfc"] = u((1, H), 4 * H)
    p["wout"] = u((H, 1), H)
    p["bout"] = u((1, 1), H)
    return p


def ref_forward(x, p):
    """Pure-JAX reference of the same forward pass (for verification)."""
    B, T, E = x.shape
    H = p["whh0f"].shape[0]

    def run_dir(xs, wih, whh, b, reverse):
        h = jnp.zeros((B, H), jnp.float32)
        c = jnp.zeros((B, H), jnp.float32)
        outs = [None] * T
        order = range(T - 1, -1, -1) if reverse else range(T)
        for t in order:
            g = xs[:, t, :] @ wih + h @ whh + b
            i = jax.nn.sigmoid(g[:, :H])
            f = jax.nn.sigmoid(g[:, H:2 * H])
            gg = jnp.tanh(g[:, 2 * H:3 * H])
            o = jax.nn.sigmoid(g[:, 3 * H:])
            c = f * c + i * gg
            h = o * jnp.tanh(c)
            outs[t] = h
        return jnp.stack(outs, axis=1), h, c

    of, _, _ = run_dir(x, p["wih0f"], p["whh0f"], p["b0f"], False)
    ob, _, _ = run_dir(x, p["wih0b"], p["whh0b"], p["b0b"], True)
    x1 = jnp.concatenate([of, ob], axis=-1)
    _, h1f, c1f = run_dir(x1, p["wih1f"], p["whh1f"], p["b1f"], False)
    _, h1b, c1b = run_dir(x1, p["wih1b"], p["whh1b"], p["b1b"], True)
    final = jnp.concatenate([h1f, h1b, c1f, c1b], axis=-1)
    hid = jnp.maximum(final @ p["wfc"] + p["bfc"], 0.0)
    return jnp.squeeze(hid @ p["wout"] + p["bout"], axis=1)


if __name__ == "__main__":
    # small shapes: batch=2, seq_len=8, word_embed_size=32, discriminator_rnn_size=32
    B, T, E, H = 2, 8, 32, 32
    key = jax.random.PRNGKey(0)
    k_x, k_p = jax.random.split(key)

    sentences = jax.random.normal(k_x, (B, T, E), jnp.float32)
    params = init_params(k_p, E, H)

    y = discriminator_forward(sentences, params)
    y = jax.block_until_ready(y)
    assert y.shape == (B,), y.shape

    y_ref = jax.block_until_ready(ref_forward(sentences, params))
    assert jnp.allclose(y, y_ref, rtol=1e-3, atol=1e-3), (y, y_ref)

    print("KERNEL_OK")
</pallas_src>

<mosaic_0001>
module attributes {stable_mosaic.version = 11 : i64} {
  func.func @discriminator_kernel(%arg0: memref<8x2x32xf32, #tpu.memory_space<vmem>>, %arg1: memref<32x256xf32, #tpu.memory_space<vmem>>, %arg2: memref<1x256xf32, #tpu.memory_space<vmem>>, %arg3: memref<32x128xf32, #tpu.memory_space<vmem>>, %arg4: memref<32x128xf32, #tpu.memory_space<vmem>>, %arg5: memref<64x256xf32, #tpu.memory_space<vmem>>, %arg6: memref<1x256xf32, #tpu.memory_space<vmem>>, %arg7: memref<32x128xf32, #tpu.memory_space<vmem>>, %arg8: memref<32x128xf32, #tpu.memory_space<vmem>>, %arg9: memref<128x32xf32, #tpu.memory_space<vmem>>, %arg10: memref<1x32xf32, #tpu.memory_space<vmem>>, %arg11: memref<32x128xf32, #tpu.memory_space<vmem>>, %arg12: memref<1x128xf32, #tpu.memory_space<vmem>>, %arg13: memref<2x128xf32, #tpu.memory_space<vmem>>, %arg14: memref<8x2x256xf32, #tpu.memory_space<vmem>>, %arg15: memref<8x2x256xf32, #tpu.memory_space<vmem>>, %arg16: memref<8x2x64xf32, #tpu.memory_space<vmem>>) attributes {dimension_semantics = [], scalar_prefetch = 0 : i64, scratch_operands = 3 : i64, tpu.core_type = #tpu.core_type<tc>} {
    %c0 = arith.constant 0 : index
    %c0_0 = arith.constant 0 : index
    %0 = vector.load %arg1[%c0, %c0_0] : memref<32x256xf32, #tpu.memory_space<vmem>>, vector<32x256xf32>
    %c0_1 = arith.constant 0 : index
    %c0_2 = arith.constant 0 : index
    %1 = vector.load %arg2[%c0_1, %c0_2] : memref<1x256xf32, #tpu.memory_space<vmem>>, vector<1x256xf32>
    %c0_3 = arith.constant 0 : index
    %c0_4 = arith.constant 0 : index
    %2 = vector.load %arg3[%c0_3, %c0_4] : memref<32x128xf32, #tpu.memory_space<vmem>>, vector<32x128xf32>
    %c0_5 = arith.constant 0 : index
    %c0_6 = arith.constant 0 : index
    %3 = vector.load %arg4[%c0_5, %c0_6] : memref<32x128xf32, #tpu.memory_space<vmem>>, vector<32x128xf32>
    %c0_7 = arith.constant 0 : index
    %c0_8 = arith.constant 0 : index
    %4 = vector.load %arg5[%c0_7, %c0_8] : memref<64x256xf32, #tpu.memory_space<vmem>>, vector<64x256xf32>
    %c0_9 = arith.constant 0 : index
    %c0_10 = arith.constant 0 : index
    %5 = vector.load %arg6[%c0_9, %c0_10] : memref<1x256xf32, #tpu.memory_space<vmem>>, vector<1x256xf32>
    %c0_11 = arith.constant 0 : index
    %c0_12 = arith.constant 0 : index
    %6 = vector.load %arg7[%c0_11, %c0_12] : memref<32x128xf32, #tpu.memory_space<vmem>>, vector<32x128xf32>
    %c0_13 = arith.constant 0 : index
    %c0_14 = arith.constant 0 : index
    %7 = vector.load %arg8[%c0_13, %c0_14] : memref<32x128xf32, #tpu.memory_space<vmem>>, vector<32x128xf32>
    %cst = arith.constant 0.000000e+00 : f32
    %8 = vector.broadcast %cst : f32 to vector<2x32xf32>
    %c0_15 = arith.constant 0 : index
    %c0_16 = arith.constant 0 : index
    %c0_17 = arith.constant 0 : index
    %9 = vector.load %arg0[%c0_15, %c0_16, %c0_17] : memref<8x2x32xf32, #tpu.memory_space<vmem>>, vector<1x2x32xf32>
    %10 = vector.shape_cast %9 : vector<1x2x32xf32> to vector<2x32xf32>
    %cst_18 = arith.constant dense<0.000000e+00> : vector<2x256xf32>
    %11 = tpu.matmul %10, %0, %cst_18 {dimension_numbers = #tpu.dot_dimension_numbers<[1], [0], [0], [1], [0, 0, 1, 1], [], []>} : vector<2x32xf32>, vector<32x256xf32>, vector<2x256xf32> -> vector<2x256xf32>
    %12 = vector.broadcast %1 : vector<1x256xf32> to vector<2x256xf32>
    %13 = arith.addf %11, %12 : vector<2x256xf32>
    %c0_19 = arith.constant 0 : index
    %c0_20 = arith.constant 0 : index
    %c0_21 = arith.constant 0 : index
    %14 = vector.load %arg14[%c0_19, %c0_20, %c0_21] : memref<8x2x256xf32, #tpu.memory_space<vmem>>, vector<1x2x256xf32>
    %15 = vector.shape_cast %14 : vector<1x2x256xf32> to vector<2x256xf32>
    %16 = vector.shape_cast %13 : vector<2x256xf32> to vector<1x2x256xf32>
    tpu.vector_store %arg14[%c0_19, %c0_20, %c0_21], %16 {strides = array<i32>} : memref<8x2x256xf32, #tpu.memory_space<vmem>>, vector<1x2x256xf32>,
    %c1 = arith.constant 1 : index
    %c0_22 = arith.constant 0 : index
    %c0_23 = arith.constant 0 : index
    %17 = vector.load %arg0[%c1, %c0_22, %c0_23] : memref<8x2x32xf32, #tpu.memory_space<vmem>>, vector<1x2x32xf32>
    %18 = vector.shape_cast %17 : vector<1x2x32xf32> to vector<2x32xf32>
    %cst_24 = arith.constant dense<0.000000e+00> : vector<2x256xf32>
    %19 = tpu.matmul %18, %0, %cst_24 {dimension_numbers = #tpu.dot_dimension_numbers<[1], [0], [0], [1], [0, 0, 1, 1], [], []>} : vector<2x32xf32>, vector<32x256xf32>, vector<2x256xf32> -> vector<2x256xf32>
    %20 = vector.broadcast %1 : vector<1x256xf32> to vector<2x256xf32>
    %21 = arith.addf %19, %20 : vector<2x256xf32>
    %c1_25 = arith.constant 1 : index
    %c0_26 = arith.constant 0 : index
    %c0_27 = arith.constant 0 : index
    %22 = vector.load %arg14[%c1_25, %c0_26, %c0_27] : memref<8x2x256xf32, #tpu.memory_space<vmem>>, vector<1x2x256xf32>
    %23 = vector.shape_cast %22 : vector<1x2x256xf32> to vector<2x256xf32>
    %24 = vector.shape_cast %21 : vector<2x256xf32> to vector<1x2x256xf32>
    tpu.vector_store %arg14[%c1_25, %c0_26, %c0_27], %24 {strides = array<i32>} : memref<8x2x256xf32, #tpu.memory_space<vmem>>, vector<1x2x256xf32>,
    %c2 = arith.constant 2 : index
    %c0_28 = arith.constant 0 : index
    %c0_29 = arith.constant 0 : index
    %25 = vector.load %arg0[%c2, %c0_28, %c0_29] : memref<8x2x32xf32, #tpu.memory_space<vmem>>, vector<1x2x32xf32>
    %26 = vector.shape_cast %25 : vector<1x2x32xf32> to vector<2x32xf32>
    %cst_30 = arith.constant dense<0.000000e+00> : vector<2x256xf32>
    %27 = tpu.matmul %26, %0, %cst_30 {dimension_numbers = #tpu.dot_dimension_numbers<[1], [0], [0], [1], [0, 0, 1, 1], [], []>} : vector<2x32xf32>, vector<32x256xf32>, vector<2x256xf32> -> vector<2x256xf32>
    %28 = vector.broadcast %1 : vector<1x256xf32> to vector<2x256xf32>
    %29 = arith.addf %27, %28 : vector<2x256xf32>
    %c2_31 = arith.constant 2 : index
    %c0_32 = arith.constant 0 : index
    %c0_33 = arith.constant 0 : index
    %30 = vector.load %arg14[%c2_31, %c0_32, %c0_33] : memref<8x2x256xf32, #tpu.memory_space<vmem>>, vector<1x2x256xf32>
    %31 = vector.shape_cast %30 : vector<1x2x256xf32> to vector<2x256xf32>
    %32 = vector.shape_cast %29 : vector<2x256xf32> to vector<1x2x256xf32>
    tpu.vector_store %arg14[%c2_31, %c0_32, %c0_33], %32 {strides = array<i32>} : memref<8x2x256xf32, #tpu.memory_space<vmem>>, vector<1x2x256xf32>,
    %c3 = arith.constant 3 : index
    %c0_34 = arith.constant 0 : index
    %c0_35 = arith.constant 0 : index
    %33 = vector.load %arg0[%c3, %c0_34, %c0_35] : memref<8x2x32xf32, #tpu.memory_space<vmem>>, vector<1x2x32xf32>
    %34 = vector.shape_cast %33 : vector<1x2x32xf32> to vector<2x32xf32>
    %cst_36 = arith.constant dense<0.000000e+00> : vector<2x256xf32>
    %35 = tpu.matmul %34, %0, %cst_36 {dimension_numbers = #tpu.dot_dimension_numbers<[1], [0], [0], [1], [0, 0, 1, 1], [], []>} : vector<2x32xf32>, vector<32x256xf32>, vector<2x256xf32> -> vector<2x256xf32>
    %36 = vector.broadcast %1 : vector<1x256xf32> to vector<2x256xf32>
    %37 = arith.addf %35, %36 : vector<2x256xf32>
    %c3_37 = arith.constant 3 : index
    %c0_38 = arith.constant 0 : index
    %c0_39 = arith.constant 0 : index
    %38 = vector.load %arg14[%c3_37, %c0_38, %c0_39] : memref<8x2x256xf32, #tpu.memory_space<vmem>>, vector<1x2x256xf32>
    %39 = vector.shape_cast %38 : vector<1x2x256xf32> to vector<2x256xf32>
    %40 = vector.shape_cast %37 : vector<2x256xf32> to vector<1x2x256xf32>
    tpu.vector_store %arg14[%c3_37, %c0_38, %c0_39], %40 {strides = array<i32>} : memref<8x2x256xf32, #tpu.memory_space<vmem>>, vector<1x2x256xf32>,
    %c4 = arith.constant 4 : index
    %c0_40 = arith.constant 0 : index
    %c0_41 = arith.constant 0 : index
    %41 = vector.load %arg0[%c4, %c0_40, %c0_41] : memref<8x2x32xf32, #tpu.memory_space<vmem>>, vector<1x2x32xf32>
    %42 = vector.shape_cast %41 : vector<1x2x32xf32> to vector<2x32xf32>
    %cst_42 = arith.constant dense<0.000000e+00> : vector<2x256xf32>
    %43 = tpu.matmul %42, %0, %cst_42 {dimension_numbers = #tpu.dot_dimension_numbers<[1], [0], [0], [1], [0, 0, 1, 1], [], []>} : vector<2x32xf32>, vector<32x256xf32>, vector<2x256xf32> -> vector<2x256xf32>
    %44 = vector.broadcast %1 : vector<1x256xf32> to vector<2x256xf32>
    %45 = arith.addf %43, %44 : vector<2x256xf32>
    %c4_43 = arith.constant 4 : index
    %c0_44 = arith.constant 0 : index
    %c0_45 = arith.constant 0 : index
    %46 = vector.load %arg14[%c4_43, %c0_44, %c0_45] : memref<8x2x256xf32, #tpu.memory_space<vmem>>, vector<1x2x256xf32>
    %47 = vector.shape_cast %46 : vector<1x2x256xf32> to vector<2x256xf32>
    %48 = vector.shape_cast %45 : vector<2x256xf32> to vector<1x2x256xf32>
    tpu.vector_store %arg14[%c4_43, %c0_44, %c0_45], %48 {strides = array<i32>} : memref<8x2x256xf32, #tpu.memory_space<vmem>>, vector<1x2x256xf32>,
    %c5 = arith.constant 5 : index
    %c0_46 = arith.constant 0 : index
    %c0_47 = arith.constant 0 : index
    %49 = vector.load %arg0[%c5, %c0_46, %c0_47] : memref<8x2x32xf32, #tpu.memory_space<vmem>>, vector<1x2x32xf32>
    %50 = vector.shape_cast %49 : vector<1x2x32xf32> to vector<2x32xf32>
    %cst_48 = arith.constant dense<0.000000e+00> : vector<2x256xf32>
    %51 = tpu.matmul %50, %0, %cst_48 {dimension_numbers = #tpu.dot_dimension_numbers<[1], [0], [0], [1], [0, 0, 1, 1], [], []>} : vector<2x32xf32>, vector<32x256xf32>, vector<2x256xf32> -> vector<2x256xf32>
    %52 = vector.broadcast %1 : vector<1x256xf32> to vector<2x256xf32>
    %53 = arith.addf %51, %52 : vector<2x256xf32>
    %c5_49 = arith.constant 5 : index
    %c0_50 = arith.constant 0 : index
    %c0_51 = arith.constant 0 : index
    %54 = vector.load %arg14[%c5_49, %c0_50, %c0_51] : memref<8x2x256xf32, #tpu.memory_space<vmem>>, vector<1x2x256xf32>
    %55 = vector.shape_cast %54 : vector<1x2x256xf32> to vector<2x256xf32>
    %56 = vector.shape_cast %53 : vector<2x256xf32> to vector<1x2x256xf32>
    tpu.vector_store %arg14[%c5_49, %c0_50, %c0_51], %56 {strides = array<i32>} : memref<8x2x256xf32, #tpu.memory_space<vmem>>, vector<1x2x256xf32>,
    %c6 = arith.constant 6 : index
    %c0_52 = arith.constant 0 : index
    %c0_53 = arith.constant 0 : index
    %57 = vector.load %arg0[%c6, %c0_52, %c0_53] : memref<8x2x32xf32, #tpu.memory_space<vmem>>, vector<1x2x32xf32>
    %58 = vector.shape_cast %57 : vector<1x2x32xf32> to vector<2x32xf32>
    %cst_54 = arith.constant dense<0.000000e+00> : vector<2x256xf32>
    %59 = tpu.matmul %58, %0, %cst_54 {dimension_numbers = #tpu.dot_dimension_numbers<[1], [0], [0], [1], [0, 0, 1, 1], [], []>} : vector<2x32xf32>, vector<32x256xf32>, vector<2x256xf32> -> vector<2x256xf32>
    %60 = vector.broadcast %1 : vector<1x256xf32> to vector<2x256xf32>
    %61 = arith.addf %59, %60 : vector<2x256xf32>
    %c6_55 = arith.constant 6 : index
    %c0_56 = arith.constant 0 : index
    %c0_57 = arith.constant 0 : index
    %62 = vector.load %arg14[%c6_55, %c0_56, %c0_57] : memref<8x2x256xf32, #tpu.memory_space<vmem>>, vector<1x2x256xf32>
    %63 = vector.shape_cast %62 : vector<1x2x256xf32> to vector<2x256xf32>
    %64 = vector.shape_cast %61 : vector<2x256xf32> to vector<1x2x256xf32>
    tpu.vector_store %arg14[%c6_55, %c0_56, %c0_57], %64 {strides = array<i32>} : memref<8x2x256xf32, #tpu.memory_space<vmem>>, vector<1x2x256xf32>,
    %c7 = arith.constant 7 : index
    %c0_58 = arith.constant 0 : index
    %c0_59 = arith.constant 0 : index
    %65 = vector.load %arg0[%c7, %c0_58, %c0_59] : memref<8x2x32xf32, #tpu.memory_space<vmem>>, vector<1x2x32xf32>
    %66 = vector.shape_cast %65 : vector<1x2x32xf32> to vector<2x32xf32>
    %cst_60 = arith.constant dense<0.000000e+00> : vector<2x256xf32>
    %67 = tpu.matmul %66, %0, %cst_60 {dimension_numbers = #tpu.dot_dimension_numbers<[1], [0], [0], [1], [0, 0, 1, 1], [], []>} : vector<2x32xf32>, vector<32x256xf32>, vector<2x256xf32> -> vector<2x256xf32>
    %68 = vector.broadcast %1 : vector<1x256xf32> to vector<2x256xf32>
    %69 = arith.addf %67, %68 : vector<2x256xf32>
    %c7_61 = arith.constant 7 : index
    %c0_62 = arith.constant 0 : index
    %c0_63 = arith.constant 0 : index
    %70 = vector.load %arg14[%c7_61, %c0_62, %c0_63] : memref<8x2x256xf32, #tpu.memory_space<vmem>>, vector<1x2x256xf32>
    %71 = vector.shape_cast %70 : vector<1x2x256xf32> to vector<2x256xf32>
    %72 = vector.shape_cast %69 : vector<2x256xf32> to vector<1x2x256xf32>
    tpu.vector_store %arg14[%c7_61, %c0_62, %c0_63], %72 {strides = array<i32>} : memref<8x2x256xf32, #tpu.memory_space<vmem>>, vector<1x2x256xf32>,
    %c0_64 = arith.constant 0 : index
    %c0_65 = arith.constant 0 : index
    %c0_66 = arith.constant 0 : index
    %73 = vector.load %arg14[%c0_64, %c0_65, %c0_66] : memref<8x2x256xf32, #tpu.memory_space<vmem>>, vector<1x2x256xf32>
    %74 = vector.shape_cast %73 : vector<1x2x256xf32> to vector<2x256xf32>
    %75 = vector.extract_strided_slice %74 {offsets = [0, 0], sizes = [2, 128], strides = [1, 1]} : vector<2x256xf32> to vector<2x128xf32>
    %cst_67 = arith.constant dense<0.000000e+00> : vector<2x128xf32>
    %76 = tpu.matmul %8, %2, %cst_67 {dimension_numbers = #tpu.dot_dimension_numbers<[1], [0], [0], [1], [0, 0, 1, 1], [], []>} : vector<2x32xf32>, vector<32x128xf32>, vector<2x128xf32> -> vector<2x128xf32>
    %77 = arith.addf %75, %76 : vector<2x128xf32>
    %c7_68 = arith.constant 7 : index
    %c0_69 = arith.constant 0 : index
    %c0_70 = arith.constant 0 : index
    %78 = vector.load %arg14[%c7_68, %c0_69, %c0_70] : memref<8x2x256xf32, #tpu.memory_space<vmem>>, vector<1x2x256xf32>
    %79 = vector.shape_cast %78 : vector<1x2x256xf32> to vector<2x256xf32>
    %80 = vector.extract_strided_slice %79 {offsets = [0, 128], sizes = [2, 128], strides = [1, 1]} : vector<2x256xf32> to vector<2x128xf32>
    %cst_71 = arith.constant dense<0.000000e+00> : vector<2x128xf32>
    %81 = tpu.matmul %8, %3, %cst_71 {dimension_numbers = #tpu.dot_dimension_numbers<[1], [0], [0], [1], [0, 0, 1, 1], [], []>} : vector<2x32xf32>, vector<32x128xf32>, vector<2x128xf32> -> vector<2x128xf32>
    %82 = arith.addf %80, %81 : vector<2x128xf32>
    %83 = arith.negf %77 : vector<2x128xf32>
    %84 = math.exp %83 : vector<2x128xf32>
    %cst_72 = arith.constant 1.000000e+00 : f32
    %85 = vector.broadcast %cst_72 : f32 to vector<2x128xf32>
    %86 = arith.addf %85, %84 : vector<2x128xf32>
    %87 = arith.divf %85, %86 : vector<2x128xf32>
    %88 = math.tanh %77 : vector<2x128xf32>
    %89 = vector.extract_strided_slice %87 {offsets = [0, 0], sizes = [2, 32], strides = [1, 1]} : vector<2x128xf32> to vector<2x32xf32>
    %90 = vector.extract_strided_slice %87 {offsets = [0, 32], sizes = [2, 32], strides = [1, 1]} : vector<2x128xf32> to vector<2x32xf32>
    %91 = vector.extract_strided_slice %88 {offsets = [0, 64], sizes = [2, 32], strides = [1, 1]} : vector<2x128xf32> to vector<2x32xf32>
    %92 = vector.extract_strided_slice %87 {offsets = [0, 96], sizes = [2, 32], strides = [1, 1]} : vector<2x128xf32> to vector<2x32xf32>
    %93 = arith.mulf %90, %8 : vector<2x32xf32>
    %94 = arith.mulf %89, %91 : vector<2x32xf32>
    %95 = arith.addf %93, %94 : vector<2x32xf32>
    %96 = math.tanh %95 : vector<2x32xf32>
    %97 = arith.mulf %92, %96 : vector<2x32xf32>
    %98 = arith.negf %82 : vector<2x128xf32>
    %99 = math.exp %98 : vector<2x128xf32>
    %cst_73 = arith.constant 1.000000e+00 : f32
    %100 = vector.broadcast %cst_73 : f32 to vector<2x128xf32>
    %101 = arith.addf %100, %99 : vector<2x128xf32>
    %102 = arith.divf %100, %101 : vector<2x128xf32>
    %103 = math.tanh %82 : vector<2x128xf32>
    %104 = vector.extract_strided_slice %102 {offsets = [0, 0], sizes = [2, 32], strides = [1, 1]} : vector<2x128xf32> to vector<2x32xf32>
    %105 = vector.extract_strided_slice %102 {offsets = [0, 32], sizes = [2, 32], strides = [1, 1]} : vector<2x128xf32> to vector<2x32xf32>
    %106 = vector.extract_strided_slice %103 {offsets = [0, 64], sizes = [2, 32], strides = [1, 1]} : vector<2x128xf32> to vector<2x32xf32>
    %107 = vector.extract_strided_slice %102 {offsets = [0, 96], sizes = [2, 32], strides = [1, 1]} : vector<2x128xf32> to vector<2x32xf32>
    %108 = arith.mulf %105, %8 : vector<2x32xf32>
    %109 = arith.mulf %104, %106 : vector<2x32xf32>
    %110 = arith.addf %108, %109 : vector<2x32xf32>
    %111 = math.tanh %110 : vector<2x32xf32>
    %112 = arith.mulf %107, %111 : vector<2x32xf32>
    %c0_74 = arith.constant 0 : index
    %c0_75 = arith.constant 0 : index
    %c0_76 = arith.constant 0 : index
    %113 = vector.load %arg16[%c0_74, %c0_75, %c0_76] : memref<8x2x64xf32, #tpu.memory_space<vmem>>, vector<1x2x32xf32>
    %114 = vector.shape_cast %113 : vector<1x2x32xf32> to vector<2x32xf32>
    %115 = vector.shape_cast %97 : vector<2x32xf32> to vector<1x2x32xf32>
    tpu.vector_store %arg16[%c0_74, %c0_75, %c0_76], %115 {strides = array<i32>} : memref<8x2x64xf32, #tpu.memory_space<vmem>>, vector<1x2x32xf32>,
    %c7_77 = arith.constant 7 : index
    %c0_78 = arith.constant 0 : index
    %c32 = arith.constant 32 : index
    %116 = vector.load %arg16[%c7_77, %c0_78, %c32] : memref<8x2x64xf32, #tpu.memory_space<vmem>>, vector<1x2x32xf32>
    %117 = vector.shape_cast %116 : vector<1x2x32xf32> to vector<2x32xf32>
    %118 = vector.shape_cast %112 : vector<2x32xf32> to vector<1x2x32xf32>
    tpu.vector_store %arg16[%c7_77, %c0_78, %c32], %118 {strides = array<i32>} : memref<8x2x64xf32, #tpu.memory_space<vmem>>, vector<1x2x32xf32>,
    %c1_79 = arith.constant 1 : index
    %c0_80 = arith.constant 0 : index
    %c0_81 = arith.constant 0 : index
    %119 = vector.load %arg14[%c1_79, %c0_80, %c0_81] : memref<8x2x256xf32, #tpu.memory_space<vmem>>, vector<1x2x256xf32>
    %120 = vector.shape_cast %119 : vector<1x2x256xf32> to vector<2x256xf32>
    %121 = vector.extract_strided_slice %120 {offsets = [0, 0], sizes = [2, 128], strides = [1, 1]} : vector<2x256xf32> to vector<2x128xf32>
    %cst_82 = arith.constant dense<0.000000e+00> : vector<2x128xf32>
    %122 = tpu.matmul %97, %2, %cst_82 {dimension_numbers = #tpu.dot_dimension_numbers<[1], [0], [0], [1], [0, 0, 1, 1], [], []>} : vector<2x32xf32>, vector<32x128xf32>, vector<2x128xf32> -> vector<2x128xf32>
    %123 = arith.addf %121, %122 : vector<2x128xf32>
    %c6_83 = arith.constant 6 : index
    %c0_84 = arith.constant 0 : index
    %c0_85 = arith.constant 0 : index
    %124 = vector.load %arg14[%c6_83, %c0_84, %c0_85] : memref<8x2x256xf32, #tpu.memory_space<vmem>>, vector<1x2x256xf32>
    %125 = vector.shape_cast %124 : vector<1x2x256xf32> to vector<2x256xf32>
    %126 = vector.extract_strided_slice %125 {offsets = [0, 128], sizes = [2, 128], strides = [1, 1]} : vector<2x256xf32> to vector<2x128xf32>
    %cst_86 = arith.constant dense<0.000000e+00> : vector<2x128xf32>
    %127 = tpu.matmul %112, %3, %cst_86 {dimension_numbers = #tpu.dot_dimension_numbers<[1], [0], [0], [1], [0, 0, 1, 1], [], []>} : vector<2x32xf32>, vector<32x128xf32>, vector<2x128xf32> -> vector<2x128xf32>
    %128 = arith.addf %126, %127 : vector<2x128xf32>
    %129 = arith.negf %123 : vector<2x128xf32>
    %130 = math.exp %129 : vector<2x128xf32>
    %cst_87 = arith.constant 1.000000e+00 : f32
    %131 = vector.broadcast %cst_87 : f32 to vector<2x128xf32>
    %132 = arith.addf %131, %130 : vector<2x128xf32>
    %133 = arith.divf %131, %132 : vector<2x128xf32>
    %134 = math.tanh %123 : vector<2x128xf32>
    %135 = vector.extract_strided_slice %133 {offsets = [0, 0], sizes = [2, 32], strides = [1, 1]} : vector<2x128xf32> to vector<2x32xf32>
    %136 = vector.extract_strided_slice %133 {offsets = [0, 32], sizes = [2, 32], strides = [1, 1]} : vector<2x128xf32> to vector<2x32xf32>
    %137 = vector.extract_strided_slice %134 {offsets = [0, 64], sizes = [2, 32], strides = [1, 1]} : vector<2x128xf32> to vector<2x32xf32>
    %138 = vector.extract_strided_slice %133 {offsets = [0, 96], sizes = [2, 32], strides = [1, 1]} : vector<2x128xf32> to vector<2x32xf32>
    %139 = arith.mulf %136, %95 : vector<2x32xf32>
    %140 = arith.mulf %135, %137 : vector<2x32xf32>
    %141 = arith.addf %139, %140 : vector<2x32xf32>
    %142 = math.tanh %141 : vector<2x32xf32>
    %143 = arith.mulf %138, %142 : vector<2x32xf32>
    %144 = arith.negf %128 : vector<2x128xf32>
    %145 = math.exp %144 : vector<2x128xf32>
    %cst_88 = arith.constant 1.000000e+00 : f32
    %146 = vector.broadcast %cst_88 : f32 to vector<2x128xf32>
    %147 = arith.addf %146, %145 : vector<2x128xf32>
    %148 = arith.divf %146, %147 : vector<2x128xf32>
    %149 = math.tanh %128 : vector<2x128xf32>
    %150 = vector.extract_strided_slice %148 {offsets = [0, 0], sizes = [2, 32], strides = [1, 1]} : vector<2x128xf32> to vector<2x32xf32>
    %151 = vector.extract_strided_slice %148 {offsets = [0, 32], sizes = [2, 32], strides = [1, 1]} : vector<2x128xf32> to vector<2x32xf32>
    %152 = vector.extract_strided_slice %149 {offsets = [0, 64], sizes = [2, 32], strides = [1, 1]} : vector<2x128xf32> to vector<2x32xf32>
    %153 = vector.extract_strided_slice %148 {offsets = [0, 96], sizes = [2, 32], strides = [1, 1]} : vector<2x128xf32> to vector<2x32xf32>
    %154 = arith.mulf %151, %110 : vector<2x32xf32>
    %155 = arith.mulf %150, %152 : vector<2x32xf32>
    %156 = arith.addf %154, %155 : vector<2x32xf32>
    %157 = math.tanh %156 : vector<2x32xf32>
    %158 = arith.mulf %153, %157 : vector<2x32xf32>
    %c1_89 = arith.constant 1 : index
    %c0_90 = arith.constant 0 : index
    %c0_91 = arith.constant 0 : index
    %159 = vector.load %arg16[%c1_89, %c0_90, %c0_91] : memref<8x2x64xf32, #tpu.memory_space<vmem>>, vector<1x2x32xf32>
    %160 = vector.shape_cast %159 : vector<1x2x32xf32> to vector<2x32xf32>
    %161 = vector.shape_cast %143 : vector<2x32xf32> to vector<1x2x32xf32>
    tpu.vector_store %arg16[%c1_89, %c0_90, %c0_91], %161 {strides = array<i32>} : memref<8x2x64xf32, #tpu.memory_space<vmem>>, vector<1x2x32xf32>,
    %c6_92 = arith.constant 6 : index
    %c0_93 = arith.constant 0 : index
    %c32_94 = arith.constant 32 : index
    %162 = vector.load %arg16[%c6_92, %c0_93, %c32_94] : memref<8x2x64xf32, #tpu.memory_space<vmem>>, vector<1x2x32xf32>
    %163 = vector.shape_cast %162 : vector<1x2x32xf32> to vector<2x32xf32>
    %164 = vector.shape_cast %158 : vector<2x32xf32> to vector<1x2x32xf32>
    tpu.vector_store %arg16[%c6_92, %c0_93, %c32_94], %164 {strides = array<i32>} : memref<8x2x64xf32, #tpu.memory_space<vmem>>, vector<1x2x32xf32>,
    %c2_95 = arith.constant 2 : index
    %c0_96 = arith.constant 0 : index
    %c0_97 = arith.constant 0 : index
    %165 = vector.load %arg14[%c2_95, %c0_96, %c0_97] : memref<8x2x256xf32, #tpu.memory_space<vmem>>, vector<1x2x256xf32>
    %166 = vector.shape_cast %165 : vector<1x2x256xf32> to vector<2x256xf32>
    %167 = vector.extract_strided_slice %166 {offsets = [0, 0], sizes = [2, 128], strides = [1, 1]} : vector<2x256xf32> to vector<2x128xf32>
    %cst_98 = arith.constant dense<0.000000e+00> : vector<2x128xf32>
    %168 = tpu.matmul %143, %2, %cst_98 {dimension_numbers = #tpu.dot_dimension_numbers<[1], [0], [0], [1], [0, 0, 1, 1], [], []>} : vector<2x32xf32>, vector<32x128xf32>, vector<2x128xf32> -> vector<2x128xf32>
    %169 = arith.addf %167, %168 : vector<2x128xf32>
    %c5_99 = arith.constant 5 : index
    %c0_100 = arith.constant 0 : index
    %c0_101 = arith.constant 0 : index
    %170 = vector.load %arg14[%c5_99, %c0_100, %c0_101] : memref<8x2x256xf32, #tpu.memory_space<vmem>>, vector<1x2x256xf32>
    %171 = vector.shape_cast %170 : vector<1x2x256xf32> to vector<2x256xf32>
    %172 = vector.extract_strided_slice %171 {offsets = [0, 128], sizes = [2, 128], strides = [1, 1]} : vector<2x256xf32> to vector<2x128xf32>
    %cst_102 = arith.constant dense<0.000000e+00> : vector<2x128xf32>
    %173 = tpu.matmul %158, %3, %cst_102 {dimension_numbers = #tpu.dot_dimension_numbers<[1], [0], [0], [1], [0, 0, 1, 1], [], []>} : vector<2x32xf32>, vector<32x128xf32>, vector<2x128xf32> -> vector<2x128xf32>
    %174 = arith.addf %172, %173 : vector<2x128xf32>
    %175 = arith.negf %169 : vector<2x128xf32>
    %176 = math.exp %175 : vector<2x128xf32>
    %cst_103 = arith.constant 1.000000e+00 : f32
    %177 = vector.broadcast %cst_103 : f32 to vector<2x128xf32>
    %178 = arith.addf %177, %176 : vector<2x128xf32>
    %179 = arith.divf %177, %178 : vector<2x128xf32>
    %180 = math.tanh %169 : vector<2x128xf32>
    %181 = vector.extract_strided_slice %179 {offsets = [0, 0], sizes = [2, 32], strides = [1, 1]} : vector<2x128xf32> to vector<2x32xf32>
    %182 = vector.extract_strided_slice %179 {offsets = [0, 32], sizes = [2, 32], strides = [1, 1]} : vector<2x128xf32> to vector<2x32xf32>
    %183 = vector.extract_strided_slice %180 {offsets = [0, 64], sizes = [2, 32], strides = [1, 1]} : vector<2x128xf32> to vector<2x32xf32>
    %184 = vector.extract_strided_slice %179 {offsets = [0, 96], sizes = [2, 32], strides = [1, 1]} : vector<2x128xf32> to vector<2x32xf32>
    %185 = arith.mulf %182, %141 : vector<2x32xf32>
    %186 = arith.mulf %181, %183 : vector<2x32xf32>
    %187 = arith.addf %185, %186 : vector<2x32xf32>
    %188 = math.tanh %187 : vector<2x32xf32>
    %189 = arith.mulf %184, %188 : vector<2x32xf32>
    %190 = arith.negf %174 : vector<2x128xf32>
    %191 = math.exp %190 : vector<2x128xf32>
    %cst_104 = arith.constant 1.000000e+00 : f32
    %192 = vector.broadcast %cst_104 : f32 to vector<2x128xf32>
    %193 = arith.addf %192, %191 : vector<2x128xf32>
    %194 = arith.divf %192, %193 : vector<2x128xf32>
    %195 = math.tanh %174 : vector<2x128xf32>
    %196 = vector.extract_strided_slice %194 {offsets = [0, 0], sizes = [2, 32], strides = [1, 1]} : vector<2x128xf32> to vector<2x32xf32>
    %197 = vector.extract_strided_slice %194 {offsets = [0, 32], sizes = [2, 32], strides = [1, 1]} : vector<2x128xf32> to vector<2x32xf32>
    %198 = vector.extract_strided_slice %195 {offsets = [0, 64], sizes = [2, 32], strides = [1, 1]} : vector<2x128xf32> to vector<2x32xf32>
    %199 = vector.extract_strided_slice %194 {offsets = [0, 96], sizes = [2, 32], strides = [1, 1]} : vector<2x128xf32> to vector<2x32xf32>
    %200 = arith.mulf %197, %156 : vector<2x32xf32>
    %201 = arith.mulf %196, %198 : vector<2x32xf32>
    %202 = arith.addf %200, %201 : vector<2x32xf32>
    %203 = math.tanh %202 : vector<2x32xf32>
    %204 = arith.mulf %199, %203 : vector<2x32xf32>
    %c2_105 = arith.constant 2 : index
    %c0_106 = arith.constant 0 : index
    %c0_107 = arith.constant 0 : index
    %205 = vector.load %arg16[%c2_105, %c0_106, %c0_107] : memref<8x2x64xf32, #tpu.memory_space<vmem>>, vector<1x2x32xf32>
    %206 = vector.shape_cast %205 : vector<1x2x32xf32> to vector<2x32xf32>
    %207 = vector.shape_cast %189 : vector<2x32xf32> to vector<1x2x32xf32>
    tpu.vector_store %arg16[%c2_105, %c0_106, %c0_107], %207 {strides = array<i32>} : memref<8x2x64xf32, #tpu.memory_space<vmem>>, vector<1x2x32xf32>,
    %c5_108 = arith.constant 5 : index
    %c0_109 = arith.constant 0 : index
    %c32_110 = arith.constant 32 : index
    %208 = vector.load %arg16[%c5_108, %c0_109, %c32_110] : memref<8x2x64xf32, #tpu.memory_space<vmem>>, vector<1x2x32xf32>
    %209 = vector.shape_cast %208 : vector<1x2x32xf32> to vector<2x32xf32>
    %210 = vector.shape_cast %204 : vector<2x32xf32> to vector<1x2x32xf32>
    tpu.vector_store %arg16[%c5_108, %c0_109, %c32_110], %210 {strides = array<i32>} : memref<8x2x64xf32, #tpu.memory_space<vmem>>, vector<1x2x32xf32>,
    %c3_111 = arith.constant 3 : index
    %c0_112 = arith.constant 0 : index
    %c0_113 = arith.constant 0 : index
    %211 = vector.load %arg14[%c3_111, %c0_112, %c0_113] : memref<8x2x256xf32, #tpu.memory_space<vmem>>, vector<1x2x256xf32>
    %212 = vector.shape_cast %211 : vector<1x2x256xf32> to vector<2x256xf32>
    %213 = vector.extract_strided_slice %212 {offsets = [0, 0], sizes = [2, 128], strides = [1, 1]} : vector<2x256xf32> to vector<2x128xf32>
    %cst_114 = arith.constant dense<0.000000e+00> : vector<2x128xf32>
    %214 = tpu.matmul %189, %2, %cst_114 {dimension_numbers = #tpu.dot_dimension_numbers<[1], [0], [0], [1], [0, 0, 1, 1], [], []>} : vector<2x32xf32>, vector<32x128xf32>, vector<2x128xf32> -> vector<2x128xf32>
    %215 = arith.addf %213, %214 : vector<2x128xf32>
    %c4_115 = arith.constant 4 : index
    %c0_116 = arith.constant 0 : index
    %c0_117 = arith.constant 0 : index
    %216 = vector.load %arg14[%c4_115, %c0_116, %c0_117] : memref<8x2x256xf32, #tpu.memory_space<vmem>>, vector<1x2x256xf32>
    %217 = vector.shape_cast %216 : vector<1x2x256xf32> to vector<2x256xf32>
    %218 = vector.extract_strided_slice %217 {offsets = [0, 128], sizes = [2, 128], strides = [1, 1]} : vector<2x256xf32> to vector<2x128xf32>
    %cst_118 = arith.constant dense<0.000000e+00> : vector<2x128xf32>
    %219 = tpu.matmul %204, %3, %cst_118 {dimension_numbers = #tpu.dot_dimension_numbers<[1], [0], [0], [1], [0, 0, 1, 1], [], []>} : vector<2x32xf32>, vector<32x128xf32>, vector<2x128xf32> -> vector<2x128xf32>
    %220 = arith.addf %218, %219 : vector<2x128xf32>
    %221 = arith.negf %215 : vector<2x128xf32>
    %222 = math.exp %221 : vector<2x128xf32>
    %cst_119 = arith.constant 1.000000e+00 : f32
    %223 = vector.broadcast %cst_119 : f32 to vector<2x128xf32>
    %224 = arith.addf %223, %222 : vector<2x128xf32>
    %225 = arith.divf %223, %224 : vector<2x128xf32>
    %226 = math.tanh %215 : vector<2x128xf32>
    %227 = vector.extract_strided_slice %225 {offsets = [0, 0], sizes = [2, 32], strides = [1, 1]} : vector<2x128xf32> to vector<2x32xf32>
    %228 = vector.extract_strided_slice %225 {offsets = [0, 32], sizes = [2, 32], strides = [1, 1]} : vector<2x128xf32> to vector<2x32xf32>
    %229 = vector.extract_strided_slice %226 {offsets = [0, 64], sizes = [2, 32], strides = [1, 1]} : vector<2x128xf32> to vector<2x32xf32>
    %230 = vector.extract_strided_slice %225 {offsets = [0, 96], sizes = [2, 32], strides = [1, 1]} : vector<2x128xf32> to vector<2x32xf32>
    %231 = arith.mulf %228, %187 : vector<2x32xf32>
    %232 = arith.mulf %227, %229 : vector<2x32xf32>
    %233 = arith.addf %231, %232 : vector<2x32xf32>
    %234 = math.tanh %233 : vector<2x32xf32>
    %235 = arith.mulf %230, %234 : vector<2x32xf32>
    %236 = arith.negf %220 : vector<2x128xf32>
    %237 = math.exp %236 : vector<2x128xf32>
    %cst_120 = arith.constant 1.000000e+00 : f32
    %238 = vector.broadcast %cst_120 : f32 to vector<2x128xf32>
    %239 = arith.addf %238, %237 : vector<2x128xf32>
    %240 = arith.divf %238, %239 : vector<2x128xf32>
    %241 = math.tanh %220 : vector<2x128xf32>
    %242 = vector.extract_strided_slice %240 {offsets = [0, 0], sizes = [2, 32], strides = [1, 1]} : vector<2x128xf32> to vector<2x32xf32>
    %243 = vector.extract_strided_slice %240 {offsets = [0, 32], sizes = [2, 32], strides = [1, 1]} : vector<2x128xf32> to vector<2x32xf32>
    %244 = vector.extract_strided_slice %241 {offsets = [0, 64], sizes = [2, 32], strides = [1, 1]} : vector<2x128xf32> to vector<2x32xf32>
    %245 = vector.extract_strided_slice %240 {offsets = [0, 96], sizes = [2, 32], strides = [1, 1]} : vector<2x128xf32> to vector<2x32xf32>
    %246 = arith.mulf %243, %202 : vector<2x32xf32>
    %247 = arith.mulf %242, %244 : vector<2x32xf32>
    %248 = arith.addf %246, %247 : vector<2x32xf32>
    %249 = math.tanh %248 : vector<2x32xf32>
    %250 = arith.mulf %245, %249 : vector<2x32xf32>
    %c3_121 = arith.constant 3 : index
    %c0_122 = arith.constant 0 : index
    %c0_123 = arith.constant 0 : index
    %251 = vector.load %arg16[%c3_121, %c0_122, %c0_123] : memref<8x2x64xf32, #tpu.memory_space<vmem>>, vector<1x2x32xf32>
    %252 = vector.shape_cast %251 : vector<1x2x32xf32> to vector<2x32xf32>
    %253 = vector.shape_cast %235 : vector<2x32xf32> to vector<1x2x32xf32>
    tpu.vector_store %arg16[%c3_121, %c0_122, %c0_123], %253 {strides = array<i32>} : memref<8x2x64xf32, #tpu.memory_space<vmem>>, vector<1x2x32xf32>,
    %c4_124 = arith.constant 4 : index
    %c0_125 = arith.constant 0 : index
    %c32_126 = arith.constant 32 : index
    %254 = vector.load %arg16[%c4_124, %c0_125, %c32_126] : memref<8x2x64xf32, #tpu.memory_space<vmem>>, vector<1x2x32xf32>
    %255 = vector.shape_cast %254 : vector<1x2x32xf32> to vector<2x32xf32>
    %256 = vector.shape_cast %250 : vector<2x32xf32> to vector<1x2x32xf32>
    tpu.vector_store %arg16[%c4_124, %c0_125, %c32_126], %256 {strides = array<i32>} : memref<8x2x64xf32, #tpu.memory_space<vmem>>, vector<1x2x32xf32>,
    %c4_127 = arith.constant 4 : index
    %c0_128 = arith.constant 0 : index
    %c0_129 = arith.constant 0 : index
    %257 = vector.load %arg14[%c4_127, %c0_128, %c0_129] : memref<8x2x256xf32, #tpu.memory_space<vmem>>, vector<1x2x256xf32>
    %258 = vector.shape_cast %257 : vector<1x2x256xf32> to vector<2x256xf32>
    %259 = vector.extract_strided_slice %258 {offsets = [0, 0], sizes = [2, 128], strides = [1, 1]} : vector<2x256xf32> to vector<2x128xf32>
    %cst_130 = arith.constant dense<0.000000e+00> : vector<2x128xf32>
    %260 = tpu.matmul %235, %2, %cst_130 {dimension_numbers = #tpu.dot_dimension_numbers<[1], [0], [0], [1], [0, 0, 1, 1], [], []>} : vector<2x32xf32>, vector<32x128xf32>, vector<2x128xf32> -> vector<2x128xf32>
    %261 = arith.addf %259, %260 : vector<2x128xf32>
    %c3_131 = arith.constant 3 : index
    %c0_132 = arith.constant 0 : index
    %c0_133 = arith.constant 0 : index
    %262 = vector.load %arg14[%c3_131, %c0_132, %c0_133] : memref<8x2x256xf32, #tpu.memory_space<vmem>>, vector<1x2x256xf32>
    %263 = vector.shape_cast %262 : vector<1x2x256xf32> to vector<2x256xf32>
    %264 = vector.extract_strided_slice %263 {offsets = [0, 128], sizes = [2, 128], strides = [1, 1]} : vector<2x256xf32> to vector<2x128xf32>
    %cst_134 = arith.constant dense<0.000000e+00> : vector<2x128xf32>
    %265 = tpu.matmul %250, %3, %cst_134 {dimension_numbers = #tpu.dot_dimension_numbers<[1], [0], [0], [1], [0, 0, 1, 1], [], []>} : vector<2x32xf32>, vector<32x128xf32>, vector<2x128xf32> -> vector<2x128xf32>
    %266 = arith.addf %264, %265 : vector<2x128xf32>
    %267 = arith.negf %261 : vector<2x128xf32>
    %268 = math.exp %267 : vector<2x128xf32>
    %cst_135 = arith.constant 1.000000e+00 : f32
    %269 = vector.broadcast %cst_135 : f32 to vector<2x128xf32>
    %270 = arith.addf %269, %268 : vector<2x128xf32>
    %271 = arith.divf %269, %270 : vector<2x128xf32>
    %272 = math.tanh %261 : vector<2x128xf32>
    %273 = vector.extract_strided_slice %271 {offsets = [0, 0], sizes = [2, 32], strides = [1, 1]} : vector<2x128xf32> to vector<2x32xf32>
    %274 = vector.extract_strided_slice %271 {offsets = [0, 32], sizes = [2, 32], strides = [1, 1]} : vector<2x128xf32> to vector<2x32xf32>
    %275 = vector.extract_strided_slice %272 {offsets = [0, 64], sizes = [2, 32], strides = [1, 1]} : vector<2x128xf32> to vector<2x32xf32>
    %276 = vector.extract_strided_slice %271 {offsets = [0, 96], sizes = [2, 32], strides = [1, 1]} : vector<2x128xf32> to vector<2x32xf32>
    %277 = arith.mulf %274, %233 : vector<2x32xf32>
    %278 = arith.mulf %273, %275 : vector<2x32xf32>
    %279 = arith.addf %277, %278 : vector<2x32xf32>
    %280 = math.tanh %279 : vector<2x32xf32>
    %281 = arith.mulf %276, %280 : vector<2x32xf32>
    %282 = arith.negf %266 : vector<2x128xf32>
    %283 = math.exp %282 : vector<2x128xf32>
    %cst_136 = arith.constant 1.000000e+00 : f32
    %284 = vector.broadcast %cst_136 : f32 to vector<2x128xf32>
    %285 = arith.addf %284, %283 : vector<2x128xf32>
    %286 = arith.divf %284, %285 : vector<2x128xf32>
    %287 = math.tanh %266 : vector<2x128xf32>
    %288 = vector.extract_strided_slice %286 {offsets = [0, 0], sizes = [2, 32], strides = [1, 1]} : vector<2x128xf32> to vector<2x32xf32>
    %289 = vector.extract_strided_slice %286 {offsets = [0, 32], sizes = [2, 32], strides = [1, 1]} : vector<2x128xf32> to vector<2x32xf32>
    %290 = vector.extract_strided_slice %287 {offsets = [0, 64], sizes = [2, 32], strides = [1, 1]} : vector<2x128xf32> to vector<2x32xf32>
    %291 = vector.extract_strided_slice %286 {offsets = [0, 96], sizes = [2, 32], strides = [1, 1]} : vector<2x128xf32> to vector<2x32xf32>
    %292 = arith.mulf %289, %248 : vector<2x32xf32>
    %293 = arith.mulf %288, %290 : vector<2x32xf32>
    %294 = arith.addf %292, %293 : vector<2x32xf32>
    %295 = math.tanh %294 : vector<2x32xf32>
    %296 = arith.mulf %291, %295 : vector<2x32xf32>
    %c4_137 = arith.constant 4 : index
    %c0_138 = arith.constant 0 : index
    %c0_139 = arith.constant 0 : index
    %297 = vector.load %arg16[%c4_137, %c0_138, %c0_139] : memref<8x2x64xf32, #tpu.memory_space<vmem>>, vector<1x2x32xf32>
    %298 = vector.shape_cast %297 : vector<1x2x32xf32> to vector<2x32xf32>
    %299 = vector.shape_cast %281 : vector<2x32xf32> to vector<1x2x32xf32>
    tpu.vector_store %arg16[%c4_137, %c0_138, %c0_139], %299 {strides = array<i32>} : memref<8x2x64xf32, #tpu.memory_space<vmem>>, vector<1x2x32xf32>,
    %c3_140 = arith.constant 3 : index
    %c0_141 = arith.constant 0 : index
    %c32_142 = arith.constant 32 : index
    %300 = vector.load %arg16[%c3_140, %c0_141, %c32_142] : memref<8x2x64xf32, #tpu.memory_space<vmem>>, vector<1x2x32xf32>
    %301 = vector.shape_cast %300 : vector<1x2x32xf32> to vector<2x32xf32>
    %302 = vector.shape_cast %296 : vector<2x32xf32> to vector<1x2x32xf32>
    tpu.vector_store %arg16[%c3_140, %c0_141, %c32_142], %302 {strides = array<i32>} : memref<8x2x64xf32, #tpu.memory_space<vmem>>, vector<1x2x32xf32>,
    %c5_143 = arith.constant 5 : index
    %c0_144 = arith.constant 0 : index
    %c0_145 = arith.constant 0 : index
    %303 = vector.load %arg14[%c5_143, %c0_144, %c0_145] : memref<8x2x256xf32, #tpu.memory_space<vmem>>, vector<1x2x256xf32>
    %304 = vector.shape_cast %303 : vector<1x2x256xf32> to vector<2x256xf32>
    %305 = vector.extract_strided_slice %304 {offsets = [0, 0], sizes = [2, 128], strides = [1, 1]} : vector<2x256xf32> to vector<2x128xf32>
    %cst_146 = arith.constant dense<0.000000e+00> : vector<2x128xf32>
    %306 = tpu.matmul %281, %2, %cst_146 {dimension_numbers = #tpu.dot_dimension_numbers<[1], [0], [0], [1], [0, 0, 1, 1], [], []>} : vector<2x32xf32>, vector<32x128xf32>, vector<2x128xf32> -> vector<2x128xf32>
    %307 = arith.addf %305, %306 : vector<2x128xf32>
    %c2_147 = arith.constant 2 : index
    %c0_148 = arith.constant 0 : index
    %c0_149 = arith.constant 0 : index
    %308 = vector.load %arg14[%c2_147, %c0_148, %c0_149] : memref<8x2x256xf32, #tpu.memory_space<vmem>>, vector<1x2x256xf32>
    %309 = vector.shape_cast %308 : vector<1x2x256xf32> to vector<2x256xf32>
    %310 = vector.extract_strided_slice %309 {offsets = [0, 128], sizes = [2, 128], strides = [1, 1]} : vector<2x256xf32> to vector<2x128xf32>
    %cst_150 = arith.constant dense<0.000000e+00> : vector<2x128xf32>
    %311 = tpu.matmul %296, %3, %cst_150 {dimension_numbers = #tpu.dot_dimension_numbers<[1], [0], [0], [1], [0, 0, 1, 1], [], []>} : vector<2x32xf32>, vector<32x128xf32>, vector<2x128xf32> -> vector<2x128xf32>
    %312 = arith.addf %310, %311 : vector<2x128xf32>
    %313 = arith.negf %307 : vector<2x128xf32>
    %314 = math.exp %313 : vector<2x128xf32>
    %cst_151 = arith.constant 1.000000e+00 : f32
    %315 = vector.broadcast %cst_151 : f32 to vector<2x128xf32>
    %316 = arith.addf %315, %314 : vector<2x128xf32>
    %317 = arith.divf %315, %316 : vector<2x128xf32>
    %318 = math.tanh %307 : vector<2x128xf32>
    %319 = vector.extract_strided_slice %317 {offsets = [0, 0], sizes = [2, 32], strides = [1, 1]} : vector<2x128xf32> to vector<2x32xf32>
    %320 = vector.extract_strided_slice %317 {offsets = [0, 32], sizes = [2, 32], strides = [1, 1]} : vector<2x128xf32> to vector<2x32xf32>
    %321 = vector.extract_strided_slice %318 {offsets = [0, 64], sizes = [2, 32], strides = [1, 1]} : vector<2x128xf32> to vector<2x32xf32>
    %322 = vector.extract_strided_slice %317 {offsets = [0, 96], sizes = [2, 32], strides = [1, 1]} : vector<2x128xf32> to vector<2x32xf32>
    %323 = arith.mulf %320, %279 : vector<2x32xf32>
    %324 = arith.mulf %319, %321 : vector<2x32xf32>
    %325 = arith.addf %323, %324 : vector<2x32xf32>
    %326 = math.tanh %325 : vector<2x32xf32>
    %327 = arith.mulf %322, %326 : vector<2x32xf32>
    %328 = arith.negf %312 : vector<2x128xf32>
    %329 = math.exp %328 : vector<2x128xf32>
    %cst_152 = arith.constant 1.000000e+00 : f32
    %330 = vector.broadcast %cst_152 : f32 to vector<2x128xf32>
    %331 = arith.addf %330, %329 : vector<2x128xf32>
    %332 = arith.divf %330, %331 : vector<2x128xf32>
    %333 = math.tanh %312 : vector<2x128xf32>
    %334 = vector.extract_strided_slice %332 {offsets = [0, 0], sizes = [2, 32], strides = [1, 1]} : vector<2x128xf32> to vector<2x32xf32>
    %335 = vector.extract_strided_slice %332 {offsets = [0, 32], sizes = [2, 32], strides = [1, 1]} : vector<2x128xf32> to vector<2x32xf32>
    %336 = vector.extract_strided_slice %333 {offsets = [0, 64], sizes = [2, 32], strides = [1, 1]} : vector<2x128xf32> to vector<2x32xf32>
    %337 = vector.extract_strided_slice %332 {offsets = [0, 96], sizes = [2, 32], strides = [1, 1]} : vector<2x128xf32> to vector<2x32xf32>
    %338 = arith.mulf %335, %294 : vector<2x32xf32>
    %339 = arith.mulf %334, %336 : vector<2x32xf32>
    %340 = arith.addf %338, %339 : vector<2x32xf32>
    %341 = math.tanh %340 : vector<2x32xf32>
    %342 = arith.mulf %337, %341 : vector<2x32xf32>
    %c5_153 = arith.constant 5 : index
    %c0_154 = arith.constant 0 : index
    %c0_155 = arith.constant 0 : index
    %343 = vector.load %arg16[%c5_153, %c0_154, %c0_155] : memref<8x2x64xf32, #tpu.memory_space<vmem>>, vector<1x2x32xf32>
    %344 = vector.shape_cast %343 : vector<1x2x32xf32> to vector<2x32xf32>
    %345 = vector.shape_cast %327 : vector<2x32xf32> to vector<1x2x32xf32>
    tpu.vector_store %arg16[%c5_153, %c0_154, %c0_155], %345 {strides = array<i32>} : memref<8x2x64xf32, #tpu.memory_space<vmem>>, vector<1x2x32xf32>,
    %c2_156 = arith.constant 2 : index
    %c0_157 = arith.constant 0 : index
    %c32_158 = arith.constant 32 : index
    %346 = vector.load %arg16[%c2_156, %c0_157, %c32_158] : memref<8x2x64xf32, #tpu.memory_space<vmem>>, vector<1x2x32xf32>
    %347 = vector.shape_cast %346 : vector<1x2x32xf32> to vector<2x32xf32>
    %348 = vector.shape_cast %342 : vector<2x32xf32> to vector<1x2x32xf32>
    tpu.vector_store %arg16[%c2_156, %c0_157, %c32_158], %348 {strides = array<i32>} : memref<8x2x64xf32, #tpu.memory_space<vmem>>, vector<1x2x32xf32>,
    %c6_159 = arith.constant 6 : index
    %c0_160 = arith.constant 0 : index
    %c0_161 = arith.constant 0 : index
    %349 = vector.load %arg14[%c6_159, %c0_160, %c0_161] : memref<8x2x256xf32, #tpu.memory_space<vmem>>, vector<1x2x256xf32>
    %350 = vector.shape_cast %349 : vector<1x2x256xf32> to vector<2x256xf32>
    %351 = vector.extract_strided_slice %350 {offsets = [0, 0], sizes = [2, 128], strides = [1, 1]} : vector<2x256xf32> to vector<2x128xf32>
    %cst_162 = arith.constant dense<0.000000e+00> : vector<2x128xf32>
    %352 = tpu.matmul %327, %2, %cst_162 {dimension_numbers = #tpu.dot_dimension_numbers<[1], [0], [0], [1], [0, 0, 1, 1], [], []>} : vector<2x32xf32>, vector<32x128xf32>, vector<2x128xf32> -> vector<2x128xf32>
    %353 = arith.addf %351, %352 : vector<2x128xf32>
    %c1_163 = arith.constant 1 : index
    %c0_164 = arith.constant 0 : index
    %c0_165 = arith.constant 0 : index
    %354 = vector.load %arg14[%c1_163, %c0_164, %c0_165] : memref<8x2x256xf32, #tpu.memory_space<vmem>>, vector<1x2x256xf32>
    %355 = vector.shape_cast %354 : vector<1x2x256xf32> to vector<2x256xf32>
    %356 = vector.extract_strided_slice %355 {offsets = [0, 128], sizes = [2, 128], strides = [1, 1]} : vector<2x256xf32> to vector<2x128xf32>
    %cst_166 = arith.constant dense<0.000000e+00> : vector<2x128xf32>
    %357 = tpu.matmul %342, %3, %cst_166 {dimension_numbers = #tpu.dot_dimension_numbers<[1], [0], [0], [1], [0, 0, 1, 1], [], []>} : vector<2x32xf32>, vector<32x128xf32>, vector<2x128xf32> -> vector<2x128xf32>
    %358 = arith.addf %356, %357 : vector<2x128xf32>
    %359 = arith.negf %353 : vector<2x128xf32>
    %360 = math.exp %359 : vector<2x128xf32>
    %cst_167 = arith.constant 1.000000e+00 : f32
    %361 = vector.broadcast %cst_167 : f32 to vector<2x128xf32>
    %362 = arith.addf %361, %360 : vector<2x128xf32>
    %363 = arith.divf %361, %362 : vector<2x128xf32>
    %364 = math.tanh %353 : vector<2x128xf32>
    %365 = vector.extract_strided_slice %363 {offsets = [0, 0], sizes = [2, 32], strides = [1, 1]} : vector<2x128xf32> to vector<2x32xf32>
    %366 = vector.extract_strided_slice %363 {offsets = [0, 32], sizes = [2, 32], strides = [1, 1]} : vector<2x128xf32> to vector<2x32xf32>
    %367 = vector.extract_strided_slice %364 {offsets = [0, 64], sizes = [2, 32], strides = [1, 1]} : vector<2x128xf32> to vector<2x32xf32>
    %368 = vector.extract_strided_slice %363 {offsets = [0, 96], sizes = [2, 32], strides = [1, 1]} : vector<2x128xf32> to vector<2x32xf32>
    %369 = arith.mulf %366, %325 : vector<2x32xf32>
    %370 = arith.mulf %365, %367 : vector<2x32xf32>
    %371 = arith.addf %369, %370 : vector<2x32xf32>
    %372 = math.tanh %371 : vector<2x32xf32>
    %373 = arith.mulf %368, %372 : vector<2x32xf32>
    %374 = arith.negf %358 : vector<2x128xf32>
    %375 = math.exp %374 : vector<2x128xf32>
    %cst_168 = arith.constant 1.000000e+00 : f32
    %376 = vector.broadcast %cst_168 : f32 to vector<2x128xf32>
    %377 = arith.addf %376, %375 : vector<2x128xf32>
    %378 = arith.divf %376, %377 : vector<2x128xf32>
    %379 = math.tanh %358 : vector<2x128xf32>
    %380 = vector.extract_strided_slice %378 {offsets = [0, 0], sizes = [2, 32], strides = [1, 1]} : vector<2x128xf32> to vector<2x32xf32>
    %381 = vector.extract_strided_slice %378 {offsets = [0, 32], sizes = [2, 32], strides = [1, 1]} : vector<2x128xf32> to vector<2x32xf32>
    %382 = vector.extract_strided_slice %379 {offsets = [0, 64], sizes = [2, 32], strides = [1, 1]} : vector<2x128xf32> to vector<2x32xf32>
    %383 = vector.extract_strided_slice %378 {offsets = [0, 96], sizes = [2, 32], strides = [1, 1]} : vector<2x128xf32> to vector<2x32xf32>
    %384 = arith.mulf %381, %340 : vector<2x32xf32>
    %385 = arith.mulf %380, %382 : vector<2x32xf32>
    %386 = arith.addf %384, %385 : vector<2x32xf32>
    %387 = math.tanh %386 : vector<2x32xf32>
    %388 = arith.mulf %383, %387 : vector<2x32xf32>
    %c6_169 = arith.constant 6 : index
    %c0_170 = arith.constant 0 : index
    %c0_171 = arith.constant 0 : index
    %389 = vector.load %arg16[%c6_169, %c0_170, %c0_171] : memref<8x2x64xf32, #tpu.memory_space<vmem>>, vector<1x2x32xf32>
    %390 = vector.shape_cast %389 : vector<1x2x32xf32> to vector<2x32xf32>
    %391 = vector.shape_cast %373 : vector<2x32xf32> to vector<1x2x32xf32>
    tpu.vector_store %arg16[%c6_169, %c0_170, %c0_171], %391 {strides = array<i32>} : memref<8x2x64xf32, #tpu.memory_space<vmem>>, vector<1x2x32xf32>,
    %c1_172 = arith.constant 1 : index
    %c0_173 = arith.constant 0 : index
    %c32_174 = arith.constant 32 : index
    %392 = vector.load %arg16[%c1_172, %c0_173, %c32_174] : memref<8x2x64xf32, #tpu.memory_space<vmem>>, vector<1x2x32xf32>
    %393 = vector.shape_cast %392 : vector<1x2x32xf32> to vector<2x32xf32>
    %394 = vector.shape_cast %388 : vector<2x32xf32> to vector<1x2x32xf32>
    tpu.vector_store %arg16[%c1_172, %c0_173, %c32_174], %394 {strides = array<i32>} : memref<8x2x64xf32, #tpu.memory_space<vmem>>, vector<1x2x32xf32>,
    %c7_175 = arith.constant 7 : index
    %c0_176 = arith.constant 0 : index
    %c0_177 = arith.constant 0 : index
    %395 = vector.load %arg14[%c7_175, %c0_176, %c0_177] : memref<8x2x256xf32, #tpu.memory_space<vmem>>, vector<1x2x256xf32>
    %396 = vector.shape_cast %395 : vector<1x2x256xf32> to vector<2x256xf32>
    %397 = vector.extract_strided_slice %396 {offsets = [0, 0], sizes = [2, 128], strides = [1, 1]} : vector<2x256xf32> to vector<2x128xf32>
    %cst_178 = arith.constant dense<0.000000e+00> : vector<2x128xf32>
    %398 = tpu.matmul %373, %2, %cst_178 {dimension_numbers = #tpu.dot_dimension_numbers<[1], [0], [0], [1], [0, 0, 1, 1], [], []>} : vector<2x32xf32>, vector<32x128xf32>, vector<2x128xf32> -> vector<2x128xf32>
    %399 = arith.addf %397, %398 : vector<2x128xf32>
    %c0_179 = arith.constant 0 : index
    %c0_180 = arith.constant 0 : index
    %c0_181 = arith.constant 0 : index
    %400 = vector.load %arg14[%c0_179, %c0_180, %c0_181] : memref<8x2x256xf32, #tpu.memory_space<vmem>>, vector<1x2x256xf32>
    %401 = vector.shape_cast %400 : vector<1x2x256xf32> to vector<2x256xf32>
    %402 = vector.extract_strided_slice %401 {offsets = [0, 128], sizes = [2, 128], strides = [1, 1]} : vector<2x256xf32> to vector<2x128xf32>
    %cst_182 = arith.constant dense<0.000000e+00> : vector<2x128xf32>
    %403 = tpu.matmul %388, %3, %cst_182 {dimension_numbers = #tpu.dot_dimension_numbers<[1], [0], [0], [1], [0, 0, 1, 1], [], []>} : vector<2x32xf32>, vector<32x128xf32>, vector<2x128xf32> -> vector<2x128xf32>
    %404 = arith.addf %402, %403 : vector<2x128xf32>
    %405 = arith.negf %399 : vector<2x128xf32>
    %406 = math.exp %405 : vector<2x128xf32>
    %cst_183 = arith.constant 1.000000e+00 : f32
    %407 = vector.broadcast %cst_183 : f32 to vector<2x128xf32>
    %408 = arith.addf %407, %406 : vector<2x128xf32>
    %409 = arith.divf %407, %408 : vector<2x128xf32>
    %410 = math.tanh %399 : vector<2x128xf32>
    %411 = vector.extract_strided_slice %409 {offsets = [0, 0], sizes = [2, 32], strides = [1, 1]} : vector<2x128xf32> to vector<2x32xf32>
    %412 = vector.extract_strided_slice %409 {offsets = [0, 32], sizes = [2, 32], strides = [1, 1]} : vector<2x128xf32> to vector<2x32xf32>
    %413 = vector.extract_strided_slice %410 {offsets = [0, 64], sizes = [2, 32], strides = [1, 1]} : vector<2x128xf32> to vector<2x32xf32>
    %414 = vector.extract_strided_slice %409 {offsets = [0, 96], sizes = [2, 32], strides = [1, 1]} : vector<2x128xf32> to vector<2x32xf32>
    %415 = arith.mulf %412, %371 : vector<2x32xf32>
    %416 = arith.mulf %411, %413 : vector<2x32xf32>
    %417 = arith.addf %415, %416 : vector<2x32xf32>
    %418 = math.tanh %417 : vector<2x32xf32>
    %419 = arith.mulf %414, %418 : vector<2x32xf32>
    %420 = arith.negf %404 : vector<2x128xf32>
    %421 = math.exp %420 : vector<2x128xf32>
    %cst_184 = arith.constant 1.000000e+00 : f32
    %422 = vector.broadcast %cst_184 : f32 to vector<2x128xf32>
    %423 = arith.addf %422, %421 : vector<2x128xf32>
    %424 = arith.divf %422, %423 : vector<2x128xf32>
    %425 = math.tanh %404 : vector<2x128xf32>
    %426 = vector.extract_strided_slice %424 {offsets = [0, 0], sizes = [2, 32], strides = [1, 1]} : vector<2x128xf32> to vector<2x32xf32>
    %427 = vector.extract_strided_slice %424 {offsets = [0, 32], sizes = [2, 32], strides = [1, 1]} : vector<2x128xf32> to vector<2x32xf32>
    %428 = vector.extract_strided_slice %425 {offsets = [0, 64], sizes = [2, 32], strides = [1, 1]} : vector<2x128xf32> to vector<2x32xf32>
    %429 = vector.extract_strided_slice %424 {offsets = [0, 96], sizes = [2, 32], strides = [1, 1]} : vector<2x128xf32> to vector<2x32xf32>
    %430 = arith.mulf %427, %386 : vector<2x32xf32>
    %431 = arith.mulf %426, %428 : vector<2x32xf32>
    %432 = arith.addf %430, %431 : vector<2x32xf32>
    %433 = math.tanh %432 : vector<2x32xf32>
    %434 = arith.mulf %429, %433 : vector<2x32xf32>
    %c7_185 = arith.constant 7 : index
    %c0_186 = arith.constant 0 : index
    %c0_187 = arith.constant 0 : index
    %435 = vector.load %arg16[%c7_185, %c0_186, %c0_187] : memref<8x2x64xf32, #tpu.memory_space<vmem>>, vector<1x2x32xf32>
    %436 = vector.shape_cast %435 : vector<1x2x32xf32> to vector<2x32xf32>
    %437 = vector.shape_cast %419 : vector<2x32xf32> to vector<1x2x32xf32>
    tpu.vector_store %arg16[%c7_185, %c0_186, %c0_187], %437 {strides = array<i32>} : memref<8x2x64xf32, #tpu.memory_space<vmem>>, vector<1x2x32xf32>,
    %c0_188 = arith.constant 0 : index
    %c0_189 = arith.constant 0 : index
    %c32_190 = arith.constant 32 : index
    %438 = vector.load %arg16[%c0_188, %c0_189, %c32_190] : memref<8x2x64xf32, #tpu.memory_space<vmem>>, vector<1x2x32xf32>
    %439 = vector.shape_cast %438 : vector<1x2x32xf32> to vector<2x32xf32>
    %440 = vector.shape_cast %434 : vector<2x32xf32> to vector<1x2x32xf32>
    tpu.vector_store %arg16[%c0_188, %c0_189, %c32_190], %440 {strides = array<i32>} : memref<8x2x64xf32, #tpu.memory_space<vmem>>, vector<1x2x32xf32>,
    %c0_191 = arith.constant 0 : index
    %c0_192 = arith.constant 0 : index
    %c0_193 = arith.constant 0 : index
    %441 = vector.load %arg16[%c0_191, %c0_192, %c0_193] : memref<8x2x64xf32, #tpu.memory_space<vmem>>, vector<1x2x64xf32>
    %442 = vector.shape_cast %441 : vector<1x2x64xf32> to vector<2x64xf32>
    %cst_194 = arith.constant dense<0.000000e+00> : vector<2x256xf32>
    %443 = tpu.matmul %442, %4, %cst_194 {dimension_numbers = #tpu.dot_dimension_numbers<[1], [0], [0], [1], [0, 0, 1, 1], [], []>} : vector<2x64xf32>, vector<64x256xf32>, vector<2x256xf32> -> vector<2x256xf32>
    %444 = vector.broadcast %5 : vector<1x256xf32> to vector<2x256xf32>
    %445 = arith.addf %443, %444 : vector<2x256xf32>
    %c0_195 = arith.constant 0 : index
    %c0_196 = arith.constant 0 : index
    %c0_197 = arith.constant 0 : index
    %446 = vector.load %arg15[%c0_195, %c0_196, %c0_197] : memref<8x2x256xf32, #tpu.memory_space<vmem>>, vector<1x2x256xf32>
    %447 = vector.shape_cast %446 : vector<1x2x256xf32> to vector<2x256xf32>
    %448 = vector.shape_cast %445 : vector<2x256xf32> to vector<1x2x256xf32>
    tpu.vector_store %arg15[%c0_195, %c0_196, %c0_197], %448 {strides = array<i32>} : memref<8x2x256xf32, #tpu.memory_space<vmem>>, vector<1x2x256xf32>,
    %c1_198 = arith.constant 1 : index
    %c0_199 = arith.constant 0 : index
    %c0_200 = arith.constant 0 : index
    %449 = vector.load %arg16[%c1_198, %c0_199, %c0_200] : memref<8x2x64xf32, #tpu.memory_space<vmem>>, vector<1x2x64xf32>
    %450 = vector.shape_cast %449 : vector<1x2x64xf32> to vector<2x64xf32>
    %cst_201 = arith.constant dense<0.000000e+00> : vector<2x256xf32>
    %451 = tpu.matmul %450, %4, %cst_201 {dimension_numbers = #tpu.dot_dimension_numbers<[1], [0], [0], [1], [0, 0, 1, 1], [], []>} : vector<2x64xf32>, vector<64x256xf32>, vector<2x256xf32> -> vector<2x256xf32>
    %452 = vector.broadcast %5 : vector<1x256xf32> to vector<2x256xf32>
    %453 = arith.addf %451, %452 : vector<2x256xf32>
    %c1_202 = arith.constant 1 : index
    %c0_203 = arith.constant 0 : index
    %c0_204 = arith.constant 0 : index
    %454 = vector.load %arg15[%c1_202, %c0_203, %c0_204] : memref<8x2x256xf32, #tpu.memory_space<vmem>>, vector<1x2x256xf32>
    %455 = vector.shape_cast %454 : vector<1x2x256xf32> to vector<2x256xf32>
    %456 = vector.shape_cast %453 : vector<2x256xf32> to vector<1x2x256xf32>
    tpu.vector_store %arg15[%c1_202, %c0_203, %c0_204], %456 {strides = array<i32>} : memref<8x2x256xf32, #tpu.memory_space<vmem>>, vector<1x2x256xf32>,
    %c2_205 = arith.constant 2 : index
    %c0_206 = arith.constant 0 : index
    %c0_207 = arith.constant 0 : index
    %457 = vector.load %arg16[%c2_205, %c0_206, %c0_207] : memref<8x2x64xf32, #tpu.memory_space<vmem>>, vector<1x2x64xf32>
    %458 = vector.shape_cast %457 : vector<1x2x64xf32> to vector<2x64xf32>
    %cst_208 = arith.constant dense<0.000000e+00> : vector<2x256xf32>
    %459 = tpu.matmul %458, %4, %cst_208 {dimension_numbers = #tpu.dot_dimension_numbers<[1], [0], [0], [1], [0, 0, 1, 1], [], []>} : vector<2x64xf32>, vector<64x256xf32>, vector<2x256xf32> -> vector<2x256xf32>
    %460 = vector.broadcast %5 : vector<1x256xf32> to vector<2x256xf32>
    %461 = arith.addf %459, %460 : vector<2x256xf32>
    %c2_209 = arith.constant 2 : index
    %c0_210 = arith.constant 0 : index
    %c0_211 = arith.constant 0 : index
    %462 = vector.load %arg15[%c2_209, %c0_210, %c0_211] : memref<8x2x256xf32, #tpu.memory_space<vmem>>, vector<1x2x256xf32>
    %463 = vector.shape_cast %462 : vector<1x2x256xf32> to vector<2x256xf32>
    %464 = vector.shape_cast %461 : vector<2x256xf32> to vector<1x2x256xf32>
    tpu.vector_store %arg15[%c2_209, %c0_210, %c0_211], %464 {strides = array<i32>} : memref<8x2x256xf32, #tpu.memory_space<vmem>>, vector<1x2x256xf32>,
    %c3_212 = arith.constant 3 : index
    %c0_213 = arith.constant 0 : index
    %c0_214 = arith.constant 0 : index
    %465 = vector.load %arg16[%c3_212, %c0_213, %c0_214] : memref<8x2x64xf32, #tpu.memory_space<vmem>>, vector<1x2x64xf32>
    %466 = vector.shape_cast %465 : vector<1x2x64xf32> to vector<2x64xf32>
    %cst_215 = arith.constant dense<0.000000e+00> : vector<2x256xf32>
    %467 = tpu.matmul %466, %4, %cst_215 {dimension_numbers = #tpu.dot_dimension_numbers<[1], [0], [0], [1], [0, 0, 1, 1], [], []>} : vector<2x64xf32>, vector<64x256xf32>, vector<2x256xf32> -> vector<2x256xf32>
    %468 = vector.broadcast %5 : vector<1x256xf32> to vector<2x256xf32>
    %469 = arith.addf %467, %468 : vector<2x256xf32>
    %c3_216 = arith.constant 3 : index
    %c0_217 = arith.constant 0 : index
    %c0_218 = arith.constant 0 : index
    %470 = vector.load %arg15[%c3_216, %c0_217, %c0_218] : memref<8x2x256xf32, #tpu.memory_space<vmem>>, vector<1x2x256xf32>
    %471 = vector.shape_cast %470 : vector<1x2x256xf32> to vector<2x256xf32>
    %472 = vector.shape_cast %469 : vector<2x256xf32> to vector<1x2x256xf32>
    tpu.vector_store %arg15[%c3_216, %c0_217, %c0_218], %472 {strides = array<i32>} : memref<8x2x256xf32, #tpu.memory_space<vmem>>, vector<1x2x256xf32>,
    %c4_219 = arith.constant 4 : index
    %c0_220 = arith.constant 0 : index
    %c0_221 = arith.constant 0 : index
    %473 = vector.load %arg16[%c4_219, %c0_220, %c0_221] : memref<8x2x64xf32, #tpu.memory_space<vmem>>, vector<1x2x64xf32>
    %474 = vector.shape_cast %473 : vector<1x2x64xf32> to vector<2x64xf32>
    %cst_222 = arith.constant dense<0.000000e+00> : vector<2x256xf32>
    %475 = tpu.matmul %474, %4, %cst_222 {dimension_numbers = #tpu.dot_dimension_numbers<[1], [0], [0], [1], [0, 0, 1, 1], [], []>} : vector<2x64xf32>, vector<64x256xf32>, vector<2x256xf32> -> vector<2x256xf32>
    %476 = vector.broadcast %5 : vector<1x256xf32> to vector<2x256xf32>
    %477 = arith.addf %475, %476 : vector<2x256xf32>
    %c4_223 = arith.constant 4 : index
    %c0_224 = arith.constant 0 : index
    %c0_225 = arith.constant 0 : index
    %478 = vector.load %arg15[%c4_223, %c0_224, %c0_225] : memref<8x2x256xf32, #tpu.memory_space<vmem>>, vector<1x2x256xf32>
    %479 = vector.shape_cast %478 : vector<1x2x256xf32> to vector<2x256xf32>
    %480 = vector.shape_cast %477 : vector<2x256xf32> to vector<1x2x256xf32>
    tpu.vector_store %arg15[%c4_223, %c0_224, %c0_225], %480 {strides = array<i32>} : memref<8x2x256xf32, #tpu.memory_space<vmem>>, vector<1x2x256xf32>,
    %c5_226 = arith.constant 5 : index
    %c0_227 = arith.constant 0 : index
    %c0_228 = arith.constant 0 : index
    %481 = vector.load %arg16[%c5_226, %c0_227, %c0_228] : memref<8x2x64xf32, #tpu.memory_space<vmem>>, vector<1x2x64xf32>
    %482 = vector.shape_cast %481 : vector<1x2x64xf32> to vector<2x64xf32>
    %cst_229 = arith.constant dense<0.000000e+00> : vector<2x256xf32>
    %483 = tpu.matmul %482, %4, %cst_229 {dimension_numbers = #tpu.dot_dimension_numbers<[1], [0], [0], [1], [0, 0, 1, 1], [], []>} : vector<2x64xf32>, vector<64x256xf32>, vector<2x256xf32> -> vector<2x256xf32>
    %484 = vector.broadcast %5 : vector<1x256xf32> to vector<2x256xf32>
    %485 = arith.addf %483, %484 : vector<2x256xf32>
    %c5_230 = arith.constant 5 : index
    %c0_231 = arith.constant 0 : index
    %c0_232 = arith.constant 0 : index
    %486 = vector.load %arg15[%c5_230, %c0_231, %c0_232] : memref<8x2x256xf32, #tpu.memory_space<vmem>>, vector<1x2x256xf32>
    %487 = vector.shape_cast %486 : vector<1x2x256xf32> to vector<2x256xf32>
    %488 = vector.shape_cast %485 : vector<2x256xf32> to vector<1x2x256xf32>
    tpu.vector_store %arg15[%c5_230, %c0_231, %c0_232], %488 {strides = array<i32>} : memref<8x2x256xf32, #tpu.memory_space<vmem>>, vector<1x2x256xf32>,
    %c6_233 = arith.constant 6 : index
    %c0_234 = arith.constant 0 : index
    %c0_235 = arith.constant 0 : index
    %489 = vector.load %arg16[%c6_233, %c0_234, %c0_235] : memref<8x2x64xf32, #tpu.memory_space<vmem>>, vector<1x2x64xf32>
    %490 = vector.shape_cast %489 : vector<1x2x64xf32> to vector<2x64xf32>
    %cst_236 = arith.constant dense<0.000000e+00> : vector<2x256xf32>
    %491 = tpu.matmul %490, %4, %cst_236 {dimension_numbers = #tpu.dot_dimension_numbers<[1], [0], [0], [1], [0, 0, 1, 1], [], []>} : vector<2x64xf32>, vector<64x256xf32>, vector<2x256xf32> -> vector<2x256xf32>
    %492 = vector.broadcast %5 : vector<1x256xf32> to vector<2x256xf32>
    %493 = arith.addf %491, %492 : vector<2x256xf32>
    %c6_237 = arith.constant 6 : index
    %c0_238 = arith.constant 0 : index
    %c0_239 = arith.constant 0 : index
    %494 = vector.load %arg15[%c6_237, %c0_238, %c0_239] : memref<8x2x256xf32, #tpu.memory_space<vmem>>, vector<1x2x256xf32>
    %495 = vector.shape_cast %494 : vector<1x2x256xf32> to vector<2x256xf32>
    %496 = vector.shape_cast %493 : vector<2x256xf32> to vector<1x2x256xf32>
    tpu.vector_store %arg15[%c6_237, %c0_238, %c0_239], %496 {strides = array<i32>} : memref<8x2x256xf32, #tpu.memory_space<vmem>>, vector<1x2x256xf32>,
    %c7_240 = arith.constant 7 : index
    %c0_241 = arith.constant 0 : index
    %c0_242 = arith.constant 0 : index
    %497 = vector.load %arg16[%c7_240, %c0_241, %c0_242] : memref<8x2x64xf32, #tpu.memory_space<vmem>>, vector<1x2x64xf32>
    %498 = vector.shape_cast %497 : vector<1x2x64xf32> to vector<2x64xf32>
    %cst_243 = arith.constant dense<0.000000e+00> : vector<2x256xf32>
    %499 = tpu.matmul %498, %4, %cst_243 {dimension_numbers = #tpu.dot_dimension_numbers<[1], [0], [0], [1], [0, 0, 1, 1], [], []>} : vector<2x64xf32>, vector<64x256xf32>, vector<2x256xf32> -> vector<2x256xf32>
    %500 = vector.broadcast %5 : vector<1x256xf32> to vector<2x256xf32>
    %501 = arith.addf %499, %500 : vector<2x256xf32>
    %c7_244 = arith.constant 7 : index
    %c0_245 = arith.constant 0 : index
    %c0_246 = arith.constant 0 : index
    %502 = vector.load %arg15[%c7_244, %c0_245, %c0_246] : memref<8x2x256xf32, #tpu.memory_space<vmem>>, vector<1x2x256xf32>
    %503 = vector.shape_cast %502 : vector<1x2x256xf32> to vector<2x256xf32>
    %504 = vector.shape_cast %501 : vector<2x256xf32> to vector<1x2x256xf32>
    tpu.vector_store %arg15[%c7_244, %c0_245, %c0_246], %504 {strides = array<i32>} : memref<8x2x256xf32, #tpu.memory_space<vmem>>, vector<1x2x256xf32>,
    %c0_247 = arith.constant 0 : index
    %c0_248 = arith.constant 0 : index
    %c0_249 = arith.constant 0 : index
    %505 = vector.load %arg15[%c0_247, %c0_248, %c0_249] : memref<8x2x256xf32, #tpu.memory_space<vmem>>, vector<1x2x256xf32>
    %506 = vector.shape_cast %505 : vector<1x2x256xf32> to vector<2x256xf32>
    %507 = vector.extract_strided_slice %506 {offsets = [0, 0], sizes = [2, 128], strides = [1, 1]} : vector<2x256xf32> to vector<2x128xf32>
    %cst_250 = arith.constant dense<0.000000e+00> : vector<2x128xf32>
    %508 = tpu.matmul %8, %6, %cst_250 {dimension_numbers = #tpu.dot_dimension_numbers<[1], [0], [0], [1], [0, 0, 1, 1], [], []>} : vector<2x32xf32>, vector<32x128xf32>, vector<2x128xf32> -> vector<2x128xf32>
    %509 = arith.addf %507, %508 : vector<2x128xf32>
    %c7_251 = arith.constant 7 : index
    %c0_252 = arith.constant 0 : index
    %c0_253 = arith.constant 0 : index
    %510 = vector.load %arg15[%c7_251, %c0_252, %c0_253] : memref<8x2x256xf32, #tpu.memory_space<vmem>>, vector<1x2x256xf32>
    %511 = vector.shape_cast %510 : vector<1x2x256xf32> to vector<2x256xf32>
    %512 = vector.extract_strided_slice %511 {offsets = [0, 128], sizes = [2, 128], strides = [1, 1]} : vector<2x256xf32> to vector<2x128xf32>
    %cst_254 = arith.constant dense<0.000000e+00> : vector<2x128xf32>
    %513 = tpu.matmul %8, %7, %cst_254 {dimension_numbers = #tpu.dot_dimension_numbers<[1], [0], [0], [1], [0, 0, 1, 1], [], []>} : vector<2x32xf32>, vector<32x128xf32>, vector<2x128xf32> -> vector<2x128xf32>
    %514 = arith.addf %512, %513 : vector<2x128xf32>
    %515 = arith.negf %509 : vector<2x128xf32>
    %516 = math.exp %515 : vector<2x128xf32>
    %cst_255 = arith.constant 1.000000e+00 : f32
    %517 = vector.broadcast %cst_255 : f32 to vector<2x128xf32>
    %518 = arith.addf %517, %516 : vector<2x128xf32>
    %519 = arith.divf %517, %518 : vector<2x128xf32>
    %520 = math.tanh %509 : vector<2x128xf32>
    %521 = vector.extract_strided_slice %519 {offsets = [0, 0], sizes = [2, 32], strides = [1, 1]} : vector<2x128xf32> to vector<2x32xf32>
    %522 = vector.extract_strided_slice %519 {offsets = [0, 32], sizes = [2, 32], strides = [1, 1]} : vector<2x128xf32> to vector<2x32xf32>
    %523 = vector.extract_strided_slice %520 {offsets = [0, 64], sizes = [2, 32], strides = [1, 1]} : vector<2x128xf32> to vector<2x32xf32>
    %524 = vector.extract_strided_slice %519 {offsets = [0, 96], sizes = [2, 32], strides = [1, 1]} : vector<2x128xf32> to vector<2x32xf32>
    %525 = arith.mulf %522, %8 : vector<2x32xf32>
    %526 = arith.mulf %521, %523 : vector<2x32xf32>
    %527 = arith.addf %525, %526 : vector<2x32xf32>
    %528 = math.tanh %527 : vector<2x32xf32>
    %529 = arith.mulf %524, %528 : vector<2x32xf32>
    %530 = arith.negf %514 : vector<2x128xf32>
    %531 = math.exp %530 : vector<2x128xf32>
    %cst_256 = arith.constant 1.000000e+00 : f32
    %532 = vector.broadcast %cst_256 : f32 to vector<2x128xf32>
    %533 = arith.addf %532, %531 : vector<2x128xf32>
    %534 = arith.divf %532, %533 : vector<2x128xf32>
    %535 = math.tanh %514 : vector<2x128xf32>
    %536 = vector.extract_strided_slice %534 {offsets = [0, 0], sizes = [2, 32], strides = [1, 1]} : vector<2x128xf32> to vector<2x32xf32>
    %537 = vector.extract_strided_slice %534 {offsets = [0, 32], sizes = [2, 32], strides = [1, 1]} : vector<2x128xf32> to vector<2x32xf32>
    %538 = vector.extract_strided_slice %535 {offsets = [0, 64], sizes = [2, 32], strides = [1, 1]} : vector<2x128xf32> to vector<2x32xf32>
    %539 = vector.extract_strided_slice %534 {offsets = [0, 96], sizes = [2, 32], strides = [1, 1]} : vector<2x128xf32> to vector<2x32xf32>
    %540 = arith.mulf %537, %8 : vector<2x32xf32>
    %541 = arith.mulf %536, %538 : vector<2x32xf32>
    %542 = arith.addf %540, %541 : vector<2x32xf32>
    %543 = math.tanh %542 : vector<2x32xf32>
    %544 = arith.mulf %539, %543 : vector<2x32xf32>
    %c1_257 = arith.constant 1 : index
    %c0_258 = arith.constant 0 : index
    %c0_259 = arith.constant 0 : index
    %545 = vector.load %arg15[%c1_257, %c0_258, %c0_259] : memref<8x2x256xf32, #tpu.memory_space<vmem>>, vector<1x2x256xf32>
    %546 = vector.shape_cast %545 : vector<1x2x256xf32> to vector<2x256xf32>
    %547 = vector.extract_strided_slice %546 {offsets = [0, 0], sizes = [2, 128], strides = [1, 1]} : vector<2x256xf32> to vector<2x128xf32>
    %cst_260 = arith.constant dense<0.000000e+00> : vector<2x128xf32>
    %548 = tpu.matmul %529, %6, %cst_260 {dimension_numbers = #tpu.dot_dimension_numbers<[1], [0], [0], [1], [0, 0, 1, 1], [], []>} : vector<2x32xf32>, vector<32x128xf32>, vector<2x128xf32> -> vector<2x128xf32>
    %549 = arith.addf %547, %548 : vector<2x128xf32>
    %c6_261 = arith.constant 6 : index
    %c0_262 = arith.constant 0 : index
    %c0_263 = arith.constant 0 : index
    %550 = vector.load %arg15[%c6_261, %c0_262, %c0_263] : memref<8x2x256xf32, #tpu.memory_space<vmem>>, vector<1x2x256xf32>
    %551 = vector.shape_cast %550 : vector<1x2x256xf32> to vector<2x256xf32>
    %552 = vector.extract_strided_slice %551 {offsets = [0, 128], sizes = [2, 128], strides = [1, 1]} : vector<2x256xf32> to vector<2x128xf32>
    %cst_264 = arith.constant dense<0.000000e+00> : vector<2x128xf32>
    %553 = tpu.matmul %544, %7, %cst_264 {dimension_numbers = #tpu.dot_dimension_numbers<[1], [0], [0], [1], [0, 0, 1, 1], [], []>} : vector<2x32xf32>, vector<32x128xf32>, vector<2x128xf32> -> vector<2x128xf32>
    %554 = arith.addf %552, %553 : vector<2x128xf32>
    %555 = arith.negf %549 : vector<2x128xf32>
    %556 = math.exp %555 : vector<2x128xf32>
    %cst_265 = arith.constant 1.000000e+00 : f32
    %557 = vector.broadcast %cst_265 : f32 to vector<2x128xf32>
    %558 = arith.addf %557, %556 : vector<2x128xf32>
    %559 = arith.divf %557, %558 : vector<2x128xf32>
    %560 = math.tanh %549 : vector<2x128xf32>
    %561 = vector.extract_strided_slice %559 {offsets = [0, 0], sizes = [2, 32], strides = [1, 1]} : vector<2x128xf32> to vector<2x32xf32>
    %562 = vector.extract_strided_slice %559 {offsets = [0, 32], sizes = [2, 32], strides = [1, 1]} : vector<2x128xf32> to vector<2x32xf32>
    %563 = vector.extract_strided_slice %560 {offsets = [0, 64], sizes = [2, 32], strides = [1, 1]} : vector<2x128xf32> to vector<2x32xf32>
    %564 = vector.extract_strided_slice %559 {offsets = [0, 96], sizes = [2, 32], strides = [1, 1]} : vector<2x128xf32> to vector<2x32xf32>
    %565 = arith.mulf %562, %527 : vector<2x32xf32>
    %566 = arith.mulf %561, %563 : vector<2x32xf32>
    %567 = arith.addf %565, %566 : vector<2x32xf32>
    %568 = math.tanh %567 : vector<2x32xf32>
    %569 = arith.mulf %564, %568 : vector<2x32xf32>
    %570 = arith.negf %554 : vector<2x128xf32>
    %571 = math.exp %570 : vector<2x128xf32>
    %cst_266 = arith.constant 1.000000e+00 : f32
    %572 = vector.broadcast %cst_266 : f32 to vector<2x128xf32>
    %573 = arith.addf %572, %571 : vector<2x128xf32>
    %574 = arith.divf %572, %573 : vector<2x128xf32>
    %575 = math.tanh %554 : vector<2x128xf32>
    %576 = vector.extract_strided_slice %574 {offsets = [0, 0], sizes = [2, 32], strides = [1, 1]} : vector<2x128xf32> to vector<2x32xf32>
    %577 = vector.extract_strided_slice %574 {offsets = [0, 32], sizes = [2, 32], strides = [1, 1]} : vector<2x128xf32> to vector<2x32xf32>
    %578 = vector.extract_strided_slice %575 {offsets = [0, 64], sizes = [2, 32], strides = [1, 1]} : vector<2x128xf32> to vector<2x32xf32>
    %579 = vector.extract_strided_slice %574 {offsets = [0, 96], sizes = [2, 32], strides = [1, 1]} : vector<2x128xf32> to vector<2x32xf32>
    %580 = arith.mulf %577, %542 : vector<2x32xf32>
    %581 = arith.mulf %576, %578 : vector<2x32xf32>
    %582 = arith.addf %580, %581 : vector<2x32xf32>
    %583 = math.tanh %582 : vector<2x32xf32>
    %584 = arith.mulf %579, %583 : vector<2x32xf32>
    %c2_267 = arith.constant 2 : index
    %c0_268 = arith.constant 0 : index
    %c0_269 = arith.constant 0 : index
    %585 = vector.load %arg15[%c2_267, %c0_268, %c0_269] : memref<8x2x256xf32, #tpu.memory_space<vmem>>, vector<1x2x256xf32>
    %586 = vector.shape_cast %585 : vector<1x2x256xf32> to vector<2x256xf32>
    %587 = vector.extract_strided_slice %586 {offsets = [0, 0], sizes = [2, 128], strides = [1, 1]} : vector<2x256xf32> to vector<2x128xf32>
    %cst_270 = arith.constant dense<0.000000e+00> : vector<2x128xf32>
    %588 = tpu.matmul %569, %6, %cst_270 {dimension_numbers = #tpu.dot_dimension_numbers<[1], [0], [0], [1], [0, 0, 1, 1], [], []>} : vector<2x32xf32>, vector<32x128xf32>, vector<2x128xf32> -> vector<2x128xf32>
    %589 = arith.addf %587, %588 : vector<2x128xf32>
    %c5_271 = arith.constant 5 : index
    %c0_272 = arith.constant 0 : index
    %c0_273 = arith.constant 0 : index
    %590 = vector.load %arg15[%c5_271, %c0_272, %c0_273] : memref<8x2x256xf32, #tpu.memory_space<vmem>>, vector<1x2x256xf32>
    %591 = vector.shape_cast %590 : vector<1x2x256xf32> to vector<2x256xf32>
    %592 = vector.extract_strided_slice %591 {offsets = [0, 128], sizes = [2, 128], strides = [1, 1]} : vector<2x256xf32> to vector<2x128xf32>
    %cst_274 = arith.constant dense<0.000000e+00> : vector<2x128xf32>
    %593 = tpu.matmul %584, %7, %cst_274 {dimension_numbers = #tpu.dot_dimension_numbers<[1], [0], [0], [1], [0, 0, 1, 1], [], []>} : vector<2x32xf32>, vector<32x128xf32>, vector<2x128xf32> -> vector<2x128xf32>
    %594 = arith.addf %592, %593 : vector<2x128xf32>
    %595 = arith.negf %589 : vector<2x128xf32>
    %596 = math.exp %595 : vector<2x128xf32>
    %cst_275 = arith.constant 1.000000e+00 : f32
    %597 = vector.broadcast %cst_275 : f32 to vector<2x128xf32>
    %598 = arith.addf %597, %596 : vector<2x128xf32>
    %599 = arith.divf %597, %598 : vector<2x128xf32>
    %600 = math.tanh %589 : vector<2x128xf32>
    %601 = vector.extract_strided_slice %599 {offsets = [0, 0], sizes = [2, 32], strides = [1, 1]} : vector<2x128xf32> to vector<2x32xf32>
    %602 = vector.extract_strided_slice %599 {offsets = [0, 32], sizes = [2, 32], strides = [1, 1]} : vector<2x128xf32> to vector<2x32xf32>
    %603 = vector.extract_strided_slice %600 {offsets = [0, 64], sizes = [2, 32], strides = [1, 1]} : vector<2x128xf32> to vector<2x32xf32>
    %604 = vector.extract_strided_slice %599 {offsets = [0, 96], sizes = [2, 32], strides = [1, 1]} : vector<2x128xf32> to vector<2x32xf32>
    %605 = arith.mulf %602, %567 : vector<2x32xf32>
    %606 = arith.mulf %601, %603 : vector<2x32xf32>
    %607 = arith.addf %605, %606 : vector<2x32xf32>
    %608 = math.tanh %607 : vector<2x32xf32>
    %609 = arith.mulf %604, %608 : vector<2x32xf32>
    %610 = arith.negf %594 : vector<2x128xf32>
    %611 = math.exp %610 : vector<2x128xf32>
    %cst_276 = arith.constant 1.000000e+00 : f32
    %612 = vector.broadcast %cst_276 : f32 to vector<2x128xf32>
    %613 = arith.addf %612, %611 : vector<2x128xf32>
    %614 = arith.divf %612, %613 : vector<2x128xf32>
    %615 = math.tanh %594 : vector<2x128xf32>
    %616 = vector.extract_strided_slice %614 {offsets = [0, 0], sizes = [2, 32], strides = [1, 1]} : vector<2x128xf32> to vector<2x32xf32>
    %617 = vector.extract_strided_slice %614 {offsets = [0, 32], sizes = [2, 32], strides = [1, 1]} : vector<2x128xf32> to vector<2x32xf32>
    %618 = vector.extract_strided_slice %615 {offsets = [0, 64], sizes = [2, 32], strides = [1, 1]} : vector<2x128xf32> to vector<2x32xf32>
    %619 = vector.extract_strided_slice %614 {offsets = [0, 96], sizes = [2, 32], strides = [1, 1]} : vector<2x128xf32> to vector<2x32xf32>
    %620 = arith.mulf %617, %582 : vector<2x32xf32>
    %621 = arith.mulf %616, %618 : vector<2x32xf32>
    %622 = arith.addf %620, %621 : vector<2x32xf32>
    %623 = math.tanh %622 : vector<2x32xf32>
    %624 = arith.mulf %619, %623 : vector<2x32xf32>
    %c3_277 = arith.constant 3 : index
    %c0_278 = arith.constant 0 : index
    %c0_279 = arith.constant 0 : index
    %625 = vector.load %arg15[%c3_277, %c0_278, %c0_279] : memref<8x2x256xf32, #tpu.memory_space<vmem>>, vector<1x2x256xf32>
    %626 = vector.shape_cast %625 : vector<1x2x256xf32> to vector<2x256xf32>
    %627 = vector.extract_strided_slice %626 {offsets = [0, 0], sizes = [2, 128], strides = [1, 1]} : vector<2x256xf32> to vector<2x128xf32>
    %cst_280 = arith.constant dense<0.000000e+00> : vector<2x128xf32>
    %628 = tpu.matmul %609, %6, %cst_280 {dimension_numbers = #tpu.dot_dimension_numbers<[1], [0], [0], [1], [0, 0, 1, 1], [], []>} : vector<2x32xf32>, vector<32x128xf32>, vector<2x128xf32> -> vector<2x128xf32>
    %629 = arith.addf %627, %628 : vector<2x128xf32>
    %c4_281 = arith.constant 4 : index
    %c0_282 = arith.constant 0 : index
    %c0_283 = arith.constant 0 : index
    %630 = vector.load %arg15[%c4_281, %c0_282, %c0_283] : memref<8x2x256xf32, #tpu.memory_space<vmem>>, vector<1x2x256xf32>
    %631 = vector.shape_cast %630 : vector<1x2x256xf32> to vector<2x256xf32>
    %632 = vector.extract_strided_slice %631 {offsets = [0, 128], sizes = [2, 128], strides = [1, 1]} : vector<2x256xf32> to vector<2x128xf32>
    %cst_284 = arith.constant dense<0.000000e+00> : vector<2x128xf32>
    %633 = tpu.matmul %624, %7, %cst_284 {dimension_numbers = #tpu.dot_dimension_numbers<[1], [0], [0], [1], [0, 0, 1, 1], [], []>} : vector<2x32xf32>, vector<32x128xf32>, vector<2x128xf32> -> vector<2x128xf32>
    %634 = arith.addf %632, %633 : vector<2x128xf32>
    %635 = arith.negf %629 : vector<2x128xf32>
    %636 = math.exp %635 : vector<2x128xf32>
    %cst_285 = arith.constant 1.000000e+00 : f32
    %637 = vector.broadcast %cst_285 : f32 to vector<2x128xf32>
    %638 = arith.addf %637, %636 : vector<2x128xf32>
    %639 = arith.divf %637, %638 : vector<2x128xf32>
    %640 = math.tanh %629 : vector<2x128xf32>
    %641 = vector.extract_strided_slice %639 {offsets = [0, 0], sizes = [2, 32], strides = [1, 1]} : vector<2x128xf32> to vector<2x32xf32>
    %642 = vector.extract_strided_slice %639 {offsets = [0, 32], sizes = [2, 32], strides = [1, 1]} : vector<2x128xf32> to vector<2x32xf32>
    %643 = vector.extract_strided_slice %640 {offsets = [0, 64], sizes = [2, 32], strides = [1, 1]} : vector<2x128xf32> to vector<2x32xf32>
    %644 = vector.extract_strided_slice %639 {offsets = [0, 96], sizes = [2, 32], strides = [1, 1]} : vector<2x128xf32> to vector<2x32xf32>
    %645 = arith.mulf %642, %607 : vector<2x32xf32>
    %646 = arith.mulf %641, %643 : vector<2x32xf32>
    %647 = arith.addf %645, %646 : vector<2x32xf32>
    %648 = math.tanh %647 : vector<2x32xf32>
    %649 = arith.mulf %644, %648 : vector<2x32xf32>
    %650 = arith.negf %634 : vector<2x128xf32>
    %651 = math.exp %650 : vector<2x128xf32>
    %cst_286 = arith.constant 1.000000e+00 : f32
    %652 = vector.broadcast %cst_286 : f32 to vector<2x128xf32>
    %653 = arith.addf %652, %651 : vector<2x128xf32>
    %654 = arith.divf %652, %653 : vector<2x128xf32>
    %655 = math.tanh %634 : vector<2x128xf32>
    %656 = vector.extract_strided_slice %654 {offsets = [0, 0], sizes = [2, 32], strides = [1, 1]} : vector<2x128xf32> to vector<2x32xf32>
    %657 = vector.extract_strided_slice %654 {offsets = [0, 32], sizes = [2, 32], strides = [1, 1]} : vector<2x128xf32> to vector<2x32xf32>
    %658 = vector.extract_strided_slice %655 {offsets = [0, 64], sizes = [2, 32], strides = [1, 1]} : vector<2x128xf32> to vector<2x32xf32>
    %659 = vector.extract_strided_slice %654 {offsets = [0, 96], sizes = [2, 32], strides = [1, 1]} : vector<2x128xf32> to vector<2x32xf32>
    %660 = arith.mulf %657, %622 : vector<2x32xf32>
    %661 = arith.mulf %656, %658 : vector<2x32xf32>
    %662 = arith.addf %660, %661 : vector<2x32xf32>
    %663 = math.tanh %662 : vector<2x32xf32>
    %664 = arith.mulf %659, %663 : vector<2x32xf32>
    %c4_287 = arith.constant 4 : index
    %c0_288 = arith.constant 0 : index
    %c0_289 = arith.constant 0 : index
    %665 = vector.load %arg15[%c4_287, %c0_288, %c0_289] : memref<8x2x256xf32, #tpu.memory_space<vmem>>, vector<1x2x256xf32>
    %666 = vector.shape_cast %665 : vector<1x2x256xf32> to vector<2x256xf32>
    %667 = vector.extract_strided_slice %666 {offsets = [0, 0], sizes = [2, 128], strides = [1, 1]} : vector<2x256xf32> to vector<2x128xf32>
    %cst_290 = arith.constant dense<0.000000e+00> : vector<2x128xf32>
    %668 = tpu.matmul %649, %6, %cst_290 {dimension_numbers = #tpu.dot_dimension_numbers<[1], [0], [0], [1], [0, 0, 1, 1], [], []>} : vector<2x32xf32>, vector<32x128xf32>, vector<2x128xf32> -> vector<2x128xf32>
    %669 = arith.addf %667, %668 : vector<2x128xf32>
    %c3_291 = arith.constant 3 : index
    %c0_292 = arith.constant 0 : index
    %c0_293 = arith.constant 0 : index
    %670 = vector.load %arg15[%c3_291, %c0_292, %c0_293] : memref<8x2x256xf32, #tpu.memory_space<vmem>>, vector<1x2x256xf32>
    %671 = vector.shape_cast %670 : vector<1x2x256xf32> to vector<2x256xf32>
    %672 = vector.extract_strided_slice %671 {offsets = [0, 128], sizes = [2, 128], strides = [1, 1]} : vector<2x256xf32> to vector<2x128xf32>
    %cst_294 = arith.constant dense<0.000000e+00> : vector<2x128xf32>
    %673 = tpu.matmul %664, %7, %cst_294 {dimension_numbers = #tpu.dot_dimension_numbers<[1], [0], [0], [1], [0, 0, 1, 1], [], []>} : vector<2x32xf32>, vector<32x128xf32>, vector<2x128xf32> -> vector<2x128xf32>
    %674 = arith.addf %672, %673 : vector<2x128xf32>
    %675 = arith.negf %669 : vector<2x128xf32>
    %676 = math.exp %675 : vector<2x128xf32>
    %cst_295 = arith.constant 1.000000e+00 : f32
    %677 = vector.broadcast %cst_295 : f32 to vector<2x128xf32>
    %678 = arith.addf %677, %676 : vector<2x128xf32>
    %679 = arith.divf %677, %678 : vector<2x128xf32>
    %680 = math.tanh %669 : vector<2x128xf32>
    %681 = vector.extract_strided_slice %679 {offsets = [0, 0], sizes = [2, 32], strides = [1, 1]} : vector<2x128xf32> to vector<2x32xf32>
    %682 = vector.extract_strided_slice %679 {offsets = [0, 32], sizes = [2, 32], strides = [1, 1]} : vector<2x128xf32> to vector<2x32xf32>
    %683 = vector.extract_strided_slice %680 {offsets = [0, 64], sizes = [2, 32], strides = [1, 1]} : vector<2x128xf32> to vector<2x32xf32>
    %684 = vector.extract_strided_slice %679 {offsets = [0, 96], sizes = [2, 32], strides = [1, 1]} : vector<2x128xf32> to vector<2x32xf32>
    %685 = arith.mulf %682, %647 : vector<2x32xf32>
    %686 = arith.mulf %681, %683 : vector<2x32xf32>
    %687 = arith.addf %685, %686 : vector<2x32xf32>
    %688 = math.tanh %687 : vector<2x32xf32>
    %689 = arith.mulf %684, %688 : vector<2x32xf32>
    %690 = arith.negf %674 : vector<2x128xf32>
    %691 = math.exp %690 : vector<2x128xf32>
    %cst_296 = arith.constant 1.000000e+00 : f32
    %692 = vector.broadcast %cst_296 : f32 to vector<2x128xf32>
    %693 = arith.addf %692, %691 : vector<2x128xf32>
    %694 = arith.divf %692, %693 : vector<2x128xf32>
    %695 = math.tanh %674 : vector<2x128xf32>
    %696 = vector.extract_strided_slice %694 {offsets = [0, 0], sizes = [2, 32], strides = [1, 1]} : vector<2x128xf32> to vector<2x32xf32>
    %697 = vector.extract_strided_slice %694 {offsets = [0, 32], sizes = [2, 32], strides = [1, 1]} : vector<2x128xf32> to vector<2x32xf32>
    %698 = vector.extract_strided_slice %695 {offsets = [0, 64], sizes = [2, 32], strides = [1, 1]} : vector<2x128xf32> to vector<2x32xf32>
    %699 = vector.extract_strided_slice %694 {offsets = [0, 96], sizes = [2, 32], strides = [1, 1]} : vector<2x128xf32> to vector<2x32xf32>
    %700 = arith.mulf %697, %662 : vector<2x32xf32>
    %701 = arith.mulf %696, %698 : vector<2x32xf32>
    %702 = arith.addf %700, %701 : vector<2x32xf32>
    %703 = math.tanh %702 : vector<2x32xf32>
    %704 = arith.mulf %699, %703 : vector<2x32xf32>
    %c5_297 = arith.constant 5 : index
    %c0_298 = arith.constant 0 : index
    %c0_299 = arith.constant 0 : index
    %705 = vector.load %arg15[%c5_297, %c0_298, %c0_299] : memref<8x2x256xf32, #tpu.memory_space<vmem>>, vector<1x2x256xf32>
    %706 = vector.shape_cast %705 : vector<1x2x256xf32> to vector<2x256xf32>
    %707 = vector.extract_strided_slice %706 {offsets = [0, 0], sizes = [2, 128], strides = [1, 1]} : vector<2x256xf32> to vector<2x128xf32>
    %cst_300 = arith.constant dense<0.000000e+00> : vector<2x128xf32>
    %708 = tpu.matmul %689, %6, %cst_300 {dimension_numbers = #tpu.dot_dimension_numbers<[1], [0], [0], [1], [0, 0, 1, 1], [], []>} : vector<2x32xf32>, vector<32x128xf32>, vector<2x128xf32> -> vector<2x128xf32>
    %709 = arith.addf %707, %708 : vector<2x128xf32>
    %c2_301 = arith.constant 2 : index
    %c0_302 = arith.constant 0 : index
    %c0_303 = arith.constant 0 : index
    %710 = vector.load %arg15[%c2_301, %c0_302, %c0_303] : memref<8x2x256xf32, #tpu.memory_space<vmem>>, vector<1x2x256xf32>
    %711 = vector.shape_cast %710 : vector<1x2x256xf32> to vector<2x256xf32>
    %712 = vector.extract_strided_slice %711 {offsets = [0, 128], sizes = [2, 128], strides = [1, 1]} : vector<2x256xf32> to vector<2x128xf32>
    %cst_304 = arith.constant dense<0.000000e+00> : vector<2x128xf32>
    %713 = tpu.matmul %704, %7, %cst_304 {dimension_numbers = #tpu.dot_dimension_numbers<[1], [0], [0], [1], [0, 0, 1, 1], [], []>} : vector<2x32xf32>, vector<32x128xf32>, vector<2x128xf32> -> vector<2x128xf32>
    %714 = arith.addf %712, %713 : vector<2x128xf32>
    %715 = arith.negf %709 : vector<2x128xf32>
    %716 = math.exp %715 : vector<2x128xf32>
    %cst_305 = arith.constant 1.000000e+00 : f32
    %717 = vector.broadcast %cst_305 : f32 to vector<2x128xf32>
    %718 = arith.addf %717, %716 : vector<2x128xf32>
    %719 = arith.divf %717, %718 : vector<2x128xf32>
    %720 = math.tanh %709 : vector<2x128xf32>
    %721 = vector.extract_strided_slice %719 {offsets = [0, 0], sizes = [2, 32], strides = [1, 1]} : vector<2x128xf32> to vector<2x32xf32>
    %722 = vector.extract_strided_slice %719 {offsets = [0, 32], sizes = [2, 32], strides = [1, 1]} : vector<2x128xf32> to vector<2x32xf32>
    %723 = vector.extract_strided_slice %720 {offsets = [0, 64], sizes = [2, 32], strides = [1, 1]} : vector<2x128xf32> to vector<2x32xf32>
    %724 = vector.extract_strided_slice %719 {offsets = [0, 96], sizes = [2, 32], strides = [1, 1]} : vector<2x128xf32> to vector<2x32xf32>
    %725 = arith.mulf %722, %687 : vector<2x32xf32>
    %726 = arith.mulf %721, %723 : vector<2x32xf32>
    %727 = arith.addf %725, %726 : vector<2x32xf32>
    %728 = math.tanh %727 : vector<2x32xf32>
    %729 = arith.mulf %724, %728 : vector<2x32xf32>
    %730 = arith.negf %714 : vector<2x128xf32>
    %731 = math.exp %730 : vector<2x128xf32>
    %cst_306 = arith.constant 1.000000e+00 : f32
    %732 = vector.broadcast %cst_306 : f32 to vector<2x128xf32>
    %733 = arith.addf %732, %731 : vector<2x128xf32>
    %734 = arith.divf %732, %733 : vector<2x128xf32>
    %735 = math.tanh %714 : vector<2x128xf32>
    %736 = vector.extract_strided_slice %734 {offsets = [0, 0], sizes = [2, 32], strides = [1, 1]} : vector<2x128xf32> to vector<2x32xf32>
    %737 = vector.extract_strided_slice %734 {offsets = [0, 32], sizes = [2, 32], strides = [1, 1]} : vector<2x128xf32> to vector<2x32xf32>
    %738 = vector.extract_strided_slice %735 {offsets = [0, 64], sizes = [2, 32], strides = [1, 1]} : vector<2x128xf32> to vector<2x32xf32>
    %739 = vector.extract_strided_slice %734 {offsets = [0, 96], sizes = [2, 32], strides = [1, 1]} : vector<2x128xf32> to vector<2x32xf32>
    %740 = arith.mulf %737, %702 : vector<2x32xf32>
    %741 = arith.mulf %736, %738 : vector<2x32xf32>
    %742 = arith.addf %740, %741 : vector<2x32xf32>
    %743 = math.tanh %742 : vector<2x32xf32>
    %744 = arith.mulf %739, %743 : vector<2x32xf32>
    %c6_307 = arith.constant 6 : index
    %c0_308 = arith.constant 0 : index
    %c0_309 = arith.constant 0 : index
    %745 = vector.load %arg15[%c6_307, %c0_308, %c0_309] : memref<8x2x256xf32, #tpu.memory_space<vmem>>, vector<1x2x256xf32>
    %746 = vector.shape_cast %745 : vector<1x2x256xf32> to vector<2x256xf32>
    %747 = vector.extract_strided_slice %746 {offsets = [0, 0], sizes = [2, 128], strides = [1, 1]} : vector<2x256xf32> to vector<2x128xf32>
    %cst_310 = arith.constant dense<0.000000e+00> : vector<2x128xf32>
    %748 = tpu.matmul %729, %6, %cst_310 {dimension_numbers = #tpu.dot_dimension_numbers<[1], [0], [0], [1], [0, 0, 1, 1], [], []>} : vector<2x32xf32>, vector<32x128xf32>, vector<2x128xf32> -> vector<2x128xf32>
    %749 = arith.addf %747, %748 : vector<2x128xf32>
    %c1_311 = arith.constant 1 : index
    %c0_312 = arith.constant 0 : index
    %c0_313 = arith.constant 0 : index
    %750 = vector.load %arg15[%c1_311, %c0_312, %c0_313] : memref<8x2x256xf32, #tpu.memory_space<vmem>>, vector<1x2x256xf32>
    %751 = vector.shape_cast %750 : vector<1x2x256xf32> to vector<2x256xf32>
    %752 = vector.extract_strided_slice %751 {offsets = [0, 128], sizes = [2, 128], strides = [1, 1]} : vector<2x256xf32> to vector<2x128xf32>
    %cst_314 = arith.constant dense<0.000000e+00> : vector<2x128xf32>
    %753 = tpu.matmul %744, %7, %cst_314 {dimension_numbers = #tpu.dot_dimension_numbers<[1], [0], [0], [1], [0, 0, 1, 1], [], []>} : vector<2x32xf32>, vector<32x128xf32>, vector<2x128xf32> -> vector<2x128xf32>
    %754 = arith.addf %752, %753 : vector<2x128xf32>
    %755 = arith.negf %749 : vector<2x128xf32>
    %756 = math.exp %755 : vector<2x128xf32>
    %cst_315 = arith.constant 1.000000e+00 : f32
    %757 = vector.broadcast %cst_315 : f32 to vector<2x128xf32>
    %758 = arith.addf %757, %756 : vector<2x128xf32>
    %759 = arith.divf %757, %758 : vector<2x128xf32>
    %760 = math.tanh %749 : vector<2x128xf32>
    %761 = vector.extract_strided_slice %759 {offsets = [0, 0], sizes = [2, 32], strides = [1, 1]} : vector<2x128xf32> to vector<2x32xf32>
    %762 = vector.extract_strided_slice %759 {offsets = [0, 32], sizes = [2, 32], strides = [1, 1]} : vector<2x128xf32> to vector<2x32xf32>
    %763 = vector.extract_strided_slice %760 {offsets = [0, 64], sizes = [2, 32], strides = [1, 1]} : vector<2x128xf32> to vector<2x32xf32>
    %764 = vector.extract_strided_slice %759 {offsets = [0, 96], sizes = [2, 32], strides = [1, 1]} : vector<2x128xf32> to vector<2x32xf32>
    %765 = arith.mulf %762, %727 : vector<2x32xf32>
    %766 = arith.mulf %761, %763 : vector<2x32xf32>
    %767 = arith.addf %765, %766 : vector<2x32xf32>
    %768 = math.tanh %767 : vector<2x32xf32>
    %769 = arith.mulf %764, %768 : vector<2x32xf32>
    %770 = arith.negf %754 : vector<2x128xf32>
    %771 = math.exp %770 : vector<2x128xf32>
    %cst_316 = arith.constant 1.000000e+00 : f32
    %772 = vector.broadcast %cst_316 : f32 to vector<2x128xf32>
    %773 = arith.addf %772, %771 : vector<2x128xf32>
    %774 = arith.divf %772, %773 : vector<2x128xf32>
    %775 = math.tanh %754 : vector<2x128xf32>
    %776 = vector.extract_strided_slice %774 {offsets = [0, 0], sizes = [2, 32], strides = [1, 1]} : vector<2x128xf32> to vector<2x32xf32>
    %777 = vector.extract_strided_slice %774 {offsets = [0, 32], sizes = [2, 32], strides = [1, 1]} : vector<2x128xf32> to vector<2x32xf32>
    %778 = vector.extract_strided_slice %775 {offsets = [0, 64], sizes = [2, 32], strides = [1, 1]} : vector<2x128xf32> to vector<2x32xf32>
    %779 = vector.extract_strided_slice %774 {offsets = [0, 96], sizes = [2, 32], strides = [1, 1]} : vector<2x128xf32> to vector<2x32xf32>
    %780 = arith.mulf %777, %742 : vector<2x32xf32>
    %781 = arith.mulf %776, %778 : vector<2x32xf32>
    %782 = arith.addf %780, %781 : vector<2x32xf32>
    %783 = math.tanh %782 : vector<2x32xf32>
    %784 = arith.mulf %779, %783 : vector<2x32xf32>
    %c7_317 = arith.constant 7 : index
    %c0_318 = arith.constant 0 : index
    %c0_319 = arith.constant 0 : index
    %785 = vector.load %arg15[%c7_317, %c0_318, %c0_319] : memref<8x2x256xf32, #tpu.memory_space<vmem>>, vector<1x2x256xf32>
    %786 = vector.shape_cast %785 : vector<1x2x256xf32> to vector<2x256xf32>
    %787 = vector.extract_strided_slice %786 {offsets = [0, 0], sizes = [2, 128], strides = [1, 1]} : vector<2x256xf32> to vector<2x128xf32>
    %cst_320 = arith.constant dense<0.000000e+00> : vector<2x128xf32>
    %788 = tpu.matmul %769, %6, %cst_320 {dimension_numbers = #tpu.dot_dimension_numbers<[1], [0], [0], [1], [0, 0, 1, 1], [], []>} : vector<2x32xf32>, vector<32x128xf32>, vector<2x128xf32> -> vector<2x128xf32>
    %789 = arith.addf %787, %788 : vector<2x128xf32>
    %c0_321 = arith.constant 0 : index
    %c0_322 = arith.constant 0 : index
    %c0_323 = arith.constant 0 : index
    %790 = vector.load %arg15[%c0_321, %c0_322, %c0_323] : memref<8x2x256xf32, #tpu.memory_space<vmem>>, vector<1x2x256xf32>
    %791 = vector.shape_cast %790 : vector<1x2x256xf32> to vector<2x256xf32>
    %792 = vector.extract_strided_slice %791 {offsets = [0, 128], sizes = [2, 128], strides = [1, 1]} : vector<2x256xf32> to vector<2x128xf32>
    %cst_324 = arith.constant dense<0.000000e+00> : vector<2x128xf32>
    %793 = tpu.matmul %784, %7, %cst_324 {dimension_numbers = #tpu.dot_dimension_numbers<[1], [0], [0], [1], [0, 0, 1, 1], [], []>} : vector<2x32xf32>, vector<32x128xf32>, vector<2x128xf32> -> vector<2x128xf32>
    %794 = arith.addf %792, %793 : vector<2x128xf32>
    %795 = arith.negf %789 : vector<2x128xf32>
    %796 = math.exp %795 : vector<2x128xf32>
    %cst_325 = arith.constant 1.000000e+00 : f32
    %797 = vector.broadcast %cst_325 : f32 to vector<2x128xf32>
    %798 = arith.addf %797, %796 : vector<2x128xf32>
    %799 = arith.divf %797, %798 : vector<2x128xf32>
    %800 = math.tanh %789 : vector<2x128xf32>
    %801 = vector.extract_strided_slice %799 {offsets = [0, 0], sizes = [2, 32], strides = [1, 1]} : vector<2x128xf32> to vector<2x32xf32>
    %802 = vector.extract_strided_slice %799 {offsets = [0, 32], sizes = [2, 32], strides = [1, 1]} : vector<2x128xf32> to vector<2x32xf32>
    %803 = vector.extract_strided_slice %800 {offsets = [0, 64], sizes = [2, 32], strides = [1, 1]} : vector<2x128xf32> to vector<2x32xf32>
    %804 = vector.extract_strided_slice %799 {offsets = [0, 96], sizes = [2, 32], strides = [1, 1]} : vector<2x128xf32> to vector<2x32xf32>
    %805 = arith.mulf %802, %767 : vector<2x32xf32>
    %806 = arith.mulf %801, %803 : vector<2x32xf32>
    %807 = arith.addf %805, %806 : vector<2x32xf32>
    %808 = math.tanh %807 : vector<2x32xf32>
    %809 = arith.mulf %804, %808 : vector<2x32xf32>
    %810 = arith.negf %794 : vector<2x128xf32>
    %811 = math.exp %810 : vector<2x128xf32>
    %cst_326 = arith.constant 1.000000e+00 : f32
    %812 = vector.broadcast %cst_326 : f32 to vector<2x128xf32>
    %813 = arith.addf %812, %811 : vector<2x128xf32>
    %814 = arith.divf %812, %813 : vector<2x128xf32>
    %815 = math.tanh %794 : vector<2x128xf32>
    %816 = vector.extract_strided_slice %814 {offsets = [0, 0], sizes = [2, 32], strides = [1, 1]} : vector<2x128xf32> to vector<2x32xf32>
    %817 = vector.extract_strided_slice %814 {offsets = [0, 32], sizes = [2, 32], strides = [1, 1]} : vector<2x128xf32> to vector<2x32xf32>
    %818 = vector.extract_strided_slice %815 {offsets = [0, 64], sizes = [2, 32], strides = [1, 1]} : vector<2x128xf32> to vector<2x32xf32>
    %819 = vector.extract_strided_slice %814 {offsets = [0, 96], sizes = [2, 32], strides = [1, 1]} : vector<2x128xf32> to vector<2x32xf32>
    %820 = arith.mulf %817, %782 : vector<2x32xf32>
    %821 = arith.mulf %816, %818 : vector<2x32xf32>
    %822 = arith.addf %820, %821 : vector<2x32xf32>
    %823 = math.tanh %822 : vector<2x32xf32>
    %824 = arith.mulf %819, %823 : vector<2x32xf32>
    %825 = tpu.concatenate %809, %824, %807, %822 in 1 : vector<2x32xf32>, vector<2x32xf32>, vector<2x32xf32>, vector<2x32xf32> -> vector<2x128xf32>
    %c0_327 = arith.constant 0 : index
    %c0_328 = arith.constant 0 : index
    %826 = vector.load %arg9[%c0_327, %c0_328] : memref<128x32xf32, #tpu.memory_space<vmem>>, vector<128x32xf32>
    %cst_329 = arith.constant dense<0.000000e+00> : vector<2x32xf32>
    %827 = tpu.matmul %825, %826, %cst_329 {dimension_numbers = #tpu.dot_dimension_numbers<[1], [0], [0], [1], [0, 0, 1, 1], [], []>} : vector<2x128xf32>, vector<128x32xf32>, vector<2x32xf32> -> vector<2x32xf32>
    %c0_330 = arith.constant 0 : index
    %c0_331 = arith.constant 0 : index
    %828 = vector.load %arg10[%c0_330, %c0_331] : memref<1x32xf32, #tpu.memory_space<vmem>>, vector<1x32xf32>
    %829 = vector.broadcast %828 : vector<1x32xf32> to vector<2x32xf32>
    %830 = arith.addf %827, %829 : vector<2x32xf32>
    %cst_332 = arith.constant 0.000000e+00 : f32
    %831 = vector.broadcast %cst_332 : f32 to vector<2x32xf32>
    %832 = arith.maximumf %830, %831 : vector<2x32xf32>
    %c0_333 = arith.constant 0 : index
    %c0_334 = arith.constant 0 : index
    %833 = vector.load %arg11[%c0_333, %c0_334] : memref<32x128xf32, #tpu.memory_space<vmem>>, vector<32x128xf32>
    %cst_335 = arith.constant dense<0.000000e+00> : vector<2x128xf32>
    %834 = tpu.matmul %832, %833, %cst_335 {dimension_numbers = #tpu.dot_dimension_numbers<[1], [0], [0], [1], [0, 0, 1, 1], [], []>} : vector<2x32xf32>, vector<32x128xf32>, vector<2x128xf32> -> vector<2x128xf32>
    %c0_336 = arith.constant 0 : index
    %c0_337 = arith.constant 0 : index
    %835 = vector.load %arg12[%c0_336, %c0_337] : memref<1x128xf32, #tpu.memory_space<vmem>>, vector<1x128xf32>
    %836 = vector.broadcast %835 : vector<1x128xf32> to vector<2x128xf32>
    %837 = arith.addf %834, %836 : vector<2x128xf32>
    %c0_338 = arith.constant 0 : index
    %c0_339 = arith.constant 0 : index
    %838 = vector.load %arg13[%c0_338, %c0_339] : memref<2x128xf32, #tpu.memory_space<vmem>>, vector<2x128xf32>
    tpu.vector_store %arg13[%c0_338, %c0_339], %837 {strides = array<i32>} : memref<2x128xf32, #tpu.memory_space<vmem>>, vector<2x128xf32>,
    return
  }
}

</mosaic_0001>

<llo_original>
// kernel: tpu_custom_call.1
$region0: #{tpu_custom_call.1}
  #allocation0 [shape = 'u32[]', space=smem, size = 0x4, offset = 0x4, fixed_abs, tag = 'smem constant byte address 0x4 - core index']
  #allocation1 [shape = 'u32[144,128]{1,0:T(1,128)}', space=vmem, size = 0x12000, scoped, tag = 'internal scratch']
  #allocation2 [shape = 'f32[8,2,256]{2,1,0:T(2,128)}', space=vmem, size = 0x4000, scoped, tag = 'scratch operand']
  #allocation3 [shape = 'f32[8,2,256]{2,1,0:T(2,128)}', space=vmem, size = 0x4000, scoped, tag = 'scratch operand']
  #allocation4 [shape = 'f32[8,2,64]{2,1,0:T(2,128)}', space=vmem, size = 0x2000, scoped, tag = 'scratch operand']
  %s0 = inlined_call_operand.hbm [shape: f32[8,2,32], index: 0, kind: input, shape index: {}]
  %s1 = inlined_call_operand.hbm [shape: f32[32,256], index: 1, kind: input, shape index: {}]
  %s2 = inlined_call_operand.vmem [shape: f32[1,256], index: 2, kind: input, shape index: {}]
  %s3 = inlined_call_operand.vmem [shape: f32[32,128], index: 3, kind: input, shape index: {}]
  %s4 = inlined_call_operand.hbm [shape: f32[32,128], index: 4, kind: input, shape index: {}]
  %s5 = inlined_call_operand.vmem [shape: f32[64,256], index: 5, kind: input, shape index: {}]
  %s6 = inlined_call_operand.hbm [shape: f32[1,256], index: 6, kind: input, shape index: {}]
  %s7 = inlined_call_operand.hbm [shape: f32[32,128], index: 7, kind: input, shape index: {}]
  %s8 = inlined_call_operand.hbm [shape: f32[32,128], index: 8, kind: input, shape index: {}]
  %s9 = inlined_call_operand.vmem [shape: f32[128,32], index: 9, kind: input, shape index: {}]
  %s10 = inlined_call_operand.vmem [shape: f32[1,32], index: 10, kind: input, shape index: {}]
  %s11 = inlined_call_operand.hbm [shape: f32[32,128], index: 11, kind: input, shape index: {}]
  %s12 = inlined_call_operand.vmem [shape: f32[1,128], index: 12, kind: input, shape index: {}]
  %s13 = inlined_call_operand.hbm [shape: f32[2,128], index: 13, kind: output, shape index: {}]
  %s14 = sld [smem:[#allocation0]]
  $region90: #{tpu_custom_call.1} parent=0
    _
  %s16 = ssub.s32 1, %s14
  %s17 = scalar_select 0, %s16, %s14
  $region1: #{tpu_custom_call.1} parent=0
    #allocation5 [shape = 'u8[8192]{0}', space=vmem, size = 0x2000, scoped, tag = 'input window, operand 0, single buffered']
    #allocation6 [shape = 's32[1]{0}', space=sflag, size = 0x4, scoped, tag = 'scoped memory for tpu_custom_call.1']
    #allocation7 [shape = 's32[1]{0}', space=sflag, size = 0x4, scoped, tag = 'scoped memory for tpu_custom_call.1']
    #allocation8 [shape = 'u8[32768]{0}', space=vmem, size = 0x8000, scoped, tag = 'input window, operand 1, single buffered']
    #allocation9 [shape = 's32[1]{0}', space=sflag, size = 0x4, scoped, tag = 'scoped memory for tpu_custom_call.1']
    #allocation10 [shape = 'u8[16384]{0}', space=vmem, size = 0x4000, scoped, tag = 'input window, operand 4, single buffered']
    #allocation11 [shape = 'u8[1024]{0}', space=vmem, size = 0x400, scoped, tag = 'input window, operand 6, single buffered']
    #allocation12 [shape = 's32[1]{0}', space=sflag, size = 0x4, scoped, tag = 'scoped memory for tpu_custom_call.1']
    #allocation13 [shape = 'u8[16384]{0}', space=vmem, size = 0x4000, scoped, tag = 'input window, operand 7, single buffered']
    #allocation14 [shape = 'u8[16384]{0}', space=vmem, size = 0x4000, scoped, tag = 'input window, operand 8, single buffered']
    #allocation15 [shape = 's32[1]{0}', space=sflag, size = 0x4, scoped, tag = 'scoped memory for tpu_custom_call.1']
    #allocation16 [shape = 'u8[16384]{0}', space=vmem, size = 0x4000, scoped, tag = 'input window, operand 11, single buffered']
    #allocation17 [shape = 'u8[1024]{0}', space=vmem, size = 0x400, scoped, tag = 'output window, operand 0, single buffered']
    %18 = vsyncpa [#allocation6], 0
    %19 = vsyncpa [#allocation9], 0
    %20 = vsyncpa [#allocation12], 0
    %21 = vsyncpa [#allocation15], 0
    %22 = vsyncpa [#allocation7], 0
    // Predicated region
    $region2: #{tpu_custom_call.1} parent=1 // pred_check
      _
    $region3: #{tpu_custom_call.1} parent=1 // pred_check_branch
      %24 = sbr.rel (0) target = $region5
    $region4: #{tpu_custom_call.1} parent=1 // pred_region
      %s26 = ssub.s32 256, 256
      %27 = vsyncadd [#allocation6], %s26
      %s28 = sshll.u32 [#allocation5], 4
      %s29 = int_to_ptr.vmem [resolvable:$true] %s28
      %34 = dma.hbm_to_vmem [thread:$0]  %s0, 256, %s29, [#allocation6], 32, 32, 2
    $region5: #{tpu_custom_call.1} parent=1 // pred_fallthru
      _
    // Predicated region
    $region6: #{tpu_custom_call.1} parent=1 // pred_check
      _
    $region7: #{tpu_custom_call.1} parent=1 // pred_check_branch
      %36 = sbr.rel (0) target = $region9
    $region8: #{tpu_custom_call.1} parent=1 // pred_region
      %s38 = ssub.s32 1024, 1024
      %39 = vsyncadd [#allocation9], %s38
      %s40 = sshll.u32 [#allocation8], 4
      %s41 = int_to_ptr.vmem [resolvable:$true] %s40
      %46 = dma.hbm_to_vmem [thread:$0]  %s1, 1024, %s41, [#allocation9], 256, 256, 16
    $region9: #{tpu_custom_call.1} parent=1 // pred_fallthru
      _
    // Predicated region
    $region10: #{tpu_custom_call.1} parent=1 // pred_check
      _
    $region11: #{tpu_custom_call.1} parent=1 // pred_check_branch
      %48 = sbr.rel (0) target = $region13
    $region12: #{tpu_custom_call.1} parent=1 // pred_region
      _
    $region13: #{tpu_custom_call.1} parent=1 // pred_fallthru
      _
    // Predicated region
    $region14: #{tpu_custom_call.1} parent=1 // pred_check
      _
    $region15: #{tpu_custom_call.1} parent=1 // pred_check_branch
      %50 = sbr.rel (0) target = $region17
    $region16: #{tpu_custom_call.1} parent=1 // pred_region
      _
    $region17: #{tpu_custom_call.1} parent=1 // pred_fallthru
      _
    // Predicated region
    $region18: #{tpu_custom_call.1} parent=1 // pred_check
      _
    $region19: #{tpu_custom_call.1} parent=1 // pred_check_branch
      %52 = sbr.rel (0) target = $region21
    $region20: #{tpu_custom_call.1} parent=1 // pred_region
      %s54 = ssub.s32 512, 512
      %55 = vsyncadd [#allocation9], %s54
      %s56 = sshll.u32 [#allocation10], 4
      %s57 = int_to_ptr.vmem [resolvable:$true] %s56
      %62 = dma.hbm_to_vmem [thread:$0]  %s4, 512, %s57, [#allocation9], 128, 128, 8
    $region21: #{tpu_custom_call.1} parent=1 // pred_fallthru
      _
    // Predicated region
    $region22: #{tpu_custom_call.1} parent=1 // pred_check
      _
    $region23: #{tpu_custom_call.1} parent=1 // pred_check_branch
      %64 = sbr.rel (0) target = $region25
    $region24: #{tpu_custom_call.1} parent=1 // pred_region
      _
    $region25: #{tpu_custom_call.1} parent=1 // pred_fallthru
      _
    // Predicated region
    $region26: #{tpu_custom_call.1} parent=1 // pred_check
      _
    $region27: #{tpu_custom_call.1} parent=1 // pred_check_branch
      %66 = sbr.rel (0) target = $region29
    $region28: #{tpu_custom_call.1} parent=1 // pred_region
      %s68 = ssub.s32 32, 32
      %69 = vsyncadd [#allocation12], %s68
      %s71 = sshll.u32 [#allocation11], 4
      %s72 = int_to_ptr.vmem [resolvable:$true] %s71
      %74 = dma.hbm_to_vmem [thread:$0]  %s6, 32, %s72, [#allocation12]
    $region29: #{tpu_custom_call.1} parent=1 // pred_fallthru
      _
    // Predicated region
    $region30: #{tpu_custom_call.1} parent=1 // pred_check
      _
    $region31: #{tpu_custom_call.1} parent=1 // pred_check_branch
      %76 = sbr.rel (0) target = $region33
    $region32: #{tpu_custom_call.1} parent=1 // pred_region
      %s78 = ssub.s32 512, 512
      %79 = vsyncadd [#allocation12], %s78
      %s80 = sshll.u32 [#allocation13], 4
      %s81 = int_to_ptr.vmem [resolvable:$true] %s80
      %86 = dma.hbm_to_vmem [thread:$0]  %s7, 512, %s81, [#allocation12], 128, 128, 8
    $region33: #{tpu_custom_call.1} parent=1 // pred_fallthru
      _
    // Predicated region
    $region34: #{tpu_custom_call.1} parent=1 // pred_check
      _
    $region35: #{tpu_custom_call.1} parent=1 // pred_check_branch
      %88 = sbr.rel (0) target = $region37
    $region36: #{tpu_custom_call.1} parent=1 // pred_region
      %s90 = ssub.s32 512, 512
      %91 = vsyncadd [#allocation15], %s90
      %s92 = sshll.u32 [#allocation14], 4
      %s93 = int_to_ptr.vmem [resolvable:$true] %s92
      %98 = dma.hbm_to_vmem [thread:$0]  %s8, 512, %s93, [#allocation15], 128, 128, 8
    $region37: #{tpu_custom_call.1} parent=1 // pred_fallthru
      _
    // Predicated region
    $region38: #{tpu_custom_call.1} parent=1 // pred_check
      _
    $region39: #{tpu_custom_call.1} parent=1 // pred_check_branch
      %100 = sbr.rel (0) target = $region41
    $region40: #{tpu_custom_call.1} parent=1 // pred_region
      _
    $region41: #{tpu_custom_call.1} parent=1 // pred_fallthru
      _
    // Predicated region
    $region42: #{tpu_custom_call.1} parent=1 // pred_check
      _
    $region43: #{tpu_custom_call.1} parent=1 // pred_check_branch
      %102 = sbr.rel (0) target = $region45
    $region44: #{tpu_custom_call.1} parent=1 // pred_region
      _
    $region45: #{tpu_custom_call.1} parent=1 // pred_fallthru
      _
    // Predicated region
    $region46: #{tpu_custom_call.1} parent=1 // pred_check
      _
    $region47: #{tpu_custom_call.1} parent=1 // pred_check_branch
      %104 = sbr.rel (0) target = $region49
    $region48: #{tpu_custom_call.1} parent=1 // pred_region
      %s106 = ssub.s32 512, 512
      %107 = vsyncadd [#allocation15], %s106
      %s108 = sshll.u32 [#allocation16], 4
      %s109 = int_to_ptr.vmem [resolvable:$true] %s108
      %114 = dma.hbm_to_vmem [thread:$0]  %s11, 512, %s109, [#allocation15], 128, 128, 8
    $region49: #{tpu_custom_call.1} parent=1 // pred_fallthru
      _
    // Predicated region
    $region50: #{tpu_custom_call.1} parent=1 // pred_check
      _
    $region51: #{tpu_custom_call.1} parent=1 // pred_check_branch
      %116 = sbr.rel (0) target = $region53
    $region52: #{tpu_custom_call.1} parent=1 // pred_region
      _
    $region53: #{tpu_custom_call.1} parent=1 // pred_fallthru
      _
    // Predicated region
    $region54: #{tpu_custom_call.1} parent=1 // pred_check
      _
    $region55: #{tpu_custom_call.1} parent=1 // pred_check_branch
      %118 = sbr.rel (0) target = $region57
    $region56: #{tpu_custom_call.1} parent=1 // pred_region
      %119 = dma.done [#allocation6], 256
    $region57: #{tpu_custom_call.1} parent=1 // pred_fallthru
      _
    // Predicated region
    $region58: #{tpu_custom_call.1} parent=1 // pred_check
      _
    $region59: #{tpu_custom_call.1} parent=1 // pred_check_branch
      %121 = sbr.rel (0) target = $region61
    $region60: #{tpu_custom_call.1} parent=1 // pred_region
      %122 = dma.done [#allocation9], 1024
    $region61: #{tpu_custom_call.1} parent=1 // pred_fallthru
      _
    // Predicated region
    $region62: #{tpu_custom_call.1} parent=1 // pred_check
      _
    $region63: #{tpu_custom_call.1} parent=1 // pred_check_branch
      %124 = sbr.rel (0) target = $region65
    $region64: #{tpu_custom_call.1} parent=1 // pred_region
      %125 = dma.done [#allocation9], 512
    $region65: #{tpu_custom_call.1} parent=1 // pred_fallthru
      _
    // Predicated region
    $region66: #{tpu_custom_call.1} parent=1 // pred_check
      _
    $region67: #{tpu_custom_call.1} parent=1 // pred_check_branch
      %127 = sbr.rel (0) target = $region69
    $region68: #{tpu_custom_call.1} parent=1 // pred_region
      %128 = dma.done [#allocation12], 32
    $region69: #{tpu_custom_call.1} parent=1 // pred_fallthru
      _
    // Predicated region
    $region70: #{tpu_custom_call.1} parent=1 // pred_check
      _
    $region71: #{tpu_custom_call.1} parent=1 // pred_check_branch
      %130 = sbr.rel (0) target = $region73
    $region72: #{tpu_custom_call.1} parent=1 // pred_region
      %131 = dma.done [#allocation12], 512
    $region73: #{tpu_custom_call.1} parent=1 // pred_fallthru
      _
    // Predicated region
    $region74: #{tpu_custom_call.1} parent=1 // pred_check
      _
    $region75: #{tpu_custom_call.1} parent=1 // pred_check_branch
      %133 = sbr.rel (0) target = $region77
    $region76: #{tpu_custom_call.1} parent=1 // pred_region
      %134 = dma.done [#allocation15], 512
    $region77: #{tpu_custom_call.1} parent=1 // pred_fallthru
      _
    // Predicated region
    $region78: #{tpu_custom_call.1} parent=1 // pred_check
      _
    $region79: #{tpu_custom_call.1} parent=1 // pred_check_branch
      %136 = sbr.rel (0) target = $region81
    $region80: #{tpu_custom_call.1} parent=1 // pred_region
      %137 = dma.done [#allocation15], 512
    $region81: #{tpu_custom_call.1} parent=1 // pred_fallthru
      _
    %v138 = vld [vmem:[#allocation8] sm:$0xff]
    %v139 = vld [vmem:[#allocation8 + $0x8] sm:$0xff]
    %v140 = vld [vmem:[#allocation8 + $0x10] sm:$0xff]
    %v141 = vld [vmem:[#allocation8 + $0x18] sm:$0xff]
    %v142 = vld [vmem:[#allocation8 + $0x20] sm:$0xff]
    %v143 = vld [vmem:[#allocation8 + $0x28] sm:$0xff]
    %v144 = vld [vmem:[#allocation8 + $0x30] sm:$0xff]
    %v145 = vld [vmem:[#allocation8 + $0x38] sm:$0xff]
    %v146 = vld [vmem:[%s2] sm:$0x3]
    %v147 = vld [vmem:[%s3] sm:$0xff]
    %v148 = vld [vmem:[%s3 + $0x8] sm:$0xff]
    %v149 = vld [vmem:[%s3 + $0x10] sm:$0xff]
    %v150 = vld [vmem:[%s3 + $0x18] sm:$0xff]
    %v151 = vld [vmem:[#allocation10] sm:$0xff]
    %v152 = vld [vmem:[#allocation10 + $0x8] sm:$0xff]
    %v153 = vld [vmem:[#allocation10 + $0x10] sm:$0xff]
    %v154 = vld [vmem:[#allocation10 + $0x18] sm:$0xff]
    %v155 = vld [vmem:[%s5] sm:$0xff]
    %v156 = vld [vmem:[%s5 + $0x8] sm:$0xff]
    %v157 = vld [vmem:[%s5 + $0x10] sm:$0xff]
    %v158 = vld [vmem:[%s5 + $0x18] sm:$0xff]
    %v159 = vld [vmem:[%s5 + $0x20] sm:$0xff]
    %v160 = vld [vmem:[%s5 + $0x28] sm:$0xff]
    %v161 = vld [vmem:[%s5 + $0x30] sm:$0xff]
    %v162 = vld [vmem:[%s5 + $0x38] sm:$0xff]
    %v163 = vld [vmem:[%s5 + $0x40] sm:$0xff]
    %v164 = vld [vmem:[%s5 + $0x48] sm:$0xff]
    %v165 = vld [vmem:[%s5 + $0x50] sm:$0xff]
    %v166 = vld [vmem:[%s5 + $0x58] sm:$0xff]
    %v167 = vld [vmem:[%s5 + $0x60] sm:$0xff]
    %v168 = vld [vmem:[%s5 + $0x68] sm:$0xff]
    %v169 = vld [vmem:[%s5 + $0x70] sm:$0xff]
    %v170 = vld [vmem:[%s5 + $0x78] sm:$0xff]
    %v171 = vld [vmem:[#allocation11] sm:$0x3]
    %v172 = vld [vmem:[#allocation13] sm:$0xff]
    %v173 = vld [vmem:[#allocation13 + $0x8] sm:$0xff]
    %v174 = vld [vmem:[#allocation13 + $0x10] sm:$0xff]
    %v175 = vld [vmem:[#allocation13 + $0x18] sm:$0xff]
    %v176 = vld [vmem:[#allocation14] sm:$0xff]
    %v177 = vld [vmem:[#allocation14 + $0x8] sm:$0xff]
    %v178 = vld [vmem:[#allocation14 + $0x10] sm:$0xff]
    %v179 = vld [vmem:[#allocation14 + $0x18] sm:$0xff]
    %v180 = vld [vmem:[#allocation5] sm:$0x3]
    %v182 = vlaneseq
    %v183 = vshrl.u32 %v182, 7
    %v184 = vsub.s32 0, %v183
    %v185 = vrot.slane %v146, %v184
    %v186 = vlaneseq
    %v187 = vshrl.u32 %v186, 7
    %v188 = vsub.s32 1, %v187
    %v189 = vrot.slane %v146, %v188
    %vm192 = vcmask 261120
    %v194 = vsel %vm192, %v180, 0
    %196 = vmatprep.subr.mxu0 %v139
    %197 = vmatpush1.msra.mxu0 %v138
    %198 = vmatprep.subr.mxu0 %v141
    %199 = vmatpush1.msra.mxu0 %v140
    %200 = vmatprep.subr.mxu0 %v143
    %201 = vmatpush1.msra.mxu0 %v142
    %202 = vmatprep.subr.mxu0 %v145
    %203 = vmatpush1.msra.mxu0 %v144
    %204 = vmatprep.subr.mxu0 0.0
    %205 = vmatpush1.msra.mxu0 0.0
    %206 = vmatprep.subr.mxu0 0.0
    %207 = vmatpush1.msra.mxu0 0.0
    %208 = vmatprep.subr.mxu0 0.0
    %209 = vmatpush1.msra.mxu0 0.0
    %210 = vmatprep.subr.mxu0 0.0
    %211 = vmatpush1.msra.mxu0 0.0
    %212 = vmatprep.subr.mxu0 0.0
    %213 = vmatpush1.msra.mxu0 0.0
    %214 = vmatprep.subr.mxu0 0.0
    %215 = vmatpush1.msra.mxu0 0.0
    %216 = vmatprep.subr.mxu0 0.0
    %217 = vmatpush1.msra.mxu0 0.0
    %218 = vmatprep.subr.mxu0 0.0
    %219 = vmatpush1.msra.mxu0 0.0
    %220 = vmatprep.subr.mxu0 0.0
    %221 = vmatpush1.msra.mxu0 0.0
    %222 = vmatprep.subr.mxu0 0.0
    %223 = vmatpush1.msra.mxu0 0.0
    %224 = vmatprep.subr.mxu0 0.0
    %225 = vmatpush1.msra.mxu0 0.0
    %226 = vmatprep.subr.mxu0 0.0
    %227 = vmatpush1.msra.mxu0 0.0
    %228 = vmatprep.subr.mxu0 0.0
    %229 = vmatpush1.msra.mxu0 0.0
    %230 = vmatprep.subr.mxu0 0.0
    %231 = vmatpush1.msra.mxu0 0.0
    %232 = vmatprep.subr.mxu0 0.0
    %233 = vmatpush1.msra.mxu0 0.0
    %234 = vmatprep.subr.mxu0 0.0
    %235 = vmatpush1.msra.mxu0 0.0
    %236 = vmatprep.subr.mxu0 0.0
    %237 = vmatpush1.msra.mxu0 0.0
    %238 = vmatprep.subr.mxu0 0.0
    %239 = vmatpush1.msra.mxu0 0.0
    %240 = vmatprep.subr.mxu0 0.0
    %241 = vmatpush1.msra.mxu0 0.0
    %242 = vmatprep.subr.mxu0 0.0
    %243 = vmatpush1.msra.mxu0 0.0
    %244 = vmatprep.subr.mxu0 0.0
    %245 = vmatpush1.msra.mxu0 0.0
    %246 = vmatprep.subr.mxu0 0.0
    %247 = vmatpush1.msra.mxu0 0.0
    %248 = vmatprep.subr.mxu0 0.0
    %249 = vmatpush1.msra.mxu0 0.0
    %250 = vmatprep.subr.mxu0 0.0
    %251 = vmatpush1.msra.mxu0 0.0
    %252 = vmatprep.subr.mxu0 0.0
    %253 = vmatpush1.msra.mxu0 0.0
    %254 = vmatprep.subr.mxu0 0.0
    %255 = vmatpush1.msra.mxu0 0.0
    %256 = vmatprep.subr.mxu0 0.0
    %257 = vmatpush1.msra.mxu0 0.0
    %258 = vmatprep.subr.mxu0 0.0
    %259 = vmatpush1.msra.mxu0 0.0
    %260 = vmatprep.mubr.f32.mxu0 0.0
    %261 = vmatmul.mubr.f32.gmra.mrb[0].mxu0 %v194
    %v262 = vpop.f32.mrb[0].mxu0
    %v263 = vadd.f32 %v185, %v262
    %v264 = vpop.f32.mrb[0].mxu0
    %v265 = vadd.f32 %v189, %v264
    %266 = vdwg.mxu0
    %v269 = vcombine.low %v263, %v265
    %v271 = vunpack.c.l.s4 1983009808
    %v272 = vunpack.c.0.s8 %v271
    %v273 = vlaneseq
    %v274 = vshrl.u32 %v273, 7
    %v275 = vsub.s32 %v272, %v274
    %v276 = vrot.slane %v269, %v275
    %278 = vst [vmem:[#allocation2] sm:$0xf] %v276
    %s279 = scalar_lea.vmem [#allocation5], 2
    %v280 = vld [vmem:[%s279] sm:$0x3]
    %v282 = vsel %vm192, %v280, 0
    %284 = vmatprep.subr.mxu0 %v139
    %285 = vmatpush1.msra.mxu0 %v138
    %286 = vmatprep.subr.mxu0 %v141
    %287 = vmatpush1.msra.mxu0 %v140
    %288 = vmatprep.subr.mxu0 %v143
    %289 = vmatpush1.msra.mxu0 %v142
    %290 = vmatprep.subr.mxu0 %v145
    %291 = vmatpush1.msra.mxu0 %v144
    %292 = vmatprep.subr.mxu0 0.0
    %293 = vmatpush1.msra.mxu0 0.0
    %294 = vmatprep.subr.mxu0 0.0
    %295 = vmatpush1.msra.mxu0 0.0
    %296 = vmatprep.subr.mxu0 0.0
    %297 = vmatpush1.msra.mxu0 0.0
    %298 = vmatprep.subr.mxu0 0.0
    %299 = vmatpush1.msra.mxu0 0.0
    %300 = vmatprep.subr.mxu0 0.0
    %301 = vmatpush1.msra.mxu0 0.0
    %302 = vmatprep.subr.mxu0 0.0
    %303 = vmatpush1.msra.mxu0 0.0
    %304 = vmatprep.subr.mxu0 0.0
    %305 = vmatpush1.msra.mxu0 0.0
    %306 = vmatprep.subr.mxu0 0.0
    %307 = vmatpush1.msra.mxu0 0.0
    %308 = vmatprep.subr.mxu0 0.0
    %309 = vmatpush1.msra.mxu0 0.0
    %310 = vmatprep.subr.mxu0 0.0
    %311 = vmatpush1.msra.mxu0 0.0
    %312 = vmatprep.subr.mxu0 0.0
    %313 = vmatpush1.msra.mxu0 0.0
    %314 = vmatprep.subr.mxu0 0.0
    %315 = vmatpush1.msra.mxu0 0.0
    %316 = vmatprep.subr.mxu0 0.0
    %317 = vmatpush1.msra.mxu0 0.0
    %318 = vmatprep.subr.mxu0 0.0
    %319 = vmatpush1.msra.mxu0 0.0
    %320 = vmatprep.subr.mxu0 0.0
    %321 = vmatpush1.msra.mxu0 0.0
    %322 = vmatprep.subr.mxu0 0.0
    %323 = vmatpush1.msra.mxu0 0.0
    %324 = vmatprep.subr.mxu0 0.0
    %325 = vmatpush1.msra.mxu0 0.0
    %326 = vmatprep.subr.mxu0 0.0
    %327 = vmatpush1.msra.mxu0 0.0
    %328 = vmatprep.subr.mxu0 0.0
    %329 = vmatpush1.msra.mxu0 0.0
    %330 = vmatprep.subr.mxu0 0.0
    %331 = vmatpush1.msra.mxu0 0.0
    %332 = vmatprep.subr.mxu0 0.0
    %333 = vmatpush1.msra.mxu0 0.0
    %334 = vmatprep.subr.mxu0 0.0
    %335 = vmatpush1.msra.mxu0 0.0
    %336 = vmatprep.subr.mxu0 0.0
    %337 = vmatpush1.msra.mxu0 0.0
    %338 = vmatprep.subr.mxu0 0.0
    %339 = vmatpush1.msra.mxu0 0.0
    %340 = vmatprep.subr.mxu0 0.0
    %341 = vmatpush1.msra.mxu0 0.0
    %342 = vmatprep.subr.mxu0 0.0
    %343 = vmatpush1.msra.mxu0 0.0
    %344 = vmatprep.subr.mxu0 0.0
    %345 = vmatpush1.msra.mxu0 0.0
    %346 = vmatprep.subr.mxu0 0.0
    %347 = vmatpush1.msra.mxu0 0.0
    %348 = vmatprep.mubr.f32.mxu0 0.0
    %349 = vmatmul.mubr.f32.gmra.mrb[0].mxu0 %v282
    %v350 = vpop.f32.mrb[0].mxu0
    %v351 = vadd.f32 %v185, %v350
    %v352 = vpop.f32.mrb[0].mxu0
    %v353 = vadd.f32 %v189, %v352
    %354 = vdwg.mxu0
    %v357 = vcombine.low %v351, %v353
    %v359 = vunpack.c.l.s4 1983009808
    %v360 = vunpack.c.0.s8 %v359
    %v361 = vlaneseq
    %v362 = vshrl.u32 %v361, 7
    %v363 = vsub.s32 %v360, %v362
    %v364 = vrot.slane %v357, %v363
    %s366 = scalar_lea.vmem [#allocation2], 4
    %367 = vst [vmem:[%s366] sm:$0xf] %v364
    %s368 = scalar_lea.vmem [#allocation5], 4
    %v369 = vld [vmem:[%s368] sm:$0x3]
    %v371 = vsel %vm192, %v369, 0
    %373 = vmatprep.subr.mxu0 %v139
    %374 = vmatpush1.msra.mxu0 %v138
    %375 = vmatprep.subr.mxu0 %v141
    %376 = vmatpush1.msra.mxu0 %v140
    %377 = vmatprep.subr.mxu0 %v143
    %378 = vmatpush1.msra.mxu0 %v142
    %379 = vmatprep.subr.mxu0 %v145
    %380 = vmatpush1.msra.mxu0 %v144
    %381 = vmatprep.subr.mxu0 0.0
    %382 = vmatpush1.msra.mxu0 0.0
    %383 = vmatprep.subr.mxu0 0.0
    %384 = vmatpush1.msra.mxu0 0.0
    %385 = vmatprep.subr.mxu0 0.0
    %386 = vmatpush1.msra.mxu0 0.0
    %387 = vmatprep.subr.mxu0 0.0
    %388 = vmatpush1.msra.mxu0 0.0
    %389 = vmatprep.subr.mxu0 0.0
    %390 = vmatpush1.msra.mxu0 0.0
    %391 = vmatprep.subr.mxu0 0.0
    %392 = vmatpush1.msra.mxu0 0.0
    %393 = vmatprep.subr.mxu0 0.0
    %394 = vmatpush1.msra.mxu0 0.0
    %395 = vmatprep.subr.mxu0 0.0
    %396 = vmatpush1.msra.mxu0 0.0
    %397 = vmatprep.subr.mxu0 0.0
    %398 = vmatpush1.msra.mxu0 0.0
    %399 = vmatprep.subr.mxu0 0.0
    %400 = vmatpush1.msra.mxu0 0.0
    %401 = vmatprep.subr.mxu0 0.0
    %402 = vmatpush1.msra.mxu0 0.0
    %403 = vmatprep.subr.mxu0 0.0
    %404 = vmatpush1.msra.mxu0 0.0
    %405 = vmatprep.subr.mxu0 0.0
    %406 = vmatpush1.msra.mxu0 0.0
    %407 = vmatprep.subr.mxu0 0.0
    %408 = vmatpush1.msra.mxu0 0.0
    %409 = vmatprep.subr.mxu0 0.0
    %410 = vmatpush1.msra.mxu0 0.0
    %411 = vmatprep.subr.mxu0 0.0
    %412 = vmatpush1.msra.mxu0 0.0
    %413 = vmatprep.subr.mxu0 0.0
    %414 = vmatpush1.msra.mxu0 0.0
    %415 = vmatprep.subr.mxu0 0.0
    %416 = vmatpush1.msra.mxu0 0.0
    %417 = vmatprep.subr.mxu0 0.0
    %418 = vmatpush1.msra.mxu0 0.0
    %419 = vmatprep.subr.mxu0 0.0
    %420 = vmatpush1.msra.mxu0 0.0
    %421 = vmatprep.subr.mxu0 0.0
    %422 = vmatpush1.msra.mxu0 0.0
    %423 = vmatprep.subr.mxu0 0.0
    %424 = vmatpush1.msra.mxu0 0.0
    %425 = vmatprep.subr.mxu0 0.0
    %426 = vmatpush1.msra.mxu0 0.0
    %427 = vmatprep.subr.mxu0 0.0
    %428 = vmatpush1.msra.mxu0 0.0
    %429 = vmatprep.subr.mxu0 0.0
    %430 = vmatpush1.msra.mxu0 0.0
    %431 = vmatprep.subr.mxu0 0.0
    %432 = vmatpush1.msra.mxu0 0.0
    %433 = vmatprep.subr.mxu0 0.0
    %434 = vmatpush1.msra.mxu0 0.0
    %435 = vmatprep.subr.mxu0 0.0
    %436 = vmatpush1.msra.mxu0 0.0
    %437 = vmatprep.mubr.f32.mxu0 0.0
    %438 = vmatmul.mubr.f32.gmra.mrb[0].mxu0 %v371
    %v439 = vpop.f32.mrb[0].mxu0
    %v440 = vadd.f32 %v185, %v439
    %v441 = vpop.f32.mrb[0].mxu0
    %v442 = vadd.f32 %v189, %v441
    %443 = vdwg.mxu0
    %v446 = vcombine.low %v440, %v442
    %v448 = vunpack.c.l.s4 1983009808
    %v449 = vunpack.c.0.s8 %v448
    %v450 = vlaneseq
    %v451 = vshrl.u32 %v450, 7
    %v452 = vsub.s32 %v449, %v451
    %v453 = vrot.slane %v446, %v452
    %s455 = scalar_lea.vmem [#allocation2], 8
    %456 = vst [vmem:[%s455] sm:$0xf] %v453
    %s457 = scalar_lea.vmem [#allocation5], 6
    %v458 = vld [vmem:[%s457] sm:$0x3]
    %v460 = vsel %vm192, %v458, 0
    %462 = vmatprep.subr.mxu0 %v139
    %463 = vmatpush1.msra.mxu0 %v138
    %464 = vmatprep.subr.mxu0 %v141
    %465 = vmatpush1.msra.mxu0 %v140
    %466 = vmatprep.subr.mxu0 %v143
    %467 = vmatpush1.msra.mxu0 %v142
    %468 = vmatprep.subr.mxu0 %v145
    %469 = vmatpush1.msra.mxu0 %v144
    %470 = vmatprep.subr.mxu0 0.0
    %471 = vmatpush1.msra.mxu0 0.0
    %472 = vmatprep.subr.mxu0 0.0
    %473 = vmatpush1.msra.mxu0 0.0
    %474 = vmatprep.subr.mxu0 0.0
    %475 = vmatpush1.msra.mxu0 0.0
    %476 = vmatprep.subr.mxu0 0.0
    %477 = vmatpush1.msra.mxu0 0.0
    %478 = vmatprep.subr.mxu0 0.0
    %479 = vmatpush1.msra.mxu0 0.0
    %480 = vmatprep.subr.mxu0 0.0
    %481 = vmatpush1.msra.mxu0 0.0
    %482 = vmatprep.subr.mxu0 0.0
    %483 = vmatpush1.msra.mxu0 0.0
    %484 = vmatprep.subr.mxu0 0.0
    %485 = vmatpush1.msra.mxu0 0.0
    %486 = vmatprep.subr.mxu0 0.0
    %487 = vmatpush1.msra.mxu0 0.0
    %488 = vmatprep.subr.mxu0 0.0
    %489 = vmatpush1.msra.mxu0 0.0
    %490 = vmatprep.subr.mxu0 0.0
    %491 = vmatpush1.msra.mxu0 0.0
    %492 = vmatprep.subr.mxu0 0.0
    %493 = vmatpush1.msra.mxu0 0.0
    %494 = vmatprep.subr.mxu0 0.0
    %495 = vmatpush1.msra.mxu0 0.0
    %496 = vmatprep.subr.mxu0 0.0
    %497 = vmatpush1.msra.mxu0 0.0
    %498 = vmatprep.subr.mxu0 0.0
    %499 = vmatpush1.msra.mxu0 0.0
    %500 = vmatprep.subr.mxu0 0.0
    %501 = vmatpush1.msra.mxu0 0.0
    %502 = vmatprep.subr.mxu0 0.0
    %503 = vmatpush1.msra.mxu0 0.0
    %504 = vmatprep.subr.mxu0 0.0
    %505 = vmatpush1.msra.mxu0 0.0
    %506 = vmatprep.subr.mxu0 0.0
    %507 = vmatpush1.msra.mxu0 0.0
    %508 = vmatprep.subr.mxu0 0.0
    %509 = vmatpush1.msra.mxu0 0.0
    %510 = vmatprep.subr.mxu0 0.0
    %511 = vmatpush1.msra.mxu0 0.0
    %512 = vmatprep.subr.mxu0 0.0
    %513 = vmatpush1.msra.mxu0 0.0
    %514 = vmatprep.subr.mxu0 0.0
    %515 = vmatpush1.msra.mxu0 0.0
    %516 = vmatprep.subr.mxu0 0.0
    %517 = vmatpush1.msra.mxu0 0.0
    %518 = vmatprep.subr.mxu0 0.0
    %519 = vmatpush1.msra.mxu0 0.0
    %520 = vmatprep.subr.mxu0 0.0
    %521 = vmatpush1.msra.mxu0 0.0
    %522 = vmatprep.subr.mxu0 0.0
    %523 = vmatpush1.msra.mxu0 0.0
    %524 = vmatprep.subr.mxu0 0.0
    %525 = vmatpush1.msra.mxu0 0.0
    %526 = vmatprep.mubr.f32.mxu0 0.0
    %527 = vmatmul.mubr.f32.gmra.mrb[0].mxu0 %v460
    %v528 = vpop.f32.mrb[0].mxu0
    %v529 = vadd.f32 %v185, %v528
    %v530 = vpop.f32.mrb[0].mxu0
    %v531 = vadd.f32 %v189, %v530
    %532 = vdwg.mxu0
    %v535 = vcombine.low %v529, %v531
    %v537 = vunpack.c.l.s4 1983009808
    %v538 = vunpack.c.0.s8 %v537
    %v539 = vlaneseq
    %v540 = vshrl.u32 %v539, 7
    %v541 = vsub.s32 %v538, %v540
    %v542 = vrot.slane %v535, %v541
    %s544 = scalar_lea.vmem [#allocation2], 12
    %545 = vst [vmem:[%s544] sm:$0xf] %v542
    %s546 = scalar_lea.vmem [#allocation5], 8
    %v547 = vld [vmem:[%s546] sm:$0x3]
    %v549 = vsel %vm192, %v547, 0
    %551 = vmatprep.subr.mxu0 %v139
    %552 = vmatpush1.msra.mxu0 %v138
    %553 = vmatprep.subr.mxu0 %v141
    %554 = vmatpush1.msra.mxu0 %v140
    %555 = vmatprep.subr.mxu0 %v143
    %556 = vmatpush1.msra.mxu0 %v142
    %557 = vmatprep.subr.mxu0 %v145
    %558 = vmatpush1.msra.mxu0 %v144
    %559 = vmatprep.subr.mxu0 0.0
    %560 = vmatpush1.msra.mxu0 0.0
    %561 = vmatprep.subr.mxu0 0.0
    %562 = vmatpush1.msra.mxu0 0.0
    %563 = vmatprep.subr.mxu0 0.0
    %564 = vmatpush1.msra.mxu0 0.0
    %565 = vmatprep.subr.mxu0 0.0
    %566 = vmatpush1.msra.mxu0 0.0
    %567 = vmatprep.subr.mxu0 0.0
    %568 = vmatpush1.msra.mxu0 0.0
    %569 = vmatprep.subr.mxu0 0.0
    %570 = vmatpush1.msra.mxu0 0.0
    %571 = vmatprep.subr.mxu0 0.0
    %572 = vmatpush1.msra.mxu0 0.0
    %573 = vmatprep.subr.mxu0 0.0
    %574 = vmatpush1.msra.mxu0 0.0
    %575 = vmatprep.subr.mxu0 0.0
    %576 = vmatpush1.msra.mxu0 0.0
    %577 = vmatprep.subr.mxu0 0.0
    %578 = vmatpush1.msra.mxu0 0.0
    %579 = vmatprep.subr.mxu0 0.0
    %580 = vmatpush1.msra.mxu0 0.0
    %581 = vmatprep.subr.mxu0 0.0
    %582 = vmatpush1.msra.mxu0 0.0
    %583 = vmatprep.subr.mxu0 0.0
    %584 = vmatpush1.msra.mxu0 0.0
    %585 = vmatprep.subr.mxu0 0.0
    %586 = vmatpush1.msra.mxu0 0.0
    %587 = vmatprep.subr.mxu0 0.0
    %588 = vmatpush1.msra.mxu0 0.0
    %589 = vmatprep.subr.mxu0 0.0
    %590 = vmatpush1.msra.mxu0 0.0
    %591 = vmatprep.subr.mxu0 0.0
    %592 = vmatpush1.msra.mxu0 0.0
    %593 = vmatprep.subr.mxu0 0.0
    %594 = vmatpush1.msra.mxu0 0.0
    %595 = vmatprep.subr.mxu0 0.0
    %596 = vmatpush1.msra.mxu0 0.0
    %597 = vmatprep.subr.mxu0 0.0
    %598 = vmatpush1.msra.mxu0 0.0
    %599 = vmatprep.subr.mxu0 0.0
    %600 = vmatpush1.msra.mxu0 0.0
    %601 = vmatprep.subr.mxu0 0.0
    %602 = vmatpush1.msra.mxu0 0.0
    %603 = vmatprep.subr.mxu0 0.0
    %604 = vmatpush1.msra.mxu0 0.0
    %605 = vmatprep.subr.mxu0 0.0
    %606 = vmatpush1.msra.mxu0 0.0
    %607 = vmatprep.subr.mxu0 0.0
    %608 = vmatpush1.msra.mxu0 0.0
    %609 = vmatprep.subr.mxu0 0.0
    %610 = vmatpush1.msra.mxu0 0.0
    %611 = vmatprep.subr.mxu0 0.0
    %612 = vmatpush1.msra.mxu0 0.0
    %613 = vmatprep.subr.mxu0 0.0
    %614 = vmatpush1.msra.mxu0 0.0
    %615 = vmatprep.mubr.f32.mxu0 0.0
    %616 = vmatmul.mubr.f32.gmra.mrb[0].mxu0 %v549
    %v617 = vpop.f32.mrb[0].mxu0
    %v618 = vadd.f32 %v185, %v617
    %v619 = vpop.f32.mrb[0].mxu0
    %v620 = vadd.f32 %v189, %v619
    %621 = vdwg.mxu0
    %v624 = vcombine.low %v618, %v620
    %v626 = vunpack.c.l.s4 1983009808
    %v627 = vunpack.c.0.s8 %v626
    %v628 = vlaneseq
    %v629 = vshrl.u32 %v628, 7
    %v630 = vsub.s32 %v627, %v629
    %v631 = vrot.slane %v624, %v630
    %s633 = scalar_lea.vmem [#allocation2], 16
    %634 = vst [vmem:[%s633] sm:$0xf] %v631
    %s635 = scalar_lea.vmem [#allocation5], 10
    %v636 = vld [vmem:[%s635] sm:$0x3]
    %v638 = vsel %vm192, %v636, 0
    %640 = vmatprep.subr.mxu0 %v139
    %641 = vmatpush1.msra.mxu0 %v138
    %642 = vmatprep.subr.mxu0 %v141
    %643 = vmatpush1.msra.mxu0 %v140
    %644 = vmatprep.subr.mxu0 %v143
    %645 = vmatpush1.msra.mxu0 %v142
    %646 = vmatprep.subr.mxu0 %v145
    %647 = vmatpush1.msra.mxu0 %v144
    %648 = vmatprep.subr.mxu0 0.0
    %649 = vmatpush1.msra.mxu0 0.0
    %650 = vmatprep.subr.mxu0 0.0
    %651 = vmatpush1.msra.mxu0 0.0
    %652 = vmatprep.subr.mxu0 0.0
    %653 = vmatpush1.msra.mxu0 0.0
    %654 = vmatprep.subr.mxu0 0.0
    %655 = vmatpush1.msra.mxu0 0.0
    %656 = vmatprep.subr.mxu0 0.0
    %657 = vmatpush1.msra.mxu0 0.0
    %658 = vmatprep.subr.mxu0 0.0
    %659 = vmatpush1.msra.mxu0 0.0
    %660 = vmatprep.subr.mxu0 0.0
    %661 = vmatpush1.msra.mxu0 0.0
    %662 = vmatprep.subr.mxu0 0.0
    %663 = vmatpush1.msra.mxu0 0.0
    %664 = vmatprep.subr.mxu0 0.0
    %665 = vmatpush1.msra.mxu0 0.0
    %666 = vmatprep.subr.mxu0 0.0
    %667 = vmatpush1.msra.mxu0 0.0
    %668 = vmatprep.subr.mxu0 0.0
    %669 = vmatpush1.msra.mxu0 0.0
    %670 = vmatprep.subr.mxu0 0.0
    %671 = vmatpush1.msra.mxu0 0.0
    %672 = vmatprep.subr.mxu0 0.0
    %673 = vmatpush1.msra.mxu0 0.0
    %674 = vmatprep.subr.mxu0 0.0
    %675 = vmatpush1.msra.mxu0 0.0
    %676 = vmatprep.subr.mxu0 0.0
    %677 = vmatpush1.msra.mxu0 0.0
    %678 = vmatprep.subr.mxu0 0.0
    %679 = vmatpush1.msra.mxu0 0.0
    %680 = vmatprep.subr.mxu0 0.0
    %681 = vmatpush1.msra.mxu0 0.0
    %682 = vmatprep.subr.mxu0 0.0
    %683 = vmatpush1.msra.mxu0 0.0
    %684 = vmatprep.subr.mxu0 0.0
    %685 = vmatpush1.msra.mxu0 0.0
    %686 = vmatprep.subr.mxu0 0.0
    %687 = vmatpush1.msra.mxu0 0.0
    %688 = vmatprep.subr.mxu0 0.0
    %689 = vmatpush1.msra.mxu0 0.0
    %690 = vmatprep.subr.mxu0 0.0
    %691 = vmatpush1.msra.mxu0 0.0
    %692 = vmatprep.subr.mxu0 0.0
    %693 = vmatpush1.msra.mxu0 0.0
    %694 = vmatprep.subr.mxu0 0.0
    %695 = vmatpush1.msra.mxu0 0.0
    %696 = vmatprep.subr.mxu0 0.0
    %697 = vmatpush1.msra.mxu0 0.0
    %698 = vmatprep.subr.mxu0 0.0
    %699 = vmatpush1.msra.mxu0 0.0
    %700 = vmatprep.subr.mxu0 0.0
    %701 = vmatpush1.msra.mxu0 0.0
    %702 = vmatprep.subr.mxu0 0.0
    %703 = vmatpush1.msra.mxu0 0.0
    %704 = vmatprep.mubr.f32.mxu0 0.0
    %705 = vmatmul.mubr.f32.gmra.mrb[0].mxu0 %v638
    %v706 = vpop.f32.mrb[0].mxu0
    %v707 = vadd.f32 %v185, %v706
    %v708 = vpop.f32.mrb[0].mxu0
    %v709 = vadd.f32 %v189, %v708
    %710 = vdwg.mxu0
    %v713 = vcombine.low %v707, %v709
    %v715 = vunpack.c.l.s4 1983009808
    %v716 = vunpack.c.0.s8 %v715
    %v717 = vlaneseq
    %v718 = vshrl.u32 %v717, 7
    %v719 = vsub.s32 %v716, %v718
    %v720 = vrot.slane %v713, %v719
    %s722 = scalar_lea.vmem [#allocation2], 20
    %723 = vst [vmem:[%s722] sm:$0xf] %v720
    %s724 = scalar_lea.vmem [#allocation5], 12
    %v725 = vld [vmem:[%s724] sm:$0x3]
    %v727 = vsel %vm192, %v725, 0
    %729 = vmatprep.subr.mxu0 %v139
    %730 = vmatpush1.msra.mxu0 %v138
    %731 = vmatprep.subr.mxu0 %v141
    %732 = vmatpush1.msra.mxu0 %v140
    %733 = vmatprep.subr.mxu0 %v143
    %734 = vmatpush1.msra.mxu0 %v142
    %735 = vmatprep.subr.mxu0 %v145
    %736 = vmatpush1.msra.mxu0 %v144
    %737 = vmatprep.subr.mxu0 0.0
    %738 = vmatpush1.msra.mxu0 0.0
    %739 = vmatprep.subr.mxu0 0.0
    %740 = vmatpush1.msra.mxu0 0.0
    %741 = vmatprep.subr.mxu0 0.0
    %742 = vmatpush1.msra.mxu0 0.0
    %743 = vmatprep.subr.mxu0 0.0
    %744 = vmatpush1.msra.mxu0 0.0
    %745 = vmatprep.subr.mxu0 0.0
    %746 = vmatpush1.msra.mxu0 0.0
    %747 = vmatprep.subr.mxu0 0.0
    %748 = vmatpush1.msra.mxu0 0.0
    %749 = vmatprep.subr.mxu0 0.0
    %750 = vmatpush1.msra.mxu0 0.0
    %751 = vmatprep.subr.mxu0 0.0
    %752 = vmatpush1.msra.mxu0 0.0
    %753 = vmatprep.subr.mxu0 0.0
    %754 = vmatpush1.msra.mxu0 0.0
    %755 = vmatprep.subr.mxu0 0.0
    %756 = vmatpush1.msra.mxu0 0.0
    %757 = vmatprep.subr.mxu0 0.0
    %758 = vmatpush1.msra.mxu0 0.0
    %759 = vmatprep.subr.mxu0 0.0
    %760 = vmatpush1.msra.mxu0 0.0
    %761 = vmatprep.subr.mxu0 0.0
    %762 = vmatpush1.msra.mxu0 0.0
    %763 = vmatprep.subr.mxu0 0.0
    %764 = vmatpush1.msra.mxu0 0.0
    %765 = vmatprep.subr.mxu0 0.0
    %766 = vmatpush1.msra.mxu0 0.0
    %767 = vmatprep.subr.mxu0 0.0
    %768 = vmatpush1.msra.mxu0 0.0
    %769 = vmatprep.subr.mxu0 0.0
    %770 = vmatpush1.msra.mxu0 0.0
    %771 = vmatprep.subr.mxu0 0.0
    %772 = vmatpush1.msra.mxu0 0.0
    %773 = vmatprep.subr.mxu0 0.0
    %774 = vmatpush1.msra.mxu0 0.0
    %775 = vmatprep.subr.mxu0 0.0
    %776 = vmatpush1.msra.mxu0 0.0
    %777 = vmatprep.subr.mxu0 0.0
    %778 = vmatpush1.msra.mxu0 0.0
    %779 = vmatprep.subr.mxu0 0.0
    %780 = vmatpush1.msra.mxu0 0.0
    %781 = vmatprep.subr.mxu0 0.0
    %782 = vmatpush1.msra.mxu0 0.0
    %783 = vmatprep.subr.mxu0 0.0
    %784 = vmatpush1.msra.mxu0 0.0
    %785 = vmatprep.subr.mxu0 0.0
    %786 = vmatpush1.msra.mxu0 0.0
    %787 = vmatprep.subr.mxu0 0.0
    %788 = vmatpush1.msra.mxu0 0.0
    %789 = vmatprep.subr.mxu0 0.0
    %790 = vmatpush1.msra.mxu0 0.0
    %791 = vmatprep.subr.mxu0 0.0
    %792 = vmatpush1.msra.mxu0 0.0
    %793 = vmatprep.mubr.f32.mxu0 0.0
    %794 = vmatmul.mubr.f32.gmra.mrb[0].mxu0 %v727
    %v795 = vpop.f32.mrb[0].mxu0
    %v796 = vadd.f32 %v185, %v795
    %v797 = vpop.f32.mrb[0].mxu0
    %v798 = vadd.f32 %v189, %v797
    %799 = vdwg.mxu0
    %v802 = vcombine.low %v796, %v798
    %v804 = vunpack.c.l.s4 1983009808
    %v805 = vunpack.c.0.s8 %v804
    %v806 = vlaneseq
    %v807 = vshrl.u32 %v806, 7
    %v808 = vsub.s32 %v805, %v807
    %v809 = vrot.slane %v802, %v808
    %s811 = scalar_lea.vmem [#allocation2], 24
    %812 = vst [vmem:[%s811] sm:$0xf] %v809
    %s813 = scalar_lea.vmem [#allocation5], 14
    %v814 = vld [vmem:[%s813] sm:$0x3]
    %v816 = vsel %vm192, %v814, 0
    %818 = vmatprep.subr.mxu0 %v139
    %819 = vmatpush1.msra.mxu0 %v138
    %820 = vmatprep.subr.mxu0 %v141
    %821 = vmatpush1.msra.mxu0 %v140
    %822 = vmatprep.subr.mxu0 %v143
    %823 = vmatpush1.msra.mxu0 %v142
    %824 = vmatprep.subr.mxu0 %v145
    %825 = vmatpush1.msra.mxu0 %v144
    %826 = vmatprep.subr.mxu0 0.0
    %827 = vmatpush1.msra.mxu0 0.0
    %828 = vmatprep.subr.mxu0 0.0
    %829 = vmatpush1.msra.mxu0 0.0
    %830 = vmatprep.subr.mxu0 0.0
    %831 = vmatpush1.msra.mxu0 0.0
    %832 = vmatprep.subr.mxu0 0.0
    %833 = vmatpush1.msra.mxu0 0.0
    %834 = vmatprep.subr.mxu0 0.0
    %835 = vmatpush1.msra.mxu0 0.0
    %836 = vmatprep.subr.mxu0 0.0
    %837 = vmatpush1.msra.mxu0 0.0
    %838 = vmatprep.subr.mxu0 0.0
    %839 = vmatpush1.msra.mxu0 0.0
    %840 = vmatprep.subr.mxu0 0.0
    %841 = vmatpush1.msra.mxu0 0.0
    %842 = vmatprep.subr.mxu0 0.0
    %843 = vmatpush1.msra.mxu0 0.0
    %844 = vmatprep.subr.mxu0 0.0
    %845 = vmatpush1.msra.mxu0 0.0
    %846 = vmatprep.subr.mxu0 0.0
    %847 = vmatpush1.msra.mxu0 0.0
    %848 = vmatprep.subr.mxu0 0.0
    %849 = vmatpush1.msra.mxu0 0.0
    %850 = vmatprep.subr.mxu0 0.0
    %851 = vmatpush1.msra.mxu0 0.0
    %852 = vmatprep.subr.mxu0 0.0
    %853 = vmatpush1.msra.mxu0 0.0
    %854 = vmatprep.subr.mxu0 0.0
    %855 = vmatpush1.msra.mxu0 0.0
    %856 = vmatprep.subr.mxu0 0.0
    %857 = vmatpush1.msra.mxu0 0.0
    %858 = vmatprep.subr.mxu0 0.0
    %859 = vmatpush1.msra.mxu0 0.0
    %860 = vmatprep.subr.mxu0 0.0
    %861 = vmatpush1.msra.mxu0 0.0
    %862 = vmatprep.subr.mxu0 0.0
    %863 = vmatpush1.msra.mxu0 0.0
    %864 = vmatprep.subr.mxu0 0.0
    %865 = vmatpush1.msra.mxu0 0.0
    %866 = vmatprep.subr.mxu0 0.0
    %867 = vmatpush1.msra.mxu0 0.0
    %868 = vmatprep.subr.mxu0 0.0
    %869 = vmatpush1.msra.mxu0 0.0
    %870 = vmatprep.subr.mxu0 0.0
    %871 = vmatpush1.msra.mxu0 0.0
    %872 = vmatprep.subr.mxu0 0.0
    %873 = vmatpush1.msra.mxu0 0.0
    %874 = vmatprep.subr.mxu0 0.0
    %875 = vmatpush1.msra.mxu0 0.0
    %876 = vmatprep.subr.mxu0 0.0
    %877 = vmatpush1.msra.mxu0 0.0
    %878 = vmatprep.subr.mxu0 0.0
    %879 = vmatpush1.msra.mxu0 0.0
    %880 = vmatprep.subr.mxu0 0.0
    %881 = vmatpush1.msra.mxu0 0.0
    %882 = vmatprep.mubr.f32.mxu0 0.0
    %883 = vmatmul.mubr.f32.gmra.mrb[0].mxu0 %v816
    %v884 = vpop.f32.mrb[0].mxu0
    %v885 = vadd.f32 %v185, %v884
    %v886 = vpop.f32.mrb[0].mxu0
    %v887 = vadd.f32 %v189, %v886
    %888 = vdwg.mxu0
    %v891 = vcombine.low %v885, %v887
    %v893 = vunpack.c.l.s4 1983009808
    %v894 = vunpack.c.0.s8 %v893
    %v895 = vlaneseq
    %v896 = vshrl.u32 %v895, 7
    %v897 = vsub.s32 %v894, %v896
    %v898 = vrot.slane %v891, %v897
    %s900 = scalar_lea.vmem [#allocation2], 28
    %901 = vst [vmem:[%s900] sm:$0xf] %v898
    %v902 = vld [vmem:[#allocation2] sm:$0xf]
    %v904 = vsel %vm192, 0.0, 0
    %906 = vmatprep.subr.mxu0 0.0
    %907 = vmatpush1.msra.mxu0 %v147
    %908 = vmatprep.subr.mxu0 0.0
    %909 = vmatpush1.msra.mxu0 %v148
    %910 = vmatprep.subr.mxu0 0.0
    %911 = vmatpush1.msra.mxu0 %v149
    %912 = vmatprep.subr.mxu0 0.0
    %913 = vmatpush1.msra.mxu0 %v150
    %914 = vmatprep.subr.mxu0 0.0
    %915 = vmatpush1.msra.mxu0 0.0
    %916 = vmatprep.subr.mxu0 0.0
    %917 = vmatpush1.msra.mxu0 0.0
    %918 = vmatprep.subr.mxu0 0.0
    %919 = vmatpush1.msra.mxu0 0.0
    %920 = vmatprep.subr.mxu0 0.0
    %921 = vmatpush1.msra.mxu0 0.0
    %922 = vmatprep.subr.mxu0 0.0
    %923 = vmatpush1.msra.mxu0 0.0
    %924 = vmatprep.subr.mxu0 0.0
    %925 = vmatpush1.msra.mxu0 0.0
    %926 = vmatprep.subr.mxu0 0.0
    %927 = vmatpush1.msra.mxu0 0.0
    %928 = vmatprep.subr.mxu0 0.0
    %929 = vmatpush1.msra.mxu0 0.0
    %930 = vmatprep.subr.mxu0 0.0
    %931 = vmatpush1.msra.mxu0 0.0
    %932 = vmatprep.subr.mxu0 0.0
    %933 = vmatpush1.msra.mxu0 0.0
    %934 = vmatprep.subr.mxu0 0.0
    %935 = vmatpush1.msra.mxu0 0.0
    %936 = vmatprep.subr.mxu0 0.0
    %937 = vmatpush1.msra.mxu0 0.0
    %938 = vmatprep.subr.mxu0 0.0
    %939 = vmatpush1.msra.mxu0 0.0
    %940 = vmatprep.subr.mxu0 0.0
    %941 = vmatpush1.msra.mxu0 0.0
    %942 = vmatprep.subr.mxu0 0.0
    %943 = vmatpush1.msra.mxu0 0.0
    %944 = vmatprep.subr.mxu0 0.0
    %945 = vmatpush1.msra.mxu0 0.0
    %946 = vmatprep.subr.mxu0 0.0
    %947 = vmatpush1.msra.mxu0 0.0
    %948 = vmatprep.subr.mxu0 0.0
    %949 = vmatpush1.msra.mxu0 0.0
    %950 = vmatprep.subr.mxu0 0.0
    %951 = vmatpush1.msra.mxu0 0.0
    %952 = vmatprep.subr.mxu0 0.0
    %953 = vmatpush1.msra.mxu0 0.0
    %954 = vmatprep.subr.mxu0 0.0
    %955 = vmatpush1.msra.mxu0 0.0
    %956 = vmatprep.subr.mxu0 0.0
    %957 = vmatpush1.msra.mxu0 0.0
    %958 = vmatprep.subr.mxu0 0.0
    %959 = vmatpush1.msra.mxu0 0.0
    %960 = vmatprep.subr.mxu0 0.0
    %961 = vmatpush1.msra.mxu0 0.0
    %962 = vmatprep.subr.mxu0 0.0
    %963 = vmatpush1.msra.mxu0 0.0
    %964 = vmatprep.subr.mxu0 0.0
    %965 = vmatpush1.msra.mxu0 0.0
    %966 = vmatprep.subr.mxu0 0.0
    %967 = vmatpush1.msra.mxu0 0.0
    %968 = vmatprep.subr.mxu0 0.0
    %969 = vmatpush1.msra.mxu0 0.0
    %970 = vmatprep.mubr.f32.mxu0 0.0
    %971 = vmatmul.mubr.f32.gmra.mrb[0].mxu0 %v904
    %v972 = vpop.f32.mrb[0].mxu0
    %v973 = vadd.f32 0.0, %v972
    %v974 = vpop.f32.mrb[0].mxu0
    %975 = vdwg.mxu0
    %v976 = vadd.f32 %v902, %v973
    %v977 = vld [vmem:[%s900] sm:$0xf]
    %978 = vmatprep.subr.mxu0 0.0
    %979 = vmatpush1.msra.mxu0 %v151
    %980 = vmatprep.subr.mxu0 0.0
    %981 = vmatpush1.msra.mxu0 %v152
    %982 = vmatprep.subr.mxu0 0.0
    %983 = vmatpush1.msra.mxu0 %v153
    %984 = vmatprep.subr.mxu0 0.0
    %985 = vmatpush1.msra.mxu0 %v154
    %986 = vmatprep.subr.mxu0 0.0
    %987 = vmatpush1.msra.mxu0 0.0
    %988 = vmatprep.subr.mxu0 0.0
    %989 = vmatpush1.msra.mxu0 0.0
    %990 = vmatprep.subr.mxu0 0.0
    %991 = vmatpush1.msra.mxu0 0.0
    %992 = vmatprep.subr.mxu0 0.0
    %993 = vmatpush1.msra.mxu0 0.0
    %994 = vmatprep.subr.mxu0 0.0
    %995 = vmatpush1.msra.mxu0 0.0
    %996 = vmatprep.subr.mxu0 0.0
    %997 = vmatpush1.msra.mxu0 0.0
    %998 = vmatprep.subr.mxu0 0.0
    %999 = vmatpush1.msra.mxu0 0.0
    %1000 = vmatprep.subr.mxu0 0.0
    %1001 = vmatpush1.msra.mxu0 0.0
    %1002 = vmatprep.subr.mxu0 0.0
    %1003 = vmatpush1.msra.mxu0 0.0
    %1004 = vmatprep.subr.mxu0 0.0
    %1005 = vmatpush1.msra.mxu0 0.0
    %1006 = vmatprep.subr.mxu0 0.0
    %1007 = vmatpush1.msra.mxu0 0.0
    %1008 = vmatprep.subr.mxu0 0.0
    %1009 = vmatpush1.msra.mxu0 0.0
    %1010 = vmatprep.subr.mxu0 0.0
    %1011 = vmatpush1.msra.mxu0 0.0
    %1012 = vmatprep.subr.mxu0 0.0
    %1013 = vmatpush1.msra.mxu0 0.0
    %1014 = vmatprep.subr.mxu0 0.0
    %1015 = vmatpush1.msra.mxu0 0.0
    %1016 = vmatprep.subr.mxu0 0.0
    %1017 = vmatpush1.msra.mxu0 0.0
    %1018 = vmatprep.subr.mxu0 0.0
    %1019 = vmatpush1.msra.mxu0 0.0
    %1020 = vmatprep.subr.mxu0 0.0
    %1021 = vmatpush1.msra.mxu0 0.0
    %1022 = vmatprep.subr.mxu0 0.0
    %1023 = vmatpush1.msra.mxu0 0.0
    %1024 = vmatprep.subr.mxu0 0.0
    %1025 = vmatpush1.msra.mxu0 0.0
    %1026 = vmatprep.subr.mxu0 0.0
    %1027 = vmatpush1.msra.mxu0 0.0
    %1028 = vmatprep.subr.mxu0 0.0
    %1029 = vmatpush1.msra.mxu0 0.0
    %1030 = vmatprep.subr.mxu0 0.0
    %1031 = vmatpush1.msra.mxu0 0.0
    %1032 = vmatprep.subr.mxu0 0.0
    %1033 = vmatpush1.msra.mxu0 0.0
    %1034 = vmatprep.subr.mxu0 0.0
    %1035 = vmatpush1.msra.mxu0 0.0
    %1036 = vmatprep.subr.mxu0 0.0
    %1037 = vmatpush1.msra.mxu0 0.0
    %1038 = vmatprep.subr.mxu0 0.0
    %1039 = vmatpush1.msra.mxu0 0.0
    %1040 = vmatprep.subr.mxu0 0.0
    %1041 = vmatpush1.msra.mxu0 0.0
    %1042 = vmatprep.mubr.f32.mxu0 0.0
    %1043 = vmatmul.mubr.f32.gmra.mrb[0].mxu0 %v904
    %v1044 = vpop.f32.mrb[0].mxu0
    %v1045 = vadd.f32 0.0, %v1044
    %v1046 = vpop.f32.mrb[0].mxu0
    %1047 = vdwg.mxu0
    %v1049 = vrot.slane %v977, 2
    %v1051 = vadd.f32 %v1049, %v1045
    %v1052 = vxor.u32 %v976, 2147483648
    %v1053 = vmul.f32 %v1052, 1.442695
    %v1054 = vpow.pop %v1053
    %v1055 = vadd.f32 %v1054, 1.0
    %v1056 = vrcp.pop %v1055
    %v1057 = vmul.f32 1.0, %v1056
    %v1058 = vtanh.pop %v976
    %v1059 = vmul.f32 %v1057, 0.0
    %1061 = vrot.lane.b32.xlu0 %v1058, 64
    %v1062 = vpop.permute.xlu0 %1061
    %v1064 = vmul.f32 %v1057, %v1062
    %1066 = vrot.lane.b32.xlu0 %v1064, 32
    %v1067 = vpop.permute.xlu0 %1066
    %v1069 = vadd.f32 %v1059, %v1067
    %v1070 = vtanh.pop %v1069
    %1072 = vrot.lane.b32.xlu0 %v1070, 64
    %v1073 = vpop.permute.xlu0 %1072
    %v1075 = vmul.f32 %v1057, %v1073
    %v1076 = vxor.u32 %v1051, 2147483648
    %v1077 = vmul.f32 %v1076, 1.442695
    %v1078 = vpow.pop %v1077
    %v1079 = vadd.f32 %v1078, 1.0
    %v1080 = vrcp.pop %v1079
    %v1081 = vmul.f32 1.0, %v1080
    %v1082 = vtanh.pop %v1051
    %v1083 = vmul.f32 %v1081, 0.0
    %1085 = vrot.lane.b32.xlu0 %v1082, 64
    %v1086 = vpop.permute.xlu0 %1085
    %v1088 = vmul.f32 %v1081, %v1086
    %1090 = vrot.lane.b32.xlu0 %v1088, 32
    %v1091 = vpop.permute.xlu0 %1090
    %v1093 = vadd.f32 %v1083, %v1091
    %v1094 = vtanh.pop %v1093
    %1096 = vrot.lane.b32.xlu0 %v1094, 64
    %v1097 = vpop.permute.xlu0 %1096
    %v1099 = vmul.f32 %v1081, %v1097
    %v1102 = vunpack.c.l.s4 1983009808
    %v1103 = vunpack.c.0.s8 %v1102
    %v1104 = vlaneseq
    %v1105 = vshrl.u32 %v1104, 7
    %v1106 = vsub.s32 %v1103, %v1105
    %v1107 = vrot.slane %v1075, %v1106
    %1108 = vrot.lane.b32.xlu0 %v1107, 32
    %v1109 = vpop.permute.xlu0 %1108
    %vm1111 = vcmask 254976
    %1112 = vst.msk [vmem:[#allocation4] sm:$0x3] %vm1111, %v1109
    %v1115 = vunpack.c.l.s4 1983009808
    %v1116 = vunpack.c.0.s8 %v1115
    %v1117 = vlaneseq
    %v1118 = vshrl.u32 %v1117, 7
    %v1119 = vsub.s32 %v1116, %v1118
    %v1120 = vrot.slane %v1099, %v1119
    %1121 = vrot.lane.b32.xlu0 %v1120, 64
    %v1122 = vpop.permute.xlu0 %1121
    %s1124 = scalar_lea.vmem [#allocation4], 14
    %vm1125 = vcmask 517376
    %1126 = vst.msk [vmem:[%s1124] sm:$0x3] %vm1125, %v1122
    %v1127 = vld [vmem:[%s366] sm:$0xf]
    %v1128 = vsel %vm192, %v1109, 0
    %1130 = vmatprep.subr.mxu0 0.0
    %1131 = vmatpush1.msra.mxu0 %v147
    %1132 = vmatprep.subr.mxu0 0.0
    %1133 = vmatpush1.msra.mxu0 %v148
    %1134 = vmatprep.subr.mxu0 0.0
    %1135 = vmatpush1.msra.mxu0 %v149
    %1136 = vmatprep.subr.mxu0 0.0
    %1137 = vmatpush1.msra.mxu0 %v150
    %1138 = vmatprep.subr.mxu0 0.0
    %1139 = vmatpush1.msra.mxu0 0.0
    %1140 = vmatprep.subr.mxu0 0.0
    %1141 = vmatpush1.msra.mxu0 0.0
    %1142 = vmatprep.subr.mxu0 0.0
    %1143 = vmatpush1.msra.mxu0 0.0
    %1144 = vmatprep.subr.mxu0 0.0
    %1145 = vmatpush1.msra.mxu0 0.0
    %1146 = vmatprep.subr.mxu0 0.0
    %1147 = vmatpush1.msra.mxu0 0.0
    %1148 = vmatprep.subr.mxu0 0.0
    %1149 = vmatpush1.msra.mxu0 0.0
    %1150 = vmatprep.subr.mxu0 0.0
    %1151 = vmatpush1.msra.mxu0 0.0
    %1152 = vmatprep.subr.mxu0 0.0
    %1153 = vmatpush1.msra.mxu0 0.0
    %1154 = vmatprep.subr.mxu0 0.0
    %1155 = vmatpush1.msra.mxu0 0.0
    %1156 = vmatprep.subr.mxu0 0.0
    %1157 = vmatpush1.msra.mxu0 0.0
    %1158 = vmatprep.subr.mxu0 0.0
    %1159 = vmatpush1.msra.mxu0 0.0
    %1160 = vmatprep.subr.mxu0 0.0
    %1161 = vmatpush1.msra.mxu0 0.0
    %1162 = vmatprep.subr.mxu0 0.0
    %1163 = vmatpush1.msra.mxu0 0.0
    %1164 = vmatprep.subr.mxu0 0.0
    %1165 = vmatpush1.msra.mxu0 0.0
    %1166 = vmatprep.subr.mxu0 0.0
    %1167 = vmatpush1.msra.mxu0 0.0
    %1168 = vmatprep.subr.mxu0 0.0
    %1169 = vmatpush1.msra.mxu0 0.0
    %1170 = vmatprep.subr.mxu0 0.0
    %1171 = vmatpush1.msra.mxu0 0.0
    %1172 = vmatprep.subr.mxu0 0.0
    %1173 = vmatpush1.msra.mxu0 0.0
    %1174 = vmatprep.subr.mxu0 0.0
    %1175 = vmatpush1.msra.mxu0 0.0
    %1176 = vmatprep.subr.mxu0 0.0
    %1177 = vmatpush1.msra.mxu0 0.0
    %1178 = vmatprep.subr.mxu0 0.0
    %1179 = vmatpush1.msra.mxu0 0.0
    %1180 = vmatprep.subr.mxu0 0.0
    %1181 = vmatpush1.msra.mxu0 0.0
    %1182 = vmatprep.subr.mxu0 0.0
    %1183 = vmatpush1.msra.mxu0 0.0
    %1184 = vmatprep.subr.mxu0 0.0
    %1185 = vmatpush1.msra.mxu0 0.0
    %1186 = vmatprep.subr.mxu0 0.0
    %1187 = vmatpush1.msra.mxu0 0.0
    %1188 = vmatprep.subr.mxu0 0.0
    %1189 = vmatpush1.msra.mxu0 0.0
    %1190 = vmatprep.subr.mxu0 0.0
    %1191 = vmatpush1.msra.mxu0 0.0
    %1192 = vmatprep.subr.mxu0 0.0
    %1193 = vmatpush1.msra.mxu0 0.0
    %1194 = vmatprep.mubr.f32.mxu0 0.0
    %1195 = vmatmul.mubr.f32.gmra.mrb[0].mxu0 %v1128
    %v1196 = vpop.f32.mrb[0].mxu0
    %v1197 = vadd.f32 0.0, %v1196
    %v1198 = vpop.f32.mrb[0].mxu0
    %1199 = vdwg.mxu0
    %v1200 = vadd.f32 %v1127, %v1197
    %v1201 = vld [vmem:[%s811] sm:$0xf]
    %1202 = vrot.lane.b32.xlu0 %v1120, 32
    %v1203 = vpop.permute.xlu0 %1202
    %v1204 = vsel %vm192, %v1203, 0
    %1206 = vmatprep.subr.mxu0 0.0
    %1207 = vmatpush1.msra.mxu0 %v151
    %1208 = vmatprep.subr.mxu0 0.0
    %1209 = vmatpush1.msra.mxu0 %v152
    %1210 = vmatprep.subr.mxu0 0.0
    %1211 = vmatpush1.msra.mxu0 %v153
    %1212 = vmatprep.subr.mxu0 0.0
    %1213 = vmatpush1.msra.mxu0 %v154
    %1214 = vmatprep.subr.mxu0 0.0
    %1215 = vmatpush1.msra.mxu0 0.0
    %1216 = vmatprep.subr.mxu0 0.0
    %1217 = vmatpush1.msra.mxu0 0.0
    %1218 = vmatprep.subr.mxu0 0.0
    %1219 = vmatpush1.msra.mxu0 0.0
    %1220 = vmatprep.subr.mxu0 0.0
    %1221 = vmatpush1.msra.mxu0 0.0
    %1222 = vmatprep.subr.mxu0 0.0
    %1223 = vmatpush1.msra.mxu0 0.0
    %1224 = vmatprep.subr.mxu0 0.0
    %1225 = vmatpush1.msra.mxu0 0.0
    %1226 = vmatprep.subr.mxu0 0.0
    %1227 = vmatpush1.msra.mxu0 0.0
    %1228 = vmatprep.subr.mxu0 0.0
    %1229 = vmatpush1.msra.mxu0 0.0
    %1230 = vmatprep.subr.mxu0 0.0
    %1231 = vmatpush1.msra.mxu0 0.0
    %1232 = vmatprep.subr.mxu0 0.0
    %1233 = vmatpush1.msra.mxu0 0.0
    %1234 = vmatprep.subr.mxu0 0.0
    %1235 = vmatpush1.msra.mxu0 0.0
    %1236 = vmatprep.subr.mxu0 0.0
    %1237 = vmatpush1.msra.mxu0 0.0
    %1238 = vmatprep.subr.mxu0 0.0
    %1239 = vmatpush1.msra.mxu0 0.0
    %1240 = vmatprep.subr.mxu0 0.0
    %1241 = vmatpush1.msra.mxu0 0.0
    %1242 = vmatprep.subr.mxu0 0.0
    %1243 = vmatpush1.msra.mxu0 0.0
    %1244 = vmatprep.subr.mxu0 0.0
    %1245 = vmatpush1.msra.mxu0 0.0
    %1246 = vmatprep.subr.mxu0 0.0
    %1247 = vmatpush1.msra.mxu0 0.0
    %1248 = vmatprep.subr.mxu0 0.0
    %1249 = vmatpush1.msra.mxu0 0.0
    %1250 = vmatprep.subr.mxu0 0.0
    %1251 = vmatpush1.msra.mxu0 0.0
    %1252 = vmatprep.subr.mxu0 0.0
    %1253 = vmatpush1.msra.mxu0 0.0
    %1254 = vmatprep.subr.mxu0 0.0
    %1255 = vmatpush1.msra.mxu0 0.0
    %1256 = vmatprep.subr.mxu0 0.0
    %1257 = vmatpush1.msra.mxu0 0.0
    %1258 = vmatprep.subr.mxu0 0.0
    %1259 = vmatpush1.msra.mxu0 0.0
    %1260 = vmatprep.subr.mxu0 0.0
    %1261 = vmatpush1.msra.mxu0 0.0
    %1262 = vmatprep.subr.mxu0 0.0
    %1263 = vmatpush1.msra.mxu0 0.0
    %1264 = vmatprep.subr.mxu0 0.0
    %1265 = vmatpush1.msra.mxu0 0.0
    %1266 = vmatprep.subr.mxu0 0.0
    %1267 = vmatpush1.msra.mxu0 0.0
    %1268 = vmatprep.subr.mxu0 0.0
    %1269 = vmatpush1.msra.mxu0 0.0
    %1270 = vmatprep.mubr.f32.mxu0 0.0
    %1271 = vmatmul.mubr.f32.gmra.mrb[0].mxu0 %v1204
    %v1272 = vpop.f32.mrb[0].mxu0
    %v1273 = vadd.f32 0.0, %v1272
    %v1274 = vpop.f32.mrb[0].mxu0
    %1275 = vdwg.mxu0
    %v1277 = vrot.slane %v1201, 2
    %v1279 = vadd.f32 %v1277, %v1273
    %v1280 = vxor.u32 %v1200, 2147483648
    %v1281 = vmul.f32 %v1280, 1.442695
    %v1282 = vpow.pop %v1281
    %v1283 = vadd.f32 %v1282, 1.0
    %v1284 = vrcp.pop %v1283
    %v1285 = vmul.f32 1.0, %v1284
    %v1286 = vtanh.pop %v1200
    %v1287 = vmul.f32 %v1285, %v1069
    %1289 = vrot.lane.b32.xlu0 %v1286, 64
    %v1290 = vpop.permute.xlu0 %1289
    %v1292 = vmul.f32 %v1285, %v1290
    %1294 = vrot.lane.b32.xlu0 %v1292, 32
    %v1295 = vpop.permute.xlu0 %1294
    %v1297 = vadd.f32 %v1287, %v1295
    %v1298 = vtanh.pop %v1297
    %1300 = vrot.lane.b32.xlu0 %v1298, 64
    %v1301 = vpop.permute.xlu0 %1300
    %v1303 = vmul.f32 %v1285, %v1301
    %v1304 = vxor.u32 %v1279, 2147483648
    %v1305 = vmul.f32 %v1304, 1.442695
    %v1306 = vpow.pop %v1305
    %v1307 = vadd.f32 %v1306, 1.0
    %v1308 = vrcp.pop %v1307
    %v1309 = vmul.f32 1.0, %v1308
    %v1310 = vtanh.pop %v1279
    %v1311 = vmul.f32 %v1309, %v1093
    %1313 = vrot.lane.b32.xlu0 %v1310, 64
    %v1314 = vpop.permute.xlu0 %1313
    %v1316 = vmul.f32 %v1309, %v1314
    %1318 = vrot.lane.b32.xlu0 %v1316, 32
    %v1319 = vpop.permute.xlu0 %1318
    %v1321 = vadd.f32 %v1311, %v1319
    %v1322 = vtanh.pop %v1321
    %1324 = vrot.lane.b32.xlu0 %v1322, 64
    %v1325 = vpop.permute.xlu0 %1324
    %v1327 = vmul.f32 %v1309, %v1325
    %v1330 = vunpack.c.l.s4 1983009808
    %v1331 = vunpack.c.0.s8 %v1330
    %v1332 = vlaneseq
    %v1333 = vshrl.u32 %v1332, 7
    %v1334 = vsub.s32 %v1331, %v1333
    %v1335 = vrot.slane %v1303, %v1334
    %1336 = vrot.lane.b32.xlu0 %v1335, 32
    %v1337 = vpop.permute.xlu0 %1336
    %s1339 = scalar_lea.vmem [#allocation4], 2
    %1340 = vst.msk [vmem:[%s1339] sm:$0x3] %vm1111, %v1337
    %v1343 = vunpack.c.l.s4 1983009808
    %v1344 = vunpack.c.0.s8 %v1343
    %v1345 = vlaneseq
    %v1346 = vshrl.u32 %v1345, 7
    %v1347 = vsub.s32 %v1344, %v1346
    %v1348 = vrot.slane %v1327, %v1347
    %1349 = vrot.lane.b32.xlu0 %v1348, 64
    %v1350 = vpop.permute.xlu0 %1349
    %s1352 = scalar_lea.vmem [#allocation4], 12
    %1353 = vst.msk [vmem:[%s1352] sm:$0x3] %vm1125, %v1350
    %v1354 = vld [vmem:[%s455] sm:$0xf]
    %v1355 = vsel %vm192, %v1337, 0
    %1357 = vmatprep.subr.mxu0 0.0
    %1358 = vmatpush1.msra.mxu0 %v147
    %1359 = vmatprep.subr.mxu0 0.0
    %1360 = vmatpush1.msra.mxu0 %v148
    %1361 = vmatprep.subr.mxu0 0.0
    %1362 = vmatpush1.msra.mxu0 %v149
    %1363 = vmatprep.subr.mxu0 0.0
    %1364 = vmatpush1.msra.mxu0 %v150
    %1365 = vmatprep.subr.mxu0 0.0
    %1366 = vmatpush1.msra.mxu0 0.0
    %1367 = vmatprep.subr.mxu0 0.0
    %1368 = vmatpush1.msra.mxu0 0.0
    %1369 = vmatprep.subr.mxu0 0.0
    %1370 = vmatpush1.msra.mxu0 0.0
    %1371 = vmatprep.subr.mxu0 0.0
    %1372 = vmatpush1.msra.mxu0 0.0
    %1373 = vmatprep.subr.mxu0 0.0
    %1374 = vmatpush1.msra.mxu0 0.0
    %1375 = vmatprep.subr.mxu0 0.0
    %1376 = vmatpush1.msra.mxu0 0.0
    %1377 = vmatprep.subr.mxu0 0.0
    %1378 = vmatpush1.msra.mxu0 0.0
    %1379 = vmatprep.subr.mxu0 0.0
    %1380 = vmatpush1.msra.mxu0 0.0
    %1381 = vmatprep.subr.mxu0 0.0
    %1382 = vmatpush1.msra.mxu0 0.0
    %1383 = vmatprep.subr.mxu0 0.0
    %1384 = vmatpush1.msra.mxu0 0.0
    %1385 = vmatprep.subr.mxu0 0.0
    %1386 = vmatpush1.msra.mxu0 0.0
    %1387 = vmatprep.subr.mxu0 0.0
    %1388 = vmatpush1.msra.mxu0 0.0
    %1389 = vmatprep.subr.mxu0 0.0
    %1390 = vmatpush1.msra.mxu0 0.0
    %1391 = vmatprep.subr.mxu0 0.0
    %1392 = vmatpush1.msra.mxu0 0.0
    %1393 = vmatprep.subr.mxu0 0.0
    %1394 = vmatpush1.msra.mxu0 0.0
    %1395 = vmatprep.subr.mxu0 0.0
    %1396 = vmatpush1.msra.mxu0 0.0
    %1397 = vmatprep.subr.mxu0 0.0
    %1398 = vmatpush1.msra.mxu0 0.0
    %1399 = vmatprep.subr.mxu0 0.0
    %1400 = vmatpush1.msra.mxu0 0.0
    %1401 = vmatprep.subr.mxu0 0.0
    %1402 = vmatpush1.msra.mxu0 0.0
    %1403 = vmatprep.subr.mxu0 0.0
    %1404 = vmatpush1.msra.mxu0 0.0
    %1405 = vmatprep.subr.mxu0 0.0
    %1406 = vmatpush1.msra.mxu0 0.0
    %1407 = vmatprep.subr.mxu0 0.0
    %1408 = vmatpush1.msra.mxu0 0.0
    %1409 = vmatprep.subr.mxu0 0.0
    %1410 = vmatpush1.msra.mxu0 0.0
    %1411 = vmatprep.subr.mxu0 0.0
    %1412 = vmatpush1.msra.mxu0 0.0
    %1413 = vmatprep.subr.mxu0 0.0
    %1414 = vmatpush1.msra.mxu0 0.0
    %1415 = vmatprep.subr.mxu0 0.0
    %1416 = vmatpush1.msra.mxu0 0.0
    %1417 = vmatprep.subr.mxu0 0.0
    %1418 = vmatpush1.msra.mxu0 0.0
    %1419 = vmatprep.subr.mxu0 0.0
    %1420 = vmatpush1.msra.mxu0 0.0
    %1421 = vmatprep.mubr.f32.mxu0 0.0
    %1422 = vmatmul.mubr.f32.gmra.mrb[0].mxu0 %v1355
    %v1423 = vpop.f32.mrb[0].mxu0
    %v1424 = vadd.f32 0.0, %v1423
    %v1425 = vpop.f32.mrb[0].mxu0
    %1426 = vdwg.mxu0
    %v1427 = vadd.f32 %v1354, %v1424
    %v1428 = vld [vmem:[%s722] sm:$0xf]
    %1429 = vrot.lane.b32.xlu0 %v1348, 32
    %v1430 = vpop.permute.xlu0 %1429
    %v1431 = vsel %vm192, %v1430, 0
    %1433 = vmatprep.subr.mxu0 0.0
    %1434 = vmatpush1.msra.mxu0 %v151
    %1435 = vmatprep.subr.mxu0 0.0
    %1436 = vmatpush1.msra.mxu0 %v152
    %1437 = vmatprep.subr.mxu0 0.0
    %1438 = vmatpush1.msra.mxu0 %v153
    %1439 = vmatprep.subr.mxu0 0.0
    %1440 = vmatpush1.msra.mxu0 %v154
    %1441 = vmatprep.subr.mxu0 0.0
    %1442 = vmatpush1.msra.mxu0 0.0
    %1443 = vmatprep.subr.mxu0 0.0
    %1444 = vmatpush1.msra.mxu0 0.0
    %1445 = vmatprep.subr.mxu0 0.0
    %1446 = vmatpush1.msra.mxu0 0.0
    %1447 = vmatprep.subr.mxu0 0.0
    %1448 = vmatpush1.msra.mxu0 0.0
    %1449 = vmatprep.subr.mxu0 0.0
    %1450 = vmatpush1.msra.mxu0 0.0
    %1451 = vmatprep.subr.mxu0 0.0
    %1452 = vmatpush1.msra.mxu0 0.0
    %1453 = vmatprep.subr.mxu0 0.0
    %1454 = vmatpush1.msra.mxu0 0.0
    %1455 = vmatprep.subr.mxu0 0.0
    %1456 = vmatpush1.msra.mxu0 0.0
    %1457 = vmatprep.subr.mxu0 0.0
    %1458 = vmatpush1.msra.mxu0 0.0
    %1459 = vmatprep.subr.mxu0 0.0
    %1460 = vmatpush1.msra.mxu0 0.0
    %1461 = vmatprep.subr.mxu0 0.0
    %1462 = vmatpush1.msra.mxu0 0.0
    %1463 = vmatprep.subr.mxu0 0.0
    %1464 = vmatpush1.msra.mxu0 0.0
    %1465 = vmatprep.subr.mxu0 0.0
    %1466 = vmatpush1.msra.mxu0 0.0
    %1467 = vmatprep.subr.mxu0 0.0
    %1468 = vmatpush1.msra.mxu0 0.0
    %1469 = vmatprep.subr.mxu0 0.0
    %1470 = vmatpush1.msra.mxu0 0.0
    %1471 = vmatprep.subr.mxu0 0.0
    %1472 = vmatpush1.msra.mxu0 0.0
    %1473 = vmatprep.subr.mxu0 0.0
    %1474 = vmatpush1.msra.mxu0 0.0
    %1475 = vmatprep.subr.mxu0 0.0
    %1476 = vmatpush1.msra.mxu0 0.0
    %1477 = vmatprep.subr.mxu0 0.0
    %1478 = vmatpush1.msra.mxu0 0.0
    %1479 = vmatprep.subr.mxu0 0.0
    %1480 = vmatpush1.msra.mxu0 0.0
    %1481 = vmatprep.subr.mxu0 0.0
    %1482 = vmatpush1.msra.mxu0 0.0
    %1483 = vmatprep.subr.mxu0 0.0
    %1484 = vmatpush1.msra.mxu0 0.0
    %1485 = vmatprep.subr.mxu0 0.0
    %1486 = vmatpush1.msra.mxu0 0.0
    %1487 = vmatprep.subr.mxu0 0.0
    %1488 = vmatpush1.msra.mxu0 0.0
    %1489 = vmatprep.subr.mxu0 0.0
    %1490 = vmatpush1.msra.mxu0 0.0
    %1491 = vmatprep.subr.mxu0 0.0
    %1492 = vmatpush1.msra.mxu0 0.0
    %1493 = vmatprep.subr.mxu0 0.0
    %1494 = vmatpush1.msra.mxu0 0.0
    %1495 = vmatprep.subr.mxu0 0.0
    %1496 = vmatpush1.msra.mxu0 0.0
    %1497 = vmatprep.mubr.f32.mxu0 0.0
    %1498 = vmatmul.mubr.f32.gmra.mrb[0].mxu0 %v1431
    %v1499 = vpop.f32.mrb[0].mxu0
    %v1500 = vadd.f32 0.0, %v1499
    %v1501 = vpop.f32.mrb[0].mxu0
    %1502 = vdwg.mxu0
    %v1504 = vrot.slane %v1428, 2
    %v1506 = vadd.f32 %v1504, %v1500
    %v1507 = vxor.u32 %v1427, 2147483648
    %v1508 = vmul.f32 %v1507, 1.442695
    %v1509 = vpow.pop %v1508
    %v1510 = vadd.f32 %v1509, 1.0
    %v1511 = vrcp.pop %v1510
    %v1512 = vmul.f32 1.0, %v1511
    %v1513 = vtanh.pop %v1427
    %v1514 = vmul.f32 %v1512, %v1297
    %1516 = vrot.lane.b32.xlu0 %v1513, 64
    %v1517 = vpop.permute.xlu0 %1516
    %v1519 = vmul.f32 %v1512, %v1517
    %1521 = vrot.lane.b32.xlu0 %v1519, 32
    %v1522 = vpop.permute.xlu0 %1521
    %v1524 = vadd.f32 %v1514, %v1522
    %v1525 = vtanh.pop %v1524
    %1527 = vrot.lane.b32.xlu0 %v1525, 64
    %v1528 = vpop.permute.xlu0 %1527
    %v1530 = vmul.f32 %v1512, %v1528
    %v1531 = vxor.u32 %v1506, 2147483648
    %v1532 = vmul.f32 %v1531, 1.442695
    %v1533 = vpow.pop %v1532
    %v1534 = vadd.f32 %v1533, 1.0
    %v1535 = vrcp.pop %v1534
    %v1536 = vmul.f32 1.0, %v1535
    %v1537 = vtanh.pop %v1506
    %v1538 = vmul.f32 %v1536, %v1321
    %1540 = vrot.lane.b32.xlu0 %v1537, 64
    %v1541 = vpop.permute.xlu0 %1540
    %v1543 = vmul.f32 %v1536, %v1541
    %1545 = vrot.lane.b32.xlu0 %v1543, 32
    %v1546 = vpop.permute.xlu0 %1545
    %v1548 = vadd.f32 %v1538, %v1546
    %v1549 = vtanh.pop %v1548
    %1551 = vrot.lane.b32.xlu0 %v1549, 64
    %v1552 = vpop.permute.xlu0 %1551
    %v1554 = vmul.f32 %v1536, %v1552
    %v1557 = vunpack.c.l.s4 1983009808
    %v1558 = vunpack.c.0.s8 %v1557
    %v1559 = vlaneseq
    %v1560 = vshrl.u32 %v1559, 7
    %v1561 = vsub.s32 %v1558, %v1560
    %v1562 = vrot.slane %v1530, %v1561
    %1563 = vrot.lane.b32.xlu0 %v1562, 32
    %v1564 = vpop.permute.xlu0 %1563
    %s1566 = scalar_lea.vmem [#allocation4], 4
    %1567 = vst.msk [vmem:[%s1566] sm:$0x3] %vm1111, %v1564
    %v1570 = vunpack.c.l.s4 1983009808
    %v1571 = vunpack.c.0.s8 %v1570
    %v1572 = vlaneseq
    %v1573 = vshrl.u32 %v1572, 7
    %v1574 = vsub.s32 %v1571, %v1573
    %v1575 = vrot.slane %v1554, %v1574
    %1576 = vrot.lane.b32.xlu0 %v1575, 64
    %v1577 = vpop.permute.xlu0 %1576
    %s1579 = scalar_lea.vmem [#allocation4], 10
    %1580 = vst.msk [vmem:[%s1579] sm:$0x3] %vm1125, %v1577
    %v1581 = vld [vmem:[%s544] sm:$0xf]
    %v1582 = vsel %vm192, %v1564, 0
    %1584 = vmatprep.subr.mxu0 0.0
    %1585 = vmatpush1.msra.mxu0 %v147
    %1586 = vmatprep.subr.mxu0 0.0
    %1587 = vmatpush1.msra.mxu0 %v148
    %1588 = vmatprep.subr.mxu0 0.0
    %1589 = vmatpush1.msra.mxu0 %v149
    %1590 = vmatprep.subr.mxu0 0.0
    %1591 = vmatpush1.msra.mxu0 %v150
    %1592 = vmatprep.subr.mxu0 0.0
    %1593 = vmatpush1.msra.mxu0 0.0
    %1594 = vmatprep.subr.mxu0 0.0
    %1595 = vmatpush1.msra.mxu0 0.0
    %1596 = vmatprep.subr.mxu0 0.0
    %1597 = vmatpush1.msra.mxu0 0.0
    %1598 = vmatprep.subr.mxu0 0.0
    %1599 = vmatpush1.msra.mxu0 0.0
    %1600 = vmatprep.subr.mxu0 0.0
    %1601 = vmatpush1.msra.mxu0 0.0
    %1602 = vmatprep.subr.mxu0 0.0
    %1603 = vmatpush1.msra.mxu0 0.0
    %1604 = vmatprep.subr.mxu0 0.0
    %1605 = vmatpush1.msra.mxu0 0.0
    %1606 = vmatprep.subr.mxu0 0.0
    %1607 = vmatpush1.msra.mxu0 0.0
    %1608 = vmatprep.subr.mxu0 0.0
    %1609 = vmatpush1.msra.mxu0 0.0
    %1610 = vmatprep.subr.mxu0 0.0
    %1611 = vmatpush1.msra.mxu0 0.0
    %1612 = vmatprep.subr.mxu0 0.0
    %1613 = vmatpush1.msra.mxu0 0.0
    %1614 = vmatprep.subr.mxu0 0.0
    %1615 = vmatpush1.msra.mxu0 0.0
    %1616 = vmatprep.subr.mxu0 0.0
    %1617 = vmatpush1.msra.mxu0 0.0
    %1618 = vmatprep.subr.mxu0 0.0
    %1619 = vmatpush1.msra.mxu0 0.0
    %1620 = vmatprep.subr.mxu0 0.0
    %1621 = vmatpush1.msra.mxu0 0.0
    %1622 = vmatprep.subr.mxu0 0.0
    %1623 = vmatpush1.msra.mxu0 0.0
    %1624 = vmatprep.subr.mxu0 0.0
    %1625 = vmatpush1.msra.mxu0 0.0
    %1626 = vmatprep.subr.mxu0 0.0
    %1627 = vmatpush1.msra.mxu0 0.0
    %1628 = vmatprep.subr.mxu0 0.0
    %1629 = vmatpush1.msra.mxu0 0.0
    %1630 = vmatprep.subr.mxu0 0.0
    %1631 = vmatpush1.msra.mxu0 0.0
    %1632 = vmatprep.subr.mxu0 0.0
    %1633 = vmatpush1.msra.mxu0 0.0
    %1634 = vmatprep.subr.mxu0 0.0
    %1635 = vmatpush1.msra.mxu0 0.0
    %1636 = vmatprep.subr.mxu0 0.0
    %1637 = vmatpush1.msra.mxu0 0.0
    %1638 = vmatprep.subr.mxu0 0.0
    %1639 = vmatpush1.msra.mxu0 0.0
    %1640 = vmatprep.subr.mxu0 0.0
    %1641 = vmatpush1.msra.mxu0 0.0
    %1642 = vmatprep.subr.mxu0 0.0
    %1643 = vmatpush1.msra.mxu0 0.0
    %1644 = vmatprep.subr.mxu0 0.0
    %1645 = vmatpush1.msra.mxu0 0.0
    %1646 = vmatprep.subr.mxu0 0.0
    %1647 = vmatpush1.msra.mxu0 0.0
    %1648 = vmatprep.mubr.f32.mxu0 0.0
    %1649 = vmatmul.mubr.f32.gmra.mrb[0].mxu0 %v1582
    %v1650 = vpop.f32.mrb[0].mxu0
    %v1651 = vadd.f32 0.0, %v1650
    %v1652 = vpop.f32.mrb[0].mxu0
    %1653 = vdwg.mxu0
    %v1654 = vadd.f32 %v1581, %v1651
    %v1655 = vld [vmem:[%s633] sm:$0xf]
    %1656 = vrot.lane.b32.xlu0 %v1575, 32
    %v1657 = vpop.permute.xlu0 %1656
    %v1658 = vsel %vm192, %v1657, 0
    %1660 = vmatprep.subr.mxu0 0.0
    %1661 = vmatpush1.msra.mxu0 %v151
    %1662 = vmatprep.subr.mxu0 0.0
    %1663 = vmatpush1.msra.mxu0 %v152
    %1664 = vmatprep.subr.mxu0 0.0
    %1665 = vmatpush1.msra.mxu0 %v153
    %1666 = vmatprep.subr.mxu0 0.0
    %1667 = vmatpush1.msra.mxu0 %v154
    %1668 = vmatprep.subr.mxu0 0.0
    %1669 = vmatpush1.msra.mxu0 0.0
    %1670 = vmatprep.subr.mxu0 0.0
    %1671 = vmatpush1.msra.mxu0 0.0
    %1672 = vmatprep.subr.mxu0 0.0
    %1673 = vmatpush1.msra.mxu0 0.0
    %1674 = vmatprep.subr.mxu0 0.0
    %1675 = vmatpush1.msra.mxu0 0.0
    %1676 = vmatprep.subr.mxu0 0.0
    %1677 = vmatpush1.msra.mxu0 0.0
    %1678 = vmatprep.subr.mxu0 0.0
    %1679 = vmatpush1.msra.mxu0 0.0
    %1680 = vmatprep.subr.mxu0 0.0
    %1681 = vmatpush1.msra.mxu0 0.0
    %1682 = vmatprep.subr.mxu0 0.0
    %1683 = vmatpush1.msra.mxu0 0.0
    %1684 = vmatprep.subr.mxu0 0.0
    %1685 = vmatpush1.msra.mxu0 0.0
    %1686 = vmatprep.subr.mxu0 0.0
    %1687 = vmatpush1.msra.mxu0 0.0
    %1688 = vmatprep.subr.mxu0 0.0
    %1689 = vmatpush1.msra.mxu0 0.0
    %1690 = vmatprep.subr.mxu0 0.0
    %1691 = vmatpush1.msra.mxu0 0.0
    %1692 = vmatprep.subr.mxu0 0.0
    %1693 = vmatpush1.msra.mxu0 0.0
    %1694 = vmatprep.subr.mxu0 0.0
    %1695 = vmatpush1.msra.mxu0 0.0
    %1696 = vmatprep.subr.mxu0 0.0
    %1697 = vmatpush1.msra.mxu0 0.0
    %1698 = vmatprep.subr.mxu0 0.0
    %1699 = vmatpush1.msra.mxu0 0.0
    %1700 = vmatprep.subr.mxu0 0.0
    %1701 = vmatpush1.msra.mxu0 0.0
    %1702 = vmatprep.subr.mxu0 0.0
    %1703 = vmatpush1.msra.mxu0 0.0
    %1704 = vmatprep.subr.mxu0 0.0
    %1705 = vmatpush1.msra.mxu0 0.0
    %1706 = vmatprep.subr.mxu0 0.0
    %1707 = vmatpush1.msra.mxu0 0.0
    %1708 = vmatprep.subr.mxu0 0.0
    %1709 = vmatpush1.msra.mxu0 0.0
    %1710 = vmatprep.subr.mxu0 0.0
    %1711 = vmatpush1.msra.mxu0 0.0
    %1712 = vmatprep.subr.mxu0 0.0
    %1713 = vmatpush1.msra.mxu0 0.0
    %1714 = vmatprep.subr.mxu0 0.0
    %1715 = vmatpush1.msra.mxu0 0.0
    %1716 = vmatprep.subr.mxu0 0.0
    %1717 = vmatpush1.msra.mxu0 0.0
    %1718 = vmatprep.subr.mxu0 0.0
    %1719 = vmatpush1.msra.mxu0 0.0
    %1720 = vmatprep.subr.mxu0 0.0
    %1721 = vmatpush1.msra.mxu0 0.0
    %1722 = vmatprep.subr.mxu0 0.0
    %1723 = vmatpush1.msra.mxu0 0.0
    %1724 = vmatprep.mubr.f32.mxu0 0.0
    %1725 = vmatmul.mubr.f32.gmra.mrb[0].mxu0 %v1658
    %v1726 = vpop.f32.mrb[0].mxu0
    %v1727 = vadd.f32 0.0, %v1726
    %v1728 = vpop.f32.mrb[0].mxu0
    %1729 = vdwg.mxu0
    %v1731 = vrot.slane %v1655, 2
    %v1733 = vadd.f32 %v1731, %v1727
    %v1734 = vxor.u32 %v1654, 2147483648
    %v1735 = vmul.f32 %v1734, 1.442695
    %v1736 = vpow.pop %v1735
    %v1737 = vadd.f32 %v1736, 1.0
    %v1738 = vrcp.pop %v1737
    %v1739 = vmul.f32 1.0, %v1738
    %v1740 = vtanh.pop %v1654
    %v1741 = vmul.f32 %v1739, %v1524
    %1743 = vrot.lane.b32.xlu0 %v1740, 64
    %v1744 = vpop.permute.xlu0 %1743
    %v1746 = vmul.f32 %v1739, %v1744
    %1748 = vrot.lane.b32.xlu0 %v1746, 32
    %v1749 = vpop.permute.xlu0 %1748
    %v1751 = vadd.f32 %v1741, %v1749
    %v1752 = vtanh.pop %v1751
    %1754 = vrot.lane.b32.xlu0 %v1752, 64
    %v1755 = vpop.permute.xlu0 %1754
    %v1757 = vmul.f32 %v1739, %v1755
    %v1758 = vxor.u32 %v1733, 2147483648
    %v1759 = vmul.f32 %v1758, 1.442695
    %v1760 = vpow.pop %v1759
    %v1761 = vadd.f32 %v1760, 1.0
    %v1762 = vrcp.pop %v1761
    %v1763 = vmul.f32 1.0, %v1762
    %v1764 = vtanh.pop %v1733
    %v1765 = vmul.f32 %v1763, %v1548
    %1767 = vrot.lane.b32.xlu0 %v1764, 64
    %v1768 = vpop.permute.xlu0 %1767
    %v1770 = vmul.f32 %v1763, %v1768
    %1772 = vrot.lane.b32.xlu0 %v1770, 32
    %v1773 = vpop.permute.xlu0 %1772
    %v1775 = vadd.f32 %v1765, %v1773
    %v1776 = vtanh.pop %v1775
    %1778 = vrot.lane.b32.xlu0 %v1776, 64
    %v1779 = vpop.permute.xlu0 %1778
    %v1781 = vmul.f32 %v1763, %v1779
    %v1784 = vunpack.c.l.s4 1983009808
    %v1785 = vunpack.c.0.s8 %v1784
    %v1786 = vlaneseq
    %v1787 = vshrl.u32 %v1786, 7
    %v1788 = vsub.s32 %v1785, %v1787
    %v1789 = vrot.slane %v1757, %v1788
    %1790 = vrot.lane.b32.xlu0 %v1789, 32
    %v1791 = vpop.permute.xlu0 %1790
    %s1793 = scalar_lea.vmem [#allocation4], 6
    %1794 = vst.msk [vmem:[%s1793] sm:$0x3] %vm1111, %v1791
    %v1797 = vunpack.c.l.s4 1983009808
    %v1798 = vunpack.c.0.s8 %v1797
    %v1799 = vlaneseq
    %v1800 = vshrl.u32 %v1799, 7
    %v1801 = vsub.s32 %v1798, %v1800
    %v1802 = vrot.slane %v1781, %v1801
    %1803 = vrot.lane.b32.xlu0 %v1802, 64
    %v1804 = vpop.permute.xlu0 %1803
    %s1806 = scalar_lea.vmem [#allocation4], 8
    %1807 = vst.msk [vmem:[%s1806] sm:$0x3] %vm1125, %v1804
    %v1808 = vld [vmem:[%s633] sm:$0xf]
    %v1809 = vsel %vm192, %v1791, 0
    %1811 = vmatprep.subr.mxu0 0.0
    %1812 = vmatpush1.msra.mxu0 %v147
    %1813 = vmatprep.subr.mxu0 0.0
    %1814 = vmatpush1.msra.mxu0 %v148
    %1815 = vmatprep.subr.mxu0 0.0
    %1816 = vmatpush1.msra.mxu0 %v149
    %1817 = vmatprep.subr.mxu0 0.0
    %1818 = vmatpush1.msra.mxu0 %v150
    %1819 = vmatprep.subr.mxu0 0.0
    %1820 = vmatpush1.msra.mxu0 0.0
    %1821 = vmatprep.subr.mxu0 0.0
    %1822 = vmatpush1.msra.mxu0 0.0
    %1823 = vmatprep.subr.mxu0 0.0
    %1824 = vmatpush1.msra.mxu0 0.0
    %1825 = vmatprep.subr.mxu0 0.0
    %1826 = vmatpush1.msra.mxu0 0.0
    %1827 = vmatprep.subr.mxu0 0.0
    %1828 = vmatpush1.msra.mxu0 0.0
    %1829 = vmatprep.subr.mxu0 0.0
    %1830 = vmatpush1.msra.mxu0 0.0
    %1831 = vmatprep.subr.mxu0 0.0
    %1832 = vmatpush1.msra.mxu0 0.0
    %1833 = vmatprep.subr.mxu0 0.0
    %1834 = vmatpush1.msra.mxu0 0.0
    %1835 = vmatprep.subr.mxu0 0.0
    %1836 = vmatpush1.msra.mxu0 0.0
    %1837 = vmatprep.subr.mxu0 0.0
    %1838 = vmatpush1.msra.mxu0 0.0
    %1839 = vmatprep.subr.mxu0 0.0
    %1840 = vmatpush1.msra.mxu0 0.0
    %1841 = vmatprep.subr.mxu0 0.0
    %1842 = vmatpush1.msra.mxu0 0.0
    %1843 = vmatprep.subr.mxu0 0.0
    %1844 = vmatpush1.msra.mxu0 0.0
    %1845 = vmatprep.subr.mxu0 0.0
    %1846 = vmatpush1.msra.mxu0 0.0
    %1847 = vmatprep.subr.mxu0 0.0
    %1848 = vmatpush1.msra.mxu0 0.0
    %1849 = vmatprep.subr.mxu0 0.0
    %1850 = vmatpush1.msra.mxu0 0.0
    %1851 = vmatprep.subr.mxu0 0.0
    %1852 = vmatpush1.msra.mxu0 0.0
    %1853 = vmatprep.subr.mxu0 0.0
    %1854 = vmatpush1.msra.mxu0 0.0
    %1855 = vmatprep.subr.mxu0 0.0
    %1856 = vmatpush1.msra.mxu0 0.0
    %1857 = vmatprep.subr.mxu0 0.0
    %1858 = vmatpush1.msra.mxu0 0.0
    %1859 = vmatprep.subr.mxu0 0.0
    %1860 = vmatpush1.msra.mxu0 0.0
    %1861 = vmatprep.subr.mxu0 0.0
    %1862 = vmatpush1.msra.mxu0 0.0
    %1863 = vmatprep.subr.mxu0 0.0
    %1864 = vmatpush1.msra.mxu0 0.0
    %1865 = vmatprep.subr.mxu0 0.0
    %1866 = vmatpush1.msra.mxu0 0.0
    %1867 = vmatprep.subr.mxu0 0.0
    %1868 = vmatpush1.msra.mxu0 0.0
    %1869 = vmatprep.subr.mxu0 0.0
    %1870 = vmatpush1.msra.mxu0 0.0
    %1871 = vmatprep.subr.mxu0 0.0
    %1872 = vmatpush1.msra.mxu0 0.0
    %1873 = vmatprep.subr.mxu0 0.0
    %1874 = vmatpush1.msra.mxu0 0.0
    %1875 = vmatprep.mubr.f32.mxu0 0.0
    %1876 = vmatmul.mubr.f32.gmra.mrb[0].mxu0 %v1809
    %v1877 = vpop.f32.mrb[0].mxu0
    %v1878 = vadd.f32 0.0, %v1877
    %v1879 = vpop.f32.mrb[0].mxu0
    %1880 = vdwg.mxu0
    %v1881 = vadd.f32 %v1808, %v1878
    %v1882 = vld [vmem:[%s544] sm:$0xf]
    %1883 = vrot.lane.b32.xlu0 %v1802, 32
    %v1884 = vpop.permute.xlu0 %1883
    %v1885 = vsel %vm192, %v1884, 0
    %1887 = vmatprep.subr.mxu0 0.0
    %1888 = vmatpush1.msra.mxu0 %v151
    %1889 = vmatprep.subr.mxu0 0.0
    %1890 = vmatpush1.msra.mxu0 %v152
    %1891 = vmatprep.subr.mxu0 0.0
    %1892 = vmatpush1.msra.mxu0 %v153
    %1893 = vmatprep.subr.mxu0 0.0
    %1894 = vmatpush1.msra.mxu0 %v154
    %1895 = vmatprep.subr.mxu0 0.0
    %1896 = vmatpush1.msra.mxu0 0.0
    %1897 = vmatprep.subr.mxu0 0.0
    %1898 = vmatpush1.msra.mxu0 0.0
    %1899 = vmatprep.subr.mxu0 0.0
    %1900 = vmatpush1.msra.mxu0 0.0
    %1901 = vmatprep.subr.mxu0 0.0
    %1902 = vmatpush1.msra.mxu0 0.0
    %1903 = vmatprep.subr.mxu0 0.0
    %1904 = vmatpush1.msra.mxu0 0.0
    %1905 = vmatprep.subr.mxu0 0.0
    %1906 = vmatpush1.msra.mxu0 0.0
    %1907 = vmatprep.subr.mxu0 0.0
    %1908 = vmatpush1.msra.mxu0 0.0
    %1909 = vmatprep.subr.mxu0 0.0
    %1910 = vmatpush1.msra.mxu0 0.0
    %1911 = vmatprep.subr.mxu0 0.0
    %1912 = vmatpush1.msra.mxu0 0.0
    %1913 = vmatprep.subr.mxu0 0.0
    %1914 = vmatpush1.msra.mxu0 0.0
    %1915 = vmatprep.subr.mxu0 0.0
    %1916 = vmatpush1.msra.mxu0 0.0
    %1917 = vmatprep.subr.mxu0 0.0
    %1918 = vmatpush1.msra.mxu0 0.0
    %1919 = vmatprep.subr.mxu0 0.0
    %1920 = vmatpush1.msra.mxu0 0.0
    %1921 = vmatprep.subr.mxu0 0.0
    %1922 = vmatpush1.msra.mxu0 0.0
    %1923 = vmatprep.subr.mxu0 0.0
    %1924 = vmatpush1.msra.mxu0 0.0
    %1925 = vmatprep.subr.mxu0 0.0
    %1926 = vmatpush1.msra.mxu0 0.0
    %1927 = vmatprep.subr.mxu0 0.0
    %1928 = vmatpush1.msra.mxu0 0.0
    %1929 = vmatprep.subr.mxu0 0.0
    %1930 = vmatpush1.msra.mxu0 0.0
    %1931 = vmatprep.subr.mxu0 0.0
    %1932 = vmatpush1.msra.mxu0 0.0
    %1933 = vmatprep.subr.mxu0 0.0
    %1934 = vmatpush1.msra.mxu0 0.0
    %1935 = vmatprep.subr.mxu0 0.0
    %1936 = vmatpush1.msra.mxu0 0.0
    %1937 = vmatprep.subr.mxu0 0.0
    %1938 = vmatpush1.msra.mxu0 0.0
    %1939 = vmatprep.subr.mxu0 0.0
    %1940 = vmatpush1.msra.mxu0 0.0
    %1941 = vmatprep.subr.mxu0 0.0
    %1942 = vmatpush1.msra.mxu0 0.0
    %1943 = vmatprep.subr.mxu0 0.0
    %1944 = vmatpush1.msra.mxu0 0.0
    %1945 = vmatprep.subr.mxu0 0.0
    %1946 = vmatpush1.msra.mxu0 0.0
    %1947 = vmatprep.subr.mxu0 0.0
    %1948 = vmatpush1.msra.mxu0 0.0
    %1949 = vmatprep.subr.mxu0 0.0
    %1950 = vmatpush1.msra.mxu0 0.0
    %1951 = vmatprep.mubr.f32.mxu0 0.0
    %1952 = vmatmul.mubr.f32.gmra.mrb[0].mxu0 %v1885
    %v1953 = vpop.f32.mrb[0].mxu0
    %v1954 = vadd.f32 0.0, %v1953
    %v1955 = vpop.f32.mrb[0].mxu0
    %1956 = vdwg.mxu0
    %v1958 = vrot.slane %v1882, 2
    %v1960 = vadd.f32 %v1958, %v1954
    %v1961 = vxor.u32 %v1881, 2147483648
    %v1962 = vmul.f32 %v1961, 1.442695
    %v1963 = vpow.pop %v1962
    %v1964 = vadd.f32 %v1963, 1.0
    %v1965 = vrcp.pop %v1964
    %v1966 = vmul.f32 1.0, %v1965
    %v1967 = vtanh.pop %v1881
    %v1968 = vmul.f32 %v1966, %v1751
    %1970 = vrot.lane.b32.xlu0 %v1967, 64
    %v1971 = vpop.permute.xlu0 %1970
    %v1973 = vmul.f32 %v1966, %v1971
    %1975 = vrot.lane.b32.xlu0 %v1973, 32
    %v1976 = vpop.permute.xlu0 %1975
    %v1978 = vadd.f32 %v1968, %v1976
    %v1979 = vtanh.pop %v1978
    %1981 = vrot.lane.b32.xlu0 %v1979, 64
    %v1982 = vpop.permute.xlu0 %1981
    %v1984 = vmul.f32 %v1966, %v1982
    %v1985 = vxor.u32 %v1960, 2147483648
    %v1986 = vmul.f32 %v1985, 1.442695
    %v1987 = vpow.pop %v1986
    %v1988 = vadd.f32 %v1987, 1.0
    %v1989 = vrcp.pop %v1988
    %v1990 = vmul.f32 1.0, %v1989
    %v1991 = vtanh.pop %v1960
    %v1992 = vmul.f32 %v1990, %v1775
    %1994 = vrot.lane.b32.xlu0 %v1991, 64
    %v1995 = vpop.permute.xlu0 %1994
    %v1997 = vmul.f32 %v1990, %v1995
    %1999 = vrot.lane.b32.xlu0 %v1997, 32
    %v2000 = vpop.permute.xlu0 %1999
    %v2002 = vadd.f32 %v1992, %v2000
    %v2003 = vtanh.pop %v2002
    %2005 = vrot.lane.b32.xlu0 %v2003, 64
    %v2006 = vpop.permute.xlu0 %2005
    %v2008 = vmul.f32 %v1990, %v2006
    %v2011 = vunpack.c.l.s4 1983009808
    %v2012 = vunpack.c.0.s8 %v2011
    %v2013 = vlaneseq
    %v2014 = vshrl.u32 %v2013, 7
    %v2015 = vsub.s32 %v2012, %v2014
    %v2016 = vrot.slane %v1984, %v2015
    %2017 = vrot.lane.b32.xlu0 %v2016, 32
    %v2018 = vpop.permute.xlu0 %2017
    %2020 = vst.msk [vmem:[%s1806] sm:$0x3] %vm1111, %v2018
    %v2023 = vunpack.c.l.s4 1983009808
    %v2024 = vunpack.c.0.s8 %v2023
    %v2025 = vlaneseq
    %v2026 = vshrl.u32 %v2025, 7
    %v2027 = vsub.s32 %v2024, %v2026
    %v2028 = vrot.slane %v2008, %v2027
    %2029 = vrot.lane.b32.xlu0 %v2028, 64
    %v2030 = vpop.permute.xlu0 %2029
    %2032 = vst.msk [vmem:[%s1793] sm:$0x3] %vm1125, %v2030
    %v2033 = vld [vmem:[%s722] sm:$0xf]
    %v2034 = vsel %vm192, %v2018, 0
    %2036 = vmatprep.subr.mxu0 0.0
    %2037 = vmatpush1.msra.mxu0 %v147
    %2038 = vmatprep.subr.mxu0 0.0
    %2039 = vmatpush1.msra.mxu0 %v148
    %2040 = vmatprep.subr.mxu0 0.0
    %2041 = vmatpush1.msra.mxu0 %v149
    %2042 = vmatprep.subr.mxu0 0.0
    %2043 = vmatpush1.msra.mxu0 %v150
    %2044 = vmatprep.subr.mxu0 0.0
    %2045 = vmatpush1.msra.mxu0 0.0
    %2046 = vmatprep.subr.mxu0 0.0
    %2047 = vmatpush1.msra.mxu0 0.0
    %2048 = vmatprep.subr.mxu0 0.0
    %2049 = vmatpush1.msra.mxu0 0.0
    %2050 = vmatprep.subr.mxu0 0.0
    %2051 = vmatpush1.msra.mxu0 0.0
    %2052 = vmatprep.subr.mxu0 0.0
    %2053 = vmatpush1.msra.mxu0 0.0
    %2054 = vmatprep.subr.mxu0 0.0
    %2055 = vmatpush1.msra.mxu0 0.0
    %2056 = vmatprep.subr.mxu0 0.0
    %2057 = vmatpush1.msra.mxu0 0.0
    %2058 = vmatprep.subr.mxu0 0.0
    %2059 = vmatpush1.msra.mxu0 0.0
    %2060 = vmatprep.subr.mxu0 0.0
    %2061 = vmatpush1.msra.mxu0 0.0
    %2062 = vmatprep.subr.mxu0 0.0
    %2063 = vmatpush1.msra.mxu0 0.0
    %2064 = vmatprep.subr.mxu0 0.0
    %2065 = vmatpush1.msra.mxu0 0.0
    %2066 = vmatprep.subr.mxu0 0.0
    %2067 = vmatpush1.msra.mxu0 0.0
    %2068 = vmatprep.subr.mxu0 0.0
    %2069 = vmatpush1.msra.mxu0 0.0
    %2070 = vmatprep.subr.mxu0 0.0
    %2071 = vmatpush1.msra.mxu0 0.0
    %2072 = vmatprep.subr.mxu0 0.0
    %2073 = vmatpush1.msra.mxu0 0.0
    %2074 = vmatprep.subr.mxu0 0.0
    %2075 = vmatpush1.msra.mxu0 0.0
    %2076 = vmatprep.subr.mxu0 0.0
    %2077 = vmatpush1.msra.mxu0 0.0
    %2078 = vmatprep.subr.mxu0 0.0
    %2079 = vmatpush1.msra.mxu0 0.0
    %2080 = vmatprep.subr.mxu0 0.0
    %2081 = vmatpush1.msra.mxu0 0.0
    %2082 = vmatprep.subr.mxu0 0.0
    %2083 = vmatpush1.msra.mxu0 0.0
    %2084 = vmatprep.subr.mxu0 0.0
    %2085 = vmatpush1.msra.mxu0 0.0
    %2086 = vmatprep.subr.mxu0 0.0
    %2087 = vmatpush1.msra.mxu0 0.0
    %2088 = vmatprep.subr.mxu0 0.0
    %2089 = vmatpush1.msra.mxu0 0.0
    %2090 = vmatprep.subr.mxu0 0.0
    %2091 = vmatpush1.msra.mxu0 0.0
    %2092 = vmatprep.subr.mxu0 0.0
    %2093 = vmatpush1.msra.mxu0 0.0
    %2094 = vmatprep.subr.mxu0 0.0
    %2095 = vmatpush1.msra.mxu0 0.0
    %2096 = vmatprep.subr.mxu0 0.0
    %2097 = vmatpush1.msra.mxu0 0.0
    %2098 = vmatprep.subr.mxu0 0.0
    %2099 = vmatpush1.msra.mxu0 0.0
    %2100 = vmatprep.mubr.f32.mxu0 0.0
    %2101 = vmatmul.mubr.f32.gmra.mrb[0].mxu0 %v2034
    %v2102 = vpop.f32.mrb[0].mxu0
    %v2103 = vadd.f32 0.0, %v2102
    %v2104 = vpop.f32.mrb[0].mxu0
    %2105 = vdwg.mxu0
    %v2106 = vadd.f32 %v2033, %v2103
    %v2107 = vld [vmem:[%s455] sm:$0xf]
    %2108 = vrot.lane.b32.xlu0 %v2028, 32
    %v2109 = vpop.permute.xlu0 %2108
    %v2110 = vsel %vm192, %v2109, 0
    %2112 = vmatprep.subr.mxu0 0.0
    %2113 = vmatpush1.msra.mxu0 %v151
    %2114 = vmatprep.subr.mxu0 0.0
    %2115 = vmatpush1.msra.mxu0 %v152
    %2116 = vmatprep.subr.mxu0 0.0
    %2117 = vmatpush1.msra.mxu0 %v153
    %2118 = vmatprep.subr.mxu0 0.0
    %2119 = vmatpush1.msra.mxu0 %v154
    %2120 = vmatprep.subr.mxu0 0.0
    %2121 = vmatpush1.msra.mxu0 0.0
    %2122 = vmatprep.subr.mxu0 0.0
    %2123 = vmatpush1.msra.mxu0 0.0
    %2124 = vmatprep.subr.mxu0 0.0
    %2125 = vmatpush1.msra.mxu0 0.0
    %2126 = vmatprep.subr.mxu0 0.0
    %2127 = vmatpush1.msra.mxu0 0.0
    %2128 = vmatprep.subr.mxu0 0.0
    %2129 = vmatpush1.msra.mxu0 0.0
    %2130 = vmatprep.subr.mxu0 0.0
    %2131 = vmatpush1.msra.mxu0 0.0
    %2132 = vmatprep.subr.mxu0 0.0
    %2133 = vmatpush1.msra.mxu0 0.0
    %2134 = vmatprep.subr.mxu0 0.0
    %2135 = vmatpush1.msra.mxu0 0.0
    %2136 = vmatprep.subr.mxu0 0.0
    %2137 = vmatpush1.msra.mxu0 0.0
    %2138 = vmatprep.subr.mxu0 0.0
    %2139 = vmatpush1.msra.mxu0 0.0
    %2140 = vmatprep.subr.mxu0 0.0
    %2141 = vmatpush1.msra.mxu0 0.0
    %2142 = vmatprep.subr.mxu0 0.0
    %2143 = vmatpush1.msra.mxu0 0.0
    %2144 = vmatprep.subr.mxu0 0.0
    %2145 = vmatpush1.msra.mxu0 0.0
    %2146 = vmatprep.subr.mxu0 0.0
    %2147 = vmatpush1.msra.mxu0 0.0
    %2148 = vmatprep.subr.mxu0 0.0
    %2149 = vmatpush1.msra.mxu0 0.0
    %2150 = vmatprep.subr.mxu0 0.0
    %2151 = vmatpush1.msra.mxu0 0.0
    %2152 = vmatprep.subr.mxu0 0.0
    %2153 = vmatpush1.msra.mxu0 0.0
    %2154 = vmatprep.subr.mxu0 0.0
    %2155 = vmatpush1.msra.mxu0 0.0
    %2156 = vmatprep.subr.mxu0 0.0
    %2157 = vmatpush1.msra.mxu0 0.0
    %2158 = vmatprep.subr.mxu0 0.0
    %2159 = vmatpush1.msra.mxu0 0.0
    %2160 = vmatprep.subr.mxu0 0.0
    %2161 = vmatpush1.msra.mxu0 0.0
    %2162 = vmatprep.subr.mxu0 0.0
    %2163 = vmatpush1.msra.mxu0 0.0
    %2164 = vmatprep.subr.mxu0 0.0
    %2165 = vmatpush1.msra.mxu0 0.0
    %2166 = vmatprep.subr.mxu0 0.0
    %2167 = vmatpush1.msra.mxu0 0.0
    %2168 = vmatprep.subr.mxu0 0.0
    %2169 = vmatpush1.msra.mxu0 0.0
    %2170 = vmatprep.subr.mxu0 0.0
    %2171 = vmatpush1.msra.mxu0 0.0
    %2172 = vmatprep.subr.mxu0 0.0
    %2173 = vmatpush1.msra.mxu0 0.0
    %2174 = vmatprep.subr.mxu0 0.0
    %2175 = vmatpush1.msra.mxu0 0.0
    %2176 = vmatprep.mubr.f32.mxu0 0.0
    %2177 = vmatmul.mubr.f32.gmra.mrb[0].mxu0 %v2110
    %v2178 = vpop.f32.mrb[0].mxu0
    %v2179 = vadd.f32 0.0, %v2178
    %v2180 = vpop.f32.mrb[0].mxu0
    %2181 = vdwg.mxu0
    %v2183 = vrot.slane %v2107, 2
    %v2185 = vadd.f32 %v2183, %v2179
    %v2186 = vxor.u32 %v2106, 2147483648
    %v2187 = vmul.f32 %v2186, 1.442695
    %v2188 = vpow.pop %v2187
    %v2189 = vadd.f32 %v2188, 1.0
    %v2190 = vrcp.pop %v2189
    %v2191 = vmul.f32 1.0, %v2190
    %v2192 = vtanh.pop %v2106
    %v2193 = vmul.f32 %v2191, %v1978
    %2195 = vrot.lane.b32.xlu0 %v2192, 64
    %v2196 = vpop.permute.xlu0 %2195
    %v2198 = vmul.f32 %v2191, %v2196
    %2200 = vrot.lane.b32.xlu0 %v2198, 32
    %v2201 = vpop.permute.xlu0 %2200
    %v2203 = vadd.f32 %v2193, %v2201
    %v2204 = vtanh.pop %v2203
    %2206 = vrot.lane.b32.xlu0 %v2204, 64
    %v2207 = vpop.permute.xlu0 %2206
    %v2209 = vmul.f32 %v2191, %v2207
    %v2210 = vxor.u32 %v2185, 2147483648
    %v2211 = vmul.f32 %v2210, 1.442695
    %v2212 = vpow.pop %v2211
    %v2213 = vadd.f32 %v2212, 1.0
    %v2214 = vrcp.pop %v2213
    %v2215 = vmul.f32 1.0, %v2214
    %v2216 = vtanh.pop %v2185
    %v2217 = vmul.f32 %v2215, %v2002
    %2219 = vrot.lane.b32.xlu0 %v2216, 64
    %v2220 = vpop.permute.xlu0 %2219
    %v2222 = vmul.f32 %v2215, %v2220
    %2224 = vrot.lane.b32.xlu0 %v2222, 32
    %v2225 = vpop.permute.xlu0 %2224
    %v2227 = vadd.f32 %v2217, %v2225
    %v2228 = vtanh.pop %v2227
    %2230 = vrot.lane.b32.xlu0 %v2228, 64
    %v2231 = vpop.permute.xlu0 %2230
    %v2233 = vmul.f32 %v2215, %v2231
    %v2236 = vunpack.c.l.s4 1983009808
    %v2237 = vunpack.c.0.s8 %v2236
    %v2238 = vlaneseq
    %v2239 = vshrl.u32 %v2238, 7
    %v2240 = vsub.s32 %v2237, %v2239
    %v2241 = vrot.slane %v2209, %v2240
    %2242 = vrot.lane.b32.xlu0 %v2241, 32
    %v2243 = vpop.permute.xlu0 %2242
    %2245 = vst.msk [vmem:[%s1579] sm:$0x3] %vm1111, %v2243
    %v2248 = vunpack.c.l.s4 1983009808
    %v2249 = vunpack.c.0.s8 %v2248
    %v2250 = vlaneseq
    %v2251 = vshrl.u32 %v2250, 7
    %v2252 = vsub.s32 %v2249, %v2251
    %v2253 = vrot.slane %v2233, %v2252
    %2254 = vrot.lane.b32.xlu0 %v2253, 64
    %v2255 = vpop.permute.xlu0 %2254
    %2257 = vst.msk [vmem:[%s1566] sm:$0x3] %vm1125, %v2255
    %v2258 = vld [vmem:[%s811] sm:$0xf]
    %v2259 = vsel %vm192, %v2243, 0
    %2261 = vmatprep.subr.mxu0 0.0
    %2262 = vmatpush1.msra.mxu0 %v147
    %2263 = vmatprep.subr.mxu0 0.0
    %2264 = vmatpush1.msra.mxu0 %v148
    %2265 = vmatprep.subr.mxu0 0.0
    %2266 = vmatpush1.msra.mxu0 %v149
    %2267 = vmatprep.subr.mxu0 0.0
    %2268 = vmatpush1.msra.mxu0 %v150
    %2269 = vmatprep.subr.mxu0 0.0
    %2270 = vmatpush1.msra.mxu0 0.0
    %2271 = vmatprep.subr.mxu0 0.0
    %2272 = vmatpush1.msra.mxu0 0.0
    %2273 = vmatprep.subr.mxu0 0.0
    %2274 = vmatpush1.msra.mxu0 0.0
    %2275 = vmatprep.subr.mxu0 0.0
    %2276 = vmatpush1.msra.mxu0 0.0
    %2277 = vmatprep.subr.mxu0 0.0
    %2278 = vmatpush1.msra.mxu0 0.0
    %2279 = vmatprep.subr.mxu0 0.0
    %2280 = vmatpush1.msra.mxu0 0.0
    %2281 = vmatprep.subr.mxu0 0.0
    %2282 = vmatpush1.msra.mxu0 0.0
    %2283 = vmatprep.subr.mxu0 0.0
    %2284 = vmatpush1.msra.mxu0 0.0
    %2285 = vmatprep.subr.mxu0 0.0
    %2286 = vmatpush1.msra.mxu0 0.0
    %2287 = vmatprep.subr.mxu0 0.0
    %2288 = vmatpush1.msra.mxu0 0.0
    %2289 = vmatprep.subr.mxu0 0.0
    %2290 = vmatpush1.msra.mxu0 0.0
    %2291 = vmatprep.subr.mxu0 0.0
    %2292 = vmatpush1.msra.mxu0 0.0
    %2293 = vmatprep.subr.mxu0 0.0
    %2294 = vmatpush1.msra.mxu0 0.0
    %2295 = vmatprep.subr.mxu0 0.0
    %2296 = vmatpush1.msra.mxu0 0.0
    %2297 = vmatprep.subr.mxu0 0.0
    %2298 = vmatpush1.msra.mxu0 0.0
    %2299 = vmatprep.subr.mxu0 0.0
    %2300 = vmatpush1.msra.mxu0 0.0
    %2301 = vmatprep.subr.mxu0 0.0
    %2302 = vmatpush1.msra.mxu0 0.0
    %2303 = vmatprep.subr.mxu0 0.0
    %2304 = vmatpush1.msra.mxu0 0.0
    %2305 = vmatprep.subr.mxu0 0.0
    %2306 = vmatpush1.msra.mxu0 0.0
    %2307 = vmatprep.subr.mxu0 0.0
    %2308 = vmatpush1.msra.mxu0 0.0
    %2309 = vmatprep.subr.mxu0 0.0
    %2310 = vmatpush1.msra.mxu0 0.0
    %2311 = vmatprep.subr.mxu0 0.0
    %2312 = vmatpush1.msra.mxu0 0.0
    %2313 = vmatprep.subr.mxu0 0.0
    %2314 = vmatpush1.msra.mxu0 0.0
    %2315 = vmatprep.subr.mxu0 0.0
    %2316 = vmatpush1.msra.mxu0 0.0
    %2317 = vmatprep.subr.mxu0 0.0
    %2318 = vmatpush1.msra.mxu0 0.0
    %2319 = vmatprep.subr.mxu0 0.0
    %2320 = vmatpush1.msra.mxu0 0.0
    %2321 = vmatprep.subr.mxu0 0.0
    %2322 = vmatpush1.msra.mxu0 0.0
    %2323 = vmatprep.subr.mxu0 0.0
    %2324 = vmatpush1.msra.mxu0 0.0
    %2325 = vmatprep.mubr.f32.mxu0 0.0
    %2326 = vmatmul.mubr.f32.gmra.mrb[0].mxu0 %v2259
    %v2327 = vpop.f32.mrb[0].mxu0
    %v2328 = vadd.f32 0.0, %v2327
    %v2329 = vpop.f32.mrb[0].mxu0
    %2330 = vdwg.mxu0
    %v2331 = vadd.f32 %v2258, %v2328
    %v2332 = vld [vmem:[%s366] sm:$0xf]
    %2333 = vrot.lane.b32.xlu0 %v2253, 32
    %v2334 = vpop.permute.xlu0 %2333
    %v2335 = vsel %vm192, %v2334, 0
    %2337 = vmatprep.subr.mxu0 0.0
    %2338 = vmatpush1.msra.mxu0 %v151
    %2339 = vmatprep.subr.mxu0 0.0
    %2340 = vmatpush1.msra.mxu0 %v152
    %2341 = vmatprep.subr.mxu0 0.0
    %2342 = vmatpush1.msra.mxu0 %v153
    %2343 = vmatprep.subr.mxu0 0.0
    %2344 = vmatpush1.msra.mxu0 %v154
    %2345 = vmatprep.subr.mxu0 0.0
    %2346 = vmatpush1.msra.mxu0 0.0
    %2347 = vmatprep.subr.mxu0 0.0
    %2348 = vmatpush1.msra.mxu0 0.0
    %2349 = vmatprep.subr.mxu0 0.0
    %2350 = vmatpush1.msra.mxu0 0.0
    %2351 = vmatprep.subr.mxu0 0.0
    %2352 = vmatpush1.msra.mxu0 0.0
    %2353 = vmatprep.subr.mxu0 0.0
    %2354 = vmatpush1.msra.mxu0 0.0
    %2355 = vmatprep.subr.mxu0 0.0
    %2356 = vmatpush1.msra.mxu0 0.0
    %2357 = vmatprep.subr.mxu0 0.0
    %2358 = vmatpush1.msra.mxu0 0.0
    %2359 = vmatprep.subr.mxu0 0.0
    %2360 = vmatpush1.msra.mxu0 0.0
    %2361 = vmatprep.subr.mxu0 0.0
    %2362 = vmatpush1.msra.mxu0 0.0
    %2363 = vmatprep.subr.mxu0 0.0
    %2364 = vmatpush1.msra.mxu0 0.0
    %2365 = vmatprep.subr.mxu0 0.0
    %2366 = vmatpush1.msra.mxu0 0.0
    %2367 = vmatprep.subr.mxu0 0.0
    %2368 = vmatpush1.msra.mxu0 0.0
    %2369 = vmatprep.subr.mxu0 0.0
    %2370 = vmatpush1.msra.mxu0 0.0
    %2371 = vmatprep.subr.mxu0 0.0
    %2372 = vmatpush1.msra.mxu0 0.0
    %2373 = vmatprep.subr.mxu0 0.0
    %2374 = vmatpush1.msra.mxu0 0.0
    %2375 = vmatprep.subr.mxu0 0.0
    %2376 = vmatpush1.msra.mxu0 0.0
    %2377 = vmatprep.subr.mxu0 0.0
    %2378 = vmatpush1.msra.mxu0 0.0
    %2379 = vmatprep.subr.mxu0 0.0
    %2380 = vmatpush1.msra.mxu0 0.0
    %2381 = vmatprep.subr.mxu0 0.0
    %2382 = vmatpush1.msra.mxu0 0.0
    %2383 = vmatprep.subr.mxu0 0.0
    %2384 = vmatpush1.msra.mxu0 0.0
    %2385 = vmatprep.subr.mxu0 0.0
    %2386 = vmatpush1.msra.mxu0 0.0
    %2387 = vmatprep.subr.mxu0 0.0
    %2388 = vmatpush1.msra.mxu0 0.0
    %2389 = vmatprep.subr.mxu0 0.0
    %2390 = vmatpush1.msra.mxu0 0.0
    %2391 = vmatprep.subr.mxu0 0.0
    %2392 = vmatpush1.msra.mxu0 0.0
    %2393 = vmatprep.subr.mxu0 0.0
    %2394 = vmatpush1.msra.mxu0 0.0
    %2395 = vmatprep.subr.mxu0 0.0
    %2396 = vmatpush1.msra.mxu0 0.0
    %2397 = vmatprep.subr.mxu0 0.0
    %2398 = vmatpush1.msra.mxu0 0.0
    %2399 = vmatprep.subr.mxu0 0.0
    %2400 = vmatpush1.msra.mxu0 0.0
    %2401 = vmatprep.mubr.f32.mxu0 0.0
    %2402 = vmatmul.mubr.f32.gmra.mrb[0].mxu0 %v2335
    %v2403 = vpop.f32.mrb[0].mxu0
    %v2404 = vadd.f32 0.0, %v2403
    %v2405 = vpop.f32.mrb[0].mxu0
    %2406 = vdwg.mxu0
    %v2408 = vrot.slane %v2332, 2
    %v2410 = vadd.f32 %v2408, %v2404
    %v2411 = vxor.u32 %v2331, 2147483648
    %v2412 = vmul.f32 %v2411, 1.442695
    %v2413 = vpow.pop %v2412
    %v2414 = vadd.f32 %v2413, 1.0
    %v2415 = vrcp.pop %v2414
    %v2416 = vmul.f32 1.0, %v2415
    %v2417 = vtanh.pop %v2331
    %v2418 = vmul.f32 %v2416, %v2203
    %2420 = vrot.lane.b32.xlu0 %v2417, 64
    %v2421 = vpop.permute.xlu0 %2420
    %v2423 = vmul.f32 %v2416, %v2421
    %2425 = vrot.lane.b32.xlu0 %v2423, 32
    %v2426 = vpop.permute.xlu0 %2425
    %v2428 = vadd.f32 %v2418, %v2426
    %v2429 = vtanh.pop %v2428
    %2431 = vrot.lane.b32.xlu0 %v2429, 64
    %v2432 = vpop.permute.xlu0 %2431
    %v2434 = vmul.f32 %v2416, %v2432
    %v2435 = vxor.u32 %v2410, 2147483648
    %v2436 = vmul.f32 %v2435, 1.442695
    %v2437 = vpow.pop %v2436
    %v2438 = vadd.f32 %v2437, 1.0
    %v2439 = vrcp.pop %v2438
    %v2440 = vmul.f32 1.0, %v2439
    %v2441 = vtanh.pop %v2410
    %v2442 = vmul.f32 %v2440, %v2227
    %2444 = vrot.lane.b32.xlu0 %v2441, 64
    %v2445 = vpop.permute.xlu0 %2444
    %v2447 = vmul.f32 %v2440, %v2445
    %2449 = vrot.lane.b32.xlu0 %v2447, 32
    %v2450 = vpop.permute.xlu0 %2449
    %v2452 = vadd.f32 %v2442, %v2450
    %v2453 = vtanh.pop %v2452
    %2455 = vrot.lane.b32.xlu0 %v2453, 64
    %v2456 = vpop.permute.xlu0 %2455
    %v2458 = vmul.f32 %v2440, %v2456
    %v2461 = vunpack.c.l.s4 1983009808
    %v2462 = vunpack.c.0.s8 %v2461
    %v2463 = vlaneseq
    %v2464 = vshrl.u32 %v2463, 7
    %v2465 = vsub.s32 %v2462, %v2464
    %v2466 = vrot.slane %v2434, %v2465
    %2467 = vrot.lane.b32.xlu0 %v2466, 32
    %v2468 = vpop.permute.xlu0 %2467
    %2470 = vst.msk [vmem:[%s1352] sm:$0x3] %vm1111, %v2468
    %v2473 = vunpack.c.l.s4 1983009808
    %v2474 = vunpack.c.0.s8 %v2473
    %v2475 = vlaneseq
    %v2476 = vshrl.u32 %v2475, 7
    %v2477 = vsub.s32 %v2474, %v2476
    %v2478 = vrot.slane %v2458, %v2477
    %2479 = vrot.lane.b32.xlu0 %v2478, 64
    %v2480 = vpop.permute.xlu0 %2479
    %2482 = vst.msk [vmem:[%s1339] sm:$0x3] %vm1125, %v2480
    %v2483 = vld [vmem:[%s900] sm:$0xf]
    %v2484 = vsel %vm192, %v2468, 0
    %2486 = vmatprep.subr.mxu0 0.0
    %2487 = vmatpush1.msra.mxu0 %v147
    %2488 = vmatprep.subr.mxu0 0.0
    %2489 = vmatpush1.msra.mxu0 %v148
    %2490 = vmatprep.subr.mxu0 0.0
    %2491 = vmatpush1.msra.mxu0 %v149
    %2492 = vmatprep.subr.mxu0 0.0
    %2493 = vmatpush1.msra.mxu0 %v150
    %2494 = vmatprep.subr.mxu0 0.0
    %2495 = vmatpush1.msra.mxu0 0.0
    %2496 = vmatprep.subr.mxu0 0.0
    %2497 = vmatpush1.msra.mxu0 0.0
    %2498 = vmatprep.subr.mxu0 0.0
    %2499 = vmatpush1.msra.mxu0 0.0
    %2500 = vmatprep.subr.mxu0 0.0
    %2501 = vmatpush1.msra.mxu0 0.0
    %2502 = vmatprep.subr.mxu0 0.0
    %2503 = vmatpush1.msra.mxu0 0.0
    %2504 = vmatprep.subr.mxu0 0.0
    %2505 = vmatpush1.msra.mxu0 0.0
    %2506 = vmatprep.subr.mxu0 0.0
    %2507 = vmatpush1.msra.mxu0 0.0
    %2508 = vmatprep.subr.mxu0 0.0
    %2509 = vmatpush1.msra.mxu0 0.0
    %2510 = vmatprep.subr.mxu0 0.0
    %2511 = vmatpush1.msra.mxu0 0.0
    %2512 = vmatprep.subr.mxu0 0.0
    %2513 = vmatpush1.msra.mxu0 0.0
    %2514 = vmatprep.subr.mxu0 0.0
    %2515 = vmatpush1.msra.mxu0 0.0
    %2516 = vmatprep.subr.mxu0 0.0
    %2517 = vmatpush1.msra.mxu0 0.0
    %2518 = vmatprep.subr.mxu0 0.0
    %2519 = vmatpush1.msra.mxu0 0.0
    %2520 = vmatprep.subr.mxu0 0.0
    %2521 = vmatpush1.msra.mxu0 0.0
    %2522 = vmatprep.subr.mxu0 0.0
    %2523 = vmatpush1.msra.mxu0 0.0
    %2524 = vmatprep.subr.mxu0 0.0
    %2525 = vmatpush1.msra.mxu0 0.0
    %2526 = vmatprep.subr.mxu0 0.0
    %2527 = vmatpush1.msra.mxu0 0.0
    %2528 = vmatprep.subr.mxu0 0.0
    %2529 = vmatpush1.msra.mxu0 0.0
    %2530 = vmatprep.subr.mxu0 0.0
    %2531 = vmatpush1.msra.mxu0 0.0
    %2532 = vmatprep.subr.mxu0 0.0
    %2533 = vmatpush1.msra.mxu0 0.0
    %2534 = vmatprep.subr.mxu0 0.0
    %2535 = vmatpush1.msra.mxu0 0.0
    %2536 = vmatprep.subr.mxu0 0.0
    %2537 = vmatpush1.msra.mxu0 0.0
    %2538 = vmatprep.subr.mxu0 0.0
    %2539 = vmatpush1.msra.mxu0 0.0
    %2540 = vmatprep.subr.mxu0 0.0
    %2541 = vmatpush1.msra.mxu0 0.0
    %2542 = vmatprep.subr.mxu0 0.0
    %2543 = vmatpush1.msra.mxu0 0.0
    %2544 = vmatprep.subr.mxu0 0.0
    %2545 = vmatpush1.msra.mxu0 0.0
    %2546 = vmatprep.subr.mxu0 0.0
    %2547 = vmatpush1.msra.mxu0 0.0
    %2548 = vmatprep.subr.mxu0 0.0
    %2549 = vmatpush1.msra.mxu0 0.0
    %2550 = vmatprep.mubr.f32.mxu0 0.0
    %2551 = vmatmul.mubr.f32.gmra.mrb[0].mxu0 %v2484
    %v2552 = vpop.f32.mrb[0].mxu0
    %v2553 = vadd.f32 0.0, %v2552
    %v2554 = vpop.f32.mrb[0].mxu0
    %2555 = vdwg.mxu0
    %v2556 = vadd.f32 %v2483, %v2553
    %v2557 = vld [vmem:[#allocation2] sm:$0xf]
    %2558 = vrot.lane.b32.xlu0 %v2478, 32
    %v2559 = vpop.permute.xlu0 %2558
    %v2560 = vsel %vm192, %v2559, 0
    %2562 = vmatprep.subr.mxu0 0.0
    %2563 = vmatpush1.msra.mxu0 %v151
    %2564 = vmatprep.subr.mxu0 0.0
    %2565 = vmatpush1.msra.mxu0 %v152
    %2566 = vmatprep.subr.mxu0 0.0
    %2567 = vmatpush1.msra.mxu0 %v153
    %2568 = vmatprep.subr.mxu0 0.0
    %2569 = vmatpush1.msra.mxu0 %v154
    %2570 = vmatprep.subr.mxu0 0.0
    %2571 = vmatpush1.msra.mxu0 0.0
    %2572 = vmatprep.subr.mxu0 0.0
    %2573 = vmatpush1.msra.mxu0 0.0
    %2574 = vmatprep.subr.mxu0 0.0
    %2575 = vmatpush1.msra.mxu0 0.0
    %2576 = vmatprep.subr.mxu0 0.0
    %2577 = vmatpush1.msra.mxu0 0.0
    %2578 = vmatprep.subr.mxu0 0.0
    %2579 = vmatpush1.msra.mxu0 0.0
    %2580 = vmatprep.subr.mxu0 0.0
    %2581 = vmatpush1.msra.mxu0 0.0
    %2582 = vmatprep.subr.mxu0 0.0
    %2583 = vmatpush1.msra.mxu0 0.0
    %2584 = vmatprep.subr.mxu0 0.0
    %2585 = vmatpush1.msra.mxu0 0.0
    %2586 = vmatprep.subr.mxu0 0.0
    %2587 = vmatpush1.msra.mxu0 0.0
    %2588 = vmatprep.subr.mxu0 0.0
    %2589 = vmatpush1.msra.mxu0 0.0
    %2590 = vmatprep.subr.mxu0 0.0
    %2591 = vmatpush1.msra.mxu0 0.0
    %2592 = vmatprep.subr.mxu0 0.0
    %2593 = vmatpush1.msra.mxu0 0.0
    %2594 = vmatprep.subr.mxu0 0.0
    %2595 = vmatpush1.msra.mxu0 0.0
    %2596 = vmatprep.subr.mxu0 0.0
    %2597 = vmatpush1.msra.mxu0 0.0
    %2598 = vmatprep.subr.mxu0 0.0
    %2599 = vmatpush1.msra.mxu0 0.0
    %2600 = vmatprep.subr.mxu0 0.0
    %2601 = vmatpush1.msra.mxu0 0.0
    %2602 = vmatprep.subr.mxu0 0.0
    %2603 = vmatpush1.msra.mxu0 0.0
    %2604 = vmatprep.subr.mxu0 0.0
    %2605 = vmatpush1.msra.mxu0 0.0
    %2606 = vmatprep.subr.mxu0 0.0
    %2607 = vmatpush1.msra.mxu0 0.0
    %2608 = vmatprep.subr.mxu0 0.0
    %2609 = vmatpush1.msra.mxu0 0.0
    %2610 = vmatprep.subr.mxu0 0.0
    %2611 = vmatpush1.msra.mxu0 0.0
    %2612 = vmatprep.subr.mxu0 0.0
    %2613 = vmatpush1.msra.mxu0 0.0
    %2614 = vmatprep.subr.mxu0 0.0
    %2615 = vmatpush1.msra.mxu0 0.0
    %2616 = vmatprep.subr.mxu0 0.0
    %2617 = vmatpush1.msra.mxu0 0.0
    %2618 = vmatprep.subr.mxu0 0.0
    %2619 = vmatpush1.msra.mxu0 0.0
    %2620 = vmatprep.subr.mxu0 0.0
    %2621 = vmatpush1.msra.mxu0 0.0
    %2622 = vmatprep.subr.mxu0 0.0
    %2623 = vmatpush1.msra.mxu0 0.0
    %2624 = vmatprep.subr.mxu0 0.0
    %2625 = vmatpush1.msra.mxu0 0.0
    %2626 = vmatprep.mubr.f32.mxu0 0.0
    %2627 = vmatmul.mubr.f32.gmra.mrb[0].mxu0 %v2560
    %v2628 = vpop.f32.mrb[0].mxu0
    %v2629 = vadd.f32 0.0, %v2628
    %v2630 = vpop.f32.mrb[0].mxu0
    %2631 = vdwg.mxu0
    %v2633 = vrot.slane %v2557, 2
    %v2635 = vadd.f32 %v2633, %v2629
    %v2636 = vxor.u32 %v2556, 2147483648
    %v2637 = vmul.f32 %v2636, 1.442695
    %v2638 = vpow.pop %v2637
    %v2639 = vadd.f32 %v2638, 1.0
    %v2640 = vrcp.pop %v2639
    %v2641 = vmul.f32 1.0, %v2640
    %v2642 = vtanh.pop %v2556
    %v2643 = vmul.f32 %v2641, %v2428
    %2645 = vrot.lane.b32.xlu0 %v2642, 64
    %v2646 = vpop.permute.xlu0 %2645
    %v2648 = vmul.f32 %v2641, %v2646
    %2650 = vrot.lane.b32.xlu0 %v2648, 32
    %v2651 = vpop.permute.xlu0 %2650
    %v2653 = vadd.f32 %v2643, %v2651
    %v2654 = vtanh.pop %v2653
    %2656 = vrot.lane.b32.xlu0 %v2654, 64
    %v2657 = vpop.permute.xlu0 %2656
    %v2659 = vmul.f32 %v2641, %v2657
    %v2660 = vxor.u32 %v2635, 2147483648
    %v2661 = vmul.f32 %v2660, 1.442695
    %v2662 = vpow.pop %v2661
    %v2663 = vadd.f32 %v2662, 1.0
    %v2664 = vrcp.pop %v2663
    %v2665 = vmul.f32 1.0, %v2664
    %v2666 = vtanh.pop %v2635
    %v2667 = vmul.f32 %v2665, %v2452
    %2669 = vrot.lane.b32.xlu0 %v2666, 64
    %v2670 = vpop.permute.xlu0 %2669
    %v2672 = vmul.f32 %v2665, %v2670
    %2674 = vrot.lane.b32.xlu0 %v2672, 32
    %v2675 = vpop.permute.xlu0 %2674
    %v2677 = vadd.f32 %v2667, %v2675
    %v2678 = vtanh.pop %v2677
    %2680 = vrot.lane.b32.xlu0 %v2678, 64
    %v2681 = vpop.permute.xlu0 %2680
    %v2683 = vmul.f32 %v2665, %v2681
    %v2686 = vunpack.c.l.s4 1983009808
    %v2687 = vunpack.c.0.s8 %v2686
    %v2688 = vlaneseq
    %v2689 = vshrl.u32 %v2688, 7
    %v2690 = vsub.s32 %v2687, %v2689
    %v2691 = vrot.slane %v2659, %v2690
    %2692 = vrot.lane.b32.xlu0 %v2691, 32
    %v2693 = vpop.permute.xlu0 %2692
    %2695 = vst.msk [vmem:[%s1124] sm:$0x3] %vm1111, %v2693
    %v2698 = vunpack.c.l.s4 1983009808
    %v2699 = vunpack.c.0.s8 %v2698
    %v2700 = vlaneseq
    %v2701 = vshrl.u32 %v2700, 7
    %v2702 = vsub.s32 %v2699, %v2701
    %v2703 = vrot.slane %v2683, %v2702
    %2704 = vrot.lane.b32.xlu0 %v2703, 64
    %v2705 = vpop.permute.xlu0 %2704
    %2707 = vst.msk [vmem:[#allocation4] sm:$0x3] %vm1125, %v2705
    %v2708 = vld [vmem:[#allocation4] sm:$0x3]
    %v2710 = vlaneseq
    %v2711 = vshrl.u32 %v2710, 7
    %v2712 = vsub.s32 0, %v2711
    %v2713 = vrot.slane %v171, %v2712
    %v2714 = vlaneseq
    %v2715 = vshrl.u32 %v2714, 7
    %v2716 = vsub.s32 1, %v2715
    %v2717 = vrot.slane %v171, %v2716
    %vm2720 = vcmask 523264
    %v2722 = vsel %vm2720, %v2708, 0
    %2724 = vmatprep.subr.mxu0 %v156
    %2725 = vmatpush1.msra.mxu0 %v155
    %2726 = vmatprep.subr.mxu0 %v158
    %2727 = vmatpush1.msra.mxu0 %v157
    %2728 = vmatprep.subr.mxu0 %v160
    %2729 = vmatpush1.msra.mxu0 %v159
    %2730 = vmatprep.subr.mxu0 %v162
    %2731 = vmatpush1.msra.mxu0 %v161
    %2732 = vmatprep.subr.mxu0 %v164
    %2733 = vmatpush1.msra.mxu0 %v163
    %2734 = vmatprep.subr.mxu0 %v166
    %2735 = vmatpush1.msra.mxu0 %v165
    %2736 = vmatprep.subr.mxu0 %v168
    %2737 = vmatpush1.msra.mxu0 %v167
    %2738 = vmatprep.subr.mxu0 %v170
    %2739 = vmatpush1.msra.mxu0 %v169
    %2740 = vmatprep.subr.mxu0 0.0
    %2741 = vmatpush1.msra.mxu0 0.0
    %2742 = vmatprep.subr.mxu0 0.0
    %2743 = vmatpush1.msra.mxu0 0.0
    %2744 = vmatprep.subr.mxu0 0.0
    %2745 = vmatpush1.msra.mxu0 0.0
    %2746 = vmatprep.subr.mxu0 0.0
    %2747 = vmatpush1.msra.mxu0 0.0
    %2748 = vmatprep.subr.mxu0 0.0
    %2749 = vmatpush1.msra.mxu0 0.0
    %2750 = vmatprep.subr.mxu0 0.0
    %2751 = vmatpush1.msra.mxu0 0.0
    %2752 = vmatprep.subr.mxu0 0.0
    %2753 = vmatpush1.msra.mxu0 0.0
    %2754 = vmatprep.subr.mxu0 0.0
    %2755 = vmatpush1.msra.mxu0 0.0
    %2756 = vmatprep.subr.mxu0 0.0
    %2757 = vmatpush1.msra.mxu0 0.0
    %2758 = vmatprep.subr.mxu0 0.0
    %2759 = vmatpush1.msra.mxu0 0.0
    %2760 = vmatprep.subr.mxu0 0.0
    %2761 = vmatpush1.msra.mxu0 0.0
    %2762 = vmatprep.subr.mxu0 0.0
    %2763 = vmatpush1.msra.mxu0 0.0
    %2764 = vmatprep.subr.mxu0 0.0
    %2765 = vmatpush1.msra.mxu0 0.0
    %2766 = vmatprep.subr.mxu0 0.0
    %2767 = vmatpush1.msra.mxu0 0.0
    %2768 = vmatprep.subr.mxu0 0.0
    %2769 = vmatpush1.msra.mxu0 0.0
    %2770 = vmatprep.subr.mxu0 0.0
    %2771 = vmatpush1.msra.mxu0 0.0
    %2772 = vmatprep.subr.mxu0 0.0
    %2773 = vmatpush1.msra.mxu0 0.0
    %2774 = vmatprep.subr.mxu0 0.0
    %2775 = vmatpush1.msra.mxu0 0.0
    %2776 = vmatprep.subr.mxu0 0.0
    %2777 = vmatpush1.msra.mxu0 0.0
    %2778 = vmatprep.subr.mxu0 0.0
    %2779 = vmatpush1.msra.mxu0 0.0
    %2780 = vmatprep.subr.mxu0 0.0
    %2781 = vmatpush1.msra.mxu0 0.0
    %2782 = vmatprep.subr.mxu0 0.0
    %2783 = vmatpush1.msra.mxu0 0.0
    %2784 = vmatprep.subr.mxu0 0.0
    %2785 = vmatpush1.msra.mxu0 0.0
    %2786 = vmatprep.subr.mxu0 0.0
    %2787 = vmatpush1.msra.mxu0 0.0
    %2788 = vmatprep.mubr.f32.mxu0 0.0
    %2789 = vmatmul.mubr.f32.gmra.mrb[0].mxu0 %v2722
    %v2790 = vpop.f32.mrb[0].mxu0
    %v2791 = vadd.f32 %v2713, %v2790
    %v2792 = vpop.f32.mrb[0].mxu0
    %v2793 = vadd.f32 %v2717, %v2792
    %2794 = vdwg.mxu0
    %v2797 = vcombine.low %v2791, %v2793
    %v2799 = vunpack.c.l.s4 1983009808
    %v2800 = vunpack.c.0.s8 %v2799
    %v2801 = vlaneseq
    %v2802 = vshrl.u32 %v2801, 7
    %v2803 = vsub.s32 %v2800, %v2802
    %v2804 = vrot.slane %v2797, %v2803
    %2806 = vst [vmem:[#allocation3] sm:$0xf] %v2804
    %v2807 = vld [vmem:[%s1339] sm:$0x3]
    %v2809 = vsel %vm2720, %v2807, 0
    %2811 = vmatprep.subr.mxu0 %v156
    %2812 = vmatpush1.msra.mxu0 %v155
    %2813 = vmatprep.subr.mxu0 %v158
    %2814 = vmatpush1.msra.mxu0 %v157
    %2815 = vmatprep.subr.mxu0 %v160
    %2816 = vmatpush1.msra.mxu0 %v159
    %2817 = vmatprep.subr.mxu0 %v162
    %2818 = vmatpush1.msra.mxu0 %v161
    %2819 = vmatprep.subr.mxu0 %v164
    %2820 = vmatpush1.msra.mxu0 %v163
    %2821 = vmatprep.subr.mxu0 %v166
    %2822 = vmatpush1.msra.mxu0 %v165
    %2823 = vmatprep.subr.mxu0 %v168
    %2824 = vmatpush1.msra.mxu0 %v167
    %2825 = vmatprep.subr.mxu0 %v170
    %2826 = vmatpush1.msra.mxu0 %v169
    %2827 = vmatprep.subr.mxu0 0.0
    %2828 = vmatpush1.msra.mxu0 0.0
    %2829 = vmatprep.subr.mxu0 0.0
    %2830 = vmatpush1.msra.mxu0 0.0
    %2831 = vmatprep.subr.mxu0 0.0
    %2832 = vmatpush1.msra.mxu0 0.0
    %2833 = vmatprep.subr.mxu0 0.0
    %2834 = vmatpush1.msra.mxu0 0.0
    %2835 = vmatprep.subr.mxu0 0.0
    %2836 = vmatpush1.msra.mxu0 0.0
    %2837 = vmatprep.subr.mxu0 0.0
    %2838 = vmatpush1.msra.mxu0 0.0
    %2839 = vmatprep.subr.mxu0 0.0
    %2840 = vmatpush1.msra.mxu0 0.0
    %2841 = vmatprep.subr.mxu0 0.0
    %2842 = vmatpush1.msra.mxu0 0.0
    %2843 = vmatprep.subr.mxu0 0.0
    %2844 = vmatpush1.msra.mxu0 0.0
    %2845 = vmatprep.subr.mxu0 0.0
    %2846 = vmatpush1.msra.mxu0 0.0
    %2847 = vmatprep.subr.mxu0 0.0
    %2848 = vmatpush1.msra.mxu0 0.0
    %2849 = vmatprep.subr.mxu0 0.0
    %2850 = vmatpush1.msra.mxu0 0.0
    %2851 = vmatprep.subr.mxu0 0.0
    %2852 = vmatpush1.msra.mxu0 0.0
    %2853 = vmatprep.subr.mxu0 0.0
    %2854 = vmatpush1.msra.mxu0 0.0
    %2855 = vmatprep.subr.mxu0 0.0
    %2856 = vmatpush1.msra.mxu0 0.0
    %2857 = vmatprep.subr.mxu0 0.0
    %2858 = vmatpush1.msra.mxu0 0.0
    %2859 = vmatprep.subr.mxu0 0.0
    %2860 = vmatpush1.msra.mxu0 0.0
    %2861 = vmatprep.subr.mxu0 0.0
    %2862 = vmatpush1.msra.mxu0 0.0
    %2863 = vmatprep.subr.mxu0 0.0
    %2864 = vmatpush1.msra.mxu0 0.0
    %2865 = vmatprep.subr.mxu0 0.0
    %2866 = vmatpush1.msra.mxu0 0.0
    %2867 = vmatprep.subr.mxu0 0.0
    %2868 = vmatpush1.msra.mxu0 0.0
    %2869 = vmatprep.subr.mxu0 0.0
    %2870 = vmatpush1.msra.mxu0 0.0
    %2871 = vmatprep.subr.mxu0 0.0
    %2872 = vmatpush1.msra.mxu0 0.0
    %2873 = vmatprep.subr.mxu0 0.0
    %2874 = vmatpush1.msra.mxu0 0.0
    %2875 = vmatprep.mubr.f32.mxu0 0.0
    %2876 = vmatmul.mubr.f32.gmra.mrb[0].mxu0 %v2809
    %v2877 = vpop.f32.mrb[0].mxu0
    %v2878 = vadd.f32 %v2713, %v2877
    %v2879 = vpop.f32.mrb[0].mxu0
    %v2880 = vadd.f32 %v2717, %v2879
    %2881 = vdwg.mxu0
    %v2884 = vcombine.low %v2878, %v2880
    %v2886 = vunpack.c.l.s4 1983009808
    %v2887 = vunpack.c.0.s8 %v2886
    %v2888 = vlaneseq
    %v2889 = vshrl.u32 %v2888, 7
    %v2890 = vsub.s32 %v2887, %v2889
    %v2891 = vrot.slane %v2884, %v2890
    %s2893 = scalar_lea.vmem [#allocation3], 4
    %2894 = vst [vmem:[%s2893] sm:$0xf] %v2891
    %v2895 = vld [vmem:[%s1566] sm:$0x3]
    %v2897 = vsel %vm2720, %v2895, 0
    %2899 = vmatprep.subr.mxu0 %v156
    %2900 = vmatpush1.msra.mxu0 %v155
    %2901 = vmatprep.subr.mxu0 %v158
    %2902 = vmatpush1.msra.mxu0 %v157
    %2903 = vmatprep.subr.mxu0 %v160
    %2904 = vmatpush1.msra.mxu0 %v159
    %2905 = vmatprep.subr.mxu0 %v162
    %2906 = vmatpush1.msra.mxu0 %v161
    %2907 = vmatprep.subr.mxu0 %v164
    %2908 = vmatpush1.msra.mxu0 %v163
    %2909 = vmatprep.subr.mxu0 %v166
    %2910 = vmatpush1.msra.mxu0 %v165
    %2911 = vmatprep.subr.mxu0 %v168
    %2912 = vmatpush1.msra.mxu0 %v167
    %2913 = vmatprep.subr.mxu0 %v170
    %2914 = vmatpush1.msra.mxu0 %v169
    %2915 = vmatprep.subr.mxu0 0.0
    %2916 = vmatpush1.msra.mxu0 0.0
    %2917 = vmatprep.subr.mxu0 0.0
    %2918 = vmatpush1.msra.mxu0 0.0
    %2919 = vmatprep.subr.mxu0 0.0
    %2920 = vmatpush1.msra.mxu0 0.0
    %2921 = vmatprep.subr.mxu0 0.0
    %2922 = vmatpush1.msra.mxu0 0.0
    %2923 = vmatprep.subr.mxu0 0.0
    %2924 = vmatpush1.msra.mxu0 0.0
    %2925 = vmatprep.subr.mxu0 0.0
    %2926 = vmatpush1.msra.mxu0 0.0
    %2927 = vmatprep.subr.mxu0 0.0
    %2928 = vmatpush1.msra.mxu0 0.0
    %2929 = vmatprep.subr.mxu0 0.0
    %2930 = vmatpush1.msra.mxu0 0.0
    %2931 = vmatprep.subr.mxu0 0.0
    %2932 = vmatpush1.msra.mxu0 0.0
    %2933 = vmatprep.subr.mxu0 0.0
    %2934 = vmatpush1.msra.mxu0 0.0
    %2935 = vmatprep.subr.mxu0 0.0
    %2936 = vmatpush1.msra.mxu0 0.0
    %2937 = vmatprep.subr.mxu0 0.0
    %2938 = vmatpush1.msra.mxu0 0.0
    %2939 = vmatprep.subr.mxu0 0.0
    %2940 = vmatpush1.msra.mxu0 0.0
    %2941 = vmatprep.subr.mxu0 0.0
    %2942 = vmatpush1.msra.mxu0 0.0
    %2943 = vmatprep.subr.mxu0 0.0
    %2944 = vmatpush1.msra.mxu0 0.0
    %2945 = vmatprep.subr.mxu0 0.0
    %2946 = vmatpush1.msra.mxu0 0.0
    %2947 = vmatprep.subr.mxu0 0.0
    %2948 = vmatpush1.msra.mxu0 0.0
    %2949 = vmatprep.subr.mxu0 0.0
    %2950 = vmatpush1.msra.mxu0 0.0
    %2951 = vmatprep.subr.mxu0 0.0
    %2952 = vmatpush1.msra.mxu0 0.0
    %2953 = vmatprep.subr.mxu0 0.0
    %2954 = vmatpush1.msra.mxu0 0.0
    %2955 = vmatprep.subr.mxu0 0.0
    %2956 = vmatpush1.msra.mxu0 0.0
    %2957 = vmatprep.subr.mxu0 0.0
    %2958 = vmatpush1.msra.mxu0 0.0
    %2959 = vmatprep.subr.mxu0 0.0
    %2960 = vmatpush1.msra.mxu0 0.0
    %2961 = vmatprep.subr.mxu0 0.0
    %2962 = vmatpush1.msra.mxu0 0.0
    %2963 = vmatprep.mubr.f32.mxu0 0.0
    %2964 = vmatmul.mubr.f32.gmra.mrb[0].mxu0 %v2897
    %v2965 = vpop.f32.mrb[0].mxu0
    %v2966 = vadd.f32 %v2713, %v2965
    %v2967 = vpop.f32.mrb[0].mxu0
    %v2968 = vadd.f32 %v2717, %v2967
    %2969 = vdwg.mxu0
    %v2972 = vcombine.low %v2966, %v2968
    %v2974 = vunpack.c.l.s4 1983009808
    %v2975 = vunpack.c.0.s8 %v2974
    %v2976 = vlaneseq
    %v2977 = vshrl.u32 %v2976, 7
    %v2978 = vsub.s32 %v2975, %v2977
    %v2979 = vrot.slane %v2972, %v2978
    %s2981 = scalar_lea.vmem [#allocation3], 8
    %2982 = vst [vmem:[%s2981] sm:$0xf] %v2979
    %v2983 = vld [vmem:[%s1793] sm:$0x3]
    %v2985 = vsel %vm2720, %v2983, 0
    %2987 = vmatprep.subr.mxu0 %v156
    %2988 = vmatpush1.msra.mxu0 %v155
    %2989 = vmatprep.subr.mxu0 %v158
    %2990 = vmatpush1.msra.mxu0 %v157
    %2991 = vmatprep.subr.mxu0 %v160
    %2992 = vmatpush1.msra.mxu0 %v159
    %2993 = vmatprep.subr.mxu0 %v162
    %2994 = vmatpush1.msra.mxu0 %v161
    %2995 = vmatprep.subr.mxu0 %v164
    %2996 = vmatpush1.msra.mxu0 %v163
    %2997 = vmatprep.subr.mxu0 %v166
    %2998 = vmatpush1.msra.mxu0 %v165
    %2999 = vmatprep.subr.mxu0 %v168
    %3000 = vmatpush1.msra.mxu0 %v167
    %3001 = vmatprep.subr.mxu0 %v170
    %3002 = vmatpush1.msra.mxu0 %v169
    %3003 = vmatprep.subr.mxu0 0.0
    %3004 = vmatpush1.msra.mxu0 0.0
    %3005 = vmatprep.subr.mxu0 0.0
    %3006 = vmatpush1.msra.mxu0 0.0
    %3007 = vmatprep.subr.mxu0 0.0
    %3008 = vmatpush1.msra.mxu0 0.0
    %3009 = vmatprep.subr.mxu0 0.0
    %3010 = vmatpush1.msra.mxu0 0.0
    %3011 = vmatprep.subr.mxu0 0.0
    %3012 = vmatpush1.msra.mxu0 0.0
    %3013 = vmatprep.subr.mxu0 0.0
    %3014 = vmatpush1.msra.mxu0 0.0
    %3015 = vmatprep.subr.mxu0 0.0
    %3016 = vmatpush1.msra.mxu0 0.0
    %3017 = vmatprep.subr.mxu0 0.0
    %3018 = vmatpush1.msra.mxu0 0.0
    %3019 = vmatprep.subr.mxu0 0.0
    %3020 = vmatpush1.msra.mxu0 0.0
    %3021 = vmatprep.subr.mxu0 0.0
    %3022 = vmatpush1.msra.mxu0 0.0
    %3023 = vmatprep.subr.mxu0 0.0
    %3024 = vmatpush1.msra.mxu0 0.0
    %3025 = vmatprep.subr.mxu0 0.0
    %3026 = vmatpush1.msra.mxu0 0.0
    %3027 = vmatprep.subr.mxu0 0.0
    %3028 = vmatpush1.msra.mxu0 0.0
    %3029 = vmatprep.subr.mxu0 0.0
    %3030 = vmatpush1.msra.mxu0 0.0
    %3031 = vmatprep.subr.mxu0 0.0
    %3032 = vmatpush1.msra.mxu0 0.0
    %3033 = vmatprep.subr.mxu0 0.0
    %3034 = vmatpush1.msra.mxu0 0.0
    %3035 = vmatprep.subr.mxu0 0.0
    %3036 = vmatpush1.msra.mxu0 0.0
    %3037 = vmatprep.subr.mxu0 0.0
    %3038 = vmatpush1.msra.mxu0 0.0
    %3039 = vmatprep.subr.mxu0 0.0
    %3040 = vmatpush1.msra.mxu0 0.0
    %3041 = vmatprep.subr.mxu0 0.0
    %3042 = vmatpush1.msra.mxu0 0.0
    %3043 = vmatprep.subr.mxu0 0.0
    %3044 = vmatpush1.msra.mxu0 0.0
    %3045 = vmatprep.subr.mxu0 0.0
    %3046 = vmatpush1.msra.mxu0 0.0
    %3047 = vmatprep.subr.mxu0 0.0
    %3048 = vmatpush1.msra.mxu0 0.0
    %3049 = vmatprep.subr.mxu0 0.0
    %3050 = vmatpush1.msra.mxu0 0.0
    %3051 = vmatprep.mubr.f32.mxu0 0.0
    %3052 = vmatmul.mubr.f32.gmra.mrb[0].mxu0 %v2985
    %v3053 = vpop.f32.mrb[0].mxu0
    %v3054 = vadd.f32 %v2713, %v3053
    %v3055 = vpop.f32.mrb[0].mxu0
    %v3056 = vadd.f32 %v2717, %v3055
    %3057 = vdwg.mxu0
    %v3060 = vcombine.low %v3054, %v3056
    %v3062 = vunpack.c.l.s4 1983009808
    %v3063 = vunpack.c.0.s8 %v3062
    %v3064 = vlaneseq
    %v3065 = vshrl.u32 %v3064, 7
    %v3066 = vsub.s32 %v3063, %v3065
    %v3067 = vrot.slane %v3060, %v3066
    %s3069 = scalar_lea.vmem [#allocation3], 12
    %3070 = vst [vmem:[%s3069] sm:$0xf] %v3067
    %v3071 = vld [vmem:[%s1806] sm:$0x3]
    %v3073 = vsel %vm2720, %v3071, 0
    %3075 = vmatprep.subr.mxu0 %v156
    %3076 = vmatpush1.msra.mxu0 %v155
    %3077 = vmatprep.subr.mxu0 %v158
    %3078 = vmatpush1.msra.mxu0 %v157
    %3079 = vmatprep.subr.mxu0 %v160
    %3080 = vmatpush1.msra.mxu0 %v159
    %3081 = vmatprep.subr.mxu0 %v162
    %3082 = vmatpush1.msra.mxu0 %v161
    %3083 = vmatprep.subr.mxu0 %v164
    %3084 = vmatpush1.msra.mxu0 %v163
    %3085 = vmatprep.subr.mxu0 %v166
    %3086 = vmatpush1.msra.mxu0 %v165
    %3087 = vmatprep.subr.mxu0 %v168
    %3088 = vmatpush1.msra.mxu0 %v167
    %3089 = vmatprep.subr.mxu0 %v170
    %3090 = vmatpush1.msra.mxu0 %v169
    %3091 = vmatprep.subr.mxu0 0.0
    %3092 = vmatpush1.msra.mxu0 0.0
    %3093 = vmatprep.subr.mxu0 0.0
    %3094 = vmatpush1.msra.mxu0 0.0
    %3095 = vmatprep.subr.mxu0 0.0
    %3096 = vmatpush1.msra.mxu0 0.0
    %3097 = vmatprep.subr.mxu0 0.0
    %3098 = vmatpush1.msra.mxu0 0.0
    %3099 = vmatprep.subr.mxu0 0.0
    %3100 = vmatpush1.msra.mxu0 0.0
    %3101 = vmatprep.subr.mxu0 0.0
    %3102 = vmatpush1.msra.mxu0 0.0
    %3103 = vmatprep.subr.mxu0 0.0
    %3104 = vmatpush1.msra.mxu0 0.0
    %3105 = vmatprep.subr.mxu0 0.0
    %3106 = vmatpush1.msra.mxu0 0.0
    %3107 = vmatprep.subr.mxu0 0.0
    %3108 = vmatpush1.msra.mxu0 0.0
    %3109 = vmatprep.subr.mxu0 0.0
    %3110 = vmatpush1.msra.mxu0 0.0
    %3111 = vmatprep.subr.mxu0 0.0
    %3112 = vmatpush1.msra.mxu0 0.0
    %3113 = vmatprep.subr.mxu0 0.0
    %3114 = vmatpush1.msra.mxu0 0.0
    %3115 = vmatprep.subr.mxu0 0.0
    %3116 = vmatpush1.msra.mxu0 0.0
    %3117 = vmatprep.subr.mxu0 0.0
    %3118 = vmatpush1.msra.mxu0 0.0
    %3119 = vmatprep.subr.mxu0 0.0
    %3120 = vmatpush1.msra.mxu0 0.0
    %3121 = vmatprep.subr.mxu0 0.0
    %3122 = vmatpush1.msra.mxu0 0.0
    %3123 = vmatprep.subr.mxu0 0.0
    %3124 = vmatpush1.msra.mxu0 0.0
    %3125 = vmatprep.subr.mxu0 0.0
    %3126 = vmatpush1.msra.mxu0 0.0
    %3127 = vmatprep.subr.mxu0 0.0
    %3128 = vmatpush1.msra.mxu0 0.0
    %3129 = vmatprep.subr.mxu0 0.0
    %3130 = vmatpush1.msra.mxu0 0.0
    %3131 = vmatprep.subr.mxu0 0.0
    %3132 = vmatpush1.msra.mxu0 0.0
    %3133 = vmatprep.subr.mxu0 0.0
    %3134 = vmatpush1.msra.mxu0 0.0
    %3135 = vmatprep.subr.mxu0 0.0
    %3136 = vmatpush1.msra.mxu0 0.0
    %3137 = vmatprep.subr.mxu0 0.0
    %3138 = vmatpush1.msra.mxu0 0.0
    %3139 = vmatprep.mubr.f32.mxu0 0.0
    %3140 = vmatmul.mubr.f32.gmra.mrb[0].mxu0 %v3073
    %v3141 = vpop.f32.mrb[0].mxu0
    %v3142 = vadd.f32 %v2713, %v3141
    %v3143 = vpop.f32.mrb[0].mxu0
    %v3144 = vadd.f32 %v2717, %v3143
    %3145 = vdwg.mxu0
    %v3148 = vcombine.low %v3142, %v3144
    %v3150 = vunpack.c.l.s4 1983009808
    %v3151 = vunpack.c.0.s8 %v3150
    %v3152 = vlaneseq
    %v3153 = vshrl.u32 %v3152, 7
    %v3154 = vsub.s32 %v3151, %v3153
    %v3155 = vrot.slane %v3148, %v3154
    %s3157 = scalar_lea.vmem [#allocation3], 16
    %3158 = vst [vmem:[%s3157] sm:$0xf] %v3155
    %v3159 = vld [vmem:[%s1579] sm:$0x3]
    %v3161 = vsel %vm2720, %v3159, 0
    %3163 = vmatprep.subr.mxu0 %v156
    %3164 = vmatpush1.msra.mxu0 %v155
    %3165 = vmatprep.subr.mxu0 %v158
    %3166 = vmatpush1.msra.mxu0 %v157
    %3167 = vmatprep.subr.mxu0 %v160
    %3168 = vmatpush1.msra.mxu0 %v159
    %3169 = vmatprep.subr.mxu0 %v162
    %3170 = vmatpush1.msra.mxu0 %v161
    %3171 = vmatprep.subr.mxu0 %v164
    %3172 = vmatpush1.msra.mxu0 %v163
    %3173 = vmatprep.subr.mxu0 %v166
    %3174 = vmatpush1.msra.mxu0 %v165
    %3175 = vmatprep.subr.mxu0 %v168
    %3176 = vmatpush1.msra.mxu0 %v167
    %3177 = vmatprep.subr.mxu0 %v170
    %3178 = vmatpush1.msra.mxu0 %v169
    %3179 = vmatprep.subr.mxu0 0.0
    %3180 = vmatpush1.msra.mxu0 0.0
    %3181 = vmatprep.subr.mxu0 0.0
    %3182 = vmatpush1.msra.mxu0 0.0
    %3183 = vmatprep.subr.mxu0 0.0
    %3184 = vmatpush1.msra.mxu0 0.0
    %3185 = vmatprep.subr.mxu0 0.0
    %3186 = vmatpush1.msra.mxu0 0.0
    %3187 = vmatprep.subr.mxu0 0.0
    %3188 = vmatpush1.msra.mxu0 0.0
    %3189 = vmatprep.subr.mxu0 0.0
    %3190 = vmatpush1.msra.mxu0 0.0
    %3191 = vmatprep.subr.mxu0 0.0
    %3192 = vmatpush1.msra.mxu0 0.0
    %3193 = vmatprep.subr.mxu0 0.0
    %3194 = vmatpush1.msra.mxu0 0.0
    %3195 = vmatprep.subr.mxu0 0.0
    %3196 = vmatpush1.msra.mxu0 0.0
    %3197 = vmatprep.subr.mxu0 0.0
    %3198 = vmatpush1.msra.mxu0 0.0
    %3199 = vmatprep.subr.mxu0 0.0
    %3200 = vmatpush1.msra.mxu0 0.0
    %3201 = vmatprep.subr.mxu0 0.0
    %3202 = vmatpush1.msra.mxu0 0.0
    %3203 = vmatprep.subr.mxu0 0.0
    %3204 = vmatpush1.msra.mxu0 0.0
    %3205 = vmatprep.subr.mxu0 0.0
    %3206 = vmatpush1.msra.mxu0 0.0
    %3207 = vmatprep.subr.mxu0 0.0
    %3208 = vmatpush1.msra.mxu0 0.0
    %3209 = vmatprep.subr.mxu0 0.0
    %3210 = vmatpush1.msra.mxu0 0.0
    %3211 = vmatprep.subr.mxu0 0.0
    %3212 = vmatpush1.msra.mxu0 0.0
    %3213 = vmatprep.subr.mxu0 0.0
    %3214 = vmatpush1.msra.mxu0 0.0
    %3215 = vmatprep.subr.mxu0 0.0
    %3216 = vmatpush1.msra.mxu0 0.0
    %3217 = vmatprep.subr.mxu0 0.0
    %3218 = vmatpush1.msra.mxu0 0.0
    %3219 = vmatprep.subr.mxu0 0.0
    %3220 = vmatpush1.msra.mxu0 0.0
    %3221 = vmatprep.subr.mxu0 0.0
    %3222 = vmatpush1.msra.mxu0 0.0
    %3223 = vmatprep.subr.mxu0 0.0
    %3224 = vmatpush1.msra.mxu0 0.0
    %3225 = vmatprep.subr.mxu0 0.0
    %3226 = vmatpush1.msra.mxu0 0.0
    %3227 = vmatprep.mubr.f32.mxu0 0.0
    %3228 = vmatmul.mubr.f32.gmra.mrb[0].mxu0 %v3161
    %v3229 = vpop.f32.mrb[0].mxu0
    %v3230 = vadd.f32 %v2713, %v3229
    %v3231 = vpop.f32.mrb[0].mxu0
    %v3232 = vadd.f32 %v2717, %v3231
    %3233 = vdwg.mxu0
    %v3236 = vcombine.low %v3230, %v3232
    %v3238 = vunpack.c.l.s4 1983009808
    %v3239 = vunpack.c.0.s8 %v3238
    %v3240 = vlaneseq
    %v3241 = vshrl.u32 %v3240, 7
    %v3242 = vsub.s32 %v3239, %v3241
    %v3243 = vrot.slane %v3236, %v3242
    %s3245 = scalar_lea.vmem [#allocation3], 20
    %3246 = vst [vmem:[%s3245] sm:$0xf] %v3243
    %v3247 = vld [vmem:[%s1352] sm:$0x3]
    %v3249 = vsel %vm2720, %v3247, 0
    %3251 = vmatprep.subr.mxu0 %v156
    %3252 = vmatpush1.msra.mxu0 %v155
    %3253 = vmatprep.subr.mxu0 %v158
    %3254 = vmatpush1.msra.mxu0 %v157
    %3255 = vmatprep.subr.mxu0 %v160
    %3256 = vmatpush1.msra.mxu0 %v159
    %3257 = vmatprep.subr.mxu0 %v162
    %3258 = vmatpush1.msra.mxu0 %v161
    %3259 = vmatprep.subr.mxu0 %v164
    %3260 = vmatpush1.msra.mxu0 %v163
    %3261 = vmatprep.subr.mxu0 %v166
    %3262 = vmatpush1.msra.mxu0 %v165
    %3263 = vmatprep.subr.mxu0 %v168
    %3264 = vmatpush1.msra.mxu0 %v167
    %3265 = vmatprep.subr.mxu0 %v170
    %3266 = vmatpush1.msra.mxu0 %v169
    %3267 = vmatprep.subr.mxu0 0.0
    %3268 = vmatpush1.msra.mxu0 0.0
    %3269 = vmatprep.subr.mxu0 0.0
    %3270 = vmatpush1.msra.mxu0 0.0
    %3271 = vmatprep.subr.mxu0 0.0
    %3272 = vmatpush1.msra.mxu0 0.0
    %3273 = vmatprep.subr.mxu0 0.0
    %3274 = vmatpush1.msra.mxu0 0.0
    %3275 = vmatprep.subr.mxu0 0.0
    %3276 = vmatpush1.msra.mxu0 0.0
    %3277 = vmatprep.subr.mxu0 0.0
    %3278 = vmatpush1.msra.mxu0 0.0
    %3279 = vmatprep.subr.mxu0 0.0
    %3280 = vmatpush1.msra.mxu0 0.0
    %3281 = vmatprep.subr.mxu0 0.0
    %3282 = vmatpush1.msra.mxu0 0.0
    %3283 = vmatprep.subr.mxu0 0.0
    %3284 = vmatpush1.msra.mxu0 0.0
    %3285 = vmatprep.subr.mxu0 0.0
    %3286 = vmatpush1.msra.mxu0 0.0
    %3287 = vmatprep.subr.mxu0 0.0
    %3288 = vmatpush1.msra.mxu0 0.0
    %3289 = vmatprep.subr.mxu0 0.0
    %3290 = vmatpush1.msra.mxu0 0.0
    %3291 = vmatprep.subr.mxu0 0.0
    %3292 = vmatpush1.msra.mxu0 0.0
    %3293 = vmatprep.subr.mxu0 0.0
    %3294 = vmatpush1.msra.mxu0 0.0
    %3295 = vmatprep.subr.mxu0 0.0
    %3296 = vmatpush1.msra.mxu0 0.0
    %3297 = vmatprep.subr.mxu0 0.0
    %3298 = vmatpush1.msra.mxu0 0.0
    %3299 = vmatprep.subr.mxu0 0.0
    %3300 = vmatpush1.msra.mxu0 0.0
    %3301 = vmatprep.subr.mxu0 0.0
    %3302 = vmatpush1.msra.mxu0 0.0
    %3303 = vmatprep.subr.mxu0 0.0
    %3304 = vmatpush1.msra.mxu0 0.0
    %3305 = vmatprep.subr.mxu0 0.0
    %3306 = vmatpush1.msra.mxu0 0.0
    %3307 = vmatprep.subr.mxu0 0.0
    %3308 = vmatpush1.msra.mxu0 0.0
    %3309 = vmatprep.subr.mxu0 0.0
    %3310 = vmatpush1.msra.mxu0 0.0
    %3311 = vmatprep.subr.mxu0 0.0
    %3312 = vmatpush1.msra.mxu0 0.0
    %3313 = vmatprep.subr.mxu0 0.0
    %3314 = vmatpush1.msra.mxu0 0.0
    %3315 = vmatprep.mubr.f32.mxu0 0.0
    %3316 = vmatmul.mubr.f32.gmra.mrb[0].mxu0 %v3249
    %v3317 = vpop.f32.mrb[0].mxu0
    %v3318 = vadd.f32 %v2713, %v3317
    %v3319 = vpop.f32.mrb[0].mxu0
    %v3320 = vadd.f32 %v2717, %v3319
    %3321 = vdwg.mxu0
    %v3324 = vcombine.low %v3318, %v3320
    %v3326 = vunpack.c.l.s4 1983009808
    %v3327 = vunpack.c.0.s8 %v3326
    %v3328 = vlaneseq
    %v3329 = vshrl.u32 %v3328, 7
    %v3330 = vsub.s32 %v3327, %v3329
    %v3331 = vrot.slane %v3324, %v3330
    %s3333 = scalar_lea.vmem [#allocation3], 24
    %3334 = vst [vmem:[%s3333] sm:$0xf] %v3331
    %v3335 = vld [vmem:[%s1124] sm:$0x3]
    %v3337 = vsel %vm2720, %v3335, 0
    %3339 = vmatprep.subr.mxu0 %v156
    %3340 = vmatpush1.msra.mxu0 %v155
    %3341 = vmatprep.subr.mxu0 %v158
    %3342 = vmatpush1.msra.mxu0 %v157
    %3343 = vmatprep.subr.mxu0 %v160
    %3344 = vmatpush1.msra.mxu0 %v159
    %3345 = vmatprep.subr.mxu0 %v162
    %3346 = vmatpush1.msra.mxu0 %v161
    %3347 = vmatprep.subr.mxu0 %v164
    %3348 = vmatpush1.msra.mxu0 %v163
    %3349 = vmatprep.subr.mxu0 %v166
    %3350 = vmatpush1.msra.mxu0 %v165
    %3351 = vmatprep.subr.mxu0 %v168
    %3352 = vmatpush1.msra.mxu0 %v167
    %3353 = vmatprep.subr.mxu0 %v170
    %3354 = vmatpush1.msra.mxu0 %v169
    %3355 = vmatprep.subr.mxu0 0.0
    %3356 = vmatpush1.msra.mxu0 0.0
    %3357 = vmatprep.subr.mxu0 0.0
    %3358 = vmatpush1.msra.mxu0 0.0
    %3359 = vmatprep.subr.mxu0 0.0
    %3360 = vmatpush1.msra.mxu0 0.0
    %3361 = vmatprep.subr.mxu0 0.0
    %3362 = vmatpush1.msra.mxu0 0.0
    %3363 = vmatprep.subr.mxu0 0.0
    %3364 = vmatpush1.msra.mxu0 0.0
    %3365 = vmatprep.subr.mxu0 0.0
    %3366 = vmatpush1.msra.mxu0 0.0
    %3367 = vmatprep.subr.mxu0 0.0
    %3368 = vmatpush1.msra.mxu0 0.0
    %3369 = vmatprep.subr.mxu0 0.0
    %3370 = vmatpush1.msra.mxu0 0.0
    %3371 = vmatprep.subr.mxu0 0.0
    %3372 = vmatpush1.msra.mxu0 0.0
    %3373 = vmatprep.subr.mxu0 0.0
    %3374 = vmatpush1.msra.mxu0 0.0
    %3375 = vmatprep.subr.mxu0 0.0
    %3376 = vmatpush1.msra.mxu0 0.0
    %3377 = vmatprep.subr.mxu0 0.0
    %3378 = vmatpush1.msra.mxu0 0.0
    %3379 = vmatprep.subr.mxu0 0.0
    %3380 = vmatpush1.msra.mxu0 0.0
    %3381 = vmatprep.subr.mxu0 0.0
    %3382 = vmatpush1.msra.mxu0 0.0
    %3383 = vmatprep.subr.mxu0 0.0
    %3384 = vmatpush1.msra.mxu0 0.0
    %3385 = vmatprep.subr.mxu0 0.0
    %3386 = vmatpush1.msra.mxu0 0.0
    %3387 = vmatprep.subr.mxu0 0.0
    %3388 = vmatpush1.msra.mxu0 0.0
    %3389 = vmatprep.subr.mxu0 0.0
    %3390 = vmatpush1.msra.mxu0 0.0
    %3391 = vmatprep.subr.mxu0 0.0
    %3392 = vmatpush1.msra.mxu0 0.0
    %3393 = vmatprep.subr.mxu0 0.0
    %3394 = vmatpush1.msra.mxu0 0.0
    %3395 = vmatprep.subr.mxu0 0.0
    %3396 = vmatpush1.msra.mxu0 0.0
    %3397 = vmatprep.subr.mxu0 0.0
    %3398 = vmatpush1.msra.mxu0 0.0
    %3399 = vmatprep.subr.mxu0 0.0
    %3400 = vmatpush1.msra.mxu0 0.0
    %3401 = vmatprep.subr.mxu0 0.0
    %3402 = vmatpush1.msra.mxu0 0.0
    %3403 = vmatprep.mubr.f32.mxu0 0.0
    %3404 = vmatmul.mubr.f32.gmra.mrb[0].mxu0 %v3337
    %v3405 = vpop.f32.mrb[0].mxu0
    %v3406 = vadd.f32 %v2713, %v3405
    %v3407 = vpop.f32.mrb[0].mxu0
    %v3408 = vadd.f32 %v2717, %v3407
    %3409 = vdwg.mxu0
    %v3412 = vcombine.low %v3406, %v3408
    %v3414 = vunpack.c.l.s4 1983009808
    %v3415 = vunpack.c.0.s8 %v3414
    %v3416 = vlaneseq
    %v3417 = vshrl.u32 %v3416, 7
    %v3418 = vsub.s32 %v3415, %v3417
    %v3419 = vrot.slane %v3412, %v3418
    %s3421 = scalar_lea.vmem [#allocation3], 28
    %3422 = vst [vmem:[%s3421] sm:$0xf] %v3419
    %v3423 = vld [vmem:[#allocation3] sm:$0xf]
    %3424 = vmatprep.subr.mxu0 0.0
    %3425 = vmatpush1.msra.mxu0 %v172
    %3426 = vmatprep.subr.mxu0 0.0
    %3427 = vmatpush1.msra.mxu0 %v173
    %3428 = vmatprep.subr.mxu0 0.0
    %3429 = vmatpush1.msra.mxu0 %v174
    %3430 = vmatprep.subr.mxu0 0.0
    %3431 = vmatpush1.msra.mxu0 %v175
    %3432 = vmatprep.subr.mxu0 0.0
    %3433 = vmatpush1.msra.mxu0 0.0
    %3434 = vmatprep.subr.mxu0 0.0
    %3435 = vmatpush1.msra.mxu0 0.0
    %3436 = vmatprep.subr.mxu0 0.0
    %3437 = vmatpush1.msra.mxu0 0.0
    %3438 = vmatprep.subr.mxu0 0.0
    %3439 = vmatpush1.msra.mxu0 0.0
    %3440 = vmatprep.subr.mxu0 0.0
    %3441 = vmatpush1.msra.mxu0 0.0
    %3442 = vmatprep.subr.mxu0 0.0
    %3443 = vmatpush1.msra.mxu0 0.0
    %3444 = vmatprep.subr.mxu0 0.0
    %3445 = vmatpush1.msra.mxu0 0.0
    %3446 = vmatprep.subr.mxu0 0.0
    %3447 = vmatpush1.msra.mxu0 0.0
    %3448 = vmatprep.subr.mxu0 0.0
    %3449 = vmatpush1.msra.mxu0 0.0
    %3450 = vmatprep.subr.mxu0 0.0
    %3451 = vmatpush1.msra.mxu0 0.0
    %3452 = vmatprep.subr.mxu0 0.0
    %3453 = vmatpush1.msra.mxu0 0.0
    %3454 = vmatprep.subr.mxu0 0.0
    %3455 = vmatpush1.msra.mxu0 0.0
    %3456 = vmatprep.subr.mxu0 0.0
    %3457 = vmatpush1.msra.mxu0 0.0
    %3458 = vmatprep.subr.mxu0 0.0
    %3459 = vmatpush1.msra.mxu0 0.0
    %3460 = vmatprep.subr.mxu0 0.0
    %3461 = vmatpush1.msra.mxu0 0.0
    %3462 = vmatprep.subr.mxu0 0.0
    %3463 = vmatpush1.msra.mxu0 0.0
    %3464 = vmatprep.subr.mxu0 0.0
    %3465 = vmatpush1.msra.mxu0 0.0
    %3466 = vmatprep.subr.mxu0 0.0
    %3467 = vmatpush1.msra.mxu0 0.0
    %3468 = vmatprep.subr.mxu0 0.0
    %3469 = vmatpush1.msra.mxu0 0.0
    %3470 = vmatprep.subr.mxu0 0.0
    %3471 = vmatpush1.msra.mxu0 0.0
    %3472 = vmatprep.subr.mxu0 0.0
    %3473 = vmatpush1.msra.mxu0 0.0
    %3474 = vmatprep.subr.mxu0 0.0
    %3475 = vmatpush1.msra.mxu0 0.0
    %3476 = vmatprep.subr.mxu0 0.0
    %3477 = vmatpush1.msra.mxu0 0.0
    %3478 = vmatprep.subr.mxu0 0.0
    %3479 = vmatpush1.msra.mxu0 0.0
    %3480 = vmatprep.subr.mxu0 0.0
    %3481 = vmatpush1.msra.mxu0 0.0
    %3482 = vmatprep.subr.mxu0 0.0
    %3483 = vmatpush1.msra.mxu0 0.0
    %3484 = vmatprep.subr.mxu0 0.0
    %3485 = vmatpush1.msra.mxu0 0.0
    %3486 = vmatprep.subr.mxu0 0.0
    %3487 = vmatpush1.msra.mxu0 0.0
    %3488 = vmatprep.mubr.f32.mxu0 0.0
    %3489 = vmatmul.mubr.f32.gmra.mrb[0].mxu0 %v904
    %v3490 = vpop.f32.mrb[0].mxu0
    %v3491 = vadd.f32 0.0, %v3490
    %v3492 = vpop.f32.mrb[0].mxu0
    %3493 = vdwg.mxu0
    %v3494 = vadd.f32 %v3423, %v3491
    %v3495 = vld [vmem:[%s3421] sm:$0xf]
    %3496 = vmatprep.subr.mxu0 0.0
    %3497 = vmatpush1.msra.mxu0 %v176
    %3498 = vmatprep.subr.mxu0 0.0
    %3499 = vmatpush1.msra.mxu0 %v177
    %3500 = vmatprep.subr.mxu0 0.0
    %3501 = vmatpush1.msra.mxu0 %v178
    %3502 = vmatprep.subr.mxu0 0.0
    %3503 = vmatpush1.msra.mxu0 %v179
    %3504 = vmatprep.subr.mxu0 0.0
    %3505 = vmatpush1.msra.mxu0 0.0
    %3506 = vmatprep.subr.mxu0 0.0
    %3507 = vmatpush1.msra.mxu0 0.0
    %3508 = vmatprep.subr.mxu0 0.0
    %3509 = vmatpush1.msra.mxu0 0.0
    %3510 = vmatprep.subr.mxu0 0.0
    %3511 = vmatpush1.msra.mxu0 0.0
    %3512 = vmatprep.subr.mxu0 0.0
    %3513 = vmatpush1.msra.mxu0 0.0
    %3514 = vmatprep.subr.mxu0 0.0
    %3515 = vmatpush1.msra.mxu0 0.0
    %3516 = vmatprep.subr.mxu0 0.0
    %3517 = vmatpush1.msra.mxu0 0.0
    %3518 = vmatprep.subr.mxu0 0.0
    %3519 = vmatpush1.msra.mxu0 0.0
    %3520 = vmatprep.subr.mxu0 0.0
    %3521 = vmatpush1.msra.mxu0 0.0
    %3522 = vmatprep.subr.mxu0 0.0
    %3523 = vmatpush1.msra.mxu0 0.0
    %3524 = vmatprep.subr.mxu0 0.0
    %3525 = vmatpush1.msra.mxu0 0.0
    %3526 = vmatprep.subr.mxu0 0.0
    %3527 = vmatpush1.msra.mxu0 0.0
    %3528 = vmatprep.subr.mxu0 0.0
    %3529 = vmatpush1.msra.mxu0 0.0
    %3530 = vmatprep.subr.mxu0 0.0
    %3531 = vmatpush1.msra.mxu0 0.0
    %3532 = vmatprep.subr.mxu0 0.0
    %3533 = vmatpush1.msra.mxu0 0.0
    %3534 = vmatprep.subr.mxu0 0.0
    %3535 = vmatpush1.msra.mxu0 0.0
    %3536 = vmatprep.subr.mxu0 0.0
    %3537 = vmatpush1.msra.mxu0 0.0
    %3538 = vmatprep.subr.mxu0 0.0
    %3539 = vmatpush1.msra.mxu0 0.0
    %3540 = vmatprep.subr.mxu0 0.0
    %3541 = vmatpush1.msra.mxu0 0.0
    %3542 = vmatprep.subr.mxu0 0.0
    %3543 = vmatpush1.msra.mxu0 0.0
    %3544 = vmatprep.subr.mxu0 0.0
    %3545 = vmatpush1.msra.mxu0 0.0
    %3546 = vmatprep.subr.mxu0 0.0
    %3547 = vmatpush1.msra.mxu0 0.0
    %3548 = vmatprep.subr.mxu0 0.0
    %3549 = vmatpush1.msra.mxu0 0.0
    %3550 = vmatprep.subr.mxu0 0.0
    %3551 = vmatpush1.msra.mxu0 0.0
    %3552 = vmatprep.subr.mxu0 0.0
    %3553 = vmatpush1.msra.mxu0 0.0
    %3554 = vmatprep.subr.mxu0 0.0
    %3555 = vmatpush1.msra.mxu0 0.0
    %3556 = vmatprep.subr.mxu0 0.0
    %3557 = vmatpush1.msra.mxu0 0.0
    %3558 = vmatprep.subr.mxu0 0.0
    %3559 = vmatpush1.msra.mxu0 0.0
    %3560 = vmatprep.mubr.f32.mxu0 0.0
    %3561 = vmatmul.mubr.f32.gmra.mrb[0].mxu0 %v904
    %v3562 = vpop.f32.mrb[0].mxu0
    %v3563 = vadd.f32 0.0, %v3562
    %v3564 = vpop.f32.mrb[0].mxu0
    %3565 = vdwg.mxu0
    %v3567 = vrot.slane %v3495, 2
    %v3569 = vadd.f32 %v3567, %v3563
    %v3570 = vxor.u32 %v3494, 2147483648
    %v3571 = vmul.f32 %v3570, 1.442695
    %v3572 = vpow.pop %v3571
    %v3573 = vadd.f32 %v3572, 1.0
    %v3574 = vrcp.pop %v3573
    %v3575 = vmul.f32 1.0, %v3574
    %v3576 = vtanh.pop %v3494
    %v3577 = vmul.f32 %v3575, 0.0
    %3579 = vrot.lane.b32.xlu0 %v3576, 64
    %v3580 = vpop.permute.xlu0 %3579
    %v3582 = vmul.f32 %v3575, %v3580
    %3584 = vrot.lane.b32.xlu0 %v3582, 32
    %v3585 = vpop.permute.xlu0 %3584
    %v3587 = vadd.f32 %v3577, %v3585
    %v3588 = vtanh.pop %v3587
    %3590 = vrot.lane.b32.xlu0 %v3588, 64
    %v3591 = vpop.permute.xlu0 %3590
    %v3593 = vmul.f32 %v3575, %v3591
    %v3594 = vxor.u32 %v3569, 2147483648
    %v3595 = vmul.f32 %v3594, 1.442695
    %v3596 = vpow.pop %v3595
    %v3597 = vadd.f32 %v3596, 1.0
    %v3598 = vrcp.pop %v3597
    %v3599 = vmul.f32 1.0, %v3598
    %v3600 = vtanh.pop %v3569
    %v3601 = vmul.f32 %v3599, 0.0
    %3603 = vrot.lane.b32.xlu0 %v3600, 64
    %v3604 = vpop.permute.xlu0 %3603
    %v3606 = vmul.f32 %v3599, %v3604
    %3608 = vrot.lane.b32.xlu0 %v3606, 32
    %v3609 = vpop.permute.xlu0 %3608
    %v3611 = vadd.f32 %v3601, %v3609
    %v3612 = vtanh.pop %v3611
    %3614 = vrot.lane.b32.xlu0 %v3612, 64
    %v3615 = vpop.permute.xlu0 %3614
    %v3617 = vmul.f32 %v3599, %v3615
    %v3618 = vld [vmem:[%s2893] sm:$0xf]
    %v3621 = vunpack.c.l.s4 1983009808
    %v3622 = vunpack.c.0.s8 %v3621
    %v3623 = vlaneseq
    %v3624 = vshrl.u32 %v3623, 7
    %v3625 = vsub.s32 %v3622, %v3624
    %v3626 = vrot.slane %v3593, %v3625
    %3627 = vrot.lane.b32.xlu0 %v3626, 32
    %v3628 = vpop.permute.xlu0 %3627
    %v3629 = vsel %vm192, %v3628, 0
    %3631 = vmatprep.subr.mxu0 0.0
    %3632 = vmatpush1.msra.mxu0 %v172
    %3633 = vmatprep.subr.mxu0 0.0
    %3634 = vmatpush1.msra.mxu0 %v173
    %3635 = vmatprep.subr.mxu0 0.0
    %3636 = vmatpush1.msra.mxu0 %v174
    %3637 = vmatprep.subr.mxu0 0.0
    %3638 = vmatpush1.msra.mxu0 %v175
    %3639 = vmatprep.subr.mxu0 0.0
    %3640 = vmatpush1.msra.mxu0 0.0
    %3641 = vmatprep.subr.mxu0 0.0
    %3642 = vmatpush1.msra.mxu0 0.0
    %3643 = vmatprep.subr.mxu0 0.0
    %3644 = vmatpush1.msra.mxu0 0.0
    %3645 = vmatprep.subr.mxu0 0.0
    %3646 = vmatpush1.msra.mxu0 0.0
    %3647 = vmatprep.subr.mxu0 0.0
    %3648 = vmatpush1.msra.mxu0 0.0
    %3649 = vmatprep.subr.mxu0 0.0
    %3650 = vmatpush1.msra.mxu0 0.0
    %3651 = vmatprep.subr.mxu0 0.0
    %3652 = vmatpush1.msra.mxu0 0.0
    %3653 = vmatprep.subr.mxu0 0.0
    %3654 = vmatpush1.msra.mxu0 0.0
    %3655 = vmatprep.subr.mxu0 0.0
    %3656 = vmatpush1.msra.mxu0 0.0
    %3657 = vmatprep.subr.mxu0 0.0
    %3658 = vmatpush1.msra.mxu0 0.0
    %3659 = vmatprep.subr.mxu0 0.0
    %3660 = vmatpush1.msra.mxu0 0.0
    %3661 = vmatprep.subr.mxu0 0.0
    %3662 = vmatpush1.msra.mxu0 0.0
    %3663 = vmatprep.subr.mxu0 0.0
    %3664 = vmatpush1.msra.mxu0 0.0
    %3665 = vmatprep.subr.mxu0 0.0
    %3666 = vmatpush1.msra.mxu0 0.0
    %3667 = vmatprep.subr.mxu0 0.0
    %3668 = vmatpush1.msra.mxu0 0.0
    %3669 = vmatprep.subr.mxu0 0.0
    %3670 = vmatpush1.msra.mxu0 0.0
    %3671 = vmatprep.subr.mxu0 0.0
    %3672 = vmatpush1.msra.mxu0 0.0
    %3673 = vmatprep.subr.mxu0 0.0
    %3674 = vmatpush1.msra.mxu0 0.0
    %3675 = vmatprep.subr.mxu0 0.0
    %3676 = vmatpush1.msra.mxu0 0.0
    %3677 = vmatprep.subr.mxu0 0.0
    %3678 = vmatpush1.msra.mxu0 0.0
    %3679 = vmatprep.subr.mxu0 0.0
    %3680 = vmatpush1.msra.mxu0 0.0
    %3681 = vmatprep.subr.mxu0 0.0
    %3682 = vmatpush1.msra.mxu0 0.0
    %3683 = vmatprep.subr.mxu0 0.0
    %3684 = vmatpush1.msra.mxu0 0.0
    %3685 = vmatprep.subr.mxu0 0.0
    %3686 = vmatpush1.msra.mxu0 0.0
    %3687 = vmatprep.subr.mxu0 0.0
    %3688 = vmatpush1.msra.mxu0 0.0
    %3689 = vmatprep.subr.mxu0 0.0
    %3690 = vmatpush1.msra.mxu0 0.0
    %3691 = vmatprep.subr.mxu0 0.0
    %3692 = vmatpush1.msra.mxu0 0.0
    %3693 = vmatprep.subr.mxu0 0.0
    %3694 = vmatpush1.msra.mxu0 0.0
    %3695 = vmatprep.mubr.f32.mxu0 0.0
    %3696 = vmatmul.mubr.f32.gmra.mrb[0].mxu0 %v3629
    %v3697 = vpop.f32.mrb[0].mxu0
    %v3698 = vadd.f32 0.0, %v3697
    %v3699 = vpop.f32.mrb[0].mxu0
    %3700 = vdwg.mxu0
    %v3701 = vadd.f32 %v3618, %v3698
    %v3702 = vld [vmem:[%s3333] sm:$0xf]
    %v3705 = vunpack.c.l.s4 1983009808
    %v3706 = vunpack.c.0.s8 %v3705
    %v3707 = vlaneseq
    %v3708 = vshrl.u32 %v3707, 7
    %v3709 = vsub.s32 %v3706, %v3708
    %v3710 = vrot.slane %v3617, %v3709
    %3711 = vrot.lane.b32.xlu0 %v3710, 32
    %v3712 = vpop.permute.xlu0 %3711
    %v3713 = vsel %vm192, %v3712, 0
    %3715 = vmatprep.subr.mxu0 0.0
    %3716 = vmatpush1.msra.mxu0 %v176
    %3717 = vmatprep.subr.mxu0 0.0
    %3718 = vmatpush1.msra.mxu0 %v177
    %3719 = vmatprep.subr.mxu0 0.0
    %3720 = vmatpush1.msra.mxu0 %v178
    %3721 = vmatprep.subr.mxu0 0.0
    %3722 = vmatpush1.msra.mxu0 %v179
    %3723 = vmatprep.subr.mxu0 0.0
    %3724 = vmatpush1.msra.mxu0 0.0
    %3725 = vmatprep.subr.mxu0 0.0
    %3726 = vmatpush1.msra.mxu0 0.0
    %3727 = vmatprep.subr.mxu0 0.0
    %3728 = vmatpush1.msra.mxu0 0.0
    %3729 = vmatprep.subr.mxu0 0.0
    %3730 = vmatpush1.msra.mxu0 0.0
    %3731 = vmatprep.subr.mxu0 0.0
    %3732 = vmatpush1.msra.mxu0 0.0
    %3733 = vmatprep.subr.mxu0 0.0
    %3734 = vmatpush1.msra.mxu0 0.0
    %3735 = vmatprep.subr.mxu0 0.0
    %3736 = vmatpush1.msra.mxu0 0.0
    %3737 = vmatprep.subr.mxu0 0.0
    %3738 = vmatpush1.msra.mxu0 0.0
    %3739 = vmatprep.subr.mxu0 0.0
    %3740 = vmatpush1.msra.mxu0 0.0
    %3741 = vmatprep.subr.mxu0 0.0
    %3742 = vmatpush1.msra.mxu0 0.0
    %3743 = vmatprep.subr.mxu0 0.0
    %3744 = vmatpush1.msra.mxu0 0.0
    %3745 = vmatprep.subr.mxu0 0.0
    %3746 = vmatpush1.msra.mxu0 0.0
    %3747 = vmatprep.subr.mxu0 0.0
    %3748 = vmatpush1.msra.mxu0 0.0
    %3749 = vmatprep.subr.mxu0 0.0
    %3750 = vmatpush1.msra.mxu0 0.0
    %3751 = vmatprep.subr.mxu0 0.0
    %3752 = vmatpush1.msra.mxu0 0.0
    %3753 = vmatprep.subr.mxu0 0.0
    %3754 = vmatpush1.msra.mxu0 0.0
    %3755 = vmatprep.subr.mxu0 0.0
    %3756 = vmatpush1.msra.mxu0 0.0
    %3757 = vmatprep.subr.mxu0 0.0
    %3758 = vmatpush1.msra.mxu0 0.0
    %3759 = vmatprep.subr.mxu0 0.0
    %3760 = vmatpush1.msra.mxu0 0.0
    %3761 = vmatprep.subr.mxu0 0.0
    %3762 = vmatpush1.msra.mxu0 0.0
    %3763 = vmatprep.subr.mxu0 0.0
    %3764 = vmatpush1.msra.mxu0 0.0
    %3765 = vmatprep.subr.mxu0 0.0
    %3766 = vmatpush1.msra.mxu0 0.0
    %3767 = vmatprep.subr.mxu0 0.0
    %3768 = vmatpush1.msra.mxu0 0.0
    %3769 = vmatprep.subr.mxu0 0.0
    %3770 = vmatpush1.msra.mxu0 0.0
    %3771 = vmatprep.subr.mxu0 0.0
    %3772 = vmatpush1.msra.mxu0 0.0
    %3773 = vmatprep.subr.mxu0 0.0
    %3774 = vmatpush1.msra.mxu0 0.0
    %3775 = vmatprep.subr.mxu0 0.0
    %3776 = vmatpush1.msra.mxu0 0.0
    %3777 = vmatprep.subr.mxu0 0.0
    %3778 = vmatpush1.msra.mxu0 0.0
    %3779 = vmatprep.mubr.f32.mxu0 0.0
    %3780 = vmatmul.mubr.f32.gmra.mrb[0].mxu0 %v3713
    %v3781 = vpop.f32.mrb[0].mxu0
    %v3782 = vadd.f32 0.0, %v3781
    %v3783 = vpop.f32.mrb[0].mxu0
    %3784 = vdwg.mxu0
    %v3786 = vrot.slane %v3702, 2
    %v3788 = vadd.f32 %v3786, %v3782
    %v3789 = vxor.u32 %v3701, 2147483648
    %v3790 = vmul.f32 %v3789, 1.442695
    %v3791 = vpow.pop %v3790
    %v3792 = vadd.f32 %v3791, 1.0
    %v3793 = vrcp.pop %v3792
    %v3794 = vmul.f32 1.0, %v3793
    %v3795 = vtanh.pop %v3701
    %v3796 = vmul.f32 %v3794, %v3587
    %3798 = vrot.lane.b32.xlu0 %v3795, 64
    %v3799 = vpop.permute.xlu0 %3798
    %v3801 = vmul.f32 %v3794, %v3799
    %3803 = vrot.lane.b32.xlu0 %v3801, 32
    %v3804 = vpop.permute.xlu0 %3803
    %v3806 = vadd.f32 %v3796, %v3804
    %v3807 = vtanh.pop %v3806
    %3809 = vrot.lane.b32.xlu0 %v3807, 64
    %v3810 = vpop.permute.xlu0 %3809
    %v3812 = vmul.f32 %v3794, %v3810
    %v3813 = vxor.u32 %v3788, 2147483648
    %v3814 = vmul.f32 %v3813, 1.442695
    %v3815 = vpow.pop %v3814
    %v3816 = vadd.f32 %v3815, 1.0
    %v3817 = vrcp.pop %v3816
    %v3818 = vmul.f32 1.0, %v3817
    %v3819 = vtanh.pop %v3788
    %v3820 = vmul.f32 %v3818, %v3611
    %3822 = vrot.lane.b32.xlu0 %v3819, 64
    %v3823 = vpop.permute.xlu0 %3822
    %v3825 = vmul.f32 %v3818, %v3823
    %3827 = vrot.lane.b32.xlu0 %v3825, 32
    %v3828 = vpop.permute.xlu0 %3827
    %v3830 = vadd.f32 %v3820, %v3828
    %v3831 = vtanh.pop %v3830
    %3833 = vrot.lane.b32.xlu0 %v3831, 64
    %v3834 = vpop.permute.xlu0 %3833
    %v3836 = vmul.f32 %v3818, %v3834
    %v3837 = vld [vmem:[%s2981] sm:$0xf]
    %v3840 = vunpack.c.l.s4 1983009808
    %v3841 = vunpack.c.0.s8 %v3840
    %v3842 = vlaneseq
    %v3843 = vshrl.u32 %v3842, 7
    %v3844 = vsub.s32 %v3841, %v3843
    %v3845 = vrot.slane %v3812, %v3844
    %3846 = vrot.lane.b32.xlu0 %v3845, 32
    %v3847 = vpop.permute.xlu0 %3846
    %v3848 = vsel %vm192, %v3847, 0
    %3850 = vmatprep.subr.mxu0 0.0
    %3851 = vmatpush1.msra.mxu0 %v172
    %3852 = vmatprep.subr.mxu0 0.0
    %3853 = vmatpush1.msra.mxu0 %v173
    %3854 = vmatprep.subr.mxu0 0.0
    %3855 = vmatpush1.msra.mxu0 %v174
    %3856 = vmatprep.subr.mxu0 0.0
    %3857 = vmatpush1.msra.mxu0 %v175
    %3858 = vmatprep.subr.mxu0 0.0
    %3859 = vmatpush1.msra.mxu0 0.0
    %3860 = vmatprep.subr.mxu0 0.0
    %3861 = vmatpush1.msra.mxu0 0.0
    %3862 = vmatprep.subr.mxu0 0.0
    %3863 = vmatpush1.msra.mxu0 0.0
    %3864 = vmatprep.subr.mxu0 0.0
    %3865 = vmatpush1.msra.mxu0 0.0
    %3866 = vmatprep.subr.mxu0 0.0
    %3867 = vmatpush1.msra.mxu0 0.0
    %3868 = vmatprep.subr.mxu0 0.0
    %3869 = vmatpush1.msra.mxu0 0.0
    %3870 = vmatprep.subr.mxu0 0.0
    %3871 = vmatpush1.msra.mxu0 0.0
    %3872 = vmatprep.subr.mxu0 0.0
    %3873 = vmatpush1.msra.mxu0 0.0
    %3874 = vmatprep.subr.mxu0 0.0
    %3875 = vmatpush1.msra.mxu0 0.0
    %3876 = vmatprep.subr.mxu0 0.0
    %3877 = vmatpush1.msra.mxu0 0.0
    %3878 = vmatprep.subr.mxu0 0.0
    %3879 = vmatpush1.msra.mxu0 0.0
    %3880 = vmatprep.subr.mxu0 0.0
    %3881 = vmatpush1.msra.mxu0 0.0
    %3882 = vmatprep.subr.mxu0 0.0
    %3883 = vmatpush1.msra.mxu0 0.0
    %3884 = vmatprep.subr.mxu0 0.0
    %3885 = vmatpush1.msra.mxu0 0.0
    %3886 = vmatprep.subr.mxu0 0.0
    %3887 = vmatpush1.msra.mxu0 0.0
    %3888 = vmatprep.subr.mxu0 0.0
    %3889 = vmatpush1.msra.mxu0 0.0
    %3890 = vmatprep.subr.mxu0 0.0
    %3891 = vmatpush1.msra.mxu0 0.0
    %3892 = vmatprep.subr.mxu0 0.0
    %3893 = vmatpush1.msra.mxu0 0.0
    %3894 = vmatprep.subr.mxu0 0.0
    %3895 = vmatpush1.msra.mxu0 0.0
    %3896 = vmatprep.subr.mxu0 0.0
    %3897 = vmatpush1.msra.mxu0 0.0
    %3898 = vmatprep.subr.mxu0 0.0
    %3899 = vmatpush1.msra.mxu0 0.0
    %3900 = vmatprep.subr.mxu0 0.0
    %3901 = vmatpush1.msra.mxu0 0.0
    %3902 = vmatprep.subr.mxu0 0.0
    %3903 = vmatpush1.msra.mxu0 0.0
    %3904 = vmatprep.subr.mxu0 0.0
    %3905 = vmatpush1.msra.mxu0 0.0
    %3906 = vmatprep.subr.mxu0 0.0
    %3907 = vmatpush1.msra.mxu0 0.0
    %3908 = vmatprep.subr.mxu0 0.0
    %3909 = vmatpush1.msra.mxu0 0.0
    %3910 = vmatprep.subr.mxu0 0.0
    %3911 = vmatpush1.msra.mxu0 0.0
    %3912 = vmatprep.subr.mxu0 0.0
    %3913 = vmatpush1.msra.mxu0 0.0
    %3914 = vmatprep.mubr.f32.mxu0 0.0
    %3915 = vmatmul.mubr.f32.gmra.mrb[0].mxu0 %v3848
    %v3916 = vpop.f32.mrb[0].mxu0
    %v3917 = vadd.f32 0.0, %v3916
    %v3918 = vpop.f32.mrb[0].mxu0
    %3919 = vdwg.mxu0
    %v3920 = vadd.f32 %v3837, %v3917
    %v3921 = vld [vmem:[%s3245] sm:$0xf]
    %v3924 = vunpack.c.l.s4 1983009808
    %v3925 = vunpack.c.0.s8 %v3924
    %v3926 = vlaneseq
    %v3927 = vshrl.u32 %v3926, 7
    %v3928 = vsub.s32 %v3925, %v3927
    %v3929 = vrot.slane %v3836, %v3928
    %3930 = vrot.lane.b32.xlu0 %v3929, 32
    %v3931 = vpop.permute.xlu0 %3930
    %v3932 = vsel %vm192, %v3931, 0
    %3934 = vmatprep.subr.mxu0 0.0
    %3935 = vmatpush1.msra.mxu0 %v176
    %3936 = vmatprep.subr.mxu0 0.0
    %3937 = vmatpush1.msra.mxu0 %v177
    %3938 = vmatprep.subr.mxu0 0.0
    %3939 = vmatpush1.msra.mxu0 %v178
    %3940 = vmatprep.subr.mxu0 0.0
    %3941 = vmatpush1.msra.mxu0 %v179
    %3942 = vmatprep.subr.mxu0 0.0
    %3943 = vmatpush1.msra.mxu0 0.0
    %3944 = vmatprep.subr.mxu0 0.0
    %3945 = vmatpush1.msra.mxu0 0.0
    %3946 = vmatprep.subr.mxu0 0.0
    %3947 = vmatpush1.msra.mxu0 0.0
    %3948 = vmatprep.subr.mxu0 0.0
    %3949 = vmatpush1.msra.mxu0 0.0
    %3950 = vmatprep.subr.mxu0 0.0
    %3951 = vmatpush1.msra.mxu0 0.0
    %3952 = vmatprep.subr.mxu0 0.0
    %3953 = vmatpush1.msra.mxu0 0.0
    %3954 = vmatprep.subr.mxu0 0.0
    %3955 = vmatpush1.msra.mxu0 0.0
    %3956 = vmatprep.subr.mxu0 0.0
    %3957 = vmatpush1.msra.mxu0 0.0
    %3958 = vmatprep.subr.mxu0 0.0
    %3959 = vmatpush1.msra.mxu0 0.0
    %3960 = vmatprep.subr.mxu0 0.0
    %3961 = vmatpush1.msra.mxu0 0.0
    %3962 = vmatprep.subr.mxu0 0.0
    %3963 = vmatpush1.msra.mxu0 0.0
    %3964 = vmatprep.subr.mxu0 0.0
    %3965 = vmatpush1.msra.mxu0 0.0
    %3966 = vmatprep.subr.mxu0 0.0
    %3967 = vmatpush1.msra.mxu0 0.0
    %3968 = vmatprep.subr.mxu0 0.0
    %3969 = vmatpush1.msra.mxu0 0.0
    %3970 = vmatprep.subr.mxu0 0.0
    %3971 = vmatpush1.msra.mxu0 0.0
    %3972 = vmatprep.subr.mxu0 0.0
    %3973 = vmatpush1.msra.mxu0 0.0
    %3974 = vmatprep.subr.mxu0 0.0
    %3975 = vmatpush1.msra.mxu0 0.0
    %3976 = vmatprep.subr.mxu0 0.0
    %3977 = vmatpush1.msra.mxu0 0.0
    %3978 = vmatprep.subr.mxu0 0.0
    %3979 = vmatpush1.msra.mxu0 0.0
    %3980 = vmatprep.subr.mxu0 0.0
    %3981 = vmatpush1.msra.mxu0 0.0
    %3982 = vmatprep.subr.mxu0 0.0
    %3983 = vmatpush1.msra.mxu0 0.0
    %3984 = vmatprep.subr.mxu0 0.0
    %3985 = vmatpush1.msra.mxu0 0.0
    %3986 = vmatprep.subr.mxu0 0.0
    %3987 = vmatpush1.msra.mxu0 0.0
    %3988 = vmatprep.subr.mxu0 0.0
    %3989 = vmatpush1.msra.mxu0 0.0
    %3990 = vmatprep.subr.mxu0 0.0
    %3991 = vmatpush1.msra.mxu0 0.0
    %3992 = vmatprep.subr.mxu0 0.0
    %3993 = vmatpush1.msra.mxu0 0.0
    %3994 = vmatprep.subr.mxu0 0.0
    %3995 = vmatpush1.msra.mxu0 0.0
    %3996 = vmatprep.subr.mxu0 0.0
    %3997 = vmatpush1.msra.mxu0 0.0
    %3998 = vmatprep.mubr.f32.mxu0 0.0
    %3999 = vmatmul.mubr.f32.gmra.mrb[0].mxu0 %v3932
    %v4000 = vpop.f32.mrb[0].mxu0
    %v4001 = vadd.f32 0.0, %v4000
    %v4002 = vpop.f32.mrb[0].mxu0
    %4003 = vdwg.mxu0
    %v4005 = vrot.slane %v3921, 2
    %v4007 = vadd.f32 %v4005, %v4001
    %v4008 = vxor.u32 %v3920, 2147483648
    %v4009 = vmul.f32 %v4008, 1.442695
    %v4010 = vpow.pop %v4009
    %v4011 = vadd.f32 %v4010, 1.0
    %v4012 = vrcp.pop %v4011
    %v4013 = vmul.f32 1.0, %v4012
    %v4014 = vtanh.pop %v3920
    %v4015 = vmul.f32 %v4013, %v3806
    %4017 = vrot.lane.b32.xlu0 %v4014, 64
    %v4018 = vpop.permute.xlu0 %4017
    %v4020 = vmul.f32 %v4013, %v4018
    %4022 = vrot.lane.b32.xlu0 %v4020, 32
    %v4023 = vpop.permute.xlu0 %4022
    %v4025 = vadd.f32 %v4015, %v4023
    %v4026 = vtanh.pop %v4025
    %4028 = vrot.lane.b32.xlu0 %v4026, 64
    %v4029 = vpop.permute.xlu0 %4028
    %v4031 = vmul.f32 %v4013, %v4029
    %v4032 = vxor.u32 %v4007, 2147483648
    %v4033 = vmul.f32 %v4032, 1.442695
    %v4034 = vpow.pop %v4033
    %v4035 = vadd.f32 %v4034, 1.0
    %v4036 = vrcp.pop %v4035
    %v4037 = vmul.f32 1.0, %v4036
    %v4038 = vtanh.pop %v4007
    %v4039 = vmul.f32 %v4037, %v3830
    %4041 = vrot.lane.b32.xlu0 %v4038, 64
    %v4042 = vpop.permute.xlu0 %4041
    %v4044 = vmul.f32 %v4037, %v4042
    %4046 = vrot.lane.b32.xlu0 %v4044, 32
    %v4047 = vpop.permute.xlu0 %4046
    %v4049 = vadd.f32 %v4039, %v4047
    %v4050 = vtanh.pop %v4049
    %4052 = vrot.lane.b32.xlu0 %v4050, 64
    %v4053 = vpop.permute.xlu0 %4052
    %v4055 = vmul.f32 %v4037, %v4053
    %v4056 = vld [vmem:[%s3069] sm:$0xf]
    %v4059 = vunpack.c.l.s4 1983009808
    %v4060 = vunpack.c.0.s8 %v4059
    %v4061 = vlaneseq
    %v4062 = vshrl.u32 %v4061, 7
    %v4063 = vsub.s32 %v4060, %v4062
    %v4064 = vrot.slane %v4031, %v4063
    %4065 = vrot.lane.b32.xlu0 %v4064, 32
    %v4066 = vpop.permute.xlu0 %4065
    %v4067 = vsel %vm192, %v4066, 0
    %4069 = vmatprep.subr.mxu0 0.0
    %4070 = vmatpush1.msra.mxu0 %v172
    %4071 = vmatprep.subr.mxu0 0.0
    %4072 = vmatpush1.msra.mxu0 %v173
    %4073 = vmatprep.subr.mxu0 0.0
    %4074 = vmatpush1.msra.mxu0 %v174
    %4075 = vmatprep.subr.mxu0 0.0
    %4076 = vmatpush1.msra.mxu0 %v175
    %4077 = vmatprep.subr.mxu0 0.0
    %4078 = vmatpush1.msra.mxu0 0.0
    %4079 = vmatprep.subr.mxu0 0.0
    %4080 = vmatpush1.msra.mxu0 0.0
    %4081 = vmatprep.subr.mxu0 0.0
    %4082 = vmatpush1.msra.mxu0 0.0
    %4083 = vmatprep.subr.mxu0 0.0
    %4084 = vmatpush1.msra.mxu0 0.0
    %4085 = vmatprep.subr.mxu0 0.0
    %4086 = vmatpush1.msra.mxu0 0.0
    %4087 = vmatprep.subr.mxu0 0.0
    %4088 = vmatpush1.msra.mxu0 0.0
    %4089 = vmatprep.subr.mxu0 0.0
    %4090 = vmatpush1.msra.mxu0 0.0
    %4091 = vmatprep.subr.mxu0 0.0
    %4092 = vmatpush1.msra.mxu0 0.0
    %4093 = vmatprep.subr.mxu0 0.0
    %4094 = vmatpush1.msra.mxu0 0.0
    %4095 = vmatprep.subr.mxu0 0.0
    %4096 = vmatpush1.msra.mxu0 0.0
    %4097 = vmatprep.subr.mxu0 0.0
    %4098 = vmatpush1.msra.mxu0 0.0
    %4099 = vmatprep.subr.mxu0 0.0
    %4100 = vmatpush1.msra.mxu0 0.0
    %4101 = vmatprep.subr.mxu0 0.0
    %4102 = vmatpush1.msra.mxu0 0.0
    %4103 = vmatprep.subr.mxu0 0.0
    %4104 = vmatpush1.msra.mxu0 0.0
    %4105 = vmatprep.subr.mxu0 0.0
    %4106 = vmatpush1.msra.mxu0 0.0
    %4107 = vmatprep.subr.mxu0 0.0
    %4108 = vmatpush1.msra.mxu0 0.0
    %4109 = vmatprep.subr.mxu0 0.0
    %4110 = vmatpush1.msra.mxu0 0.0
    %4111 = vmatprep.subr.mxu0 0.0
    %4112 = vmatpush1.msra.mxu0 0.0
    %4113 = vmatprep.subr.mxu0 0.0
    %4114 = vmatpush1.msra.mxu0 0.0
    %4115 = vmatprep.subr.mxu0 0.0
    %4116 = vmatpush1.msra.mxu0 0.0
    %4117 = vmatprep.subr.mxu0 0.0
    %4118 = vmatpush1.msra.mxu0 0.0
    %4119 = vmatprep.subr.mxu0 0.0
    %4120 = vmatpush1.msra.mxu0 0.0
    %4121 = vmatprep.subr.mxu0 0.0
    %4122 = vmatpush1.msra.mxu0 0.0
    %4123 = vmatprep.subr.mxu0 0.0
    %4124 = vmatpush1.msra.mxu0 0.0
    %4125 = vmatprep.subr.mxu0 0.0
    %4126 = vmatpush1.msra.mxu0 0.0
    %4127 = vmatprep.subr.mxu0 0.0
    %4128 = vmatpush1.msra.mxu0 0.0
    %4129 = vmatprep.subr.mxu0 0.0
    %4130 = vmatpush1.msra.mxu0 0.0
    %4131 = vmatprep.subr.mxu0 0.0
    %4132 = vmatpush1.msra.mxu0 0.0
    %4133 = vmatprep.mubr.f32.mxu0 0.0
    %4134 = vmatmul.mubr.f32.gmra.mrb[0].mxu0 %v4067
    %v4135 = vpop.f32.mrb[0].mxu0
    %v4136 = vadd.f32 0.0, %v4135
    %v4137 = vpop.f32.mrb[0].mxu0
    %4138 = vdwg.mxu0
    %v4139 = vadd.f32 %v4056, %v4136
    %v4140 = vld [vmem:[%s3157] sm:$0xf]
    %v4143 = vunpack.c.l.s4 1983009808
    %v4144 = vunpack.c.0.s8 %v4143
    %v4145 = vlaneseq
    %v4146 = vshrl.u32 %v4145, 7
    %v4147 = vsub.s32 %v4144, %v4146
    %v4148 = vrot.slane %v4055, %v4147
    %4149 = vrot.lane.b32.xlu0 %v4148, 32
    %v4150 = vpop.permute.xlu0 %4149
    %v4151 = vsel %vm192, %v4150, 0
    %4153 = vmatprep.subr.mxu0 0.0
    %4154 = vmatpush1.msra.mxu0 %v176
    %4155 = vmatprep.subr.mxu0 0.0
    %4156 = vmatpush1.msra.mxu0 %v177
    %4157 = vmatprep.subr.mxu0 0.0
    %4158 = vmatpush1.msra.mxu0 %v178
    %4159 = vmatprep.subr.mxu0 0.0
    %4160 = vmatpush1.msra.mxu0 %v179
    %4161 = vmatprep.subr.mxu0 0.0
    %4162 = vmatpush1.msra.mxu0 0.0
    %4163 = vmatprep.subr.mxu0 0.0
    %4164 = vmatpush1.msra.mxu0 0.0
    %4165 = vmatprep.subr.mxu0 0.0
    %4166 = vmatpush1.msra.mxu0 0.0
    %4167 = vmatprep.subr.mxu0 0.0
    %4168 = vmatpush1.msra.mxu0 0.0
    %4169 = vmatprep.subr.mxu0 0.0
    %4170 = vmatpush1.msra.mxu0 0.0
    %4171 = vmatprep.subr.mxu0 0.0
    %4172 = vmatpush1.msra.mxu0 0.0
    %4173 = vmatprep.subr.mxu0 0.0
    %4174 = vmatpush1.msra.mxu0 0.0
    %4175 = vmatprep.subr.mxu0 0.0
    %4176 = vmatpush1.msra.mxu0 0.0
    %4177 = vmatprep.subr.mxu0 0.0
    %4178 = vmatpush1.msra.mxu0 0.0
    %4179 = vmatprep.subr.mxu0 0.0
    %4180 = vmatpush1.msra.mxu0 0.0
    %4181 = vmatprep.subr.mxu0 0.0
    %4182 = vmatpush1.msra.mxu0 0.0
    %4183 = vmatprep.subr.mxu0 0.0
    %4184 = vmatpush1.msra.mxu0 0.0
    %4185 = vmatprep.subr.mxu0 0.0
    %4186 = vmatpush1.msra.mxu0 0.0
    %4187 = vmatprep.subr.mxu0 0.0
    %4188 = vmatpush1.msra.mxu0 0.0
    %4189 = vmatprep.subr.mxu0 0.0
    %4190 = vmatpush1.msra.mxu0 0.0
    %4191 = vmatprep.subr.mxu0 0.0
    %4192 = vmatpush1.msra.mxu0 0.0
    %4193 = vmatprep.subr.mxu0 0.0
    %4194 = vmatpush1.msra.mxu0 0.0
    %4195 = vmatprep.subr.mxu0 0.0
    %4196 = vmatpush1.msra.mxu0 0.0
    %4197 = vmatprep.subr.mxu0 0.0
    %4198 = vmatpush1.msra.mxu0 0.0
    %4199 = vmatprep.subr.mxu0 0.0
    %4200 = vmatpush1.msra.mxu0 0.0
    %4201 = vmatprep.subr.mxu0 0.0
    %4202 = vmatpush1.msra.mxu0 0.0
    %4203 = vmatprep.subr.mxu0 0.0
    %4204 = vmatpush1.msra.mxu0 0.0
    %4205 = vmatprep.subr.mxu0 0.0
    %4206 = vmatpush1.msra.mxu0 0.0
    %4207 = vmatprep.subr.mxu0 0.0
    %4208 = vmatpush1.msra.mxu0 0.0
    %4209 = vmatprep.subr.mxu0 0.0
    %4210 = vmatpush1.msra.mxu0 0.0
    %4211 = vmatprep.subr.mxu0 0.0
    %4212 = vmatpush1.msra.mxu0 0.0
    %4213 = vmatprep.subr.mxu0 0.0
    %4214 = vmatpush1.msra.mxu0 0.0
    %4215 = vmatprep.subr.mxu0 0.0
    %4216 = vmatpush1.msra.mxu0 0.0
    %4217 = vmatprep.mubr.f32.mxu0 0.0
    %4218 = vmatmul.mubr.f32.gmra.mrb[0].mxu0 %v4151
    %v4219 = vpop.f32.mrb[0].mxu0
    %v4220 = vadd.f32 0.0, %v4219
    %v4221 = vpop.f32.mrb[0].mxu0
    %4222 = vdwg.mxu0
    %v4224 = vrot.slane %v4140, 2
    %v4226 = vadd.f32 %v4224, %v4220
    %v4227 = vxor.u32 %v4139, 2147483648
    %v4228 = vmul.f32 %v4227, 1.442695
    %v4229 = vpow.pop %v4228
    %v4230 = vadd.f32 %v4229, 1.0
    %v4231 = vrcp.pop %v4230
    %v4232 = vmul.f32 1.0, %v4231
    %v4233 = vtanh.pop %v4139
    %v4234 = vmul.f32 %v4232, %v4025
    %4236 = vrot.lane.b32.xlu0 %v4233, 64
    %v4237 = vpop.permute.xlu0 %4236
    %v4239 = vmul.f32 %v4232, %v4237
    %4241 = vrot.lane.b32.xlu0 %v4239, 32
    %v4242 = vpop.permute.xlu0 %4241
    %v4244 = vadd.f32 %v4234, %v4242
    %v4245 = vtanh.pop %v4244
    %4247 = vrot.lane.b32.xlu0 %v4245, 64
    %v4248 = vpop.permute.xlu0 %4247
    %v4250 = vmul.f32 %v4232, %v4248
    %v4251 = vxor.u32 %v4226, 2147483648
    %v4252 = vmul.f32 %v4251, 1.442695
    %v4253 = vpow.pop %v4252
    %v4254 = vadd.f32 %v4253, 1.0
    %v4255 = vrcp.pop %v4254
    %v4256 = vmul.f32 1.0, %v4255
    %v4257 = vtanh.pop %v4226
    %v4258 = vmul.f32 %v4256, %v4049
    %4260 = vrot.lane.b32.xlu0 %v4257, 64
    %v4261 = vpop.permute.xlu0 %4260
    %v4263 = vmul.f32 %v4256, %v4261
    %4265 = vrot.lane.b32.xlu0 %v4263, 32
    %v4266 = vpop.permute.xlu0 %4265
    %v4268 = vadd.f32 %v4258, %v4266
    %v4269 = vtanh.pop %v4268
    %4271 = vrot.lane.b32.xlu0 %v4269, 64
    %v4272 = vpop.permute.xlu0 %4271
    %v4274 = vmul.f32 %v4256, %v4272
    %v4277 = vunpack.c.l.s4 1983009808
    %v4278 = vunpack.c.0.s8 %v4277
    %v4279 = vlaneseq
    %v4280 = vshrl.u32 %v4279, 7
    %v4281 = vsub.s32 %v4278, %v4280
    %v4282 = vrot.slane %v4250, %v4281
    %4283 = vrot.lane.b32.xlu0 %v4282, 32
    %v4284 = vpop.permute.xlu0 %4283
    %v4285 = vsel %vm192, %v4284, 0
    %4287 = vmatprep.subr.mxu0 0.0
    %4288 = vmatpush1.msra.mxu0 %v172
    %4289 = vmatprep.subr.mxu0 0.0
    %4290 = vmatpush1.msra.mxu0 %v173
    %4291 = vmatprep.subr.mxu0 0.0
    %4292 = vmatpush1.msra.mxu0 %v174
    %4293 = vmatprep.subr.mxu0 0.0
    %4294 = vmatpush1.msra.mxu0 %v175
    %4295 = vmatprep.subr.mxu0 0.0
    %4296 = vmatpush1.msra.mxu0 0.0
    %4297 = vmatprep.subr.mxu0 0.0
    %4298 = vmatpush1.msra.mxu0 0.0
    %4299 = vmatprep.subr.mxu0 0.0
    %4300 = vmatpush1.msra.mxu0 0.0
    %4301 = vmatprep.subr.mxu0 0.0
    %4302 = vmatpush1.msra.mxu0 0.0
    %4303 = vmatprep.subr.mxu0 0.0
    %4304 = vmatpush1.msra.mxu0 0.0
    %4305 = vmatprep.subr.mxu0 0.0
    %4306 = vmatpush1.msra.mxu0 0.0
    %4307 = vmatprep.subr.mxu0 0.0
    %4308 = vmatpush1.msra.mxu0 0.0
    %4309 = vmatprep.subr.mxu0 0.0
    %4310 = vmatpush1.msra.mxu0 0.0
    %4311 = vmatprep.subr.mxu0 0.0
    %4312 = vmatpush1.msra.mxu0 0.0
    %4313 = vmatprep.subr.mxu0 0.0
    %4314 = vmatpush1.msra.mxu0 0.0
    %4315 = vmatprep.subr.mxu0 0.0
    %4316 = vmatpush1.msra.mxu0 0.0
    %4317 = vmatprep.subr.mxu0 0.0
    %4318 = vmatpush1.msra.mxu0 0.0
    %4319 = vmatprep.subr.mxu0 0.0
    %4320 = vmatpush1.msra.mxu0 0.0
    %4321 = vmatprep.subr.mxu0 0.0
    %4322 = vmatpush1.msra.mxu0 0.0
    %4323 = vmatprep.subr.mxu0 0.0
    %4324 = vmatpush1.msra.mxu0 0.0
    %4325 = vmatprep.subr.mxu0 0.0
    %4326 = vmatpush1.msra.mxu0 0.0
    %4327 = vmatprep.subr.mxu0 0.0
    %4328 = vmatpush1.msra.mxu0 0.0
    %4329 = vmatprep.subr.mxu0 0.0
    %4330 = vmatpush1.msra.mxu0 0.0
    %4331 = vmatprep.subr.mxu0 0.0
    %4332 = vmatpush1.msra.mxu0 0.0
    %4333 = vmatprep.subr.mxu0 0.0
    %4334 = vmatpush1.msra.mxu0 0.0
    %4335 = vmatprep.subr.mxu0 0.0
    %4336 = vmatpush1.msra.mxu0 0.0
    %4337 = vmatprep.subr.mxu0 0.0
    %4338 = vmatpush1.msra.mxu0 0.0
    %4339 = vmatprep.subr.mxu0 0.0
    %4340 = vmatpush1.msra.mxu0 0.0
    %4341 = vmatprep.subr.mxu0 0.0
    %4342 = vmatpush1.msra.mxu0 0.0
    %4343 = vmatprep.subr.mxu0 0.0
    %4344 = vmatpush1.msra.mxu0 0.0
    %4345 = vmatprep.subr.mxu0 0.0
    %4346 = vmatpush1.msra.mxu0 0.0
    %4347 = vmatprep.subr.mxu0 0.0
    %4348 = vmatpush1.msra.mxu0 0.0
    %4349 = vmatprep.subr.mxu0 0.0
    %4350 = vmatpush1.msra.mxu0 0.0
    %4351 = vmatprep.mubr.f32.mxu0 0.0
    %4352 = vmatmul.mubr.f32.gmra.mrb[0].mxu0 %v4285
    %v4353 = vpop.f32.mrb[0].mxu0
    %v4354 = vadd.f32 0.0, %v4353
    %v4355 = vpop.f32.mrb[0].mxu0
    %4356 = vdwg.mxu0
    %v4357 = vadd.f32 %v4140, %v4354
    %v4360 = vunpack.c.l.s4 1983009808
    %v4361 = vunpack.c.0.s8 %v4360
    %v4362 = vlaneseq
    %v4363 = vshrl.u32 %v4362, 7
    %v4364 = vsub.s32 %v4361, %v4363
    %v4365 = vrot.slane %v4274, %v4364
    %4366 = vrot.lane.b32.xlu0 %v4365, 32
    %v4367 = vpop.permute.xlu0 %4366
    %v4368 = vsel %vm192, %v4367, 0
    %4370 = vmatprep.subr.mxu0 0.0
    %4371 = vmatpush1.msra.mxu0 %v176
    %4372 = vmatprep.subr.mxu0 0.0
    %4373 = vmatpush1.msra.mxu0 %v177
    %4374 = vmatprep.subr.mxu0 0.0
    %4375 = vmatpush1.msra.mxu0 %v178
    %4376 = vmatprep.subr.mxu0 0.0
    %4377 = vmatpush1.msra.mxu0 %v179
    %4378 = vmatprep.subr.mxu0 0.0
    %4379 = vmatpush1.msra.mxu0 0.0
    %4380 = vmatprep.subr.mxu0 0.0
    %4381 = vmatpush1.msra.mxu0 0.0
    %4382 = vmatprep.subr.mxu0 0.0
    %4383 = vmatpush1.msra.mxu0 0.0
    %4384 = vmatprep.subr.mxu0 0.0
    %4385 = vmatpush1.msra.mxu0 0.0
    %4386 = vmatprep.subr.mxu0 0.0
    %4387 = vmatpush1.msra.mxu0 0.0
    %4388 = vmatprep.subr.mxu0 0.0
    %4389 = vmatpush1.msra.mxu0 0.0
    %4390 = vmatprep.subr.mxu0 0.0
    %4391 = vmatpush1.msra.mxu0 0.0
    %4392 = vmatprep.subr.mxu0 0.0
    %4393 = vmatpush1.msra.mxu0 0.0
    %4394 = vmatprep.subr.mxu0 0.0
    %4395 = vmatpush1.msra.mxu0 0.0
    %4396 = vmatprep.subr.mxu0 0.0
    %4397 = vmatpush1.msra.mxu0 0.0
    %4398 = vmatprep.subr.mxu0 0.0
    %4399 = vmatpush1.msra.mxu0 0.0
    %4400 = vmatprep.subr.mxu0 0.0
    %4401 = vmatpush1.msra.mxu0 0.0
    %4402 = vmatprep.subr.mxu0 0.0
    %4403 = vmatpush1.msra.mxu0 0.0
    %4404 = vmatprep.subr.mxu0 0.0
    %4405 = vmatpush1.msra.mxu0 0.0
    %4406 = vmatprep.subr.mxu0 0.0
    %4407 = vmatpush1.msra.mxu0 0.0
    %4408 = vmatprep.subr.mxu0 0.0
    %4409 = vmatpush1.msra.mxu0 0.0
    %4410 = vmatprep.subr.mxu0 0.0
    %4411 = vmatpush1.msra.mxu0 0.0
    %4412 = vmatprep.subr.mxu0 0.0
    %4413 = vmatpush1.msra.mxu0 0.0
    %4414 = vmatprep.subr.mxu0 0.0
    %4415 = vmatpush1.msra.mxu0 0.0
    %4416 = vmatprep.subr.mxu0 0.0
    %4417 = vmatpush1.msra.mxu0 0.0
    %4418 = vmatprep.subr.mxu0 0.0
    %4419 = vmatpush1.msra.mxu0 0.0
    %4420 = vmatprep.subr.mxu0 0.0
    %4421 = vmatpush1.msra.mxu0 0.0
    %4422 = vmatprep.subr.mxu0 0.0
    %4423 = vmatpush1.msra.mxu0 0.0
    %4424 = vmatprep.subr.mxu0 0.0
    %4425 = vmatpush1.msra.mxu0 0.0
    %4426 = vmatprep.subr.mxu0 0.0
    %4427 = vmatpush1.msra.mxu0 0.0
    %4428 = vmatprep.subr.mxu0 0.0
    %4429 = vmatpush1.msra.mxu0 0.0
    %4430 = vmatprep.subr.mxu0 0.0
    %4431 = vmatpush1.msra.mxu0 0.0
    %4432 = vmatprep.subr.mxu0 0.0
    %4433 = vmatpush1.msra.mxu0 0.0
    %4434 = vmatprep.mubr.f32.mxu0 0.0
    %4435 = vmatmul.mubr.f32.gmra.mrb[0].mxu0 %v4368
    %v4436 = vpop.f32.mrb[0].mxu0
    %v4437 = vadd.f32 0.0, %v4436
    %v4438 = vpop.f32.mrb[0].mxu0
    %4439 = vdwg.mxu0
    %v4441 = vrot.slane %v4056, 2
    %v4443 = vadd.f32 %v4441, %v4437
    %v4444 = vxor.u32 %v4357, 2147483648
    %v4445 = vmul.f32 %v4444, 1.442695
    %v4446 = vpow.pop %v4445
    %v4447 = vadd.f32 %v4446, 1.0
    %v4448 = vrcp.pop %v4447
    %v4449 = vmul.f32 1.0, %v4448
    %v4450 = vtanh.pop %v4357
    %v4451 = vmul.f32 %v4449, %v4244
    %4453 = vrot.lane.b32.xlu0 %v4450, 64
    %v4454 = vpop.permute.xlu0 %4453
    %v4456 = vmul.f32 %v4449, %v4454
    %4458 = vrot.lane.b32.xlu0 %v4456, 32
    %v4459 = vpop.permute.xlu0 %4458
    %v4461 = vadd.f32 %v4451, %v4459
    %v4462 = vtanh.pop %v4461
    %4464 = vrot.lane.b32.xlu0 %v4462, 64
    %v4465 = vpop.permute.xlu0 %4464
    %v4467 = vmul.f32 %v4449, %v4465
    %v4468 = vxor.u32 %v4443, 2147483648
    %v4469 = vmul.f32 %v4468, 1.442695
    %v4470 = vpow.pop %v4469
    %v4471 = vadd.f32 %v4470, 1.0
    %v4472 = vrcp.pop %v4471
    %v4473 = vmul.f32 1.0, %v4472
    %v4474 = vtanh.pop %v4443
    %v4475 = vmul.f32 %v4473, %v4268
    %4477 = vrot.lane.b32.xlu0 %v4474, 64
    %v4478 = vpop.permute.xlu0 %4477
    %v4480 = vmul.f32 %v4473, %v4478
    %4482 = vrot.lane.b32.xlu0 %v4480, 32
    %v4483 = vpop.permute.xlu0 %4482
    %v4485 = vadd.f32 %v4475, %v4483
    %v4486 = vtanh.pop %v4485
    %4488 = vrot.lane.b32.xlu0 %v4486, 64
    %v4489 = vpop.permute.xlu0 %4488
    %v4491 = vmul.f32 %v4473, %v4489
    %v4494 = vunpack.c.l.s4 1983009808
    %v4495 = vunpack.c.0.s8 %v4494
    %v4496 = vlaneseq
    %v4497 = vshrl.u32 %v4496, 7
    %v4498 = vsub.s32 %v4495, %v4497
    %v4499 = vrot.slane %v4467, %v4498
    %4500 = vrot.lane.b32.xlu0 %v4499, 32
    %v4501 = vpop.permute.xlu0 %4500
    %v4502 = vsel %vm192, %v4501, 0
    %4504 = vmatprep.subr.mxu0 0.0
    %4505 = vmatpush1.msra.mxu0 %v172
    %4506 = vmatprep.subr.mxu0 0.0
    %4507 = vmatpush1.msra.mxu0 %v173
    %4508 = vmatprep.subr.mxu0 0.0
    %4509 = vmatpush1.msra.mxu0 %v174
    %4510 = vmatprep.subr.mxu0 0.0
    %4511 = vmatpush1.msra.mxu0 %v175
    %4512 = vmatprep.subr.mxu0 0.0
    %4513 = vmatpush1.msra.mxu0 0.0
    %4514 = vmatprep.subr.mxu0 0.0
    %4515 = vmatpush1.msra.mxu0 0.0
    %4516 = vmatprep.subr.mxu0 0.0
    %4517 = vmatpush1.msra.mxu0 0.0
    %4518 = vmatprep.subr.mxu0 0.0
    %4519 = vmatpush1.msra.mxu0 0.0
    %4520 = vmatprep.subr.mxu0 0.0
    %4521 = vmatpush1.msra.mxu0 0.0
    %4522 = vmatprep.subr.mxu0 0.0
    %4523 = vmatpush1.msra.mxu0 0.0
    %4524 = vmatprep.subr.mxu0 0.0
    %4525 = vmatpush1.msra.mxu0 0.0
    %4526 = vmatprep.subr.mxu0 0.0
    %4527 = vmatpush1.msra.mxu0 0.0
    %4528 = vmatprep.subr.mxu0 0.0
    %4529 = vmatpush1.msra.mxu0 0.0
    %4530 = vmatprep.subr.mxu0 0.0
    %4531 = vmatpush1.msra.mxu0 0.0
    %4532 = vmatprep.subr.mxu0 0.0
    %4533 = vmatpush1.msra.mxu0 0.0
    %4534 = vmatprep.subr.mxu0 0.0
    %4535 = vmatpush1.msra.mxu0 0.0
    %4536 = vmatprep.subr.mxu0 0.0
    %4537 = vmatpush1.msra.mxu0 0.0
    %4538 = vmatprep.subr.mxu0 0.0
    %4539 = vmatpush1.msra.mxu0 0.0
    %4540 = vmatprep.subr.mxu0 0.0
    %4541 = vmatpush1.msra.mxu0 0.0
    %4542 = vmatprep.subr.mxu0 0.0
    %4543 = vmatpush1.msra.mxu0 0.0
    %4544 = vmatprep.subr.mxu0 0.0
    %4545 = vmatpush1.msra.mxu0 0.0
    %4546 = vmatprep.subr.mxu0 0.0
    %4547 = vmatpush1.msra.mxu0 0.0
    %4548 = vmatprep.subr.mxu0 0.0
    %4549 = vmatpush1.msra.mxu0 0.0
    %4550 = vmatprep.subr.mxu0 0.0
    %4551 = vmatpush1.msra.mxu0 0.0
    %4552 = vmatprep.subr.mxu0 0.0
    %4553 = vmatpush1.msra.mxu0 0.0
    %4554 = vmatprep.subr.mxu0 0.0
    %4555 = vmatpush1.msra.mxu0 0.0
    %4556 = vmatprep.subr.mxu0 0.0
    %4557 = vmatpush1.msra.mxu0 0.0
    %4558 = vmatprep.subr.mxu0 0.0
    %4559 = vmatpush1.msra.mxu0 0.0
    %4560 = vmatprep.subr.mxu0 0.0
    %4561 = vmatpush1.msra.mxu0 0.0
    %4562 = vmatprep.subr.mxu0 0.0
    %4563 = vmatpush1.msra.mxu0 0.0
    %4564 = vmatprep.subr.mxu0 0.0
    %4565 = vmatpush1.msra.mxu0 0.0
    %4566 = vmatprep.subr.mxu0 0.0
    %4567 = vmatpush1.msra.mxu0 0.0
    %4568 = vmatprep.mubr.f32.mxu0 0.0
    %4569 = vmatmul.mubr.f32.gmra.mrb[0].mxu0 %v4502
    %v4570 = vpop.f32.mrb[0].mxu0
    %v4571 = vadd.f32 0.0, %v4570
    %v4572 = vpop.f32.mrb[0].mxu0
    %4573 = vdwg.mxu0
    %v4574 = vadd.f32 %v3921, %v4571
    %v4577 = vunpack.c.l.s4 1983009808
    %v4578 = vunpack.c.0.s8 %v4577
    %v4579 = vlaneseq
    %v4580 = vshrl.u32 %v4579, 7
    %v4581 = vsub.s32 %v4578, %v4580
    %v4582 = vrot.slane %v4491, %v4581
    %4583 = vrot.lane.b32.xlu0 %v4582, 32
    %v4584 = vpop.permute.xlu0 %4583
    %v4585 = vsel %vm192, %v4584, 0
    %4587 = vmatprep.subr.mxu0 0.0
    %4588 = vmatpush1.msra.mxu0 %v176
    %4589 = vmatprep.subr.mxu0 0.0
    %4590 = vmatpush1.msra.mxu0 %v177
    %4591 = vmatprep.subr.mxu0 0.0
    %4592 = vmatpush1.msra.mxu0 %v178
    %4593 = vmatprep.subr.mxu0 0.0
    %4594 = vmatpush1.msra.mxu0 %v179
    %4595 = vmatprep.subr.mxu0 0.0
    %4596 = vmatpush1.msra.mxu0 0.0
    %4597 = vmatprep.subr.mxu0 0.0
    %4598 = vmatpush1.msra.mxu0 0.0
    %4599 = vmatprep.subr.mxu0 0.0
    %4600 = vmatpush1.msra.mxu0 0.0
    %4601 = vmatprep.subr.mxu0 0.0
    %4602 = vmatpush1.msra.mxu0 0.0
    %4603 = vmatprep.subr.mxu0 0.0
    %4604 = vmatpush1.msra.mxu0 0.0
    %4605 = vmatprep.subr.mxu0 0.0
    %4606 = vmatpush1.msra.mxu0 0.0
    %4607 = vmatprep.subr.mxu0 0.0
    %4608 = vmatpush1.msra.mxu0 0.0
    %4609 = vmatprep.subr.mxu0 0.0
    %4610 = vmatpush1.msra.mxu0 0.0
    %4611 = vmatprep.subr.mxu0 0.0
    %4612 = vmatpush1.msra.mxu0 0.0
    %4613 = vmatprep.subr.mxu0 0.0
    %4614 = vmatpush1.msra.mxu0 0.0
    %4615 = vmatprep.subr.mxu0 0.0
    %4616 = vmatpush1.msra.mxu0 0.0
    %4617 = vmatprep.subr.mxu0 0.0
    %4618 = vmatpush1.msra.mxu0 0.0
    %4619 = vmatprep.subr.mxu0 0.0
    %4620 = vmatpush1.msra.mxu0 0.0
    %4621 = vmatprep.subr.mxu0 0.0
    %4622 = vmatpush1.msra.mxu0 0.0
    %4623 = vmatprep.subr.mxu0 0.0
    %4624 = vmatpush1.msra.mxu0 0.0
    %4625 = vmatprep.subr.mxu0 0.0
    %4626 = vmatpush1.msra.mxu0 0.0
    %4627 = vmatprep.subr.mxu0 0.0
    %4628 = vmatpush1.msra.mxu0 0.0
    %4629 = vmatprep.subr.mxu0 0.0
    %4630 = vmatpush1.msra.mxu0 0.0
    %4631 = vmatprep.subr.mxu0 0.0
    %4632 = vmatpush1.msra.mxu0 0.0
    %4633 = vmatprep.subr.mxu0 0.0
    %4634 = vmatpush1.msra.mxu0 0.0
    %4635 = vmatprep.subr.mxu0 0.0
    %4636 = vmatpush1.msra.mxu0 0.0
    %4637 = vmatprep.subr.mxu0 0.0
    %4638 = vmatpush1.msra.mxu0 0.0
    %4639 = vmatprep.subr.mxu0 0.0
    %4640 = vmatpush1.msra.mxu0 0.0
    %4641 = vmatprep.subr.mxu0 0.0
    %4642 = vmatpush1.msra.mxu0 0.0
    %4643 = vmatprep.subr.mxu0 0.0
    %4644 = vmatpush1.msra.mxu0 0.0
    %4645 = vmatprep.subr.mxu0 0.0
    %4646 = vmatpush1.msra.mxu0 0.0
    %4647 = vmatprep.subr.mxu0 0.0
    %4648 = vmatpush1.msra.mxu0 0.0
    %4649 = vmatprep.subr.mxu0 0.0
    %4650 = vmatpush1.msra.mxu0 0.0
    %4651 = vmatprep.mubr.f32.mxu0 0.0
    %4652 = vmatmul.mubr.f32.gmra.mrb[0].mxu0 %v4585
    %v4653 = vpop.f32.mrb[0].mxu0
    %v4654 = vadd.f32 0.0, %v4653
    %v4655 = vpop.f32.mrb[0].mxu0
    %4656 = vdwg.mxu0
    %v4658 = vrot.slane %v3837, 2
    %v4660 = vadd.f32 %v4658, %v4654
    %v4661 = vxor.u32 %v4574, 2147483648
    %v4662 = vmul.f32 %v4661, 1.442695
    %v4663 = vpow.pop %v4662
    %v4664 = vadd.f32 %v4663, 1.0
    %v4665 = vrcp.pop %v4664
    %v4666 = vmul.f32 1.0, %v4665
    %v4667 = vtanh.pop %v4574
    %v4668 = vmul.f32 %v4666, %v4461
    %4670 = vrot.lane.b32.xlu0 %v4667, 64
    %v4671 = vpop.permute.xlu0 %4670
    %v4673 = vmul.f32 %v4666, %v4671
    %4675 = vrot.lane.b32.xlu0 %v4673, 32
    %v4676 = vpop.permute.xlu0 %4675
    %v4678 = vadd.f32 %v4668, %v4676
    %v4679 = vtanh.pop %v4678
    %4681 = vrot.lane.b32.xlu0 %v4679, 64
    %v4682 = vpop.permute.xlu0 %4681
    %v4684 = vmul.f32 %v4666, %v4682
    %v4685 = vxor.u32 %v4660, 2147483648
    %v4686 = vmul.f32 %v4685, 1.442695
    %v4687 = vpow.pop %v4686
    %v4688 = vadd.f32 %v4687, 1.0
    %v4689 = vrcp.pop %v4688
    %v4690 = vmul.f32 1.0, %v4689
    %v4691 = vtanh.pop %v4660
    %v4692 = vmul.f32 %v4690, %v4485
    %4694 = vrot.lane.b32.xlu0 %v4691, 64
    %v4695 = vpop.permute.xlu0 %4694
    %v4697 = vmul.f32 %v4690, %v4695
    %4699 = vrot.lane.b32.xlu0 %v4697, 32
    %v4700 = vpop.permute.xlu0 %4699
    %v4702 = vadd.f32 %v4692, %v4700
    %v4703 = vtanh.pop %v4702
    %4705 = vrot.lane.b32.xlu0 %v4703, 64
    %v4706 = vpop.permute.xlu0 %4705
    %v4708 = vmul.f32 %v4690, %v4706
    %v4711 = vunpack.c.l.s4 1983009808
    %v4712 = vunpack.c.0.s8 %v4711
    %v4713 = vlaneseq
    %v4714 = vshrl.u32 %v4713, 7
    %v4715 = vsub.s32 %v4712, %v4714
    %v4716 = vrot.slane %v4684, %v4715
    %4717 = vrot.lane.b32.xlu0 %v4716, 32
    %v4718 = vpop.permute.xlu0 %4717
    %v4719 = vsel %vm192, %v4718, 0
    %4721 = vmatprep.subr.mxu0 0.0
    %4722 = vmatpush1.msra.mxu0 %v172
    %4723 = vmatprep.subr.mxu0 0.0
    %4724 = vmatpush1.msra.mxu0 %v173
    %4725 = vmatprep.subr.mxu0 0.0
    %4726 = vmatpush1.msra.mxu0 %v174
    %4727 = vmatprep.subr.mxu0 0.0
    %4728 = vmatpush1.msra.mxu0 %v175
    %4729 = vmatprep.subr.mxu0 0.0
    %4730 = vmatpush1.msra.mxu0 0.0
    %4731 = vmatprep.subr.mxu0 0.0
    %4732 = vmatpush1.msra.mxu0 0.0
    %4733 = vmatprep.subr.mxu0 0.0
    %4734 = vmatpush1.msra.mxu0 0.0
    %4735 = vmatprep.subr.mxu0 0.0
    %4736 = vmatpush1.msra.mxu0 0.0
    %4737 = vmatprep.subr.mxu0 0.0
    %4738 = vmatpush1.msra.mxu0 0.0
    %4739 = vmatprep.subr.mxu0 0.0
    %4740 = vmatpush1.msra.mxu0 0.0
    %4741 = vmatprep.subr.mxu0 0.0
    %4742 = vmatpush1.msra.mxu0 0.0
    %4743 = vmatprep.subr.mxu0 0.0
    %4744 = vmatpush1.msra.mxu0 0.0
    %4745 = vmatprep.subr.mxu0 0.0
    %4746 = vmatpush1.msra.mxu0 0.0
    %4747 = vmatprep.subr.mxu0 0.0
    %4748 = vmatpush1.msra.mxu0 0.0
    %4749 = vmatprep.subr.mxu0 0.0
    %4750 = vmatpush1.msra.mxu0 0.0
    %4751 = vmatprep.subr.mxu0 0.0
    %4752 = vmatpush1.msra.mxu0 0.0
    %4753 = vmatprep.subr.mxu0 0.0
    %4754 = vmatpush1.msra.mxu0 0.0
    %4755 = vmatprep.subr.mxu0 0.0
    %4756 = vmatpush1.msra.mxu0 0.0
    %4757 = vmatprep.subr.mxu0 0.0
    %4758 = vmatpush1.msra.mxu0 0.0
    %4759 = vmatprep.subr.mxu0 0.0
    %4760 = vmatpush1.msra.mxu0 0.0
    %4761 = vmatprep.subr.mxu0 0.0
    %4762 = vmatpush1.msra.mxu0 0.0
    %4763 = vmatprep.subr.mxu0 0.0
    %4764 = vmatpush1.msra.mxu0 0.0
    %4765 = vmatprep.subr.mxu0 0.0
    %4766 = vmatpush1.msra.mxu0 0.0
    %4767 = vmatprep.subr.mxu0 0.0
    %4768 = vmatpush1.msra.mxu0 0.0
    %4769 = vmatprep.subr.mxu0 0.0
    %4770 = vmatpush1.msra.mxu0 0.0
    %4771 = vmatprep.subr.mxu0 0.0
    %4772 = vmatpush1.msra.mxu0 0.0
    %4773 = vmatprep.subr.mxu0 0.0
    %4774 = vmatpush1.msra.mxu0 0.0
    %4775 = vmatprep.subr.mxu0 0.0
    %4776 = vmatpush1.msra.mxu0 0.0
    %4777 = vmatprep.subr.mxu0 0.0
    %4778 = vmatpush1.msra.mxu0 0.0
    %4779 = vmatprep.subr.mxu0 0.0
    %4780 = vmatpush1.msra.mxu0 0.0
    %4781 = vmatprep.subr.mxu0 0.0
    %4782 = vmatpush1.msra.mxu0 0.0
    %4783 = vmatprep.subr.mxu0 0.0
    %4784 = vmatpush1.msra.mxu0 0.0
    %4785 = vmatprep.mubr.f32.mxu0 0.0
    %4786 = vmatmul.mubr.f32.gmra.mrb[0].mxu0 %v4719
    %v4787 = vpop.f32.mrb[0].mxu0
    %v4788 = vadd.f32 0.0, %v4787
    %v4789 = vpop.f32.mrb[0].mxu0
    %4790 = vdwg.mxu0
    %v4791 = vadd.f32 %v3702, %v4788
    %v4794 = vunpack.c.l.s4 1983009808
    %v4795 = vunpack.c.0.s8 %v4794
    %v4796 = vlaneseq
    %v4797 = vshrl.u32 %v4796, 7
    %v4798 = vsub.s32 %v4795, %v4797
    %v4799 = vrot.slane %v4708, %v4798
    %4800 = vrot.lane.b32.xlu0 %v4799, 32
    %v4801 = vpop.permute.xlu0 %4800
    %v4802 = vsel %vm192, %v4801, 0
    %4804 = vmatprep.subr.mxu0 0.0
    %4805 = vmatpush1.msra.mxu0 %v176
    %4806 = vmatprep.subr.mxu0 0.0
    %4807 = vmatpush1.msra.mxu0 %v177
    %4808 = vmatprep.subr.mxu0 0.0
    %4809 = vmatpush1.msra.mxu0 %v178
    %4810 = vmatprep.subr.mxu0 0.0
    %4811 = vmatpush1.msra.mxu0 %v179
    %4812 = vmatprep.subr.mxu0 0.0
    %4813 = vmatpush1.msra.mxu0 0.0
    %4814 = vmatprep.subr.mxu0 0.0
    %4815 = vmatpush1.msra.mxu0 0.0
    %4816 = vmatprep.subr.mxu0 0.0
    %4817 = vmatpush1.msra.mxu0 0.0
    %4818 = vmatprep.subr.mxu0 0.0
    %4819 = vmatpush1.msra.mxu0 0.0
    %4820 = vmatprep.subr.mxu0 0.0
    %4821 = vmatpush1.msra.mxu0 0.0
    %4822 = vmatprep.subr.mxu0 0.0
    %4823 = vmatpush1.msra.mxu0 0.0
    %4824 = vmatprep.subr.mxu0 0.0
    %4825 = vmatpush1.msra.mxu0 0.0
    %4826 = vmatprep.subr.mxu0 0.0
    %4827 = vmatpush1.msra.mxu0 0.0
    %4828 = vmatprep.subr.mxu0 0.0
    %4829 = vmatpush1.msra.mxu0 0.0
    %4830 = vmatprep.subr.mxu0 0.0
    %4831 = vmatpush1.msra.mxu0 0.0
    %4832 = vmatprep.subr.mxu0 0.0
    %4833 = vmatpush1.msra.mxu0 0.0
    %4834 = vmatprep.subr.mxu0 0.0
    %4835 = vmatpush1.msra.mxu0 0.0
    %4836 = vmatprep.subr.mxu0 0.0
    %4837 = vmatpush1.msra.mxu0 0.0
    %4838 = vmatprep.subr.mxu0 0.0
    %4839 = vmatpush1.msra.mxu0 0.0
    %4840 = vmatprep.subr.mxu0 0.0
    %4841 = vmatpush1.msra.mxu0 0.0
    %4842 = vmatprep.subr.mxu0 0.0
    %4843 = vmatpush1.msra.mxu0 0.0
    %4844 = vmatprep.subr.mxu0 0.0
    %4845 = vmatpush1.msra.mxu0 0.0
    %4846 = vmatprep.subr.mxu0 0.0
    %4847 = vmatpush1.msra.mxu0 0.0
    %4848 = vmatprep.subr.mxu0 0.0
    %4849 = vmatpush1.msra.mxu0 0.0
    %4850 = vmatprep.subr.mxu0 0.0
    %4851 = vmatpush1.msra.mxu0 0.0
    %4852 = vmatprep.subr.mxu0 0.0
    %4853 = vmatpush1.msra.mxu0 0.0
    %4854 = vmatprep.subr.mxu0 0.0
    %4855 = vmatpush1.msra.mxu0 0.0
    %4856 = vmatprep.subr.mxu0 0.0
    %4857 = vmatpush1.msra.mxu0 0.0
    %4858 = vmatprep.subr.mxu0 0.0
    %4859 = vmatpush1.msra.mxu0 0.0
    %4860 = vmatprep.subr.mxu0 0.0
    %4861 = vmatpush1.msra.mxu0 0.0
    %4862 = vmatprep.subr.mxu0 0.0
    %4863 = vmatpush1.msra.mxu0 0.0
    %4864 = vmatprep.subr.mxu0 0.0
    %4865 = vmatpush1.msra.mxu0 0.0
    %4866 = vmatprep.subr.mxu0 0.0
    %4867 = vmatpush1.msra.mxu0 0.0
    %4868 = vmatprep.mubr.f32.mxu0 0.0
    %4869 = vmatmul.mubr.f32.gmra.mrb[0].mxu0 %v4802
    %v4870 = vpop.f32.mrb[0].mxu0
    %v4871 = vadd.f32 0.0, %v4870
    %v4872 = vpop.f32.mrb[0].mxu0
    %4873 = vdwg.mxu0
    %v4875 = vrot.slane %v3618, 2
    %v4877 = vadd.f32 %v4875, %v4871
    %v4878 = vxor.u32 %v4791, 2147483648
    %v4879 = vmul.f32 %v4878, 1.442695
    %v4880 = vpow.pop %v4879
    %v4881 = vadd.f32 %v4880, 1.0
    %v4882 = vrcp.pop %v4881
    %v4883 = vmul.f32 1.0, %v4882
    %v4884 = vtanh.pop %v4791
    %v4885 = vmul.f32 %v4883, %v4678
    %4887 = vrot.lane.b32.xlu0 %v4884, 64
    %v4888 = vpop.permute.xlu0 %4887
    %v4890 = vmul.f32 %v4883, %v4888
    %4892 = vrot.lane.b32.xlu0 %v4890, 32
    %v4893 = vpop.permute.xlu0 %4892
    %v4895 = vadd.f32 %v4885, %v4893
    %v4896 = vtanh.pop %v4895
    %4898 = vrot.lane.b32.xlu0 %v4896, 64
    %v4899 = vpop.permute.xlu0 %4898
    %v4901 = vmul.f32 %v4883, %v4899
    %v4902 = vxor.u32 %v4877, 2147483648
    %v4903 = vmul.f32 %v4902, 1.442695
    %v4904 = vpow.pop %v4903
    %v4905 = vadd.f32 %v4904, 1.0
    %v4906 = vrcp.pop %v4905
    %v4907 = vmul.f32 1.0, %v4906
    %v4908 = vtanh.pop %v4877
    %v4909 = vmul.f32 %v4907, %v4702
    %4911 = vrot.lane.b32.xlu0 %v4908, 64
    %v4912 = vpop.permute.xlu0 %4911
    %v4914 = vmul.f32 %v4907, %v4912
    %4916 = vrot.lane.b32.xlu0 %v4914, 32
    %v4917 = vpop.permute.xlu0 %4916
    %v4919 = vadd.f32 %v4909, %v4917
    %v4920 = vtanh.pop %v4919
    %4922 = vrot.lane.b32.xlu0 %v4920, 64
    %v4923 = vpop.permute.xlu0 %4922
    %v4925 = vmul.f32 %v4907, %v4923
    %v4928 = vunpack.c.l.s4 1983009808
    %v4929 = vunpack.c.0.s8 %v4928
    %v4930 = vlaneseq
    %v4931 = vshrl.u32 %v4930, 7
    %v4932 = vsub.s32 %v4929, %v4931
    %v4933 = vrot.slane %v4901, %v4932
    %4934 = vrot.lane.b32.xlu0 %v4933, 32
    %v4935 = vpop.permute.xlu0 %4934
    %v4936 = vsel %vm192, %v4935, 0
    %4938 = vmatprep.subr.mxu0 0.0
    %4939 = vmatpush1.msra.mxu0 %v172
    %4940 = vmatprep.subr.mxu0 0.0
    %4941 = vmatpush1.msra.mxu0 %v173
    %4942 = vmatprep.subr.mxu0 0.0
    %4943 = vmatpush1.msra.mxu0 %v174
    %4944 = vmatprep.subr.mxu0 0.0
    %4945 = vmatpush1.msra.mxu0 %v175
    %4946 = vmatprep.subr.mxu0 0.0
    %4947 = vmatpush1.msra.mxu0 0.0
    %4948 = vmatprep.subr.mxu0 0.0
    %4949 = vmatpush1.msra.mxu0 0.0
    %4950 = vmatprep.subr.mxu0 0.0
    %4951 = vmatpush1.msra.mxu0 0.0
    %4952 = vmatprep.subr.mxu0 0.0
    %4953 = vmatpush1.msra.mxu0 0.0
    %4954 = vmatprep.subr.mxu0 0.0
    %4955 = vmatpush1.msra.mxu0 0.0
    %4956 = vmatprep.subr.mxu0 0.0
    %4957 = vmatpush1.msra.mxu0 0.0
    %4958 = vmatprep.subr.mxu0 0.0
    %4959 = vmatpush1.msra.mxu0 0.0
    %4960 = vmatprep.subr.mxu0 0.0
    %4961 = vmatpush1.msra.mxu0 0.0
    %4962 = vmatprep.subr.mxu0 0.0
    %4963 = vmatpush1.msra.mxu0 0.0
    %4964 = vmatprep.subr.mxu0 0.0
    %4965 = vmatpush1.msra.mxu0 0.0
    %4966 = vmatprep.subr.mxu0 0.0
    %4967 = vmatpush1.msra.mxu0 0.0
    %4968 = vmatprep.subr.mxu0 0.0
    %4969 = vmatpush1.msra.mxu0 0.0
    %4970 = vmatprep.subr.mxu0 0.0
    %4971 = vmatpush1.msra.mxu0 0.0
    %4972 = vmatprep.subr.mxu0 0.0
    %4973 = vmatpush1.msra.mxu0 0.0
    %4974 = vmatprep.subr.mxu0 0.0
    %4975 = vmatpush1.msra.mxu0 0.0
    %4976 = vmatprep.subr.mxu0 0.0
    %4977 = vmatpush1.msra.mxu0 0.0
    %4978 = vmatprep.subr.mxu0 0.0
    %4979 = vmatpush1.msra.mxu0 0.0
    %4980 = vmatprep.subr.mxu0 0.0
    %4981 = vmatpush1.msra.mxu0 0.0
    %4982 = vmatprep.subr.mxu0 0.0
    %4983 = vmatpush1.msra.mxu0 0.0
    %4984 = vmatprep.subr.mxu0 0.0
    %4985 = vmatpush1.msra.mxu0 0.0
    %4986 = vmatprep.subr.mxu0 0.0
    %4987 = vmatpush1.msra.mxu0 0.0
    %4988 = vmatprep.subr.mxu0 0.0
    %4989 = vmatpush1.msra.mxu0 0.0
    %4990 = vmatprep.subr.mxu0 0.0
    %4991 = vmatpush1.msra.mxu0 0.0
    %4992 = vmatprep.subr.mxu0 0.0
    %4993 = vmatpush1.msra.mxu0 0.0
    %4994 = vmatprep.subr.mxu0 0.0
    %4995 = vmatpush1.msra.mxu0 0.0
    %4996 = vmatprep.subr.mxu0 0.0
    %4997 = vmatpush1.msra.mxu0 0.0
    %4998 = vmatprep.subr.mxu0 0.0
    %4999 = vmatpush1.msra.mxu0 0.0
    %5000 = vmatprep.subr.mxu0 0.0
    %5001 = vmatpush1.msra.mxu0 0.0
    %5002 = vmatprep.mubr.f32.mxu0 0.0
    %5003 = vmatmul.mubr.f32.gmra.mrb[0].mxu0 %v4936
    %v5004 = vpop.f32.mrb[0].mxu0
    %v5005 = vadd.f32 0.0, %v5004
    %v5006 = vpop.f32.mrb[0].mxu0
    %5007 = vdwg.mxu0
    %v5008 = vadd.f32 %v3495, %v5005
    %v5011 = vunpack.c.l.s4 1983009808
    %v5012 = vunpack.c.0.s8 %v5011
    %v5013 = vlaneseq
    %v5014 = vshrl.u32 %v5013, 7
    %v5015 = vsub.s32 %v5012, %v5014
    %v5016 = vrot.slane %v4925, %v5015
    %5017 = vrot.lane.b32.xlu0 %v5016, 32
    %v5018 = vpop.permute.xlu0 %5017
    %v5019 = vsel %vm192, %v5018, 0
    %5021 = vmatprep.subr.mxu0 0.0
    %5022 = vmatpush1.msra.mxu0 %v176
    %5023 = vmatprep.subr.mxu0 0.0
    %5024 = vmatpush1.msra.mxu0 %v177
    %5025 = vmatprep.subr.mxu0 0.0
    %5026 = vmatpush1.msra.mxu0 %v178
    %5027 = vmatprep.subr.mxu0 0.0
    %5028 = vmatpush1.msra.mxu0 %v179
    %5029 = vmatprep.subr.mxu0 0.0
    %5030 = vmatpush1.msra.mxu0 0.0
    %5031 = vmatprep.subr.mxu0 0.0
    %5032 = vmatpush1.msra.mxu0 0.0
    %5033 = vmatprep.subr.mxu0 0.0
    %5034 = vmatpush1.msra.mxu0 0.0
    %5035 = vmatprep.subr.mxu0 0.0
    %5036 = vmatpush1.msra.mxu0 0.0
    %5037 = vmatprep.subr.mxu0 0.0
    %5038 = vmatpush1.msra.mxu0 0.0
    %5039 = vmatprep.subr.mxu0 0.0
    %5040 = vmatpush1.msra.mxu0 0.0
    %5041 = vmatprep.subr.mxu0 0.0
    %5042 = vmatpush1.msra.mxu0 0.0
    %5043 = vmatprep.subr.mxu0 0.0
    %5044 = vmatpush1.msra.mxu0 0.0
    %5045 = vmatprep.subr.mxu0 0.0
    %5046 = vmatpush1.msra.mxu0 0.0
    %5047 = vmatprep.subr.mxu0 0.0
    %5048 = vmatpush1.msra.mxu0 0.0
    %5049 = vmatprep.subr.mxu0 0.0
    %5050 = vmatpush1.msra.mxu0 0.0
    %5051 = vmatprep.subr.mxu0 0.0
    %5052 = vmatpush1.msra.mxu0 0.0
    %5053 = vmatprep.subr.mxu0 0.0
    %5054 = vmatpush1.msra.mxu0 0.0
    %5055 = vmatprep.subr.mxu0 0.0
    %5056 = vmatpush1.msra.mxu0 0.0
    %5057 = vmatprep.subr.mxu0 0.0
    %5058 = vmatpush1.msra.mxu0 0.0
    %5059 = vmatprep.subr.mxu0 0.0
    %5060 = vmatpush1.msra.mxu0 0.0
    %5061 = vmatprep.subr.mxu0 0.0
    %5062 = vmatpush1.msra.mxu0 0.0
    %5063 = vmatprep.subr.mxu0 0.0
    %5064 = vmatpush1.msra.mxu0 0.0
    %5065 = vmatprep.subr.mxu0 0.0
    %5066 = vmatpush1.msra.mxu0 0.0
    %5067 = vmatprep.subr.mxu0 0.0
    %5068 = vmatpush1.msra.mxu0 0.0
    %5069 = vmatprep.subr.mxu0 0.0
    %5070 = vmatpush1.msra.mxu0 0.0
    %5071 = vmatprep.subr.mxu0 0.0
    %5072 = vmatpush1.msra.mxu0 0.0
    %5073 = vmatprep.subr.mxu0 0.0
    %5074 = vmatpush1.msra.mxu0 0.0
    %5075 = vmatprep.subr.mxu0 0.0
    %5076 = vmatpush1.msra.mxu0 0.0
    %5077 = vmatprep.subr.mxu0 0.0
    %5078 = vmatpush1.msra.mxu0 0.0
    %5079 = vmatprep.subr.mxu0 0.0
    %5080 = vmatpush1.msra.mxu0 0.0
    %5081 = vmatprep.subr.mxu0 0.0
    %5082 = vmatpush1.msra.mxu0 0.0
    %5083 = vmatprep.subr.mxu0 0.0
    %5084 = vmatpush1.msra.mxu0 0.0
    %5085 = vmatprep.mubr.f32.mxu0 0.0
    %5086 = vmatmul.mubr.f32.gmra.mrb[0].mxu0 %v5019
    %v5087 = vpop.f32.mrb[0].mxu0
    %v5088 = vadd.f32 0.0, %v5087
    %v5089 = vpop.f32.mrb[0].mxu0
    %5090 = vdwg.mxu0
    %v5092 = vrot.slane %v3423, 2
    %v5094 = vadd.f32 %v5092, %v5088
    %v5095 = vxor.u32 %v5008, 2147483648
    %v5096 = vmul.f32 %v5095, 1.442695
    %v5097 = vpow.pop %v5096
    %v5098 = vadd.f32 %v5097, 1.0
    %v5099 = vrcp.pop %v5098
    %v5100 = vmul.f32 1.0, %v5099
    %v5101 = vtanh.pop %v5008
    %v5102 = vmul.f32 %v5100, %v4895
    %5104 = vrot.lane.b32.xlu0 %v5101, 64
    %v5105 = vpop.permute.xlu0 %5104
    %v5107 = vmul.f32 %v5100, %v5105
    %5109 = vrot.lane.b32.xlu0 %v5107, 32
    %v5110 = vpop.permute.xlu0 %5109
    %v5112 = vadd.f32 %v5102, %v5110
    %v5113 = vtanh.pop %v5112
    %5115 = vrot.lane.b32.xlu0 %v5113, 64
    %v5116 = vpop.permute.xlu0 %5115
    %v5118 = vmul.f32 %v5100, %v5116
    %v5119 = vxor.u32 %v5094, 2147483648
    %v5120 = vmul.f32 %v5119, 1.442695
    %v5121 = vpow.pop %v5120
    %v5122 = vadd.f32 %v5121, 1.0
    %v5123 = vrcp.pop %v5122
    %v5124 = vmul.f32 1.0, %v5123
    %v5125 = vtanh.pop %v5094
    %v5126 = vmul.f32 %v5124, %v4919
    %5128 = vrot.lane.b32.xlu0 %v5125, 64
    %v5129 = vpop.permute.xlu0 %5128
    %v5131 = vmul.f32 %v5124, %v5129
    %5133 = vrot.lane.b32.xlu0 %v5131, 32
    %v5134 = vpop.permute.xlu0 %5133
    %v5136 = vadd.f32 %v5126, %v5134
    %v5137 = vtanh.pop %v5136
    %5139 = vrot.lane.b32.xlu0 %v5137, 64
    %v5140 = vpop.permute.xlu0 %5139
    %v5142 = vmul.f32 %v5124, %v5140
    %v5145 = vunpack.c.l.s4 1983009808
    %v5146 = vunpack.c.0.s8 %v5145
    %v5147 = vlaneseq
    %v5148 = vshrl.u32 %v5147, 7
    %v5149 = vsub.s32 %v5146, %v5148
    %v5150 = vrot.slane %v5118, %v5149
    %5151 = vrot.lane.b32.xlu0 %v5150, 32
    %v5152 = vpop.permute.xlu0 %5151
    %v5156 = vunpack.c.l.s4 1983009808
    %v5157 = vunpack.c.0.s8 %v5156
    %v5158 = vlaneseq
    %v5159 = vshrl.u32 %v5158, 7
    %v5160 = vsub.s32 %v5157, %v5159
    %v5161 = vrot.slane %v5142, %v5160
    %5162 = vrot.lane.b32.xlu0 %v5161, 64
    %v5163 = vpop.permute.xlu0 %5162
    %v5167 = vunpack.c.l.s4 1983009808
    %v5168 = vunpack.c.0.s8 %v5167
    %v5169 = vlaneseq
    %v5170 = vshrl.u32 %v5169, 7
    %v5171 = vsub.s32 %v5168, %v5170
    %v5172 = vrot.slane %v5112, %v5171
    %5173 = vrot.lane.b32.xlu0 %v5172, 32
    %v5174 = vpop.permute.xlu0 %5173
    %v5178 = vunpack.c.l.s4 1983009808
    %v5179 = vunpack.c.0.s8 %v5178
    %v5180 = vlaneseq
    %v5181 = vshrl.u32 %v5180, 7
    %v5182 = vsub.s32 %v5179, %v5181
    %v5183 = vrot.slane %v5136, %v5182
    %5184 = vrot.lane.b32.xlu0 %v5183, 64
    %v5185 = vpop.permute.xlu0 %5184
    %v5187 = vsel %vm192, %v5152, %v5163
    %v5188 = vsel %vm2720, %v5187, %v5174
    %vm5189 = vcmask 785408
    %v5190 = vsel %vm5189, %v5188, %v5185
    %v5191 = vld [vmem:[%s9] sm:$0xff]
    %v5192 = vld [vmem:[%s9 + $0x8] sm:$0xff]
    %v5193 = vld [vmem:[%s9 + $0x10] sm:$0xff]
    %v5194 = vld [vmem:[%s9 + $0x18] sm:$0xff]
    %v5195 = vld [vmem:[%s9 + $0x20] sm:$0xff]
    %v5196 = vld [vmem:[%s9 + $0x28] sm:$0xff]
    %v5197 = vld [vmem:[%s9 + $0x30] sm:$0xff]
    %v5198 = vld [vmem:[%s9 + $0x38] sm:$0xff]
    %v5199 = vld [vmem:[%s9 + $0x40] sm:$0xff]
    %v5200 = vld [vmem:[%s9 + $0x48] sm:$0xff]
    %v5201 = vld [vmem:[%s9 + $0x50] sm:$0xff]
    %v5202 = vld [vmem:[%s9 + $0x58] sm:$0xff]
    %v5203 = vld [vmem:[%s9 + $0x60] sm:$0xff]
    %v5204 = vld [vmem:[%s9 + $0x68] sm:$0xff]
    %v5205 = vld [vmem:[%s9 + $0x70] sm:$0xff]
    %v5206 = vld [vmem:[%s9 + $0x78] sm:$0xff]
    %v5207 = vld [vmem:[%s10] sm:$0x1]
    %v5209 = vlaneseq
    %v5210 = vshrl.u32 %v5209, 7
    %v5211 = vsub.s32 0, %v5210
    %v5212 = vrot.slane %v5207, %v5211
    %5214 = vmatprep.subr.mxu0 0.0
    %5215 = vmatpush1.msra.mxu0 %v5191
    %5216 = vmatprep.subr.mxu0 0.0
    %5217 = vmatpush1.msra.mxu0 %v5192
    %5218 = vmatprep.subr.mxu0 0.0
    %5219 = vmatpush1.msra.mxu0 %v5193
    %5220 = vmatprep.subr.mxu0 0.0
    %5221 = vmatpush1.msra.mxu0 %v5194
    %5222 = vmatprep.subr.mxu0 0.0
    %5223 = vmatpush1.msra.mxu0 %v5195
    %5224 = vmatprep.subr.mxu0 0.0
    %5225 = vmatpush1.msra.mxu0 %v5196
    %5226 = vmatprep.subr.mxu0 0.0
    %5227 = vmatpush1.msra.mxu0 %v5197
    %5228 = vmatprep.subr.mxu0 0.0
    %5229 = vmatpush1.msra.mxu0 %v5198
    %5230 = vmatprep.subr.mxu0 0.0
    %5231 = vmatpush1.msra.mxu0 %v5199
    %5232 = vmatprep.subr.mxu0 0.0
    %5233 = vmatpush1.msra.mxu0 %v5200
    %5234 = vmatprep.subr.mxu0 0.0
    %5235 = vmatpush1.msra.mxu0 %v5201
    %5236 = vmatprep.subr.mxu0 0.0
    %5237 = vmatpush1.msra.mxu0 %v5202
    %5238 = vmatprep.subr.mxu0 0.0
    %5239 = vmatpush1.msra.mxu0 %v5203
    %5240 = vmatprep.subr.mxu0 0.0
    %5241 = vmatpush1.msra.mxu0 %v5204
    %5242 = vmatprep.subr.mxu0 0.0
    %5243 = vmatpush1.msra.mxu0 %v5205
    %5244 = vmatprep.subr.mxu0 0.0
    %5245 = vmatpush1.msra.mxu0 %v5206
    %5246 = vmatprep.subr.mxu0 0.0
    %5247 = vmatpush1.msra.mxu0 0.0
    %5248 = vmatprep.subr.mxu0 0.0
    %5249 = vmatpush1.msra.mxu0 0.0
    %5250 = vmatprep.subr.mxu0 0.0
    %5251 = vmatpush1.msra.mxu0 0.0
    %5252 = vmatprep.subr.mxu0 0.0
    %5253 = vmatpush1.msra.mxu0 0.0
    %5254 = vmatprep.subr.mxu0 0.0
    %5255 = vmatpush1.msra.mxu0 0.0
    %5256 = vmatprep.subr.mxu0 0.0
    %5257 = vmatpush1.msra.mxu0 0.0
    %5258 = vmatprep.subr.mxu0 0.0
    %5259 = vmatpush1.msra.mxu0 0.0
    %5260 = vmatprep.subr.mxu0 0.0
    %5261 = vmatpush1.msra.mxu0 0.0
    %5262 = vmatprep.subr.mxu0 0.0
    %5263 = vmatpush1.msra.mxu0 0.0
    %5264 = vmatprep.subr.mxu0 0.0
    %5265 = vmatpush1.msra.mxu0 0.0
    %5266 = vmatprep.subr.mxu0 0.0
    %5267 = vmatpush1.msra.mxu0 0.0
    %5268 = vmatprep.subr.mxu0 0.0
    %5269 = vmatpush1.msra.mxu0 0.0
    %5270 = vmatprep.subr.mxu0 0.0
    %5271 = vmatpush1.msra.mxu0 0.0
    %5272 = vmatprep.subr.mxu0 0.0
    %5273 = vmatpush1.msra.mxu0 0.0
    %5274 = vmatprep.subr.mxu0 0.0
    %5275 = vmatpush1.msra.mxu0 0.0
    %5276 = vmatprep.subr.mxu0 0.0
    %5277 = vmatpush1.msra.mxu0 0.0
    %5278 = vmatprep.mubr.f32.mxu0 0.0
    %5279 = vmatmul.mubr.f32.gmra.mrb[0].mxu0 %v5190
    %v5280 = vpop.f32.mrb[0].mxu0
    %v5281 = vadd.f32 %v5212, %v5280
    %v5282 = vpop.f32.mrb[0].mxu0
    %5283 = vdwg.mxu0
    %v5284 = vmax.f32 %v5281, 0.0
    %v5285 = vld [vmem:[#allocation16] sm:$0xff]
    %v5286 = vld [vmem:[#allocation16 + $0x8] sm:$0xff]
    %v5287 = vld [vmem:[#allocation16 + $0x10] sm:$0xff]
    %v5288 = vld [vmem:[#allocation16 + $0x18] sm:$0xff]
    %v5289 = vld [vmem:[%s12] sm:$0x1]
    %v5291 = vlaneseq
    %v5292 = vshrl.u32 %v5291, 7
    %v5293 = vsub.s32 0, %v5292
    %v5294 = vrot.slane %v5289, %v5293
    %v5297 = vsel %vm192, %v5284, 0
    %5299 = vmatprep.subr.mxu0 0.0
    %5300 = vmatpush1.msra.mxu0 %v5285
    %5301 = vmatprep.subr.mxu0 0.0
    %5302 = vmatpush1.msra.mxu0 %v5286
    %5303 = vmatprep.subr.mxu0 0.0
    %5304 = vmatpush1.msra.mxu0 %v5287
    %5305 = vmatprep.subr.mxu0 0.0
    %5306 = vmatpush1.msra.mxu0 %v5288
    %5307 = vmatprep.subr.mxu0 0.0
    %5308 = vmatpush1.msra.mxu0 0.0
    %5309 = vmatprep.subr.mxu0 0.0
    %5310 = vmatpush1.msra.mxu0 0.0
    %5311 = vmatprep.subr.mxu0 0.0
    %5312 = vmatpush1.msra.mxu0 0.0
    %5313 = vmatprep.subr.mxu0 0.0
    %5314 = vmatpush1.msra.mxu0 0.0
    %5315 = vmatprep.subr.mxu0 0.0
    %5316 = vmatpush1.msra.mxu0 0.0
    %5317 = vmatprep.subr.mxu0 0.0
    %5318 = vmatpush1.msra.mxu0 0.0
    %5319 = vmatprep.subr.mxu0 0.0
    %5320 = vmatpush1.msra.mxu0 0.0
    %5321 = vmatprep.subr.mxu0 0.0
    %5322 = vmatpush1.msra.mxu0 0.0
    %5323 = vmatprep.subr.mxu0 0.0
    %5324 = vmatpush1.msra.mxu0 0.0
    %5325 = vmatprep.subr.mxu0 0.0
    %5326 = vmatpush1.msra.mxu0 0.0
    %5327 = vmatprep.subr.mxu0 0.0
    %5328 = vmatpush1.msra.mxu0 0.0
    %5329 = vmatprep.subr.mxu0 0.0
    %5330 = vmatpush1.msra.mxu0 0.0
    %5331 = vmatprep.subr.mxu0 0.0
    %5332 = vmatpush1.msra.mxu0 0.0
    %5333 = vmatprep.subr.mxu0 0.0
    %5334 = vmatpush1.msra.mxu0 0.0
    %5335 = vmatprep.subr.mxu0 0.0
    %5336 = vmatpush1.msra.mxu0 0.0
    %5337 = vmatprep.subr.mxu0 0.0
    %5338 = vmatpush1.msra.mxu0 0.0
    %5339 = vmatprep.subr.mxu0 0.0
    %5340 = vmatpush1.msra.mxu0 0.0
    %5341 = vmatprep.subr.mxu0 0.0
    %5342 = vmatpush1.msra.mxu0 0.0
    %5343 = vmatprep.subr.mxu0 0.0
    %5344 = vmatpush1.msra.mxu0 0.0
    %5345 = vmatprep.subr.mxu0 0.0
    %5346 = vmatpush1.msra.mxu0 0.0
    %5347 = vmatprep.subr.mxu0 0.0
    %5348 = vmatpush1.msra.mxu0 0.0
    %5349 = vmatprep.subr.mxu0 0.0
    %5350 = vmatpush1.msra.mxu0 0.0
    %5351 = vmatprep.subr.mxu0 0.0
    %5352 = vmatpush1.msra.mxu0 0.0
    %5353 = vmatprep.subr.mxu0 0.0
    %5354 = vmatpush1.msra.mxu0 0.0
    %5355 = vmatprep.subr.mxu0 0.0
    %5356 = vmatpush1.msra.mxu0 0.0
    %5357 = vmatprep.subr.mxu0 0.0
    %5358 = vmatpush1.msra.mxu0 0.0
    %5359 = vmatprep.subr.mxu0 0.0
    %5360 = vmatpush1.msra.mxu0 0.0
    %5361 = vmatprep.subr.mxu0 0.0
    %5362 = vmatpush1.msra.mxu0 0.0
    %5363 = vmatprep.mubr.f32.mxu0 0.0
    %5364 = vmatmul.mubr.f32.gmra.mrb[0].mxu0 %v5297
    %v5365 = vpop.f32.mrb[0].mxu0
    %v5366 = vadd.f32 %v5294, %v5365
    %v5367 = vpop.f32.mrb[0].mxu0
    %5368 = vdwg.mxu0
    %5369 = vst [vmem:[#allocation17] sm:$0x3] %v5366
    // Predicated region
    $region82: #{tpu_custom_call.1} parent=1 // pred_check
      _
    $region83: #{tpu_custom_call.1} parent=1 // pred_check_branch
      %5371 = sbr.rel (0) target = $region85
    $region84: #{tpu_custom_call.1} parent=1 // pred_region
      %s5373 = ssub.s32 32, 32
      %5374 = vsyncadd [#allocation7], %s5373
      %s5376 = sshll.u32 [#allocation17], 4
      %s5377 = int_to_ptr.vmem [resolvable:$true] %s5376
      %5379 = dma.vmem_to_hbm [thread:$0]  %s5377, 32, %s13, [#allocation7]
    $region85: #{tpu_custom_call.1} parent=1 // pred_fallthru
      _
    // Predicated region
    $region86: #{tpu_custom_call.1} parent=1 // pred_check
      _
    $region87: #{tpu_custom_call.1} parent=1 // pred_check_branch
      %5381 = sbr.rel (0) target = $region89
    $region88: #{tpu_custom_call.1} parent=1 // pred_region
      %5382 = dma.done [#allocation7], 32
    $region89: #{tpu_custom_call.1} parent=1 // pred_fallthru
      _
    %5383 = vsyncpa [#allocation6], 1
    %5384 = vsyncpa [#allocation9], 1
    %5385 = vsyncpa [#allocation12], 1
    %5386 = vsyncpa [#allocation15], 1
    %5387 = vsyncpa [#allocation7], 1

</llo_original>
